<compile_context>
chip_gen: v5e
topology: v5e:2x2
jax: 0.10.0
libtpu: 0.0.40
codegen_flags: <defaults>
</compile_context>

<pallas_src>
import functools

import jax
import jax.numpy as jnp
from jax.experimental import pallas as pl
from jax.experimental.pallas import tpu as pltpu

# ----------------------------- configuration ------------------------------
C_STEM = 8
C1 = 16
C3, C4, C5 = 16, 32, 64        # backbone.out_channels (P3, P4, P5)
C_NECK = 32                    # neck.out_channels
HEAD_C = 32
NUM_OUT = 5                    # 4 box regression + 1 objectness (single class)

LANE = 128
ACT_DTYPE = jnp.bfloat16       # MXU / activation-storage dtype


# ------------------------------- helpers -----------------------------------
def _round_up(x, m):
    return ((x + m - 1) // m) * m


def _pick_tiles(m):
    """Choose (tm, m_pad): lane tile is a multiple of 128, and the grid has
    >= 2 steps whenever the problem is big enough (dual-TC friendly)."""
    m128 = _round_up(max(m, 1), LANE)
    if m128 <= 256:
        return m128, m128                      # single block
    tm = min(512, _round_up(m128 // 2, LANE))  # >= 2 grid steps, tm <= 512
    return tm, _round_up(m128, tm)


def _silu(x):
    # numerically stable SiLU; exp + reciprocal run on the (otherwise idle) EUP
    z = jnp.exp(-jnp.abs(x))                                   # in (0, 1]
    sig = jnp.where(x >= 0, 1.0, z) * pl.reciprocal(1.0 + z, approx=True)
    return x * sig


# ------------------------------ Pallas kernels ------------------------------
def _conv_act_kernel(*refs, act, has_res):
    # out(N, tm) = act(W(N, K) @ A(K, tm) + b)  [+ residual]
    if has_res:
        a_ref, w_ref, b_ref, r_ref, o_ref = refs
    else:
        a_ref, w_ref, b_ref, o_ref = refs
        r_ref = None
    acc = jnp.dot(w_ref[...], a_ref[...], preferred_element_type=jnp.float32)
    acc = acc + b_ref[...]
    if act == "silu":
        acc = _silu(acc)
    if r_ref is not None:
        acc = acc + r_ref[...].astype(jnp.float32)
    o_ref[...] = acc.astype(o_ref.dtype)


def _head_branch_kernel(a_ref, w1_ref, b1_ref, w2_ref, b2_ref, o_ref):
    # fused head branch: mid = SiLU(W1 @ A + b1);  out = W2 @ mid + b2
    # (reg and obj 3x3 convs are merged along Cout; W2 is block-diagonal)
    mid = jnp.dot(w1_ref[...], a_ref[...], preferred_element_type=jnp.float32)
    mid = _silu(mid + b1_ref[...])
    out = jnp.dot(w2_ref[...], mid.astype(jnp.bfloat16),
                  preferred_element_type=jnp.float32)
    o_ref[...] = out + b2_ref[...]


# ------------------------------ kernel wrappers -----------------------------
def matmul_act(a, w, b, act="silu", residual=None, out_dtype=ACT_DTYPE):
    """out(N, M) = act(w(N, K) @ a(K, M) + b)  [+ residual], lane-dense in M."""
    K, M = a.shape
    N = w.shape[0]
    tm, m_pad = _pick_tiles(M)
    if m_pad != M:
        a = jnp.pad(a, ((0, 0), (0, m_pad - M)))
        if residual is not None:
            residual = jnp.pad(residual, ((0, 0), (0, m_pad - M)))
    a = a.astype(ACT_DTYPE)
    w = w.astype(ACT_DTYPE)
    b = b.reshape(N, 1).astype(jnp.float32)

    in_specs = [
        pl.BlockSpec((K, tm), lambda i: (0, i)),
        pl.BlockSpec((N, K), lambda i: (0, 0)),
        pl.BlockSpec((N, 1), lambda i: (0, 0)),
    ]
    operands = [a, w, b]
    has_res = residual is not None
    if has_res:
        operands.append(residual.astype(ACT_DTYPE))
        in_specs.append(pl.BlockSpec((N, tm), lambda i: (0, i)))

    out_bytes = N * m_pad * jnp.dtype(out_dtype).itemsize
    cost = pl.CostEstimate(
        flops=2 * N * K * m_pad,
        transcendentals=(N * m_pad) if act == "silu" else 0,
        bytes_accessed=a.size * 2 + w.size * 2 + N * 4 + out_bytes,
    )
    out = pl.pallas_call(
        functools.partial(_conv_act_kernel, act=act, has_res=has_res),
        out_shape=jax.ShapeDtypeStruct((N, m_pad), out_dtype),
        grid_spec=pltpu.PrefetchScalarGridSpec(
            num_scalar_prefetch=0,
            grid=(m_pad // tm,),
            in_specs=in_specs,
            out_specs=pl.BlockSpec((N, tm), lambda i: (0, i)),
        ),
        compiler_params=pltpu.CompilerParams(
            dimension_semantics=("parallel",)),
        cost_estimate=cost,
    )(*operands)
    return out[:, :M]


def head_branch(patches, w1, b1, w2, b2):
    """Fused head branch: out(5, M) = W2 @ SiLU(W1 @ patches + b1) + b2."""
    K, M = patches.shape
    cmid = w1.shape[0]
    nout = w2.shape[0]
    tm, m_pad = _pick_tiles(M)
    if m_pad != M:
        patches = jnp.pad(patches, ((0, 0), (0, m_pad - M)))
    a = patches.astype(ACT_DTYPE)
    w1 = w1.astype(ACT_DTYPE)
    w2 = w2.astype(ACT_DTYPE)
    b1 = b1.reshape(cmid, 1).astype(jnp.float32)
    b2 = b2.reshape(nout, 1).astype(jnp.float32)
    cost = pl.CostEstimate(
        flops=2 * m_pad * (cmid * K + nout * cmid),
        transcendentals=cmid * m_pad,
        bytes_accessed=(a.size * 2 + w1.size * 2 + w2.size * 2
                        + (cmid + nout) * 4 + nout * m_pad * 4),
    )
    out = pl.pallas_call(
        _head_branch_kernel,
        out_shape=jax.ShapeDtypeStruct((nout, m_pad), jnp.float32),
        grid_spec=pltpu.PrefetchScalarGridSpec(
            num_scalar_prefetch=0,
            grid=(m_pad // tm,),
            in_specs=[
                pl.BlockSpec((K, tm), lambda i: (0, i)),
                pl.BlockSpec((cmid, K), lambda i: (0, 0)),
                pl.BlockSpec((cmid, 1), lambda i: (0, 0)),
                pl.BlockSpec((nout, cmid), lambda i: (0, 0)),
                pl.BlockSpec((nout, 1), lambda i: (0, 0)),
            ],
            out_specs=pl.BlockSpec((nout, tm), lambda i: (0, i)),
        ),
        compiler_params=pltpu.CompilerParams(
            dimension_semantics=("parallel",)),
        cost_estimate=cost,
    )(a, w1, b1, w2, b2)
    return out[:, :M]


# ------------------------------ conv glue -----------------------------------
def _pack_w(w):
    # (kh, kw, cin, cout) -> (cout, kh*kw*cin), tap-major / cin-minor
    kh, kw, cin, cout = w.shape
    return jnp.transpose(w, (3, 0, 1, 2)).reshape(cout, kh * kw * cin)


def _im2col_T(x, k, stride):
    """x: (Cin, N, H, W) -> transposed im2col patches (k*k*Cin, N*Ho*Wo)."""
    cin, n, h, w = x.shape
    pad = k // 2
    ho = (h + 2 * pad - k) // stride + 1
    wo = (w + 2 * pad - k) // stride + 1
    if k == 1 and stride == 1:
        return x.reshape(cin, n * h * w), (n, ho, wo)
    xp = jnp.pad(x, ((0, 0), (0, 0), (pad, pad), (pad, pad))) if pad else x
    taps = []
    for i in range(k):
        for j in range(k):
            taps.append(xp[:, :, i:i + stride * ho:stride,
                           j:j + stride * wo:stride])
    patches = jnp.stack(taps, axis=0).reshape(k * k * cin, n * ho * wo)
    return patches, (n, ho, wo)


def conv2d(x, p, stride=1, act="silu", residual=None):
    """Conv + bias + SiLU on channels-first (C, N, H, W) activations."""
    w, b = p["w"], p["b"]
    k, _, _, cout = w.shape
    patches, (n, ho, wo) = _im2col_T(x, k, stride)
    res = None
    if residual is not None:
        res = residual.reshape(residual.shape[0], -1)
    out = matmul_act(patches, _pack_w(w), b, act=act, residual=res)
    return out.reshape(cout, n, ho, wo)


def upsample2x(x):
    # nearest-neighbour 2x upsample (glue); channels-first layout
    return jnp.repeat(jnp.repeat(x, 2, axis=2), 2, axis=3)


def _res_block(x, pa, pb):
    h = conv2d(x, pa)                    # 1x1 + SiLU
    return conv2d(h, pb, residual=x)     # 3x3 + SiLU, residual add fused


# ------------------------------- parameters --------------------------------
def init_params(key):
    keys = iter(jax.random.split(key, 64))

    def conv(cin, cout, k):
        fan_in = k * k * cin
        w = jax.random.normal(next(keys), (k, k, cin, cout), jnp.float32) * \
            jnp.sqrt(2.0 / fan_in)
        return {"w": w, "b": jnp.zeros((cout,), jnp.float32)}

    p = {}
    # backbone
    p["stem"] = conv(3, C_STEM, 3)
    p["down1"] = conv(C_STEM, C1, 3)
    p["b1_a"], p["b1_b"] = conv(C1, C1, 1), conv(C1, C1, 3)
    p["down2"] = conv(C1, C3, 3)
    p["b2_a"], p["b2_b"] = conv(C3, C3, 1), conv(C3, C3, 3)
    p["down3"] = conv(C3, C4, 3)
    p["b3_a"], p["b3_b"] = conv(C4, C4, 1), conv(C4, C4, 3)
    p["down4"] = conv(C4, C5, 3)
    p["b4_a"], p["b4_b"] = conv(C5, C5, 1), conv(C5, C5, 3)
    # neck (PAFPN)
    p["lat3"] = conv(C3, C_NECK, 1)
    p["lat4"] = conv(C4, C_NECK, 1)
    p["lat5"] = conv(C5, C_NECK, 1)
    p["td4"] = conv(2 * C_NECK, C_NECK, 3)
    p["td3"] = conv(2 * C_NECK, C_NECK, 3)
    p["bu3_down"] = conv(C_NECK, C_NECK, 3)
    p["bu4_fuse"] = conv(2 * C_NECK, C_NECK, 3)
    p["bu4_down"] = conv(C_NECK, C_NECK, 3)
    p["bu5_fuse"] = conv(2 * C_NECK, C_NECK, 3)
    # head (per level) -- reg/obj branches merged for the fused head kernel
    for lvl in (3, 4, 5):
        p[f"h{lvl}_stem"] = conv(C_NECK, HEAD_C, 3)
        reg, obj = conv(HEAD_C, HEAD_C, 3), conv(HEAD_C, HEAD_C, 3)
        reg_out, obj_out = conv(HEAD_C, 4, 1), conv(HEAD_C, 1, 1)
        p[f"h{lvl}_mid"] = {
            "w": jnp.concatenate([reg["w"], obj["w"]], axis=3),
            "b": jnp.concatenate([reg["b"], obj["b"]]),
        }
        # block-diagonal merged 1x1 output conv: rows 0-3 = box reg, row 4 = obj
        w_out = jnp.zeros((NUM_OUT, 2 * HEAD_C), jnp.float32)
        w_out = w_out.at[:4, :HEAD_C].set(reg_out["w"].reshape(HEAD_C, 4).T)
        w_out = w_out.at[4:, HEAD_C:].set(obj_out["w"].reshape(HEAD_C, 1).T)
        p[f"h{lvl}_out"] = {
            "w": w_out,
            "b": jnp.concatenate([reg_out["b"], obj_out["b"]]),
        }
    return p


# ------------------------------ model forward ------------------------------
def yolo_one_forward(x_nchw, p):
    x = jnp.transpose(x_nchw, (1, 0, 2, 3))    # NCHW -> channels-first (C,N,H,W)

    # ---- backbone ----
    x = conv2d(x, p["stem"], stride=2)
    x = conv2d(x, p["down1"], stride=2)
    x = _res_block(x, p["b1_a"], p["b1_b"])
    x = conv2d(x, p["down2"], stride=2)
    p3 = _res_block(x, p["b2_a"], p["b2_b"])               # stride 8
    x = conv2d(p3, p["down3"], stride=2)
    p4 = _res_block(x, p["b3_a"], p["b3_b"])               # stride 16
    x = conv2d(p4, p["down4"], stride=2)
    p5 = _res_block(x, p["b4_a"], p["b4_b"])               # stride 32

    # ---- PAFPN neck ----
    l3 = conv2d(p3, p["lat3"])
    l4 = conv2d(p4, p["lat4"])
    l5 = conv2d(p5, p["lat5"])
    m4 = conv2d(jnp.concatenate([upsample2x(l5), l4], axis=0), p["td4"])
    n3 = conv2d(jnp.concatenate([upsample2x(m4), l3], axis=0), p["td3"])
    d3 = conv2d(n3, p["bu3_down"], stride=2)
    n4 = conv2d(jnp.concatenate([d3, m4], axis=0), p["bu4_fuse"])
    d4 = conv2d(n4, p["bu4_down"], stride=2)
    n5 = conv2d(jnp.concatenate([d4, l5], axis=0), p["bu5_fuse"])

    # ---- detection head (anchor-free, single class) ----
    outs = []
    for lvl, feat in zip((3, 4, 5), (n3, n4, n5)):
        s = conv2d(feat, p[f"h{lvl}_stem"])
        patches, (n, ho, wo) = _im2col_T(s, 3, 1)
        y = head_branch(patches,
                        _pack_w(p[f"h{lvl}_mid"]["w"]), p[f"h{lvl}_mid"]["b"],
                        p[f"h{lvl}_out"]["w"], p[f"h{lvl}_out"]["b"])
        y = y.reshape(NUM_OUT, n, ho, wo)                   # channels-first
        outs.append(jnp.transpose(y, (1, 0, 2, 3)))         # -> NCHW
    return outs


# ---------------------------------- main -----------------------------------
if __name__ == "__main__":
    key = jax.random.PRNGKey(0)
    pkey, xkey = jax.random.split(key)
    params = init_params(pkey)
    x = jax.random.normal(xkey, (2, 3, 64, 64), jnp.float32)   # NCHW image

    fwd = jax.jit(lambda inp: yolo_one_forward(inp, params))
    outs = fwd(x)
    outs = jax.block_until_ready(outs)

    expected = [(2, NUM_OUT, 8, 8), (2, NUM_OUT, 4, 4), (2, NUM_OUT, 2, 2)]
    assert [o.shape for o in outs] == expected, [o.shape for o in outs]
    assert all(bool(jnp.isfinite(o).all()) for o in outs)
    print("KERNEL_OK")
</pallas_src>

<mosaic_0001>
module attributes {stable_mosaic.version = 11 : i64} {
  func.func @_conv_act_kernel(%arg0: i32, %arg1: memref<27x512xbf16, #tpu.memory_space<vmem>>, %arg2: memref<8x27xbf16, #tpu.memory_space<vmem>>, %arg3: memref<8x1xf32, #tpu.memory_space<vmem>>, %arg4: memref<8x512xbf16, #tpu.memory_space<vmem>>) attributes {dimension_semantics = [#tpu.dimension_semantics<parallel>], iteration_bounds = array<i64: 4>, scalar_prefetch = 0 : i64, scratch_operands = 0 : i64, tpu.core_type = #tpu.core_type<tc>, window_params = [{transform_indices = @transform_0, window_bounds = array<i64: 27, 512>}, {pipeline_mode = #tpu.pipeline_mode<synchronous>, transform_indices = @transform_1, window_bounds = array<i64: 8, 27>}, {pipeline_mode = #tpu.pipeline_mode<synchronous>, transform_indices = @transform_2, window_bounds = array<i64: 8, 1>}, {transform_indices = @transform_3, window_bounds = array<i64: 8, 512>}]} {
    %c0 = arith.constant 0 : index
    %c0_0 = arith.constant 0 : index
    %0 = vector.load %arg2[%c0, %c0_0] : memref<8x27xbf16, #tpu.memory_space<vmem>>, vector<8x27xbf16>
    %c0_1 = arith.constant 0 : index
    %c0_2 = arith.constant 0 : index
    %1 = vector.load %arg1[%c0_1, %c0_2] : memref<27x512xbf16, #tpu.memory_space<vmem>>, vector<27x512xbf16>
    %cst = arith.constant dense<0.000000e+00> : vector<8x512xf32>
    %2 = tpu.matmul %0, %1, %cst {dimension_numbers = #tpu.dot_dimension_numbers<[1], [0], [0], [1], [0, 0, 1, 1], [], []>} : vector<8x27xbf16>, vector<27x512xbf16>, vector<8x512xf32> -> vector<8x512xf32>
    %c0_3 = arith.constant 0 : index
    %c0_4 = arith.constant 0 : index
    %3 = vector.load %arg3[%c0_3, %c0_4] : memref<8x1xf32, #tpu.memory_space<vmem>>, vector<8x1xf32>
    %4 = vector.broadcast %3 : vector<8x1xf32> to vector<8x512xf32>
    %5 = arith.addf %2, %4 : vector<8x512xf32>
    %6 = math.absf %5 : vector<8x512xf32>
    %cst_5 = arith.constant 0.000000e+00 : f32
    %7 = vector.broadcast %cst_5 : f32 to vector<8x512xf32>
    %8 = arith.subf %7, %6 : vector<8x512xf32>
    %9 = math.exp %8 : vector<8x512xf32>
    %cst_6 = arith.constant 0.000000e+00 : f32
    %10 = vector.broadcast %cst_6 : f32 to vector<8x512xf32>
    %11 = arith.cmpf oge, %5, %10 : vector<8x512xf32>
    %cst_7 = arith.constant 1.000000e+00 : f32
    %12 = vector.broadcast %cst_7 : f32 to vector<8x512xf32>
    %13 = arith.select %11, %12, %9 : vector<8x512xi1>, vector<8x512xf32>
    %cst_8 = arith.constant 1.000000e+00 : f32
    %14 = vector.broadcast %cst_8 : f32 to vector<8x512xf32>
    %15 = arith.addf %14, %9 : vector<8x512xf32>
    %16 = tpu.reciprocal %15 {approx = true} : vector<8x512xf32> -> vector<8x512xf32>
    %17 = arith.mulf %13, %16 : vector<8x512xf32>
    %18 = arith.mulf %5, %17 : vector<8x512xf32>
    %19 = arith.truncf %18 : vector<8x512xf32> to vector<8x512xbf16>
    %c0_9 = arith.constant 0 : index
    %c0_10 = arith.constant 0 : index
    %20 = vector.load %arg4[%c0_9, %c0_10] : memref<8x512xbf16, #tpu.memory_space<vmem>>, vector<8x512xbf16>
    tpu.vector_store %arg4[%c0_9, %c0_10], %19 {strides = array<i32>} : memref<8x512xbf16, #tpu.memory_space<vmem>>, vector<8x512xbf16>,
    return
  }
  func.func @transform_0(%arg0: i32) -> (i32, i32) {
    %c0_i32 = arith.constant 0 : i32
    %c0_i32_0 = arith.constant 0 : i32
    return %c0_i32, %arg0 : i32, i32
  }
  func.func @transform_1(%arg0: i32) -> (i32, i32) {
    %c0_i32 = arith.constant 0 : i32
    %c0_i32_0 = arith.constant 0 : i32
    %c0_i32_1 = arith.constant 0 : i32
    return %c0_i32, %c0_i32_0 : i32, i32
  }
  func.func @transform_2(%arg0: i32) -> (i32, i32) {
    %c0_i32 = arith.constant 0 : i32
    %c0_i32_0 = arith.constant 0 : i32
    %c0_i32_1 = arith.constant 0 : i32
    return %c0_i32, %c0_i32_0 : i32, i32
  }
  func.func @transform_3(%arg0: i32) -> (i32, i32) {
    %c0_i32 = arith.constant 0 : i32
    %c0_i32_0 = arith.constant 0 : i32
    return %c0_i32, %arg0 : i32, i32
  }
}

module attributes {stable_mosaic.version = 11 : i64} {
  func.func @_conv_act_kernel(%arg0: i32, %arg1: memref<72x256xbf16, #tpu.memory_space<vmem>>, %arg2: memref<16x72xbf16, #tpu.memory_space<vmem>>, %arg3: memref<16x1xf32, #tpu.memory_space<vmem>>, %arg4: memref<16x256xbf16, #tpu.memory_space<vmem>>) attributes {dimension_semantics = [#tpu.dimension_semantics<parallel>], iteration_bounds = array<i64: 2>, scalar_prefetch = 0 : i64, scratch_operands = 0 : i64, tpu.core_type = #tpu.core_type<tc>, window_params = [{transform_indices = @transform_0, window_bounds = array<i64: 72, 256>}, {pipeline_mode = #tpu.pipeline_mode<synchronous>, transform_indices = @transform_1, window_bounds = array<i64: 16, 72>}, {pipeline_mode = #tpu.pipeline_mode<synchronous>, transform_indices = @transform_2, window_bounds = array<i64: 16, 1>}, {transform_indices = @transform_3, window_bounds = array<i64: 16, 256>}]} {
    %c0 = arith.constant 0 : index
    %c0_0 = arith.constant 0 : index
    %0 = vector.load %arg2[%c0, %c0_0] : memref<16x72xbf16, #tpu.memory_space<vmem>>, vector<16x72xbf16>
    %c0_1 = arith.constant 0 : index
    %c0_2 = arith.constant 0 : index
    %1 = vector.load %arg1[%c0_1, %c0_2] : memref<72x256xbf16, #tpu.memory_space<vmem>>, vector<72x256xbf16>
    %cst = arith.constant dense<0.000000e+00> : vector<16x256xf32>
    %2 = tpu.matmul %0, %1, %cst {dimension_numbers = #tpu.dot_dimension_numbers<[1], [0], [0], [1], [0, 0, 1, 1], [], []>} : vector<16x72xbf16>, vector<72x256xbf16>, vector<16x256xf32> -> vector<16x256xf32>
    %c0_3 = arith.constant 0 : index
    %c0_4 = arith.constant 0 : index
    %3 = vector.load %arg3[%c0_3, %c0_4] : memref<16x1xf32, #tpu.memory_space<vmem>>, vector<16x1xf32>
    %4 = vector.broadcast %3 : vector<16x1xf32> to vector<16x256xf32>
    %5 = arith.addf %2, %4 : vector<16x256xf32>
    %6 = math.absf %5 : vector<16x256xf32>
    %cst_5 = arith.constant 0.000000e+00 : f32
    %7 = vector.broadcast %cst_5 : f32 to vector<16x256xf32>
    %8 = arith.subf %7, %6 : vector<16x256xf32>
    %9 = math.exp %8 : vector<16x256xf32>
    %cst_6 = arith.constant 0.000000e+00 : f32
    %10 = vector.broadcast %cst_6 : f32 to vector<16x256xf32>
    %11 = arith.cmpf oge, %5, %10 : vector<16x256xf32>
    %cst_7 = arith.constant 1.000000e+00 : f32
    %12 = vector.broadcast %cst_7 : f32 to vector<16x256xf32>
    %13 = arith.select %11, %12, %9 : vector<16x256xi1>, vector<16x256xf32>
    %cst_8 = arith.constant 1.000000e+00 : f32
    %14 = vector.broadcast %cst_8 : f32 to vector<16x256xf32>
    %15 = arith.addf %14, %9 : vector<16x256xf32>
    %16 = tpu.reciprocal %15 {approx = true} : vector<16x256xf32> -> vector<16x256xf32>
    %17 = arith.mulf %13, %16 : vector<16x256xf32>
    %18 = arith.mulf %5, %17 : vector<16x256xf32>
    %19 = arith.truncf %18 : vector<16x256xf32> to vector<16x256xbf16>
    %c0_9 = arith.constant 0 : index
    %c0_10 = arith.constant 0 : index
    %20 = vector.load %arg4[%c0_9, %c0_10] : memref<16x256xbf16, #tpu.memory_space<vmem>>, vector<16x256xbf16>
    tpu.vector_store %arg4[%c0_9, %c0_10], %19 {strides = array<i32>} : memref<16x256xbf16, #tpu.memory_space<vmem>>, vector<16x256xbf16>,
    return
  }
  func.func @transform_0(%arg0: i32) -> (i32, i32) {
    %c0_i32 = arith.constant 0 : i32
    %c0_i32_0 = arith.constant 0 : i32
    return %c0_i32, %arg0 : i32, i32
  }
  func.func @transform_1(%arg0: i32) -> (i32, i32) {
    %c0_i32 = arith.constant 0 : i32
    %c0_i32_0 = arith.constant 0 : i32
    %c0_i32_1 = arith.constant 0 : i32
    return %c0_i32, %c0_i32_0 : i32, i32
  }
  func.func @transform_2(%arg0: i32) -> (i32, i32) {
    %c0_i32 = arith.constant 0 : i32
    %c0_i32_0 = arith.constant 0 : i32
    %c0_i32_1 = arith.constant 0 : i32
    return %c0_i32, %c0_i32_0 : i32, i32
  }
  func.func @transform_3(%arg0: i32) -> (i32, i32) {
    %c0_i32 = arith.constant 0 : i32
    %c0_i32_0 = arith.constant 0 : i32
    return %c0_i32, %arg0 : i32, i32
  }
}

module attributes {stable_mosaic.version = 11 : i64} {
  func.func @_conv_act_kernel(%arg0: i32, %arg1: memref<16x256xbf16, #tpu.memory_space<vmem>>, %arg2: memref<16x16xbf16, #tpu.memory_space<vmem>>, %arg3: memref<16x1xf32, #tpu.memory_space<vmem>>, %arg4: memref<16x256xbf16, #tpu.memory_space<vmem>>) attributes {dimension_semantics = [#tpu.dimension_semantics<parallel>], iteration_bounds = array<i64: 2>, scalar_prefetch = 0 : i64, scratch_operands = 0 : i64, tpu.core_type = #tpu.core_type<tc>, window_params = [{transform_indices = @transform_0, window_bounds = array<i64: 16, 256>}, {pipeline_mode = #tpu.pipeline_mode<synchronous>, transform_indices = @transform_1, window_bounds = array<i64: 16, 16>}, {pipeline_mode = #tpu.pipeline_mode<synchronous>, transform_indices = @transform_2, window_bounds = array<i64: 16, 1>}, {transform_indices = @transform_3, window_bounds = array<i64: 16, 256>}]} {
    %c0 = arith.constant 0 : index
    %c0_0 = arith.constant 0 : index
    %0 = vector.load %arg2[%c0, %c0_0] : memref<16x16xbf16, #tpu.memory_space<vmem>>, vector<16x16xbf16>
    %c0_1 = arith.constant 0 : index
    %c0_2 = arith.constant 0 : index
    %1 = vector.load %arg1[%c0_1, %c0_2] : memref<16x256xbf16, #tpu.memory_space<vmem>>, vector<16x256xbf16>
    %cst = arith.constant dense<0.000000e+00> : vector<16x256xf32>
    %2 = tpu.matmul %0, %1, %cst {dimension_numbers = #tpu.dot_dimension_numbers<[1], [0], [0], [1], [0, 0, 1, 1], [], []>} : vector<16x16xbf16>, vector<16x256xbf16>, vector<16x256xf32> -> vector<16x256xf32>
    %c0_3 = arith.constant 0 : index
    %c0_4 = arith.constant 0 : index
    %3 = vector.load %arg3[%c0_3, %c0_4] : memref<16x1xf32, #tpu.memory_space<vmem>>, vector<16x1xf32>
    %4 = vector.broadcast %3 : vector<16x1xf32> to vector<16x256xf32>
    %5 = arith.addf %2, %4 : vector<16x256xf32>
    %6 = math.absf %5 : vector<16x256xf32>
    %cst_5 = arith.constant 0.000000e+00 : f32
    %7 = vector.broadcast %cst_5 : f32 to vector<16x256xf32>
    %8 = arith.subf %7, %6 : vector<16x256xf32>
    %9 = math.exp %8 : vector<16x256xf32>
    %cst_6 = arith.constant 0.000000e+00 : f32
    %10 = vector.broadcast %cst_6 : f32 to vector<16x256xf32>
    %11 = arith.cmpf oge, %5, %10 : vector<16x256xf32>
    %cst_7 = arith.constant 1.000000e+00 : f32
    %12 = vector.broadcast %cst_7 : f32 to vector<16x256xf32>
    %13 = arith.select %11, %12, %9 : vector<16x256xi1>, vector<16x256xf32>
    %cst_8 = arith.constant 1.000000e+00 : f32
    %14 = vector.broadcast %cst_8 : f32 to vector<16x256xf32>
    %15 = arith.addf %14, %9 : vector<16x256xf32>
    %16 = tpu.reciprocal %15 {approx = true} : vector<16x256xf32> -> vector<16x256xf32>
    %17 = arith.mulf %13, %16 : vector<16x256xf32>
    %18 = arith.mulf %5, %17 : vector<16x256xf32>
    %19 = arith.truncf %18 : vector<16x256xf32> to vector<16x256xbf16>
    %c0_9 = arith.constant 0 : index
    %c0_10 = arith.constant 0 : index
    %20 = vector.load %arg4[%c0_9, %c0_10] : memref<16x256xbf16, #tpu.memory_space<vmem>>, vector<16x256xbf16>
    tpu.vector_store %arg4[%c0_9, %c0_10], %19 {strides = array<i32>} : memref<16x256xbf16, #tpu.memory_space<vmem>>, vector<16x256xbf16>,
    return
  }
  func.func @transform_0(%arg0: i32) -> (i32, i32) {
    %c0_i32 = arith.constant 0 : i32
    %c0_i32_0 = arith.constant 0 : i32
    return %c0_i32, %arg0 : i32, i32
  }
  func.func @transform_1(%arg0: i32) -> (i32, i32) {
    %c0_i32 = arith.constant 0 : i32
    %c0_i32_0 = arith.constant 0 : i32
    %c0_i32_1 = arith.constant 0 : i32
    return %c0_i32, %c0_i32_0 : i32, i32
  }
  func.func @transform_2(%arg0: i32) -> (i32, i32) {
    %c0_i32 = arith.constant 0 : i32
    %c0_i32_0 = arith.constant 0 : i32
    %c0_i32_1 = arith.constant 0 : i32
    return %c0_i32, %c0_i32_0 : i32, i32
  }
  func.func @transform_3(%arg0: i32) -> (i32, i32) {
    %c0_i32 = arith.constant 0 : i32
    %c0_i32_0 = arith.constant 0 : i32
    return %c0_i32, %arg0 : i32, i32
  }
}

module attributes {stable_mosaic.version = 11 : i64} {
  func.func @_conv_act_kernel(%arg0: i32, %arg1: memref<144x256xbf16, #tpu.memory_space<vmem>>, %arg2: memref<16x144xbf16, #tpu.memory_space<vmem>>, %arg3: memref<16x1xf32, #tpu.memory_space<vmem>>, %arg4: memref<16x256xbf16, #tpu.memory_space<vmem>>, %arg5: memref<16x256xbf16, #tpu.memory_space<vmem>>) attributes {dimension_semantics = [#tpu.dimension_semantics<parallel>], iteration_bounds = array<i64: 2>, scalar_prefetch = 0 : i64, scratch_operands = 0 : i64, tpu.core_type = #tpu.core_type<tc>, window_params = [{transform_indices = @transform_0, window_bounds = array<i64: 144, 256>}, {pipeline_mode = #tpu.pipeline_mode<synchronous>, transform_indices = @transform_1, window_bounds = array<i64: 16, 144>}, {pipeline_mode = #tpu.pipeline_mode<synchronous>, transform_indices = @transform_2, window_bounds = array<i64: 16, 1>}, {transform_indices = @transform_3, window_bounds = array<i64: 16, 256>}, {transform_indices = @transform_4, window_bounds = array<i64: 16, 256>}]} {
    %c0 = arith.constant 0 : index
    %c0_0 = arith.constant 0 : index
    %0 = vector.load %arg2[%c0, %c0_0] : memref<16x144xbf16, #tpu.memory_space<vmem>>, vector<16x144xbf16>
    %c0_1 = arith.constant 0 : index
    %c0_2 = arith.constant 0 : index
    %1 = vector.load %arg1[%c0_1, %c0_2] : memref<144x256xbf16, #tpu.memory_space<vmem>>, vector<144x256xbf16>
    %cst = arith.constant dense<0.000000e+00> : vector<16x256xf32>
    %2 = tpu.matmul %0, %1, %cst {dimension_numbers = #tpu.dot_dimension_numbers<[1], [0], [0], [1], [0, 0, 1, 1], [], []>} : vector<16x144xbf16>, vector<144x256xbf16>, vector<16x256xf32> -> vector<16x256xf32>
    %c0_3 = arith.constant 0 : index
    %c0_4 = arith.constant 0 : index
    %3 = vector.load %arg3[%c0_3, %c0_4] : memref<16x1xf32, #tpu.memory_space<vmem>>, vector<16x1xf32>
    %4 = vector.broadcast %3 : vector<16x1xf32> to vector<16x256xf32>
    %5 = arith.addf %2, %4 : vector<16x256xf32>
    %6 = math.absf %5 : vector<16x256xf32>
    %cst_5 = arith.constant 0.000000e+00 : f32
    %7 = vector.broadcast %cst_5 : f32 to vector<16x256xf32>
    %8 = arith.subf %7, %6 : vector<16x256xf32>
    %9 = math.exp %8 : vector<16x256xf32>
    %cst_6 = arith.constant 0.000000e+00 : f32
    %10 = vector.broadcast %cst_6 : f32 to vector<16x256xf32>
    %11 = arith.cmpf oge, %5, %10 : vector<16x256xf32>
    %cst_7 = arith.constant 1.000000e+00 : f32
    %12 = vector.broadcast %cst_7 : f32 to vector<16x256xf32>
    %13 = arith.select %11, %12, %9 : vector<16x256xi1>, vector<16x256xf32>
    %cst_8 = arith.constant 1.000000e+00 : f32
    %14 = vector.broadcast %cst_8 : f32 to vector<16x256xf32>
    %15 = arith.addf %14, %9 : vector<16x256xf32>
    %16 = tpu.reciprocal %15 {approx = true} : vector<16x256xf32> -> vector<16x256xf32>
    %17 = arith.mulf %13, %16 : vector<16x256xf32>
    %18 = arith.mulf %5, %17 : vector<16x256xf32>
    %c0_9 = arith.constant 0 : index
    %c0_10 = arith.constant 0 : index
    %19 = vector.load %arg4[%c0_9, %c0_10] : memref<16x256xbf16, #tpu.memory_space<vmem>>, vector<16x256xbf16>
    %20 = arith.extf %19 : vector<16x256xbf16> to vector<16x256xf32>
    %21 = arith.addf %18, %20 : vector<16x256xf32>
    %22 = arith.truncf %21 : vector<16x256xf32> to vector<16x256xbf16>
    %c0_11 = arith.constant 0 : index
    %c0_12 = arith.constant 0 : index
    %23 = vector.load %arg5[%c0_11, %c0_12] : memref<16x256xbf16, #tpu.memory_space<vmem>>, vector<16x256xbf16>
    tpu.vector_store %arg5[%c0_11, %c0_12], %22 {strides = array<i32>} : memref<16x256xbf16, #tpu.memory_space<vmem>>, vector<16x256xbf16>,
    return
  }
  func.func @transform_0(%arg0: i32) -> (i32, i32) {
    %c0_i32 = arith.constant 0 : i32
    %c0_i32_0 = arith.constant 0 : i32
    return %c0_i32, %arg0 : i32, i32
  }
  func.func @transform_1(%arg0: i32) -> (i32, i32) {
    %c0_i32 = arith.constant 0 : i32
    %c0_i32_0 = arith.constant 0 : i32
    %c0_i32_1 = arith.constant 0 : i32
    return %c0_i32, %c0_i32_0 : i32, i32
  }
  func.func @transform_2(%arg0: i32) -> (i32, i32) {
    %c0_i32 = arith.constant 0 : i32
    %c0_i32_0 = arith.constant 0 : i32
    %c0_i32_1 = arith.constant 0 : i32
    return %c0_i32, %c0_i32_0 : i32, i32
  }
  func.func @transform_3(%arg0: i32) -> (i32, i32) {
    %c0_i32 = arith.constant 0 : i32
    %c0_i32_0 = arith.constant 0 : i32
    return %c0_i32, %arg0 : i32, i32
  }
  func.func @transform_4(%arg0: i32) -> (i32, i32) {
    %c0_i32 = arith.constant 0 : i32
    %c0_i32_0 = arith.constant 0 : i32
    return %c0_i32, %arg0 : i32, i32
  }
}

module attributes {stable_mosaic.version = 11 : i64} {
  func.func @_conv_act_kernel(%arg0: i32, %arg1: memref<144x128xbf16, #tpu.memory_space<vmem>>, %arg2: memref<16x144xbf16, #tpu.memory_space<vmem>>, %arg3: memref<16x1xf32, #tpu.memory_space<vmem>>, %arg4: memref<16x128xbf16, #tpu.memory_space<vmem>>) attributes {dimension_semantics = [#tpu.dimension_semantics<parallel>], iteration_bounds = array<i64: 1>, scalar_prefetch = 0 : i64, scratch_operands = 0 : i64, tpu.core_type = #tpu.core_type<tc>, window_params = [{transform_indices = @transform_0, window_bounds = array<i64: 144, 128>}, {pipeline_mode = #tpu.pipeline_mode<synchronous>, transform_indices = @transform_1, window_bounds = array<i64: 16, 144>}, {pipeline_mode = #tpu.pipeline_mode<synchronous>, transform_indices = @transform_2, window_bounds = array<i64: 16, 1>}, {transform_indices = @transform_3, window_bounds = array<i64: 16, 128>}]} {
    %c0 = arith.constant 0 : index
    %c0_0 = arith.constant 0 : index
    %0 = vector.load %arg2[%c0, %c0_0] : memref<16x144xbf16, #tpu.memory_space<vmem>>, vector<16x144xbf16>
    %c0_1 = arith.constant 0 : index
    %c0_2 = arith.constant 0 : index
    %1 = vector.load %arg1[%c0_1, %c0_2] : memref<144x128xbf16, #tpu.memory_space<vmem>>, vector<144x128xbf16>
    %cst = arith.constant dense<0.000000e+00> : vector<16x128xf32>
    %2 = tpu.matmul %0, %1, %cst {dimension_numbers = #tpu.dot_dimension_numbers<[1], [0], [0], [1], [0, 0, 1, 1], [], []>} : vector<16x144xbf16>, vector<144x128xbf16>, vector<16x128xf32> -> vector<16x128xf32>
    %c0_3 = arith.constant 0 : index
    %c0_4 = arith.constant 0 : index
    %3 = vector.load %arg3[%c0_3, %c0_4] : memref<16x1xf32, #tpu.memory_space<vmem>>, vector<16x1xf32>
    %4 = vector.broadcast %3 : vector<16x1xf32> to vector<16x128xf32>
    %5 = arith.addf %2, %4 : vector<16x128xf32>
    %6 = math.absf %5 : vector<16x128xf32>
    %cst_5 = arith.constant 0.000000e+00 : f32
    %7 = vector.broadcast %cst_5 : f32 to vector<16x128xf32>
    %8 = arith.subf %7, %6 : vector<16x128xf32>
    %9 = math.exp %8 : vector<16x128xf32>
    %cst_6 = arith.constant 0.000000e+00 : f32
    %10 = vector.broadcast %cst_6 : f32 to vector<16x128xf32>
    %11 = arith.cmpf oge, %5, %10 : vector<16x128xf32>
    %cst_7 = arith.constant 1.000000e+00 : f32
    %12 = vector.broadcast %cst_7 : f32 to vector<16x128xf32>
    %13 = arith.select %11, %12, %9 : vector<16x128xi1>, vector<16x128xf32>
    %cst_8 = arith.constant 1.000000e+00 : f32
    %14 = vector.broadcast %cst_8 : f32 to vector<16x128xf32>
    %15 = arith.addf %14, %9 : vector<16x128xf32>
    %16 = tpu.reciprocal %15 {approx = true} : vector<16x128xf32> -> vector<16x128xf32>
    %17 = arith.mulf %13, %16 : vector<16x128xf32>
    %18 = arith.mulf %5, %17 : vector<16x128xf32>
    %19 = arith.truncf %18 : vector<16x128xf32> to vector<16x128xbf16>
    %c0_9 = arith.constant 0 : index
    %c0_10 = arith.constant 0 : index
    %20 = vector.load %arg4[%c0_9, %c0_10] : memref<16x128xbf16, #tpu.memory_space<vmem>>, vector<16x128xbf16>
    tpu.vector_store %arg4[%c0_9, %c0_10], %19 {strides = array<i32>} : memref<16x128xbf16, #tpu.memory_space<vmem>>, vector<16x128xbf16>,
    return
  }
  func.func @transform_0(%arg0: i32) -> (i32, i32) {
    %c0_i32 = arith.constant 0 : i32
    %c0_i32_0 = arith.constant 0 : i32
    return %c0_i32, %arg0 : i32, i32
  }
  func.func @transform_1(%arg0: i32) -> (i32, i32) {
    %c0_i32 = arith.constant 0 : i32
    %c0_i32_0 = arith.constant 0 : i32
    %c0_i32_1 = arith.constant 0 : i32
    return %c0_i32, %c0_i32_0 : i32, i32
  }
  func.func @transform_2(%arg0: i32) -> (i32, i32) {
    %c0_i32 = arith.constant 0 : i32
    %c0_i32_0 = arith.constant 0 : i32
    %c0_i32_1 = arith.constant 0 : i32
    return %c0_i32, %c0_i32_0 : i32, i32
  }
  func.func @transform_3(%arg0: i32) -> (i32, i32) {
    %c0_i32 = arith.constant 0 : i32
    %c0_i32_0 = arith.constant 0 : i32
    return %c0_i32, %arg0 : i32, i32
  }
}

module attributes {stable_mosaic.version = 11 : i64} {
  func.func @_conv_act_kernel(%arg0: i32, %arg1: memref<16x128xbf16, #tpu.memory_space<vmem>>, %arg2: memref<16x16xbf16, #tpu.memory_space<vmem>>, %arg3: memref<16x1xf32, #tpu.memory_space<vmem>>, %arg4: memref<16x128xbf16, #tpu.memory_space<vmem>>) attributes {dimension_semantics = [#tpu.dimension_semantics<parallel>], iteration_bounds = array<i64: 1>, scalar_prefetch = 0 : i64, scratch_operands = 0 : i64, tpu.core_type = #tpu.core_type<tc>, window_params = [{transform_indices = @transform_0, window_bounds = array<i64: 16, 128>}, {pipeline_mode = #tpu.pipeline_mode<synchronous>, transform_indices = @transform_1, window_bounds = array<i64: 16, 16>}, {pipeline_mode = #tpu.pipeline_mode<synchronous>, transform_indices = @transform_2, window_bounds = array<i64: 16, 1>}, {transform_indices = @transform_3, window_bounds = array<i64: 16, 128>}]} {
    %c0 = arith.constant 0 : index
    %c0_0 = arith.constant 0 : index
    %0 = vector.load %arg2[%c0, %c0_0] : memref<16x16xbf16, #tpu.memory_space<vmem>>, vector<16x16xbf16>
    %c0_1 = arith.constant 0 : index
    %c0_2 = arith.constant 0 : index
    %1 = vector.load %arg1[%c0_1, %c0_2] : memref<16x128xbf16, #tpu.memory_space<vmem>>, vector<16x128xbf16>
    %cst = arith.constant dense<0.000000e+00> : vector<16x128xf32>
    %2 = tpu.matmul %0, %1, %cst {dimension_numbers = #tpu.dot_dimension_numbers<[1], [0], [0], [1], [0, 0, 1, 1], [], []>} : vector<16x16xbf16>, vector<16x128xbf16>, vector<16x128xf32> -> vector<16x128xf32>
    %c0_3 = arith.constant 0 : index
    %c0_4 = arith.constant 0 : index
    %3 = vector.load %arg3[%c0_3, %c0_4] : memref<16x1xf32, #tpu.memory_space<vmem>>, vector<16x1xf32>
    %4 = vector.broadcast %3 : vector<16x1xf32> to vector<16x128xf32>
    %5 = arith.addf %2, %4 : vector<16x128xf32>
    %6 = math.absf %5 : vector<16x128xf32>
    %cst_5 = arith.constant 0.000000e+00 : f32
    %7 = vector.broadcast %cst_5 : f32 to vector<16x128xf32>
    %8 = arith.subf %7, %6 : vector<16x128xf32>
    %9 = math.exp %8 : vector<16x128xf32>
    %cst_6 = arith.constant 0.000000e+00 : f32
    %10 = vector.broadcast %cst_6 : f32 to vector<16x128xf32>
    %11 = arith.cmpf oge, %5, %10 : vector<16x128xf32>
    %cst_7 = arith.constant 1.000000e+00 : f32
    %12 = vector.broadcast %cst_7 : f32 to vector<16x128xf32>
    %13 = arith.select %11, %12, %9 : vector<16x128xi1>, vector<16x128xf32>
    %cst_8 = arith.constant 1.000000e+00 : f32
    %14 = vector.broadcast %cst_8 : f32 to vector<16x128xf32>
    %15 = arith.addf %14, %9 : vector<16x128xf32>
    %16 = tpu.reciprocal %15 {approx = true} : vector<16x128xf32> -> vector<16x128xf32>
    %17 = arith.mulf %13, %16 : vector<16x128xf32>
    %18 = arith.mulf %5, %17 : vector<16x128xf32>
    %19 = arith.truncf %18 : vector<16x128xf32> to vector<16x128xbf16>
    %c0_9 = arith.constant 0 : index
    %c0_10 = arith.constant 0 : index
    %20 = vector.load %arg4[%c0_9, %c0_10] : memref<16x128xbf16, #tpu.memory_space<vmem>>, vector<16x128xbf16>
    tpu.vector_store %arg4[%c0_9, %c0_10], %19 {strides = array<i32>} : memref<16x128xbf16, #tpu.memory_space<vmem>>, vector<16x128xbf16>,
    return
  }
  func.func @transform_0(%arg0: i32) -> (i32, i32) {
    %c0_i32 = arith.constant 0 : i32
    %c0_i32_0 = arith.constant 0 : i32
    return %c0_i32, %arg0 : i32, i32
  }
  func.func @transform_1(%arg0: i32) -> (i32, i32) {
    %c0_i32 = arith.constant 0 : i32
    %c0_i32_0 = arith.constant 0 : i32
    %c0_i32_1 = arith.constant 0 : i32
    return %c0_i32, %c0_i32_0 : i32, i32
  }
  func.func @transform_2(%arg0: i32) -> (i32, i32) {
    %c0_i32 = arith.constant 0 : i32
    %c0_i32_0 = arith.constant 0 : i32
    %c0_i32_1 = arith.constant 0 : i32
    return %c0_i32, %c0_i32_0 : i32, i32
  }
  func.func @transform_3(%arg0: i32) -> (i32, i32) {
    %c0_i32 = arith.constant 0 : i32
    %c0_i32_0 = arith.constant 0 : i32
    return %c0_i32, %arg0 : i32, i32
  }
}

module attributes {stable_mosaic.version = 11 : i64} {
  func.func @_conv_act_kernel(%arg0: i32, %arg1: memref<144x128xbf16, #tpu.memory_space<vmem>>, %arg2: memref<16x144xbf16, #tpu.memory_space<vmem>>, %arg3: memref<16x1xf32, #tpu.memory_space<vmem>>, %arg4: memref<16x128xbf16, #tpu.memory_space<vmem>>, %arg5: memref<16x128xbf16, #tpu.memory_space<vmem>>) attributes {dimension_semantics = [#tpu.dimension_semantics<parallel>], iteration_bounds = array<i64: 1>, scalar_prefetch = 0 : i64, scratch_operands = 0 : i64, tpu.core_type = #tpu.core_type<tc>, window_params = [{transform_indices = @transform_0, window_bounds = array<i64: 144, 128>}, {pipeline_mode = #tpu.pipeline_mode<synchronous>, transform_indices = @transform_1, window_bounds = array<i64: 16, 144>}, {pipeline_mode = #tpu.pipeline_mode<synchronous>, transform_indices = @transform_2, window_bounds = array<i64: 16, 1>}, {transform_indices = @transform_3, window_bounds = array<i64: 16, 128>}, {transform_indices = @transform_4, window_bounds = array<i64: 16, 128>}]} {
    %c0 = arith.constant 0 : index
    %c0_0 = arith.constant 0 : index
    %0 = vector.load %arg2[%c0, %c0_0] : memref<16x144xbf16, #tpu.memory_space<vmem>>, vector<16x144xbf16>
    %c0_1 = arith.constant 0 : index
    %c0_2 = arith.constant 0 : index
    %1 = vector.load %arg1[%c0_1, %c0_2] : memref<144x128xbf16, #tpu.memory_space<vmem>>, vector<144x128xbf16>
    %cst = arith.constant dense<0.000000e+00> : vector<16x128xf32>
    %2 = tpu.matmul %0, %1, %cst {dimension_numbers = #tpu.dot_dimension_numbers<[1], [0], [0], [1], [0, 0, 1, 1], [], []>} : vector<16x144xbf16>, vector<144x128xbf16>, vector<16x128xf32> -> vector<16x128xf32>
    %c0_3 = arith.constant 0 : index
    %c0_4 = arith.constant 0 : index
    %3 = vector.load %arg3[%c0_3, %c0_4] : memref<16x1xf32, #tpu.memory_space<vmem>>, vector<16x1xf32>
    %4 = vector.broadcast %3 : vector<16x1xf32> to vector<16x128xf32>
    %5 = arith.addf %2, %4 : vector<16x128xf32>
    %6 = math.absf %5 : vector<16x128xf32>
    %cst_5 = arith.constant 0.000000e+00 : f32
    %7 = vector.broadcast %cst_5 : f32 to vector<16x128xf32>
    %8 = arith.subf %7, %6 : vector<16x128xf32>
    %9 = math.exp %8 : vector<16x128xf32>
    %cst_6 = arith.constant 0.000000e+00 : f32
    %10 = vector.broadcast %cst_6 : f32 to vector<16x128xf32>
    %11 = arith.cmpf oge, %5, %10 : vector<16x128xf32>
    %cst_7 = arith.constant 1.000000e+00 : f32
    %12 = vector.broadcast %cst_7 : f32 to vector<16x128xf32>
    %13 = arith.select %11, %12, %9 : vector<16x128xi1>, vector<16x128xf32>
    %cst_8 = arith.constant 1.000000e+00 : f32
    %14 = vector.broadcast %cst_8 : f32 to vector<16x128xf32>
    %15 = arith.addf %14, %9 : vector<16x128xf32>
    %16 = tpu.reciprocal %15 {approx = true} : vector<16x128xf32> -> vector<16x128xf32>
    %17 = arith.mulf %13, %16 : vector<16x128xf32>
    %18 = arith.mulf %5, %17 : vector<16x128xf32>
    %c0_9 = arith.constant 0 : index
    %c0_10 = arith.constant 0 : index
    %19 = vector.load %arg4[%c0_9, %c0_10] : memref<16x128xbf16, #tpu.memory_space<vmem>>, vector<16x128xbf16>
    %20 = arith.extf %19 : vector<16x128xbf16> to vector<16x128xf32>
    %21 = arith.addf %18, %20 : vector<16x128xf32>
    %22 = arith.truncf %21 : vector<16x128xf32> to vector<16x128xbf16>
    %c0_11 = arith.constant 0 : index
    %c0_12 = arith.constant 0 : index
    %23 = vector.load %arg5[%c0_11, %c0_12] : memref<16x128xbf16, #tpu.memory_space<vmem>>, vector<16x128xbf16>
    tpu.vector_store %arg5[%c0_11, %c0_12], %22 {strides = array<i32>} : memref<16x128xbf16, #tpu.memory_space<vmem>>, vector<16x128xbf16>,
    return
  }
  func.func @transform_0(%arg0: i32) -> (i32, i32) {
    %c0_i32 = arith.constant 0 : i32
    %c0_i32_0 = arith.constant 0 : i32
    return %c0_i32, %arg0 : i32, i32
  }
  func.func @transform_1(%arg0: i32) -> (i32, i32) {
    %c0_i32 = arith.constant 0 : i32
    %c0_i32_0 = arith.constant 0 : i32
    %c0_i32_1 = arith.constant 0 : i32
    return %c0_i32, %c0_i32_0 : i32, i32
  }
  func.func @transform_2(%arg0: i32) -> (i32, i32) {
    %c0_i32 = arith.constant 0 : i32
    %c0_i32_0 = arith.constant 0 : i32
    %c0_i32_1 = arith.constant 0 : i32
    return %c0_i32, %c0_i32_0 : i32, i32
  }
  func.func @transform_3(%arg0: i32) -> (i32, i32) {
    %c0_i32 = arith.constant 0 : i32
    %c0_i32_0 = arith.constant 0 : i32
    return %c0_i32, %arg0 : i32, i32
  }
  func.func @transform_4(%arg0: i32) -> (i32, i32) {
    %c0_i32 = arith.constant 0 : i32
    %c0_i32_0 = arith.constant 0 : i32
    return %c0_i32, %arg0 : i32, i32
  }
}

module attributes {stable_mosaic.version = 11 : i64} {
  func.func @_conv_act_kernel(%arg0: i32, %arg1: memref<144x128xbf16, #tpu.memory_space<vmem>>, %arg2: memref<32x144xbf16, #tpu.memory_space<vmem>>, %arg3: memref<32x1xf32, #tpu.memory_space<vmem>>, %arg4: memref<32x128xbf16, #tpu.memory_space<vmem>>) attributes {dimension_semantics = [#tpu.dimension_semantics<parallel>], iteration_bounds = array<i64: 1>, scalar_prefetch = 0 : i64, scratch_operands = 0 : i64, tpu.core_type = #tpu.core_type<tc>, window_params = [{transform_indices = @transform_0, window_bounds = array<i64: 144, 128>}, {pipeline_mode = #tpu.pipeline_mode<synchronous>, transform_indices = @transform_1, window_bounds = array<i64: 32, 144>}, {pipeline_mode = #tpu.pipeline_mode<synchronous>, transform_indices = @transform_2, window_bounds = array<i64: 32, 1>}, {transform_indices = @transform_3, window_bounds = array<i64: 32, 128>}]} {
    %c0 = arith.constant 0 : index
    %c0_0 = arith.constant 0 : index
    %0 = vector.load %arg2[%c0, %c0_0] : memref<32x144xbf16, #tpu.memory_space<vmem>>, vector<32x144xbf16>
    %c0_1 = arith.constant 0 : index
    %c0_2 = arith.constant 0 : index
    %1 = vector.load %arg1[%c0_1, %c0_2] : memref<144x128xbf16, #tpu.memory_space<vmem>>, vector<144x128xbf16>
    %cst = arith.constant dense<0.000000e+00> : vector<32x128xf32>
    %2 = tpu.matmul %0, %1, %cst {dimension_numbers = #tpu.dot_dimension_numbers<[1], [0], [0], [1], [0, 0, 1, 1], [], []>} : vector<32x144xbf16>, vector<144x128xbf16>, vector<32x128xf32> -> vector<32x128xf32>
    %c0_3 = arith.constant 0 : index
    %c0_4 = arith.constant 0 : index
    %3 = vector.load %arg3[%c0_3, %c0_4] : memref<32x1xf32, #tpu.memory_space<vmem>>, vector<32x1xf32>
    %4 = vector.broadcast %3 : vector<32x1xf32> to vector<32x128xf32>
    %5 = arith.addf %2, %4 : vector<32x128xf32>
    %6 = math.absf %5 : vector<32x128xf32>
    %cst_5 = arith.constant 0.000000e+00 : f32
    %7 = vector.broadcast %cst_5 : f32 to vector<32x128xf32>
    %8 = arith.subf %7, %6 : vector<32x128xf32>
    %9 = math.exp %8 : vector<32x128xf32>
    %cst_6 = arith.constant 0.000000e+00 : f32
    %10 = vector.broadcast %cst_6 : f32 to vector<32x128xf32>
    %11 = arith.cmpf oge, %5, %10 : vector<32x128xf32>
    %cst_7 = arith.constant 1.000000e+00 : f32
    %12 = vector.broadcast %cst_7 : f32 to vector<32x128xf32>
    %13 = arith.select %11, %12, %9 : vector<32x128xi1>, vector<32x128xf32>
    %cst_8 = arith.constant 1.000000e+00 : f32
    %14 = vector.broadcast %cst_8 : f32 to vector<32x128xf32>
    %15 = arith.addf %14, %9 : vector<32x128xf32>
    %16 = tpu.reciprocal %15 {approx = true} : vector<32x128xf32> -> vector<32x128xf32>
    %17 = arith.mulf %13, %16 : vector<32x128xf32>
    %18 = arith.mulf %5, %17 : vector<32x128xf32>
    %19 = arith.truncf %18 : vector<32x128xf32> to vector<32x128xbf16>
    %c0_9 = arith.constant 0 : index
    %c0_10 = arith.constant 0 : index
    %20 = vector.load %arg4[%c0_9, %c0_10] : memref<32x128xbf16, #tpu.memory_space<vmem>>, vector<32x128xbf16>
    tpu.vector_store %arg4[%c0_9, %c0_10], %19 {strides = array<i32>} : memref<32x128xbf16, #tpu.memory_space<vmem>>, vector<32x128xbf16>,
    return
  }
  func.func @transform_0(%arg0: i32) -> (i32, i32) {
    %c0_i32 = arith.constant 0 : i32
    %c0_i32_0 = arith.constant 0 : i32
    return %c0_i32, %arg0 : i32, i32
  }
  func.func @transform_1(%arg0: i32) -> (i32, i32) {
    %c0_i32 = arith.constant 0 : i32
    %c0_i32_0 = arith.constant 0 : i32
    %c0_i32_1 = arith.constant 0 : i32
    return %c0_i32, %c0_i32_0 : i32, i32
  }
  func.func @transform_2(%arg0: i32) -> (i32, i32) {
    %c0_i32 = arith.constant 0 : i32
    %c0_i32_0 = arith.constant 0 : i32
    %c0_i32_1 = arith.constant 0 : i32
    return %c0_i32, %c0_i32_0 : i32, i32
  }
  func.func @transform_3(%arg0: i32) -> (i32, i32) {
    %c0_i32 = arith.constant 0 : i32
    %c0_i32_0 = arith.constant 0 : i32
    return %c0_i32, %arg0 : i32, i32
  }
}

module attributes {stable_mosaic.version = 11 : i64} {
  func.func @_conv_act_kernel(%arg0: i32, %arg1: memref<32x128xbf16, #tpu.memory_space<vmem>>, %arg2: memref<32x32xbf16, #tpu.memory_space<vmem>>, %arg3: memref<32x1xf32, #tpu.memory_space<vmem>>, %arg4: memref<32x128xbf16, #tpu.memory_space<vmem>>) attributes {dimension_semantics = [#tpu.dimension_semantics<parallel>], iteration_bounds = array<i64: 1>, scalar_prefetch = 0 : i64, scratch_operands = 0 : i64, tpu.core_type = #tpu.core_type<tc>, window_params = [{transform_indices = @transform_0, window_bounds = array<i64: 32, 128>}, {pipeline_mode = #tpu.pipeline_mode<synchronous>, transform_indices = @transform_1, window_bounds = array<i64: 32, 32>}, {pipeline_mode = #tpu.pipeline_mode<synchronous>, transform_indices = @transform_2, window_bounds = array<i64: 32, 1>}, {transform_indices = @transform_3, window_bounds = array<i64: 32, 128>}]} {
    %c0 = arith.constant 0 : index
    %c0_0 = arith.constant 0 : index
    %0 = vector.load %arg2[%c0, %c0_0] : memref<32x32xbf16, #tpu.memory_space<vmem>>, vector<32x32xbf16>
    %c0_1 = arith.constant 0 : index
    %c0_2 = arith.constant 0 : index
    %1 = vector.load %arg1[%c0_1, %c0_2] : memref<32x128xbf16, #tpu.memory_space<vmem>>, vector<32x128xbf16>
    %cst = arith.constant dense<0.000000e+00> : vector<32x128xf32>
    %2 = tpu.matmul %0, %1, %cst {dimension_numbers = #tpu.dot_dimension_numbers<[1], [0], [0], [1], [0, 0, 1, 1], [], []>} : vector<32x32xbf16>, vector<32x128xbf16>, vector<32x128xf32> -> vector<32x128xf32>
    %c0_3 = arith.constant 0 : index
    %c0_4 = arith.constant 0 : index
    %3 = vector.load %arg3[%c0_3, %c0_4] : memref<32x1xf32, #tpu.memory_space<vmem>>, vector<32x1xf32>
    %4 = vector.broadcast %3 : vector<32x1xf32> to vector<32x128xf32>
    %5 = arith.addf %2, %4 : vector<32x128xf32>
    %6 = math.absf %5 : vector<32x128xf32>
    %cst_5 = arith.constant 0.000000e+00 : f32
    %7 = vector.broadcast %cst_5 : f32 to vector<32x128xf32>
    %8 = arith.subf %7, %6 : vector<32x128xf32>
    %9 = math.exp %8 : vector<32x128xf32>
    %cst_6 = arith.constant 0.000000e+00 : f32
    %10 = vector.broadcast %cst_6 : f32 to vector<32x128xf32>
    %11 = arith.cmpf oge, %5, %10 : vector<32x128xf32>
    %cst_7 = arith.constant 1.000000e+00 : f32
    %12 = vector.broadcast %cst_7 : f32 to vector<32x128xf32>
    %13 = arith.select %11, %12, %9 : vector<32x128xi1>, vector<32x128xf32>
    %cst_8 = arith.constant 1.000000e+00 : f32
    %14 = vector.broadcast %cst_8 : f32 to vector<32x128xf32>
    %15 = arith.addf %14, %9 : vector<32x128xf32>
    %16 = tpu.reciprocal %15 {approx = true} : vector<32x128xf32> -> vector<32x128xf32>
    %17 = arith.mulf %13, %16 : vector<32x128xf32>
    %18 = arith.mulf %5, %17 : vector<32x128xf32>
    %19 = arith.truncf %18 : vector<32x128xf32> to vector<32x128xbf16>
    %c0_9 = arith.constant 0 : index
    %c0_10 = arith.constant 0 : index
    %20 = vector.load %arg4[%c0_9, %c0_10] : memref<32x128xbf16, #tpu.memory_space<vmem>>, vector<32x128xbf16>
    tpu.vector_store %arg4[%c0_9, %c0_10], %19 {strides = array<i32>} : memref<32x128xbf16, #tpu.memory_space<vmem>>, vector<32x128xbf16>,
    return
  }
  func.func @transform_0(%arg0: i32) -> (i32, i32) {
    %c0_i32 = arith.constant 0 : i32
    %c0_i32_0 = arith.constant 0 : i32
    return %c0_i32, %arg0 : i32, i32
  }
  func.func @transform_1(%arg0: i32) -> (i32, i32) {
    %c0_i32 = arith.constant 0 : i32
    %c0_i32_0 = arith.constant 0 : i32
    %c0_i32_1 = arith.constant 0 : i32
    return %c0_i32, %c0_i32_0 : i32, i32
  }
  func.func @transform_2(%arg0: i32) -> (i32, i32) {
    %c0_i32 = arith.constant 0 : i32
    %c0_i32_0 = arith.constant 0 : i32
    %c0_i32_1 = arith.constant 0 : i32
    return %c0_i32, %c0_i32_0 : i32, i32
  }
  func.func @transform_3(%arg0: i32) -> (i32, i32) {
    %c0_i32 = arith.constant 0 : i32
    %c0_i32_0 = arith.constant 0 : i32
    return %c0_i32, %arg0 : i32, i32
  }
}

module attributes {stable_mosaic.version = 11 : i64} {
  func.func @_conv_act_kernel(%arg0: i32, %arg1: memref<288x128xbf16, #tpu.memory_space<vmem>>, %arg2: memref<32x288xbf16, #tpu.memory_space<vmem>>, %arg3: memref<32x1xf32, #tpu.memory_space<vmem>>, %arg4: memref<32x128xbf16, #tpu.memory_space<vmem>>, %arg5: memref<32x128xbf16, #tpu.memory_space<vmem>>) attributes {dimension_semantics = [#tpu.dimension_semantics<parallel>], iteration_bounds = array<i64: 1>, scalar_prefetch = 0 : i64, scratch_operands = 0 : i64, tpu.core_type = #tpu.core_type<tc>, window_params = [{transform_indices = @transform_0, window_bounds = array<i64: 288, 128>}, {pipeline_mode = #tpu.pipeline_mode<synchronous>, transform_indices = @transform_1, window_bounds = array<i64: 32, 288>}, {pipeline_mode = #tpu.pipeline_mode<synchronous>, transform_indices = @transform_2, window_bounds = array<i64: 32, 1>}, {transform_indices = @transform_3, window_bounds = array<i64: 32, 128>}, {transform_indices = @transform_4, window_bounds = array<i64: 32, 128>}]} {
    %c0 = arith.constant 0 : index
    %c0_0 = arith.constant 0 : index
    %0 = vector.load %arg2[%c0, %c0_0] : memref<32x288xbf16, #tpu.memory_space<vmem>>, vector<32x288xbf16>
    %c0_1 = arith.constant 0 : index
    %c0_2 = arith.constant 0 : index
    %1 = vector.load %arg1[%c0_1, %c0_2] : memref<288x128xbf16, #tpu.memory_space<vmem>>, vector<288x128xbf16>
    %cst = arith.constant dense<0.000000e+00> : vector<32x128xf32>
    %2 = tpu.matmul %0, %1, %cst {dimension_numbers = #tpu.dot_dimension_numbers<[1], [0], [0], [1], [0, 0, 1, 1], [], []>} : vector<32x288xbf16>, vector<288x128xbf16>, vector<32x128xf32> -> vector<32x128xf32>
    %c0_3 = arith.constant 0 : index
    %c0_4 = arith.constant 0 : index
    %3 = vector.load %arg3[%c0_3, %c0_4] : memref<32x1xf32, #tpu.memory_space<vmem>>, vector<32x1xf32>
    %4 = vector.broadcast %3 : vector<32x1xf32> to vector<32x128xf32>
    %5 = arith.addf %2, %4 : vector<32x128xf32>
    %6 = math.absf %5 : vector<32x128xf32>
    %cst_5 = arith.constant 0.000000e+00 : f32
    %7 = vector.broadcast %cst_5 : f32 to vector<32x128xf32>
    %8 = arith.subf %7, %6 : vector<32x128xf32>
    %9 = math.exp %8 : vector<32x128xf32>
    %cst_6 = arith.constant 0.000000e+00 : f32
    %10 = vector.broadcast %cst_6 : f32 to vector<32x128xf32>
    %11 = arith.cmpf oge, %5, %10 : vector<32x128xf32>
    %cst_7 = arith.constant 1.000000e+00 : f32
    %12 = vector.broadcast %cst_7 : f32 to vector<32x128xf32>
    %13 = arith.select %11, %12, %9 : vector<32x128xi1>, vector<32x128xf32>
    %cst_8 = arith.constant 1.000000e+00 : f32
    %14 = vector.broadcast %cst_8 : f32 to vector<32x128xf32>
    %15 = arith.addf %14, %9 : vector<32x128xf32>
    %16 = tpu.reciprocal %15 {approx = true} : vector<32x128xf32> -> vector<32x128xf32>
    %17 = arith.mulf %13, %16 : vector<32x128xf32>
    %18 = arith.mulf %5, %17 : vector<32x128xf32>
    %c0_9 = arith.constant 0 : index
    %c0_10 = arith.constant 0 : index
    %19 = vector.load %arg4[%c0_9, %c0_10] : memref<32x128xbf16, #tpu.memory_space<vmem>>, vector<32x128xbf16>
    %20 = arith.extf %19 : vector<32x128xbf16> to vector<32x128xf32>
    %21 = arith.addf %18, %20 : vector<32x128xf32>
    %22 = arith.truncf %21 : vector<32x128xf32> to vector<32x128xbf16>
    %c0_11 = arith.constant 0 : index
    %c0_12 = arith.constant 0 : index
    %23 = vector.load %arg5[%c0_11, %c0_12] : memref<32x128xbf16, #tpu.memory_space<vmem>>, vector<32x128xbf16>
    tpu.vector_store %arg5[%c0_11, %c0_12], %22 {strides = array<i32>} : memref<32x128xbf16, #tpu.memory_space<vmem>>, vector<32x128xbf16>,
    return
  }
  func.func @transform_0(%arg0: i32) -> (i32, i32) {
    %c0_i32 = arith.constant 0 : i32
    %c0_i32_0 = arith.constant 0 : i32
    return %c0_i32, %arg0 : i32, i32
  }
  func.func @transform_1(%arg0: i32) -> (i32, i32) {
    %c0_i32 = arith.constant 0 : i32
    %c0_i32_0 = arith.constant 0 : i32
    %c0_i32_1 = arith.constant 0 : i32
    return %c0_i32, %c0_i32_0 : i32, i32
  }
  func.func @transform_2(%arg0: i32) -> (i32, i32) {
    %c0_i32 = arith.constant 0 : i32
    %c0_i32_0 = arith.constant 0 : i32
    %c0_i32_1 = arith.constant 0 : i32
    return %c0_i32, %c0_i32_0 : i32, i32
  }
  func.func @transform_3(%arg0: i32) -> (i32, i32) {
    %c0_i32 = arith.constant 0 : i32
    %c0_i32_0 = arith.constant 0 : i32
    return %c0_i32, %arg0 : i32, i32
  }
  func.func @transform_4(%arg0: i32) -> (i32, i32) {
    %c0_i32 = arith.constant 0 : i32
    %c0_i32_0 = arith.constant 0 : i32
    return %c0_i32, %arg0 : i32, i32
  }
}

module attributes {stable_mosaic.version = 11 : i64} {
  func.func @_conv_act_kernel(%arg0: i32, %arg1: memref<288x128xbf16, #tpu.memory_space<vmem>>, %arg2: memref<64x288xbf16, #tpu.memory_space<vmem>>, %arg3: memref<64x1xf32, #tpu.memory_space<vmem>>, %arg4: memref<64x128xbf16, #tpu.memory_space<vmem>>) attributes {dimension_semantics = [#tpu.dimension_semantics<parallel>], iteration_bounds = array<i64: 1>, scalar_prefetch = 0 : i64, scratch_operands = 0 : i64, tpu.core_type = #tpu.core_type<tc>, window_params = [{transform_indices = @transform_0, window_bounds = array<i64: 288, 128>}, {pipeline_mode = #tpu.pipeline_mode<synchronous>, transform_indices = @transform_1, window_bounds = array<i64: 64, 288>}, {pipeline_mode = #tpu.pipeline_mode<synchronous>, transform_indices = @transform_2, window_bounds = array<i64: 64, 1>}, {transform_indices = @transform_3, window_bounds = array<i64: 64, 128>}]} {
    %c0 = arith.constant 0 : index
    %c0_0 = arith.constant 0 : index
    %0 = vector.load %arg2[%c0, %c0_0] : memref<64x288xbf16, #tpu.memory_space<vmem>>, vector<64x288xbf16>
    %c0_1 = arith.constant 0 : index
    %c0_2 = arith.constant 0 : index
    %1 = vector.load %arg1[%c0_1, %c0_2] : memref<288x128xbf16, #tpu.memory_space<vmem>>, vector<288x128xbf16>
    %cst = arith.constant dense<0.000000e+00> : vector<64x128xf32>
    %2 = tpu.matmul %0, %1, %cst {dimension_numbers = #tpu.dot_dimension_numbers<[1], [0], [0], [1], [0, 0, 1, 1], [], []>} : vector<64x288xbf16>, vector<288x128xbf16>, vector<64x128xf32> -> vector<64x128xf32>
    %c0_3 = arith.constant 0 : index
    %c0_4 = arith.constant 0 : index
    %3 = vector.load %arg3[%c0_3, %c0_4] : memref<64x1xf32, #tpu.memory_space<vmem>>, vector<64x1xf32>
    %4 = vector.broadcast %3 : vector<64x1xf32> to vector<64x128xf32>
    %5 = arith.addf %2, %4 : vector<64x128xf32>
    %6 = math.absf %5 : vector<64x128xf32>
    %cst_5 = arith.constant 0.000000e+00 : f32
    %7 = vector.broadcast %cst_5 : f32 to vector<64x128xf32>
    %8 = arith.subf %7, %6 : vector<64x128xf32>
    %9 = math.exp %8 : vector<64x128xf32>
    %cst_6 = arith.constant 0.000000e+00 : f32
    %10 = vector.broadcast %cst_6 : f32 to vector<64x128xf32>
    %11 = arith.cmpf oge, %5, %10 : vector<64x128xf32>
    %cst_7 = arith.constant 1.000000e+00 : f32
    %12 = vector.broadcast %cst_7 : f32 to vector<64x128xf32>
    %13 = arith.select %11, %12, %9 : vector<64x128xi1>, vector<64x128xf32>
    %cst_8 = arith.constant 1.000000e+00 : f32
    %14 = vector.broadcast %cst_8 : f32 to vector<64x128xf32>
    %15 = arith.addf %14, %9 : vector<64x128xf32>
    %16 = tpu.reciprocal %15 {approx = true} : vector<64x128xf32> -> vector<64x128xf32>
    %17 = arith.mulf %13, %16 : vector<64x128xf32>
    %18 = arith.mulf %5, %17 : vector<64x128xf32>
    %19 = arith.truncf %18 : vector<64x128xf32> to vector<64x128xbf16>
    %c0_9 = arith.constant 0 : index
    %c0_10 = arith.constant 0 : index
    %20 = vector.load %arg4[%c0_9, %c0_10] : memref<64x128xbf16, #tpu.memory_space<vmem>>, vector<64x128xbf16>
    tpu.vector_store %arg4[%c0_9, %c0_10], %19 {strides = array<i32>} : memref<64x128xbf16, #tpu.memory_space<vmem>>, vector<64x128xbf16>,
    return
  }
  func.func @transform_0(%arg0: i32) -> (i32, i32) {
    %c0_i32 = arith.constant 0 : i32
    %c0_i32_0 = arith.constant 0 : i32
    return %c0_i32, %arg0 : i32, i32
  }
  func.func @transform_1(%arg0: i32) -> (i32, i32) {
    %c0_i32 = arith.constant 0 : i32
    %c0_i32_0 = arith.constant 0 : i32
    %c0_i32_1 = arith.constant 0 : i32
    return %c0_i32, %c0_i32_0 : i32, i32
  }
  func.func @transform_2(%arg0: i32) -> (i32, i32) {
    %c0_i32 = arith.constant 0 : i32
    %c0_i32_0 = arith.constant 0 : i32
    %c0_i32_1 = arith.constant 0 : i32
    return %c0_i32, %c0_i32_0 : i32, i32
  }
  func.func @transform_3(%arg0: i32) -> (i32, i32) {
    %c0_i32 = arith.constant 0 : i32
    %c0_i32_0 = arith.constant 0 : i32
    return %c0_i32, %arg0 : i32, i32
  }
}

module attributes {stable_mosaic.version = 11 : i64} {
  func.func @_conv_act_kernel(%arg0: i32, %arg1: memref<64x128xbf16, #tpu.memory_space<vmem>>, %arg2: memref<64x64xbf16, #tpu.memory_space<vmem>>, %arg3: memref<64x1xf32, #tpu.memory_space<vmem>>, %arg4: memref<64x128xbf16, #tpu.memory_space<vmem>>) attributes {dimension_semantics = [#tpu.dimension_semantics<parallel>], iteration_bounds = array<i64: 1>, scalar_prefetch = 0 : i64, scratch_operands = 0 : i64, tpu.core_type = #tpu.core_type<tc>, window_params = [{transform_indices = @transform_0, window_bounds = array<i64: 64, 128>}, {pipeline_mode = #tpu.pipeline_mode<synchronous>, transform_indices = @transform_1, window_bounds = array<i64: 64, 64>}, {pipeline_mode = #tpu.pipeline_mode<synchronous>, transform_indices = @transform_2, window_bounds = array<i64: 64, 1>}, {transform_indices = @transform_3, window_bounds = array<i64: 64, 128>}]} {
    %c0 = arith.constant 0 : index
    %c0_0 = arith.constant 0 : index
    %0 = vector.load %arg2[%c0, %c0_0] : memref<64x64xbf16, #tpu.memory_space<vmem>>, vector<64x64xbf16>
    %c0_1 = arith.constant 0 : index
    %c0_2 = arith.constant 0 : index
    %1 = vector.load %arg1[%c0_1, %c0_2] : memref<64x128xbf16, #tpu.memory_space<vmem>>, vector<64x128xbf16>
    %cst = arith.constant dense<0.000000e+00> : vector<64x128xf32>
    %2 = tpu.matmul %0, %1, %cst {dimension_numbers = #tpu.dot_dimension_numbers<[1], [0], [0], [1], [0, 0, 1, 1], [], []>} : vector<64x64xbf16>, vector<64x128xbf16>, vector<64x128xf32> -> vector<64x128xf32>
    %c0_3 = arith.constant 0 : index
    %c0_4 = arith.constant 0 : index
    %3 = vector.load %arg3[%c0_3, %c0_4] : memref<64x1xf32, #tpu.memory_space<vmem>>, vector<64x1xf32>
    %4 = vector.broadcast %3 : vector<64x1xf32> to vector<64x128xf32>
    %5 = arith.addf %2, %4 : vector<64x128xf32>
    %6 = math.absf %5 : vector<64x128xf32>
    %cst_5 = arith.constant 0.000000e+00 : f32
    %7 = vector.broadcast %cst_5 : f32 to vector<64x128xf32>
    %8 = arith.subf %7, %6 : vector<64x128xf32>
    %9 = math.exp %8 : vector<64x128xf32>
    %cst_6 = arith.constant 0.000000e+00 : f32
    %10 = vector.broadcast %cst_6 : f32 to vector<64x128xf32>
    %11 = arith.cmpf oge, %5, %10 : vector<64x128xf32>
    %cst_7 = arith.constant 1.000000e+00 : f32
    %12 = vector.broadcast %cst_7 : f32 to vector<64x128xf32>
    %13 = arith.select %11, %12, %9 : vector<64x128xi1>, vector<64x128xf32>
    %cst_8 = arith.constant 1.000000e+00 : f32
    %14 = vector.broadcast %cst_8 : f32 to vector<64x128xf32>
    %15 = arith.addf %14, %9 : vector<64x128xf32>
    %16 = tpu.reciprocal %15 {approx = true} : vector<64x128xf32> -> vector<64x128xf32>
    %17 = arith.mulf %13, %16 : vector<64x128xf32>
    %18 = arith.mulf %5, %17 : vector<64x128xf32>
    %19 = arith.truncf %18 : vector<64x128xf32> to vector<64x128xbf16>
    %c0_9 = arith.constant 0 : index
    %c0_10 = arith.constant 0 : index
    %20 = vector.load %arg4[%c0_9, %c0_10] : memref<64x128xbf16, #tpu.memory_space<vmem>>, vector<64x128xbf16>
    tpu.vector_store %arg4[%c0_9, %c0_10], %19 {strides = array<i32>} : memref<64x128xbf16, #tpu.memory_space<vmem>>, vector<64x128xbf16>,
    return
  }
  func.func @transform_0(%arg0: i32) -> (i32, i32) {
    %c0_i32 = arith.constant 0 : i32
    %c0_i32_0 = arith.constant 0 : i32
    return %c0_i32, %arg0 : i32, i32
  }
  func.func @transform_1(%arg0: i32) -> (i32, i32) {
    %c0_i32 = arith.constant 0 : i32
    %c0_i32_0 = arith.constant 0 : i32
    %c0_i32_1 = arith.constant 0 : i32
    return %c0_i32, %c0_i32_0 : i32, i32
  }
  func.func @transform_2(%arg0: i32) -> (i32, i32) {
    %c0_i32 = arith.constant 0 : i32
    %c0_i32_0 = arith.constant 0 : i32
    %c0_i32_1 = arith.constant 0 : i32
    return %c0_i32, %c0_i32_0 : i32, i32
  }
  func.func @transform_3(%arg0: i32) -> (i32, i32) {
    %c0_i32 = arith.constant 0 : i32
    %c0_i32_0 = arith.constant 0 : i32
    return %c0_i32, %arg0 : i32, i32
  }
}

module attributes {stable_mosaic.version = 11 : i64} {
  func.func @_conv_act_kernel(%arg0: i32, %arg1: memref<576x128xbf16, #tpu.memory_space<vmem>>, %arg2: memref<64x576xbf16, #tpu.memory_space<vmem>>, %arg3: memref<64x1xf32, #tpu.memory_space<vmem>>, %arg4: memref<64x128xbf16, #tpu.memory_space<vmem>>, %arg5: memref<64x128xbf16, #tpu.memory_space<vmem>>) attributes {dimension_semantics = [#tpu.dimension_semantics<parallel>], iteration_bounds = array<i64: 1>, scalar_prefetch = 0 : i64, scratch_operands = 0 : i64, tpu.core_type = #tpu.core_type<tc>, window_params = [{transform_indices = @transform_0, window_bounds = array<i64: 576, 128>}, {pipeline_mode = #tpu.pipeline_mode<synchronous>, transform_indices = @transform_1, window_bounds = array<i64: 64, 576>}, {pipeline_mode = #tpu.pipeline_mode<synchronous>, transform_indices = @transform_2, window_bounds = array<i64: 64, 1>}, {transform_indices = @transform_3, window_bounds = array<i64: 64, 128>}, {transform_indices = @transform_4, window_bounds = array<i64: 64, 128>}]} {
    %c0 = arith.constant 0 : index
    %c0_0 = arith.constant 0 : index
    %0 = vector.load %arg2[%c0, %c0_0] : memref<64x576xbf16, #tpu.memory_space<vmem>>, vector<64x576xbf16>
    %c0_1 = arith.constant 0 : index
    %c0_2 = arith.constant 0 : index
    %1 = vector.load %arg1[%c0_1, %c0_2] : memref<576x128xbf16, #tpu.memory_space<vmem>>, vector<576x128xbf16>
    %cst = arith.constant dense<0.000000e+00> : vector<64x128xf32>
    %2 = tpu.matmul %0, %1, %cst {dimension_numbers = #tpu.dot_dimension_numbers<[1], [0], [0], [1], [0, 0, 1, 1], [], []>} : vector<64x576xbf16>, vector<576x128xbf16>, vector<64x128xf32> -> vector<64x128xf32>
    %c0_3 = arith.constant 0 : index
    %c0_4 = arith.constant 0 : index
    %3 = vector.load %arg3[%c0_3, %c0_4] : memref<64x1xf32, #tpu.memory_space<vmem>>, vector<64x1xf32>
    %4 = vector.broadcast %3 : vector<64x1xf32> to vector<64x128xf32>
    %5 = arith.addf %2, %4 : vector<64x128xf32>
    %6 = math.absf %5 : vector<64x128xf32>
    %cst_5 = arith.constant 0.000000e+00 : f32
    %7 = vector.broadcast %cst_5 : f32 to vector<64x128xf32>
    %8 = arith.subf %7, %6 : vector<64x128xf32>
    %9 = math.exp %8 : vector<64x128xf32>
    %cst_6 = arith.constant 0.000000e+00 : f32
    %10 = vector.broadcast %cst_6 : f32 to vector<64x128xf32>
    %11 = arith.cmpf oge, %5, %10 : vector<64x128xf32>
    %cst_7 = arith.constant 1.000000e+00 : f32
    %12 = vector.broadcast %cst_7 : f32 to vector<64x128xf32>
    %13 = arith.select %11, %12, %9 : vector<64x128xi1>, vector<64x128xf32>
    %cst_8 = arith.constant 1.000000e+00 : f32
    %14 = vector.broadcast %cst_8 : f32 to vector<64x128xf32>
    %15 = arith.addf %14, %9 : vector<64x128xf32>
    %16 = tpu.reciprocal %15 {approx = true} : vector<64x128xf32> -> vector<64x128xf32>
    %17 = arith.mulf %13, %16 : vector<64x128xf32>
    %18 = arith.mulf %5, %17 : vector<64x128xf32>
    %c0_9 = arith.constant 0 : index
    %c0_10 = arith.constant 0 : index
    %19 = vector.load %arg4[%c0_9, %c0_10] : memref<64x128xbf16, #tpu.memory_space<vmem>>, vector<64x128xbf16>
    %20 = arith.extf %19 : vector<64x128xbf16> to vector<64x128xf32>
    %21 = arith.addf %18, %20 : vector<64x128xf32>
    %22 = arith.truncf %21 : vector<64x128xf32> to vector<64x128xbf16>
    %c0_11 = arith.constant 0 : index
    %c0_12 = arith.constant 0 : index
    %23 = vector.load %arg5[%c0_11, %c0_12] : memref<64x128xbf16, #tpu.memory_space<vmem>>, vector<64x128xbf16>
    tpu.vector_store %arg5[%c0_11, %c0_12], %22 {strides = array<i32>} : memref<64x128xbf16, #tpu.memory_space<vmem>>, vector<64x128xbf16>,
    return
  }
  func.func @transform_0(%arg0: i32) -> (i32, i32) {
    %c0_i32 = arith.constant 0 : i32
    %c0_i32_0 = arith.constant 0 : i32
    return %c0_i32, %arg0 : i32, i32
  }
  func.func @transform_1(%arg0: i32) -> (i32, i32) {
    %c0_i32 = arith.constant 0 : i32
    %c0_i32_0 = arith.constant 0 : i32
    %c0_i32_1 = arith.constant 0 : i32
    return %c0_i32, %c0_i32_0 : i32, i32
  }
  func.func @transform_2(%arg0: i32) -> (i32, i32) {
    %c0_i32 = arith.constant 0 : i32
    %c0_i32_0 = arith.constant 0 : i32
    %c0_i32_1 = arith.constant 0 : i32
    return %c0_i32, %c0_i32_0 : i32, i32
  }
  func.func @transform_3(%arg0: i32) -> (i32, i32) {
    %c0_i32 = arith.constant 0 : i32
    %c0_i32_0 = arith.constant 0 : i32
    return %c0_i32, %arg0 : i32, i32
  }
  func.func @transform_4(%arg0: i32) -> (i32, i32) {
    %c0_i32 = arith.constant 0 : i32
    %c0_i32_0 = arith.constant 0 : i32
    return %c0_i32, %arg0 : i32, i32
  }
}

module attributes {stable_mosaic.version = 11 : i64} {
  func.func @_conv_act_kernel(%arg0: i32, %arg1: memref<64x128xbf16, #tpu.memory_space<vmem>>, %arg2: memref<32x64xbf16, #tpu.memory_space<vmem>>, %arg3: memref<32x1xf32, #tpu.memory_space<vmem>>, %arg4: memref<32x128xbf16, #tpu.memory_space<vmem>>) attributes {dimension_semantics = [#tpu.dimension_semantics<parallel>], iteration_bounds = array<i64: 1>, scalar_prefetch = 0 : i64, scratch_operands = 0 : i64, tpu.core_type = #tpu.core_type<tc>, window_params = [{transform_indices = @transform_0, window_bounds = array<i64: 64, 128>}, {pipeline_mode = #tpu.pipeline_mode<synchronous>, transform_indices = @transform_1, window_bounds = array<i64: 32, 64>}, {pipeline_mode = #tpu.pipeline_mode<synchronous>, transform_indices = @transform_2, window_bounds = array<i64: 32, 1>}, {transform_indices = @transform_3, window_bounds = array<i64: 32, 128>}]} {
    %c0 = arith.constant 0 : index
    %c0_0 = arith.constant 0 : index
    %0 = vector.load %arg2[%c0, %c0_0] : memref<32x64xbf16, #tpu.memory_space<vmem>>, vector<32x64xbf16>
    %c0_1 = arith.constant 0 : index
    %c0_2 = arith.constant 0 : index
    %1 = vector.load %arg1[%c0_1, %c0_2] : memref<64x128xbf16, #tpu.memory_space<vmem>>, vector<64x128xbf16>
    %cst = arith.constant dense<0.000000e+00> : vector<32x128xf32>
    %2 = tpu.matmul %0, %1, %cst {dimension_numbers = #tpu.dot_dimension_numbers<[1], [0], [0], [1], [0, 0, 1, 1], [], []>} : vector<32x64xbf16>, vector<64x128xbf16>, vector<32x128xf32> -> vector<32x128xf32>
    %c0_3 = arith.constant 0 : index
    %c0_4 = arith.constant 0 : index
    %3 = vector.load %arg3[%c0_3, %c0_4] : memref<32x1xf32, #tpu.memory_space<vmem>>, vector<32x1xf32>
    %4 = vector.broadcast %3 : vector<32x1xf32> to vector<32x128xf32>
    %5 = arith.addf %2, %4 : vector<32x128xf32>
    %6 = math.absf %5 : vector<32x128xf32>
    %cst_5 = arith.constant 0.000000e+00 : f32
    %7 = vector.broadcast %cst_5 : f32 to vector<32x128xf32>
    %8 = arith.subf %7, %6 : vector<32x128xf32>
    %9 = math.exp %8 : vector<32x128xf32>
    %cst_6 = arith.constant 0.000000e+00 : f32
    %10 = vector.broadcast %cst_6 : f32 to vector<32x128xf32>
    %11 = arith.cmpf oge, %5, %10 : vector<32x128xf32>
    %cst_7 = arith.constant 1.000000e+00 : f32
    %12 = vector.broadcast %cst_7 : f32 to vector<32x128xf32>
    %13 = arith.select %11, %12, %9 : vector<32x128xi1>, vector<32x128xf32>
    %cst_8 = arith.constant 1.000000e+00 : f32
    %14 = vector.broadcast %cst_8 : f32 to vector<32x128xf32>
    %15 = arith.addf %14, %9 : vector<32x128xf32>
    %16 = tpu.reciprocal %15 {approx = true} : vector<32x128xf32> -> vector<32x128xf32>
    %17 = arith.mulf %13, %16 : vector<32x128xf32>
    %18 = arith.mulf %5, %17 : vector<32x128xf32>
    %19 = arith.truncf %18 : vector<32x128xf32> to vector<32x128xbf16>
    %c0_9 = arith.constant 0 : index
    %c0_10 = arith.constant 0 : index
    %20 = vector.load %arg4[%c0_9, %c0_10] : memref<32x128xbf16, #tpu.memory_space<vmem>>, vector<32x128xbf16>
    tpu.vector_store %arg4[%c0_9, %c0_10], %19 {strides = array<i32>} : memref<32x128xbf16, #tpu.memory_space<vmem>>, vector<32x128xbf16>,
    return
  }
  func.func @transform_0(%arg0: i32) -> (i32, i32) {
    %c0_i32 = arith.constant 0 : i32
    %c0_i32_0 = arith.constant 0 : i32
    return %c0_i32, %arg0 : i32, i32
  }
  func.func @transform_1(%arg0: i32) -> (i32, i32) {
    %c0_i32 = arith.constant 0 : i32
    %c0_i32_0 = arith.constant 0 : i32
    %c0_i32_1 = arith.constant 0 : i32
    return %c0_i32, %c0_i32_0 : i32, i32
  }
  func.func @transform_2(%arg0: i32) -> (i32, i32) {
    %c0_i32 = arith.constant 0 : i32
    %c0_i32_0 = arith.constant 0 : i32
    %c0_i32_1 = arith.constant 0 : i32
    return %c0_i32, %c0_i32_0 : i32, i32
  }
  func.func @transform_3(%arg0: i32) -> (i32, i32) {
    %c0_i32 = arith.constant 0 : i32
    %c0_i32_0 = arith.constant 0 : i32
    return %c0_i32, %arg0 : i32, i32
  }
}

module attributes {stable_mosaic.version = 11 : i64} {
  func.func @_conv_act_kernel(%arg0: i32, %arg1: memref<576x128xbf16, #tpu.memory_space<vmem>>, %arg2: memref<32x576xbf16, #tpu.memory_space<vmem>>, %arg3: memref<32x1xf32, #tpu.memory_space<vmem>>, %arg4: memref<32x128xbf16, #tpu.memory_space<vmem>>) attributes {dimension_semantics = [#tpu.dimension_semantics<parallel>], iteration_bounds = array<i64: 1>, scalar_prefetch = 0 : i64, scratch_operands = 0 : i64, tpu.core_type = #tpu.core_type<tc>, window_params = [{transform_indices = @transform_0, window_bounds = array<i64: 576, 128>}, {pipeline_mode = #tpu.pipeline_mode<synchronous>, transform_indices = @transform_1, window_bounds = array<i64: 32, 576>}, {pipeline_mode = #tpu.pipeline_mode<synchronous>, transform_indices = @transform_2, window_bounds = array<i64: 32, 1>}, {transform_indices = @transform_3, window_bounds = array<i64: 32, 128>}]} {
    %c0 = arith.constant 0 : index
    %c0_0 = arith.constant 0 : index
    %0 = vector.load %arg2[%c0, %c0_0] : memref<32x576xbf16, #tpu.memory_space<vmem>>, vector<32x576xbf16>
    %c0_1 = arith.constant 0 : index
    %c0_2 = arith.constant 0 : index
    %1 = vector.load %arg1[%c0_1, %c0_2] : memref<576x128xbf16, #tpu.memory_space<vmem>>, vector<576x128xbf16>
    %cst = arith.constant dense<0.000000e+00> : vector<32x128xf32>
    %2 = tpu.matmul %0, %1, %cst {dimension_numbers = #tpu.dot_dimension_numbers<[1], [0], [0], [1], [0, 0, 1, 1], [], []>} : vector<32x576xbf16>, vector<576x128xbf16>, vector<32x128xf32> -> vector<32x128xf32>
    %c0_3 = arith.constant 0 : index
    %c0_4 = arith.constant 0 : index
    %3 = vector.load %arg3[%c0_3, %c0_4] : memref<32x1xf32, #tpu.memory_space<vmem>>, vector<32x1xf32>
    %4 = vector.broadcast %3 : vector<32x1xf32> to vector<32x128xf32>
    %5 = arith.addf %2, %4 : vector<32x128xf32>
    %6 = math.absf %5 : vector<32x128xf32>
    %cst_5 = arith.constant 0.000000e+00 : f32
    %7 = vector.broadcast %cst_5 : f32 to vector<32x128xf32>
    %8 = arith.subf %7, %6 : vector<32x128xf32>
    %9 = math.exp %8 : vector<32x128xf32>
    %cst_6 = arith.constant 0.000000e+00 : f32
    %10 = vector.broadcast %cst_6 : f32 to vector<32x128xf32>
    %11 = arith.cmpf oge, %5, %10 : vector<32x128xf32>
    %cst_7 = arith.constant 1.000000e+00 : f32
    %12 = vector.broadcast %cst_7 : f32 to vector<32x128xf32>
    %13 = arith.select %11, %12, %9 : vector<32x128xi1>, vector<32x128xf32>
    %cst_8 = arith.constant 1.000000e+00 : f32
    %14 = vector.broadcast %cst_8 : f32 to vector<32x128xf32>
    %15 = arith.addf %14, %9 : vector<32x128xf32>
    %16 = tpu.reciprocal %15 {approx = true} : vector<32x128xf32> -> vector<32x128xf32>
    %17 = arith.mulf %13, %16 : vector<32x128xf32>
    %18 = arith.mulf %5, %17 : vector<32x128xf32>
    %19 = arith.truncf %18 : vector<32x128xf32> to vector<32x128xbf16>
    %c0_9 = arith.constant 0 : index
    %c0_10 = arith.constant 0 : index
    %20 = vector.load %arg4[%c0_9, %c0_10] : memref<32x128xbf16, #tpu.memory_space<vmem>>, vector<32x128xbf16>
    tpu.vector_store %arg4[%c0_9, %c0_10], %19 {strides = array<i32>} : memref<32x128xbf16, #tpu.memory_space<vmem>>, vector<32x128xbf16>,
    return
  }
  func.func @transform_0(%arg0: i32) -> (i32, i32) {
    %c0_i32 = arith.constant 0 : i32
    %c0_i32_0 = arith.constant 0 : i32
    return %c0_i32, %arg0 : i32, i32
  }
  func.func @transform_1(%arg0: i32) -> (i32, i32) {
    %c0_i32 = arith.constant 0 : i32
    %c0_i32_0 = arith.constant 0 : i32
    %c0_i32_1 = arith.constant 0 : i32
    return %c0_i32, %c0_i32_0 : i32, i32
  }
  func.func @transform_2(%arg0: i32) -> (i32, i32) {
    %c0_i32 = arith.constant 0 : i32
    %c0_i32_0 = arith.constant 0 : i32
    %c0_i32_1 = arith.constant 0 : i32
    return %c0_i32, %c0_i32_0 : i32, i32
  }
  func.func @transform_3(%arg0: i32) -> (i32, i32) {
    %c0_i32 = arith.constant 0 : i32
    %c0_i32_0 = arith.constant 0 : i32
    return %c0_i32, %arg0 : i32, i32
  }
}

module attributes {stable_mosaic.version = 11 : i64} {
  func.func @_conv_act_kernel(%arg0: i32, %arg1: memref<16x128xbf16, #tpu.memory_space<vmem>>, %arg2: memref<32x16xbf16, #tpu.memory_space<vmem>>, %arg3: memref<32x1xf32, #tpu.memory_space<vmem>>, %arg4: memref<32x128xbf16, #tpu.memory_space<vmem>>) attributes {dimension_semantics = [#tpu.dimension_semantics<parallel>], iteration_bounds = array<i64: 1>, scalar_prefetch = 0 : i64, scratch_operands = 0 : i64, tpu.core_type = #tpu.core_type<tc>, window_params = [{transform_indices = @transform_0, window_bounds = array<i64: 16, 128>}, {pipeline_mode = #tpu.pipeline_mode<synchronous>, transform_indices = @transform_1, window_bounds = array<i64: 32, 16>}, {pipeline_mode = #tpu.pipeline_mode<synchronous>, transform_indices = @transform_2, window_bounds = array<i64: 32, 1>}, {transform_indices = @transform_3, window_bounds = array<i64: 32, 128>}]} {
    %c0 = arith.constant 0 : index
    %c0_0 = arith.constant 0 : index
    %0 = vector.load %arg2[%c0, %c0_0] : memref<32x16xbf16, #tpu.memory_space<vmem>>, vector<32x16xbf16>
    %c0_1 = arith.constant 0 : index
    %c0_2 = arith.constant 0 : index
    %1 = vector.load %arg1[%c0_1, %c0_2] : memref<16x128xbf16, #tpu.memory_space<vmem>>, vector<16x128xbf16>
    %cst = arith.constant dense<0.000000e+00> : vector<32x128xf32>
    %2 = tpu.matmul %0, %1, %cst {dimension_numbers = #tpu.dot_dimension_numbers<[1], [0], [0], [1], [0, 0, 1, 1], [], []>} : vector<32x16xbf16>, vector<16x128xbf16>, vector<32x128xf32> -> vector<32x128xf32>
    %c0_3 = arith.constant 0 : index
    %c0_4 = arith.constant 0 : index
    %3 = vector.load %arg3[%c0_3, %c0_4] : memref<32x1xf32, #tpu.memory_space<vmem>>, vector<32x1xf32>
    %4 = vector.broadcast %3 : vector<32x1xf32> to vector<32x128xf32>
    %5 = arith.addf %2, %4 : vector<32x128xf32>
    %6 = math.absf %5 : vector<32x128xf32>
    %cst_5 = arith.constant 0.000000e+00 : f32
    %7 = vector.broadcast %cst_5 : f32 to vector<32x128xf32>
    %8 = arith.subf %7, %6 : vector<32x128xf32>
    %9 = math.exp %8 : vector<32x128xf32>
    %cst_6 = arith.constant 0.000000e+00 : f32
    %10 = vector.broadcast %cst_6 : f32 to vector<32x128xf32>
    %11 = arith.cmpf oge, %5, %10 : vector<32x128xf32>
    %cst_7 = arith.constant 1.000000e+00 : f32
    %12 = vector.broadcast %cst_7 : f32 to vector<32x128xf32>
    %13 = arith.select %11, %12, %9 : vector<32x128xi1>, vector<32x128xf32>
    %cst_8 = arith.constant 1.000000e+00 : f32
    %14 = vector.broadcast %cst_8 : f32 to vector<32x128xf32>
    %15 = arith.addf %14, %9 : vector<32x128xf32>
    %16 = tpu.reciprocal %15 {approx = true} : vector<32x128xf32> -> vector<32x128xf32>
    %17 = arith.mulf %13, %16 : vector<32x128xf32>
    %18 = arith.mulf %5, %17 : vector<32x128xf32>
    %19 = arith.truncf %18 : vector<32x128xf32> to vector<32x128xbf16>
    %c0_9 = arith.constant 0 : index
    %c0_10 = arith.constant 0 : index
    %20 = vector.load %arg4[%c0_9, %c0_10] : memref<32x128xbf16, #tpu.memory_space<vmem>>, vector<32x128xbf16>
    tpu.vector_store %arg4[%c0_9, %c0_10], %19 {strides = array<i32>} : memref<32x128xbf16, #tpu.memory_space<vmem>>, vector<32x128xbf16>,
    return
  }
  func.func @transform_0(%arg0: i32) -> (i32, i32) {
    %c0_i32 = arith.constant 0 : i32
    %c0_i32_0 = arith.constant 0 : i32
    return %c0_i32, %arg0 : i32, i32
  }
  func.func @transform_1(%arg0: i32) -> (i32, i32) {
    %c0_i32 = arith.constant 0 : i32
    %c0_i32_0 = arith.constant 0 : i32
    %c0_i32_1 = arith.constant 0 : i32
    return %c0_i32, %c0_i32_0 : i32, i32
  }
  func.func @transform_2(%arg0: i32) -> (i32, i32) {
    %c0_i32 = arith.constant 0 : i32
    %c0_i32_0 = arith.constant 0 : i32
    %c0_i32_1 = arith.constant 0 : i32
    return %c0_i32, %c0_i32_0 : i32, i32
  }
  func.func @transform_3(%arg0: i32) -> (i32, i32) {
    %c0_i32 = arith.constant 0 : i32
    %c0_i32_0 = arith.constant 0 : i32
    return %c0_i32, %arg0 : i32, i32
  }
}

module attributes {stable_mosaic.version = 11 : i64} {
  func.func @_conv_act_kernel(%arg0: i32, %arg1: memref<288x128xbf16, #tpu.memory_space<vmem>>, %arg2: memref<32x288xbf16, #tpu.memory_space<vmem>>, %arg3: memref<32x1xf32, #tpu.memory_space<vmem>>, %arg4: memref<32x128xbf16, #tpu.memory_space<vmem>>) attributes {dimension_semantics = [#tpu.dimension_semantics<parallel>], iteration_bounds = array<i64: 1>, scalar_prefetch = 0 : i64, scratch_operands = 0 : i64, tpu.core_type = #tpu.core_type<tc>, window_params = [{transform_indices = @transform_0, window_bounds = array<i64: 288, 128>}, {pipeline_mode = #tpu.pipeline_mode<synchronous>, transform_indices = @transform_1, window_bounds = array<i64: 32, 288>}, {pipeline_mode = #tpu.pipeline_mode<synchronous>, transform_indices = @transform_2, window_bounds = array<i64: 32, 1>}, {transform_indices = @transform_3, window_bounds = array<i64: 32, 128>}]} {
    %c0 = arith.constant 0 : index
    %c0_0 = arith.constant 0 : index
    %0 = vector.load %arg2[%c0, %c0_0] : memref<32x288xbf16, #tpu.memory_space<vmem>>, vector<32x288xbf16>
    %c0_1 = arith.constant 0 : index
    %c0_2 = arith.constant 0 : index
    %1 = vector.load %arg1[%c0_1, %c0_2] : memref<288x128xbf16, #tpu.memory_space<vmem>>, vector<288x128xbf16>
    %cst = arith.constant dense<0.000000e+00> : vector<32x128xf32>
    %2 = tpu.matmul %0, %1, %cst {dimension_numbers = #tpu.dot_dimension_numbers<[1], [0], [0], [1], [0, 0, 1, 1], [], []>} : vector<32x288xbf16>, vector<288x128xbf16>, vector<32x128xf32> -> vector<32x128xf32>
    %c0_3 = arith.constant 0 : index
    %c0_4 = arith.constant 0 : index
    %3 = vector.load %arg3[%c0_3, %c0_4] : memref<32x1xf32, #tpu.memory_space<vmem>>, vector<32x1xf32>
    %4 = vector.broadcast %3 : vector<32x1xf32> to vector<32x128xf32>
    %5 = arith.addf %2, %4 : vector<32x128xf32>
    %6 = math.absf %5 : vector<32x128xf32>
    %cst_5 = arith.constant 0.000000e+00 : f32
    %7 = vector.broadcast %cst_5 : f32 to vector<32x128xf32>
    %8 = arith.subf %7, %6 : vector<32x128xf32>
    %9 = math.exp %8 : vector<32x128xf32>
    %cst_6 = arith.constant 0.000000e+00 : f32
    %10 = vector.broadcast %cst_6 : f32 to vector<32x128xf32>
    %11 = arith.cmpf oge, %5, %10 : vector<32x128xf32>
    %cst_7 = arith.constant 1.000000e+00 : f32
    %12 = vector.broadcast %cst_7 : f32 to vector<32x128xf32>
    %13 = arith.select %11, %12, %9 : vector<32x128xi1>, vector<32x128xf32>
    %cst_8 = arith.constant 1.000000e+00 : f32
    %14 = vector.broadcast %cst_8 : f32 to vector<32x128xf32>
    %15 = arith.addf %14, %9 : vector<32x128xf32>
    %16 = tpu.reciprocal %15 {approx = true} : vector<32x128xf32> -> vector<32x128xf32>
    %17 = arith.mulf %13, %16 : vector<32x128xf32>
    %18 = arith.mulf %5, %17 : vector<32x128xf32>
    %19 = arith.truncf %18 : vector<32x128xf32> to vector<32x128xbf16>
    %c0_9 = arith.constant 0 : index
    %c0_10 = arith.constant 0 : index
    %20 = vector.load %arg4[%c0_9, %c0_10] : memref<32x128xbf16, #tpu.memory_space<vmem>>, vector<32x128xbf16>
    tpu.vector_store %arg4[%c0_9, %c0_10], %19 {strides = array<i32>} : memref<32x128xbf16, #tpu.memory_space<vmem>>, vector<32x128xbf16>,
    return
  }
  func.func @transform_0(%arg0: i32) -> (i32, i32) {
    %c0_i32 = arith.constant 0 : i32
    %c0_i32_0 = arith.constant 0 : i32
    return %c0_i32, %arg0 : i32, i32
  }
  func.func @transform_1(%arg0: i32) -> (i32, i32) {
    %c0_i32 = arith.constant 0 : i32
    %c0_i32_0 = arith.constant 0 : i32
    %c0_i32_1 = arith.constant 0 : i32
    return %c0_i32, %c0_i32_0 : i32, i32
  }
  func.func @transform_2(%arg0: i32) -> (i32, i32) {
    %c0_i32 = arith.constant 0 : i32
    %c0_i32_0 = arith.constant 0 : i32
    %c0_i32_1 = arith.constant 0 : i32
    return %c0_i32, %c0_i32_0 : i32, i32
  }
  func.func @transform_3(%arg0: i32) -> (i32, i32) {
    %c0_i32 = arith.constant 0 : i32
    %c0_i32_0 = arith.constant 0 : i32
    return %c0_i32, %arg0 : i32, i32
  }
}

module attributes {stable_mosaic.version = 11 : i64} {
  func.func @_head_branch_kernel(%arg0: i32, %arg1: memref<288x128xbf16, #tpu.memory_space<vmem>>, %arg2: memref<64x288xbf16, #tpu.memory_space<vmem>>, %arg3: memref<64x1xf32, #tpu.memory_space<vmem>>, %arg4: memref<5x64xbf16, #tpu.memory_space<vmem>>, %arg5: memref<5x1xf32, #tpu.memory_space<vmem>>, %arg6: memref<5x128xf32, #tpu.memory_space<vmem>>) attributes {dimension_semantics = [#tpu.dimension_semantics<parallel>], iteration_bounds = array<i64: 1>, scalar_prefetch = 0 : i64, scratch_operands = 0 : i64, tpu.core_type = #tpu.core_type<tc>, window_params = [{transform_indices = @transform_0, window_bounds = array<i64: 288, 128>}, {pipeline_mode = #tpu.pipeline_mode<synchronous>, transform_indices = @transform_1, window_bounds = array<i64: 64, 288>}, {pipeline_mode = #tpu.pipeline_mode<synchronous>, transform_indices = @transform_2, window_bounds = array<i64: 64, 1>}, {pipeline_mode = #tpu.pipeline_mode<synchronous>, transform_indices = @transform_3, window_bounds = array<i64: 5, 64>}, {pipeline_mode = #tpu.pipeline_mode<synchronous>, transform_indices = @transform_4, window_bounds = array<i64: 5, 1>}, {transform_indices = @transform_5, window_bounds = array<i64: 5, 128>}]} {
    %c0 = arith.constant 0 : index
    %c0_0 = arith.constant 0 : index
    %0 = vector.load %arg2[%c0, %c0_0] : memref<64x288xbf16, #tpu.memory_space<vmem>>, vector<64x288xbf16>
    %c0_1 = arith.constant 0 : index
    %c0_2 = arith.constant 0 : index
    %1 = vector.load %arg1[%c0_1, %c0_2] : memref<288x128xbf16, #tpu.memory_space<vmem>>, vector<288x128xbf16>
    %cst = arith.constant dense<0.000000e+00> : vector<64x128xf32>
    %2 = tpu.matmul %0, %1, %cst {dimension_numbers = #tpu.dot_dimension_numbers<[1], [0], [0], [1], [0, 0, 1, 1], [], []>} : vector<64x288xbf16>, vector<288x128xbf16>, vector<64x128xf32> -> vector<64x128xf32>
    %c0_3 = arith.constant 0 : index
    %c0_4 = arith.constant 0 : index
    %3 = vector.load %arg3[%c0_3, %c0_4] : memref<64x1xf32, #tpu.memory_space<vmem>>, vector<64x1xf32>
    %4 = vector.broadcast %3 : vector<64x1xf32> to vector<64x128xf32>
    %5 = arith.addf %2, %4 : vector<64x128xf32>
    %6 = math.absf %5 : vector<64x128xf32>
    %cst_5 = arith.constant 0.000000e+00 : f32
    %7 = vector.broadcast %cst_5 : f32 to vector<64x128xf32>
    %8 = arith.subf %7, %6 : vector<64x128xf32>
    %9 = math.exp %8 : vector<64x128xf32>
    %cst_6 = arith.constant 0.000000e+00 : f32
    %10 = vector.broadcast %cst_6 : f32 to vector<64x128xf32>
    %11 = arith.cmpf oge, %5, %10 : vector<64x128xf32>
    %cst_7 = arith.constant 1.000000e+00 : f32
    %12 = vector.broadcast %cst_7 : f32 to vector<64x128xf32>
    %13 = arith.select %11, %12, %9 : vector<64x128xi1>, vector<64x128xf32>
    %cst_8 = arith.constant 1.000000e+00 : f32
    %14 = vector.broadcast %cst_8 : f32 to vector<64x128xf32>
    %15 = arith.addf %14, %9 : vector<64x128xf32>
    %16 = tpu.reciprocal %15 {approx = true} : vector<64x128xf32> -> vector<64x128xf32>
    %17 = arith.mulf %13, %16 : vector<64x128xf32>
    %18 = arith.mulf %5, %17 : vector<64x128xf32>
    %c0_9 = arith.constant 0 : index
    %c0_10 = arith.constant 0 : index
    %19 = vector.load %arg4[%c0_9, %c0_10] : memref<5x64xbf16, #tpu.memory_space<vmem>>, vector<5x64xbf16>
    %20 = arith.truncf %18 : vector<64x128xf32> to vector<64x128xbf16>
    %cst_11 = arith.constant dense<0.000000e+00> : vector<5x128xf32>
    %21 = tpu.matmul %19, %20, %cst_11 {dimension_numbers = #tpu.dot_dimension_numbers<[1], [0], [0], [1], [0, 0, 1, 1], [], []>} : vector<5x64xbf16>, vector<64x128xbf16>, vector<5x128xf32> -> vector<5x128xf32>
    %c0_12 = arith.constant 0 : index
    %c0_13 = arith.constant 0 : index
    %22 = vector.load %arg5[%c0_12, %c0_13] : memref<5x1xf32, #tpu.memory_space<vmem>>, vector<5x1xf32>
    %23 = vector.broadcast %22 : vector<5x1xf32> to vector<5x128xf32>
    %24 = arith.addf %21, %23 : vector<5x128xf32>
    %c0_14 = arith.constant 0 : index
    %c0_15 = arith.constant 0 : index
    %25 = vector.load %arg6[%c0_14, %c0_15] : memref<5x128xf32, #tpu.memory_space<vmem>>, vector<5x128xf32>
    tpu.vector_store %arg6[%c0_14, %c0_15], %24 {strides = array<i32>} : memref<5x128xf32, #tpu.memory_space<vmem>>, vector<5x128xf32>,
    return
  }
  func.func @transform_0(%arg0: i32) -> (i32, i32) {
    %c0_i32 = arith.constant 0 : i32
    %c0_i32_0 = arith.constant 0 : i32
    return %c0_i32, %arg0 : i32, i32
  }
  func.func @transform_1(%arg0: i32) -> (i32, i32) {
    %c0_i32 = arith.constant 0 : i32
    %c0_i32_0 = arith.constant 0 : i32
    %c0_i32_1 = arith.constant 0 : i32
    return %c0_i32, %c0_i32_0 : i32, i32
  }
  func.func @transform_2(%arg0: i32) -> (i32, i32) {
    %c0_i32 = arith.constant 0 : i32
    %c0_i32_0 = arith.constant 0 : i32
    %c0_i32_1 = arith.constant 0 : i32
    return %c0_i32, %c0_i32_0 : i32, i32
  }
  func.func @transform_3(%arg0: i32) -> (i32, i32) {
    %c0_i32 = arith.constant 0 : i32
    %c0_i32_0 = arith.constant 0 : i32
    %c0_i32_1 = arith.constant 0 : i32
    return %c0_i32, %c0_i32_0 : i32, i32
  }
  func.func @transform_4(%arg0: i32) -> (i32, i32) {
    %c0_i32 = arith.constant 0 : i32
    %c0_i32_0 = arith.constant 0 : i32
    %c0_i32_1 = arith.constant 0 : i32
    return %c0_i32, %c0_i32_0 : i32, i32
  }
  func.func @transform_5(%arg0: i32) -> (i32, i32) {
    %c0_i32 = arith.constant 0 : i32
    %c0_i32_0 = arith.constant 0 : i32
    return %c0_i32, %arg0 : i32, i32
  }
}

</mosaic_0001>

<llo_original>
// kernel: _lambda_.28
$region0: #{_lambda_.28}
  #allocation0 [shape = 'u32[]', space=smem, size = 0x4, offset = 0x4, fixed_abs, tag = 'smem constant byte address 0x4 - core index']
  #allocation1 [shape = 'u32[72,128]{1,0:T(1,128)}', space=vmem, size = 0x9000, scoped, tag = 'internal scratch']
  %s0 = inlined_call_operand.vmem [shape: bf16[27,2048], index: 0, kind: input, shape index: {}]
  %s1 = inlined_call_operand.vmem [shape: bf16[8,27], index: 1, kind: input, shape index: {}]
  %s2 = inlined_call_operand.vmem [shape: f32[8,1], index: 2, kind: input, shape index: {}]
  %s3 = inlined_call_operand.vmem [shape: bf16[8,2048], index: 3, kind: output, shape index: {}]
  %s4 = sld [smem:[#allocation0]]
  $region68: #{_lambda_.28} parent=0
    _
  %s6 = ssub.s32 1, %s4
  %s7 = scalar_select 0, %s6, %s4
  $region1: #{_lambda_.28} parent=0
    #allocation2 [shape = 'u8[65536]{0}', space=vmem, size = 0x10000, scoped, tag = 'input window, operand 0']
    loop: start=0, step=1, limit=6
    $region2: #{_lambda_.28} parent=1 // loop_pre_header
      _
    $region3: #{_lambda_.28} parent=1 // loop_header
      %s9 = sphi 0, %s13
      %p10 = scmp.ge.s32.totalorder %s9, 6
      %s19 = sphi 0, %s21
      %s22 = sphi 0, %s19
      %s23 = sphi 0, %s22
      %s39 = sphi 0, %s23
      %s43 = sphi 0, %s43
      %s45 = sphi 0, %s43
      %s46 = sphi 0, %s45
      %s60 = sphi 0, %s46
      %s64 = sphi 0, %s64
      %s66 = sphi 0, %s64
      %s67 = sphi 0, %s66
      %s81 = sphi 0, %s67
      %s87 = sphi 0, %s89
      %s90 = sphi 0, %s87
      %s91 = sphi 0, %s90
      %s107 = sphi 0, %s91
    $region4: #{_lambda_.28} parent=1 // loop_header_branch
      %12 = sbr.rel (%p10) target = $region8
    $region5: #{_lambda_.28} parent=1 // loop_body
      %s14 = ssub.s32 %s9, 1
      %s15 = ssub.s32 %s9, 2
      %s16 = sadd.s32 %s9, 1
      %s17 = ssub.s32 %s9, %s16
      %p18 = scmp.eq.s32.totalorder %s17, 0
      %s20 = sadd.s32 %s19, 1
      %s21 = scalar_select %p18, %s19, %s20
      %p24 = pneg %p18
      %p25 = scmp.eq.s32.totalorder %s9, 3
      %p26 = por %p24, %p25
      %p27 = scmp.ne.s32.totalorder %s19, %s22
      %p28 = scmp.eq.s32.totalorder %s9, 0
      %p29 = por %p27, %p28
      %p30 = scmp.ne.s32.totalorder %s19, %s22
      %p31 = scmp.eq.s32.totalorder %s14, 3
      %p32 = por %p30, %p31
      %p33 = scmp.ne.s32.totalorder %s22, %s23
      %p34 = scmp.eq.s32.totalorder %s14, 0
      %p35 = por %p33, %p34
      %p36 = scmp.ne.s32.totalorder %s22, %s23
      %p37 = scmp.eq.s32.totalorder %s15, 3
      %p38 = por %p36, %p37
      %p40 = scmp.ne.s32.totalorder %s23, %s39
      %p41 = scmp.eq.s32.totalorder %s15, 0
      %p42 = por %p40, %p41
      %s44 = sadd.s32 %s43, 1
      %p47 = scmp.eq.s32.totalorder %s9, 3
      %p48 = scmp.ne.s32.totalorder %s43, %s45
      %p49 = scmp.eq.s32.totalorder %s9, 0
      %p50 = por %p48, %p49
      %p51 = scmp.ne.s32.totalorder %s43, %s45
      %p52 = scmp.eq.s32.totalorder %s14, 3
      %p53 = por %p51, %p52
      %p54 = scmp.ne.s32.totalorder %s45, %s46
      %p55 = scmp.eq.s32.totalorder %s14, 0
      %p56 = por %p54, %p55
      %p57 = scmp.ne.s32.totalorder %s45, %s46
      %p58 = scmp.eq.s32.totalorder %s15, 3
      %p59 = por %p57, %p58
      %p61 = scmp.ne.s32.totalorder %s46, %s60
      %p62 = scmp.eq.s32.totalorder %s15, 0
      %p63 = por %p61, %p62
      %s65 = sadd.s32 %s64, 1
      %p68 = scmp.eq.s32.totalorder %s9, 3
      %p69 = scmp.ne.s32.totalorder %s64, %s66
      %p70 = scmp.eq.s32.totalorder %s9, 0
      %p71 = por %p69, %p70
      %p72 = scmp.ne.s32.totalorder %s64, %s66
      %p73 = scmp.eq.s32.totalorder %s14, 3
      %p74 = por %p72, %p73
      %p75 = scmp.ne.s32.totalorder %s66, %s67
      %p76 = scmp.eq.s32.totalorder %s14, 0
      %p77 = por %p75, %p76
      %p78 = scmp.ne.s32.totalorder %s66, %s67
      %p79 = scmp.eq.s32.totalorder %s15, 3
      %p80 = por %p78, %p79
      %p82 = scmp.ne.s32.totalorder %s67, %s81
      %p83 = scmp.eq.s32.totalorder %s15, 0
      %p84 = por %p82, %p83
      %s85 = ssub.s32 %s9, %s16
      %p86 = scmp.eq.s32.totalorder %s85, 0
      %s88 = sadd.s32 %s87, 1
      %s89 = scalar_select %p86, %s87, %s88
      %p92 = pneg %p86
      %p93 = scmp.eq.s32.totalorder %s9, 3
      %p94 = por %p92, %p93
      %p95 = scmp.ne.s32.totalorder %s87, %s90
      %p96 = scmp.eq.s32.totalorder %s9, 0
      %p97 = por %p95, %p96
      %p98 = scmp.ne.s32.totalorder %s87, %s90
      %p99 = scmp.eq.s32.totalorder %s14, 3
      %p100 = por %p98, %p99
      %p101 = scmp.ne.s32.totalorder %s90, %s91
      %p102 = scmp.eq.s32.totalorder %s14, 0
      %p103 = por %p101, %p102
      %p104 = scmp.ne.s32.totalorder %s90, %s91
      %p105 = scmp.eq.s32.totalorder %s15, 3
      %p106 = por %p104, %p105
      %p108 = scmp.ne.s32.totalorder %s91, %s107
      %p109 = scmp.eq.s32.totalorder %s15, 0
      %p110 = por %p108, %p109
      %p111 = scmp.le.s32.totalorder 1, %s9
      %p112 = scmp.lt.s32.totalorder %s9, 5
      %p113 = pnand %p111, %p112
      %p114 = pneg %p113
      // Predicated region
      $region9: #{_lambda_.28} parent=5 // pred_check
        _
      $region10: #{_lambda_.28} parent=5 // pred_check_branch
        %116 = sbr.rel (%p113) target = $region12
      $region11: #{_lambda_.28} parent=5 // pred_region
        %s117 = ssub.s32 %s9, 1
        // Predicated region
        $region13: #{_lambda_.28} parent=11 // pred_check
          %p118 = pneg %p56
        $region14: #{_lambda_.28} parent=11 // pred_check_branch
          %120 = sbr.rel (%p118) target = $region16
        $region15: #{_lambda_.28} parent=11 // pred_region
          _
        $region16: #{_lambda_.28} parent=11 // pred_fallthru
          _
        // Predicated region
        $region17: #{_lambda_.28} parent=11 // pred_check
          %p121 = pneg %p77
        $region18: #{_lambda_.28} parent=11 // pred_check_branch
          %123 = sbr.rel (%p121) target = $region20
        $region19: #{_lambda_.28} parent=11 // pred_region
          _
        $region20: #{_lambda_.28} parent=11 // pred_fallthru
          _
      $region12: #{_lambda_.28} parent=5 // pred_fallthru
        _
      %p124 = scmp.lt.s32.totalorder %s9, 4
      // Predicated region
      $region21: #{_lambda_.28} parent=5 // pred_check
        %p125 = pneg %p124
      $region22: #{_lambda_.28} parent=5 // pred_check_branch
        %127 = sbr.rel (%p125) target = $region24
      $region23: #{_lambda_.28} parent=5 // pred_region
        // Predicated region
        $region25: #{_lambda_.28} parent=23 // pred_check
          %p128 = pneg %p29
        $region26: #{_lambda_.28} parent=23 // pred_check_branch
          %130 = sbr.rel (%p128) target = $region28
        $region27: #{_lambda_.28} parent=23 // pred_region
          %s131 = sand.u32 %s19, 1
          %s132 = sand.u32 %s19, 1
          %s133 = smul.addr %s132, 64
          %s134 = scalar_lea.vmem [#allocation2], %s133
          %s135 = smul.u32 4, %s9
          %s136 = smul.addr %s135, 4
          %s137 = scalar_lea.vmem %s0, %s136
          // Predicated region
          $region29: #{_lambda_.28} parent=27 // pred_check
            _
          $region30: #{_lambda_.28} parent=27 // pred_check_branch
            %139 = sbr.rel (0) target = $region32
          $region31: #{_lambda_.28} parent=27 // pred_region
            // Predicated region
            $region33: #{_lambda_.28} parent=31 // pred_check
              _
            $region34: #{_lambda_.28} parent=31 // pred_check_branch
              %141 = sbr.rel (0) target = $region36
            $region35: #{_lambda_.28} parent=31 // pred_region
              loop: start=0, step=1, limit=1
              $region37: #{_lambda_.28} parent=35 // loop_pre_header
                _
              $region38: #{_lambda_.28} parent=35 // loop_header
                %s143 = sphi 0, %s147
                %p144 = scmp.ge.s32.totalorder %s143, 1
                %s148 = sphi %s137, %s137
                %s149 = sphi %s134, %s134
              $region39: #{_lambda_.28} parent=35 // loop_header_branch
                %146 = sbr.rel (%p144) target = $region43
              $region40: #{_lambda_.28} parent=35 // loop_body
                %v150 = vld [vmem:[%s148] sm:$0xff]
                %151 = vst [vmem:[%s149] sm:$0xff] %v150
                %v152 = vld [vmem:[%s148 + $0x8] sm:$0xff]
                %153 = vst [vmem:[%s149 + $0x8] sm:$0xff] %v152
                %v154 = vld [vmem:[%s148 + $0x40] sm:$0xff]
                %155 = vst [vmem:[%s149 + $0x10] sm:$0xff] %v154
                %v156 = vld [vmem:[%s148 + $0x48] sm:$0xff]
                %157 = vst [vmem:[%s149 + $0x18] sm:$0xff] %v156
                %v158 = vld [vmem:[%s148 + $0x80] sm:$0xff]
                %159 = vst [vmem:[%s149 + $0x20] sm:$0xff] %v158
                %v160 = vld [vmem:[%s148 + $0x88] sm:$0xff]
                %161 = vst [vmem:[%s149 + $0x28] sm:$0xff] %v160
                %v162 = vld [vmem:[%s148 + $0xc0] sm:$0xff]
                %163 = vst [vmem:[%s149 + $0x30] sm:$0xff] %v162
                %v164 = vld [vmem:[%s148 + $0xc8] sm:$0xff]
                %165 = vst [vmem:[%s149 + $0x38] sm:$0xff] %v164
              $region41: #{_lambda_.28} parent=35 // loop_footer
                %s147 = sadd.s32 1, %s143
              $region42: #{_lambda_.28} parent=35 // loop_footer_branch
                %142 = sbr.rel target = $region38
              $region43: #{_lambda_.28} parent=35 // loop_exit
                _
            $region36: #{_lambda_.28} parent=31 // pred_fallthru
              _
            // Predicated region
            $region44: #{_lambda_.28} parent=31 // pred_check
              _
            $region45: #{_lambda_.28} parent=31 // pred_check_branch
              %167 = sbr.rel target = $region47
            $region46: #{_lambda_.28} parent=31 // pred_region
              _
            $region47: #{_lambda_.28} parent=31 // pred_fallthru
              _
          $region32: #{_lambda_.28} parent=27 // pred_fallthru
            _
          %168 = vnop
        $region28: #{_lambda_.28} parent=23 // pred_fallthru
          _
      $region24: #{_lambda_.28} parent=5 // pred_fallthru
        _
      %p169 = scmp.le.s32.totalorder 1, %s9
      %p170 = scmp.lt.s32.totalorder %s9, 5
      %p171 = pnand %p169, %p170
      %p172 = pneg %p171
      // Predicated region
      $region48: #{_lambda_.28} parent=5 // pred_check
        _
      $region49: #{_lambda_.28} parent=5 // pred_check_branch
        %174 = sbr.rel (%p171) target = $region51
      $region50: #{_lambda_.28} parent=5 // pred_region
        %s175 = ssub.s32 %s9, 1
        %s176 = sand.u32 %s22, 1
        %s177 = sand.u32 %s22, 1
        %s178 = smul.addr %s177, 64
        %s179 = scalar_lea.vmem [#allocation2], %s178
        // Predicated region
        $region52: #{_lambda_.28} parent=50 // pred_check
          %p180 = pneg %p35
        $region53: #{_lambda_.28} parent=50 // pred_check_branch
          %182 = sbr.rel (%p180) target = $region55
        $region54: #{_lambda_.28} parent=50 // pred_region
          _
        $region55: #{_lambda_.28} parent=50 // pred_fallthru
          _
        %s183 = sand.u32 %s22, 1
        %s184 = sand.u32 %s22, 1
        %s185 = smul.addr %s184, 64
        %s186 = scalar_lea.vmem [#allocation2], %s185
        %p187 = pneg %p35
        %p188 = pneg %p32
        %p189 = pneg %p56
        %p190 = pneg %p53
        %p191 = pneg %p77
        %p192 = pneg %p74
        %p193 = pneg %p103
        %p194 = pneg %p100
        %s195 = smul.u32 4, %s14
        %p196 = scmp.lt.s32.totalorder %s195, 15
        %s197 = scalar_select %p196, %s195, 15
        %s198 = smul.addr %s197, 4
        %s199 = scalar_lea.vmem %s3, %s198
        %s200 = smul.u32 4, %s14
        %s201 = smul.u32 4, %s14
        %p202 = scmp.lt.s32.totalorder %s201, 15
        %s203 = scalar_select %p202, %s201, 15
        %s204 = smul.addr %s203, 4
        %s205 = scalar_lea.vmem %s3, %s204
        %s206 = smul.u32 4, %s14
        %v208 = vld [vmem:[%s1] sm:$0xf]
        %v209 = vld [vmem:[%s179] sm:$0xff]
        %v210 = vld [vmem:[%s179 + $0x8] sm:$0xff]
        %v211 = vld [vmem:[%s179 + $0x10] sm:$0xff]
        %v212 = vld [vmem:[%s179 + $0x18] sm:$0xff]
        %v213 = vld [vmem:[%s179 + $0x20] sm:$0xff]
        %v214 = vld [vmem:[%s179 + $0x28] sm:$0xff]
        %v215 = vld [vmem:[%s179 + $0x30] sm:$0x33]
        %v216 = vld [vmem:[%s179 + $0x38] sm:$0x33]
        %v217 = vld [vmem:[%s2] sm:$0xff]
        %219 = vset.pattern.permute.xlu0 0
        %220 = vperm.xlu0 %219, %v217
        %v221 = vpop.permute.xlu0 %220
        %v231 = vunpack.c.l.b16 %v209
        %v232 = vunpack.c.h.b16 %v209
        %v233 = vunpack.c.l.b16 %v210
        %v234 = vunpack.c.h.b16 %v210
        %v235 = vunpack.c.l.b16 %v211
        %v236 = vunpack.c.h.b16 %v211
        %v237 = vunpack.c.l.b16 %v212
        %v238 = vunpack.c.h.b16 %v212
        %v239 = vunpack.c.l.b16 %v213
        %v240 = vunpack.c.h.b16 %v213
        %v241 = vunpack.c.l.b16 %v214
        %v242 = vunpack.c.h.b16 %v214
        %v243 = vunpack.c.l.b16 %v215
        %v244 = vunpack.c.h.b16 %v215
        %v245 = vunpack.c.l.b16 %v216
        %v246 = vunpack.c.h.b16 %v216
        %v247 = vpack.c.b16 %v235, %v231
        %v248 = vpack.c.b16 %v236, %v232
        %v249 = vpack.c.b16 %v237, %v233
        %v250 = vpack.c.b16 %v238, %v234
        %v251 = vpack.c.b16 %v243, %v239
        %v252 = vpack.c.b16 %v244, %v240
        %v253 = vpack.c.b16 %v245, %v241
        %v254 = vpack.c.b16 %v246, %v242
        %vm259 = vcmask 220160
        %v261 = vsel %vm259, %v208, 0
        %vm263 = vcmask 1044480
        %vm264 = vcmask 1045504
        %v265 = vsel %vm263, 4294967295, 65535
        %v266 = vsel %vm264, %v265, 0
        %v268 = vand.u32 %v251, %v266
        %v271 = vand.u32 %v252, %v266
        %v274 = vand.u32 %v253, %v266
        %v277 = vand.u32 %v254, %v266
        %279 = vmatpush.bf16.msra.mxu0 0
        %280 = vmatpush.bf16.msra.mxu0 0
        %281 = vmatpush.bf16.msra.mxu0 0
        %282 = vmatpush.bf16.msra.mxu0 0
        %283 = vmatpush.bf16.msra.mxu0 0
        %284 = vmatpush.bf16.msra.mxu0 0
        %285 = vmatpush.bf16.msra.mxu0 %v268
        %286 = vmatpush.bf16.msra.mxu0 %v247
        %287 = vmatmul.bf16.gmra.mxu0 %v261
        %v288 = vpop.f32.mrf.mxu0
        %v289 = vadd.f32 %v221, %v288
        %v290 = vpop.f32.mrf.mxu0
        %291 = vdwg.mxu0
        %292 = vmatpush.bf16.msra.mxu0 0
        %293 = vmatpush.bf16.msra.mxu0 0
        %294 = vmatpush.bf16.msra.mxu0 0
        %295 = vmatpush.bf16.msra.mxu0 0
        %296 = vmatpush.bf16.msra.mxu0 0
        %297 = vmatpush.bf16.msra.mxu0 0
        %298 = vmatpush.bf16.msra.mxu0 %v271
        %299 = vmatpush.bf16.msra.mxu0 %v248
        %300 = vmatmul.bf16.gmra.mxu0 %v261
        %v301 = vpop.f32.mrf.mxu0
        %v302 = vadd.f32 %v221, %v301
        %v303 = vpop.f32.mrf.mxu0
        %304 = vdwg.mxu0
        %305 = vmatpush.bf16.msra.mxu0 0
        %306 = vmatpush.bf16.msra.mxu0 0
        %307 = vmatpush.bf16.msra.mxu0 0
        %308 = vmatpush.bf16.msra.mxu0 0
        %309 = vmatpush.bf16.msra.mxu0 0
        %310 = vmatpush.bf16.msra.mxu0 0
        %311 = vmatpush.bf16.msra.mxu0 %v274
        %312 = vmatpush.bf16.msra.mxu0 %v249
        %313 = vmatmul.bf16.gmra.mxu0 %v261
        %v314 = vpop.f32.mrf.mxu0
        %v315 = vadd.f32 %v221, %v314
        %v316 = vpop.f32.mrf.mxu0
        %317 = vdwg.mxu0
        %318 = vmatpush.bf16.msra.mxu0 0
        %319 = vmatpush.bf16.msra.mxu0 0
        %320 = vmatpush.bf16.msra.mxu0 0
        %321 = vmatpush.bf16.msra.mxu0 0
        %322 = vmatpush.bf16.msra.mxu0 0
        %323 = vmatpush.bf16.msra.mxu0 0
        %324 = vmatpush.bf16.msra.mxu0 %v277
        %325 = vmatpush.bf16.msra.mxu0 %v250
        %326 = vmatmul.bf16.gmra.mxu0 %v261
        %v327 = vpop.f32.mrf.mxu0
        %v328 = vadd.f32 %v221, %v327
        %v329 = vpop.f32.mrf.mxu0
        %330 = vdwg.mxu0
        %v331 = vand.u32 2147483647, %v289
        %v332 = vand.u32 2147483647, %v302
        %v333 = vand.u32 2147483647, %v315
        %v334 = vand.u32 2147483647, %v328
        %v335 = vsub.f32 0.0, %v331
        %v336 = vsub.f32 0.0, %v332
        %v337 = vsub.f32 0.0, %v333
        %v338 = vsub.f32 0.0, %v334
        %v339 = vmul.f32 %v335, 1.442695
        %v340 = vpow.pop %v339
        %v341 = vmul.f32 %v336, 1.442695
        %v342 = vpow.pop %v341
        %v343 = vmul.f32 %v337, 1.442695
        %v344 = vpow.pop %v343
        %v345 = vmul.f32 %v338, 1.442695
        %v346 = vpow.pop %v345
        %vm347 = vcmp.ge.f32.partialorder %v289, 0.0
        %vm348 = vcmp.ge.f32.partialorder %v302, 0.0
        %vm349 = vcmp.ge.f32.partialorder %v315, 0.0
        %vm350 = vcmp.ge.f32.partialorder %v328, 0.0
        %v351 = vsel %vm347, 1.0, %v340
        %v352 = vsel %vm348, 1.0, %v342
        %v353 = vsel %vm349, 1.0, %v344
        %v354 = vsel %vm350, 1.0, %v346
        %v355 = vadd.f32 %v340, 1.0
        %v356 = vadd.f32 %v342, 1.0
        %v357 = vadd.f32 %v344, 1.0
        %v358 = vadd.f32 %v346, 1.0
        %v359 = vrcp.pop %v355
        %v360 = vrcp.pop %v356
        %v361 = vrcp.pop %v357
        %v362 = vrcp.pop %v358
        %v363 = vmul.f32 %v351, %v359
        %v364 = vmul.f32 %v352, %v360
        %v365 = vmul.f32 %v353, %v361
        %v366 = vmul.f32 %v354, %v362
        %v367 = vmul.f32 %v289, %v363
        %v368 = vmul.f32 %v302, %v364
        %v369 = vmul.f32 %v315, %v365
        %v370 = vmul.f32 %v328, %v366
        %v371 = vpack.c.bf16 %v368, %v367
        %v372 = vpack.c.bf16 %v370, %v369
        %373 = vst [vmem:[%s205] sm:$0xff] %v371
        %374 = vst [vmem:[%s205 + $0x8] sm:$0xff] %v372
        %s375 = smul.u32 4, %s14
        %p376 = scmp.lt.s32.totalorder %s375, 15
        %s377 = scalar_select %p376, %s375, 15
        %s378 = smul.addr %s377, 4
        %s379 = scalar_lea.vmem %s3, %s378
        // Predicated region
        $region56: #{_lambda_.28} parent=50 // pred_check
          %p380 = pneg %p100
        $region57: #{_lambda_.28} parent=50 // pred_check_branch
          %382 = sbr.rel (%p380) target = $region59
        $region58: #{_lambda_.28} parent=50 // pred_region
          %s383 = smul.u32 4, %s14
        $region59: #{_lambda_.28} parent=50 // pred_fallthru
          _
      $region51: #{_lambda_.28} parent=5 // pred_fallthru
        _
      %p384 = scmp.le.s32.totalorder 2, %s9
      // Predicated region
      $region60: #{_lambda_.28} parent=5 // pred_check
        %p385 = pneg %p384
      $region61: #{_lambda_.28} parent=5 // pred_check_branch
        %387 = sbr.rel (%p385) target = $region63
      $region62: #{_lambda_.28} parent=5 // pred_region
        %s388 = ssub.s32 %s9, 2
        // Predicated region
        $region64: #{_lambda_.28} parent=62 // pred_check
          %p389 = pneg %p106
        $region65: #{_lambda_.28} parent=62 // pred_check_branch
          %391 = sbr.rel (%p389) target = $region67
        $region66: #{_lambda_.28} parent=62 // pred_region
          %s392 = smul.u32 4, %s15
          %p393 = scmp.lt.s32.totalorder %s392, 15
          %s394 = scalar_select %p393, %s392, 15
          %s395 = smul.addr %s394, 4
          %s396 = scalar_lea.vmem %s3, %s395
        $region67: #{_lambda_.28} parent=62 // pred_fallthru
          _
      $region63: #{_lambda_.28} parent=5 // pred_fallthru
        _
    $region6: #{_lambda_.28} parent=1 // loop_footer
      %s13 = sadd.s32 1, %s9
    $region7: #{_lambda_.28} parent=1 // loop_footer_branch
      %8 = sbr.rel target = $region3
    $region8: #{_lambda_.28} parent=1 // loop_exit
      _

// kernel: _lambda_.29
$region0: #{_lambda_.29}
  #allocation0 [shape = 'u32[]', space=smem, size = 0x4, offset = 0x4, fixed_abs, tag = 'smem constant byte address 0x4 - core index']
  #allocation1 [shape = 'u32[72,128]{1,0:T(1,128)}', space=vmem, size = 0x9000, scoped, tag = 'internal scratch']
  %s0 = inlined_call_operand.vmem [shape: bf16[72,512], index: 0, kind: input, shape index: {}]
  %s1 = inlined_call_operand.vmem [shape: bf16[16,72], index: 1, kind: input, shape index: {}]
  %s2 = inlined_call_operand.vmem [shape: f32[16,1], index: 2, kind: input, shape index: {}]
  %s3 = inlined_call_operand.vmem [shape: bf16[16,512], index: 3, kind: output, shape index: {}]
  %s4 = sld [smem:[#allocation0]]
  $region117: #{_lambda_.29} parent=0
    _
  %s6 = ssub.s32 1, %s4
  %s7 = scalar_select 0, %s6, %s4
  $region1: #{_lambda_.29} parent=0
    #allocation2 [shape = 'u8[73728]{0}', space=vmem, size = 0x12000, scoped, tag = 'input window, operand 0']
    #allocation3 [shape = 'u8[16384]{0}', space=vmem, size = 0x4000, scoped, tag = 'output window, operand 0']
    loop: start=0, step=1, limit=4
    $region2: #{_lambda_.29} parent=1 // loop_pre_header
      _
    $region3: #{_lambda_.29} parent=1 // loop_header
      %s9 = sphi 0, %s13
      %p10 = scmp.ge.s32.totalorder %s9, 4
      %s19 = sphi 0, %s21
      %s22 = sphi 0, %s19
      %s23 = sphi 0, %s22
      %s39 = sphi 0, %s23
      %s43 = sphi 0, %s43
      %s45 = sphi 0, %s43
      %s46 = sphi 0, %s45
      %s60 = sphi 0, %s46
      %s64 = sphi 0, %s64
      %s66 = sphi 0, %s64
      %s67 = sphi 0, %s66
      %s81 = sphi 0, %s67
      %s87 = sphi 0, %s89
      %s90 = sphi 0, %s87
      %s91 = sphi 0, %s90
      %s107 = sphi 0, %s91
    $region4: #{_lambda_.29} parent=1 // loop_header_branch
      %12 = sbr.rel (%p10) target = $region8
    $region5: #{_lambda_.29} parent=1 // loop_body
      %s14 = ssub.s32 %s9, 1
      %s15 = ssub.s32 %s9, 2
      %s16 = sadd.s32 %s9, 1
      %s17 = ssub.s32 %s9, %s16
      %p18 = scmp.eq.s32.totalorder %s17, 0
      %s20 = sadd.s32 %s19, 1
      %s21 = scalar_select %p18, %s19, %s20
      %p24 = pneg %p18
      %p25 = scmp.eq.s32.totalorder %s9, 1
      %p26 = por %p24, %p25
      %p27 = scmp.ne.s32.totalorder %s19, %s22
      %p28 = scmp.eq.s32.totalorder %s9, 0
      %p29 = por %p27, %p28
      %p30 = scmp.ne.s32.totalorder %s19, %s22
      %p31 = scmp.eq.s32.totalorder %s14, 1
      %p32 = por %p30, %p31
      %p33 = scmp.ne.s32.totalorder %s22, %s23
      %p34 = scmp.eq.s32.totalorder %s14, 0
      %p35 = por %p33, %p34
      %p36 = scmp.ne.s32.totalorder %s22, %s23
      %p37 = scmp.eq.s32.totalorder %s15, 1
      %p38 = por %p36, %p37
      %p40 = scmp.ne.s32.totalorder %s23, %s39
      %p41 = scmp.eq.s32.totalorder %s15, 0
      %p42 = por %p40, %p41
      %s44 = sadd.s32 %s43, 1
      %p47 = scmp.eq.s32.totalorder %s9, 1
      %p48 = scmp.ne.s32.totalorder %s43, %s45
      %p49 = scmp.eq.s32.totalorder %s9, 0
      %p50 = por %p48, %p49
      %p51 = scmp.ne.s32.totalorder %s43, %s45
      %p52 = scmp.eq.s32.totalorder %s14, 1
      %p53 = por %p51, %p52
      %p54 = scmp.ne.s32.totalorder %s45, %s46
      %p55 = scmp.eq.s32.totalorder %s14, 0
      %p56 = por %p54, %p55
      %p57 = scmp.ne.s32.totalorder %s45, %s46
      %p58 = scmp.eq.s32.totalorder %s15, 1
      %p59 = por %p57, %p58
      %p61 = scmp.ne.s32.totalorder %s46, %s60
      %p62 = scmp.eq.s32.totalorder %s15, 0
      %p63 = por %p61, %p62
      %s65 = sadd.s32 %s64, 1
      %p68 = scmp.eq.s32.totalorder %s9, 1
      %p69 = scmp.ne.s32.totalorder %s64, %s66
      %p70 = scmp.eq.s32.totalorder %s9, 0
      %p71 = por %p69, %p70
      %p72 = scmp.ne.s32.totalorder %s64, %s66
      %p73 = scmp.eq.s32.totalorder %s14, 1
      %p74 = por %p72, %p73
      %p75 = scmp.ne.s32.totalorder %s66, %s67
      %p76 = scmp.eq.s32.totalorder %s14, 0
      %p77 = por %p75, %p76
      %p78 = scmp.ne.s32.totalorder %s66, %s67
      %p79 = scmp.eq.s32.totalorder %s15, 1
      %p80 = por %p78, %p79
      %p82 = scmp.ne.s32.totalorder %s67, %s81
      %p83 = scmp.eq.s32.totalorder %s15, 0
      %p84 = por %p82, %p83
      %s85 = ssub.s32 %s9, %s16
      %p86 = scmp.eq.s32.totalorder %s85, 0
      %s88 = sadd.s32 %s87, 1
      %s89 = scalar_select %p86, %s87, %s88
      %p92 = pneg %p86
      %p93 = scmp.eq.s32.totalorder %s9, 1
      %p94 = por %p92, %p93
      %p95 = scmp.ne.s32.totalorder %s87, %s90
      %p96 = scmp.eq.s32.totalorder %s9, 0
      %p97 = por %p95, %p96
      %p98 = scmp.ne.s32.totalorder %s87, %s90
      %p99 = scmp.eq.s32.totalorder %s14, 1
      %p100 = por %p98, %p99
      %p101 = scmp.ne.s32.totalorder %s90, %s91
      %p102 = scmp.eq.s32.totalorder %s14, 0
      %p103 = por %p101, %p102
      %p104 = scmp.ne.s32.totalorder %s90, %s91
      %p105 = scmp.eq.s32.totalorder %s15, 1
      %p106 = por %p104, %p105
      %p108 = scmp.ne.s32.totalorder %s91, %s107
      %p109 = scmp.eq.s32.totalorder %s15, 0
      %p110 = por %p108, %p109
      %p111 = scmp.le.s32.totalorder 1, %s9
      %p112 = scmp.lt.s32.totalorder %s9, 3
      %p113 = pnand %p111, %p112
      %p114 = pneg %p113
      // Predicated region
      $region9: #{_lambda_.29} parent=5 // pred_check
        _
      $region10: #{_lambda_.29} parent=5 // pred_check_branch
        %116 = sbr.rel (%p113) target = $region12
      $region11: #{_lambda_.29} parent=5 // pred_region
        %s117 = ssub.s32 %s9, 1
        // Predicated region
        $region13: #{_lambda_.29} parent=11 // pred_check
          %p118 = pneg %p56
        $region14: #{_lambda_.29} parent=11 // pred_check_branch
          %120 = sbr.rel (%p118) target = $region16
        $region15: #{_lambda_.29} parent=11 // pred_region
          _
        $region16: #{_lambda_.29} parent=11 // pred_fallthru
          _
        // Predicated region
        $region17: #{_lambda_.29} parent=11 // pred_check
          %p121 = pneg %p77
        $region18: #{_lambda_.29} parent=11 // pred_check_branch
          %123 = sbr.rel (%p121) target = $region20
        $region19: #{_lambda_.29} parent=11 // pred_region
          _
        $region20: #{_lambda_.29} parent=11 // pred_fallthru
          _
      $region12: #{_lambda_.29} parent=5 // pred_fallthru
        _
      %p124 = scmp.lt.s32.totalorder %s9, 2
      // Predicated region
      $region21: #{_lambda_.29} parent=5 // pred_check
        %p125 = pneg %p124
      $region22: #{_lambda_.29} parent=5 // pred_check_branch
        %127 = sbr.rel (%p125) target = $region24
      $region23: #{_lambda_.29} parent=5 // pred_region
        // Predicated region
        $region25: #{_lambda_.29} parent=23 // pred_check
          %p128 = pneg %p29
        $region26: #{_lambda_.29} parent=23 // pred_check_branch
          %130 = sbr.rel (%p128) target = $region28
        $region27: #{_lambda_.29} parent=23 // pred_region
          %s131 = sand.u32 %s19, 1
          %s132 = sand.u32 %s19, 1
          %s133 = smul.addr %s132, 72
          %s134 = scalar_lea.vmem [#allocation2], %s133
          %s135 = smul.u32 2, %s9
          %s136 = smul.addr %s135, 4
          %s137 = scalar_lea.vmem %s0, %s136
          // Predicated region
          $region29: #{_lambda_.29} parent=27 // pred_check
            _
          $region30: #{_lambda_.29} parent=27 // pred_check_branch
            %139 = sbr.rel (0) target = $region32
          $region31: #{_lambda_.29} parent=27 // pred_region
            // Predicated region
            $region33: #{_lambda_.29} parent=31 // pred_check
              _
            $region34: #{_lambda_.29} parent=31 // pred_check_branch
              %141 = sbr.rel (0) target = $region36
            $region35: #{_lambda_.29} parent=31 // pred_region
              // Predicated region
              $region48: #{_lambda_.29} parent=35 // pred_check
                _
              $region49: #{_lambda_.29} parent=35 // pred_check_branch
                %173 = sbr.rel (0) target = $region51
              $region50: #{_lambda_.29} parent=35 // pred_region
                loop: start=0, step=1, limit=1
                $region52: #{_lambda_.29} parent=50 // loop_pre_header
                  _
                $region53: #{_lambda_.29} parent=50 // loop_header
                  %s175 = sphi 0, %s179
                  %p176 = scmp.ge.s32.totalorder %s175, 1
                  %s180 = sphi %s137, %s137
                  %s181 = sphi %s134, %s134
                $region54: #{_lambda_.29} parent=50 // loop_header_branch
                  %178 = sbr.rel (%p176) target = $region58
                $region55: #{_lambda_.29} parent=50 // loop_body
                  %v182 = vld [vmem:[%s180] sm:$0xff]
                  %183 = vst [vmem:[%s181] sm:$0xff] %v182
                  %v184 = vld [vmem:[%s180 + $0x10] sm:$0xff]
                  %185 = vst [vmem:[%s181 + $0x8] sm:$0xff] %v184
                  %v186 = vld [vmem:[%s180 + $0x20] sm:$0xff]
                  %187 = vst [vmem:[%s181 + $0x10] sm:$0xff] %v186
                  %v188 = vld [vmem:[%s180 + $0x30] sm:$0xff]
                  %189 = vst [vmem:[%s181 + $0x18] sm:$0xff] %v188
                  %v190 = vld [vmem:[%s180 + $0x40] sm:$0xff]
                  %191 = vst [vmem:[%s181 + $0x20] sm:$0xff] %v190
                  %v192 = vld [vmem:[%s180 + $0x50] sm:$0xff]
                  %193 = vst [vmem:[%s181 + $0x28] sm:$0xff] %v192
                  %v194 = vld [vmem:[%s180 + $0x60] sm:$0xff]
                  %195 = vst [vmem:[%s181 + $0x30] sm:$0xff] %v194
                  %v196 = vld [vmem:[%s180 + $0x70] sm:$0xff]
                  %197 = vst [vmem:[%s181 + $0x38] sm:$0xff] %v196
                  %v198 = vld [vmem:[%s180 + $0x80] sm:$0xff]
                  %199 = vst [vmem:[%s181 + $0x40] sm:$0xff] %v198
                $region56: #{_lambda_.29} parent=50 // loop_footer
                  %s179 = sadd.s32 1, %s175
                $region57: #{_lambda_.29} parent=50 // loop_footer_branch
                  %174 = sbr.rel target = $region53
                $region58: #{_lambda_.29} parent=50 // loop_exit
                  _
              $region51: #{_lambda_.29} parent=35 // pred_fallthru
                _
              // Predicated region
              $region59: #{_lambda_.29} parent=35 // pred_check
                _
              $region60: #{_lambda_.29} parent=35 // pred_check_branch
                %201 = sbr.rel target = $region62
              $region61: #{_lambda_.29} parent=35 // pred_region
                _
              $region62: #{_lambda_.29} parent=35 // pred_fallthru
                _
            $region36: #{_lambda_.29} parent=31 // pred_fallthru
              _
            // Predicated region
            $region37: #{_lambda_.29} parent=31 // pred_check
              _
            $region38: #{_lambda_.29} parent=31 // pred_check_branch
              %143 = sbr.rel target = $region40
            $region39: #{_lambda_.29} parent=31 // pred_region
              %s145 = ssub.s32 256, 1
              loop: start=0, step=1, limit=1
              $region41: #{_lambda_.29} parent=39 // loop_pre_header
                _
              $region42: #{_lambda_.29} parent=39 // loop_header
                %s147 = sphi 0, %s151
                %p148 = scmp.ge.s32.totalorder %s147, 1
                %s152 = sphi %s137, %s137
                %s153 = sphi %s134, %s134
              $region43: #{_lambda_.29} parent=39 // loop_header_branch
                %150 = sbr.rel (%p148) target = $region47
              $region44: #{_lambda_.29} parent=39 // loop_body
                %v154 = vld [vmem:[%s152] sm:%s145]
                %155 = vst [vmem:[%s153] sm:%s145] %v154
                %v156 = vld [vmem:[%s152 + $0x10] sm:%s145]
                %157 = vst [vmem:[%s153 + $0x8] sm:%s145] %v156
                %v158 = vld [vmem:[%s152 + $0x20] sm:%s145]
                %159 = vst [vmem:[%s153 + $0x10] sm:%s145] %v158
                %v160 = vld [vmem:[%s152 + $0x30] sm:%s145]
                %161 = vst [vmem:[%s153 + $0x18] sm:%s145] %v160
                %v162 = vld [vmem:[%s152 + $0x40] sm:%s145]
                %163 = vst [vmem:[%s153 + $0x20] sm:%s145] %v162
                %v164 = vld [vmem:[%s152 + $0x50] sm:%s145]
                %165 = vst [vmem:[%s153 + $0x28] sm:%s145] %v164
                %v166 = vld [vmem:[%s152 + $0x60] sm:%s145]
                %167 = vst [vmem:[%s153 + $0x30] sm:%s145] %v166
                %v168 = vld [vmem:[%s152 + $0x70] sm:%s145]
                %169 = vst [vmem:[%s153 + $0x38] sm:%s145] %v168
                %v170 = vld [vmem:[%s152 + $0x80] sm:%s145]
                %171 = vst [vmem:[%s153 + $0x40] sm:%s145] %v170
              $region45: #{_lambda_.29} parent=39 // loop_footer
                %s151 = sadd.s32 1, %s147
              $region46: #{_lambda_.29} parent=39 // loop_footer_branch
                %146 = sbr.rel target = $region42
              $region47: #{_lambda_.29} parent=39 // loop_exit
                _
            $region40: #{_lambda_.29} parent=31 // pred_fallthru
              _
          $region32: #{_lambda_.29} parent=27 // pred_fallthru
            _
          %202 = vnop
        $region28: #{_lambda_.29} parent=23 // pred_fallthru
          _
      $region24: #{_lambda_.29} parent=5 // pred_fallthru
        _
      %p203 = scmp.le.s32.totalorder 1, %s9
      %p204 = scmp.lt.s32.totalorder %s9, 3
      %p205 = pnand %p203, %p204
      %p206 = pneg %p205
      // Predicated region
      $region63: #{_lambda_.29} parent=5 // pred_check
        _
      $region64: #{_lambda_.29} parent=5 // pred_check_branch
        %208 = sbr.rel (%p205) target = $region66
      $region65: #{_lambda_.29} parent=5 // pred_region
        %s209 = ssub.s32 %s9, 1
        %s210 = sand.u32 %s22, 1
        %s211 = sand.u32 %s22, 1
        %s212 = smul.addr %s211, 72
        %s213 = scalar_lea.vmem [#allocation2], %s212
        // Predicated region
        $region67: #{_lambda_.29} parent=65 // pred_check
          %p214 = pneg %p35
        $region68: #{_lambda_.29} parent=65 // pred_check_branch
          %216 = sbr.rel (%p214) target = $region70
        $region69: #{_lambda_.29} parent=65 // pred_region
          _
        $region70: #{_lambda_.29} parent=65 // pred_fallthru
          _
        %s217 = sand.u32 %s22, 1
        %s218 = sand.u32 %s22, 1
        %s219 = smul.addr %s218, 72
        %s220 = scalar_lea.vmem [#allocation2], %s219
        %p221 = pneg %p35
        %p222 = pneg %p32
        %p223 = pneg %p56
        %p224 = pneg %p53
        %p225 = pneg %p77
        %p226 = pneg %p74
        %p227 = pneg %p103
        %p228 = pneg %p100
        %s229 = sand.u32 %s90, 1
        %s230 = sand.u32 %s90, 1
        %s231 = smul.addr %s230, 16
        %s232 = scalar_lea.vmem [#allocation3], %s231
        %s233 = smul.u32 2, %s14
        %s234 = smul.u32 2, %s14
        %v236 = vld [vmem:[%s1] sm:$0xf]
        %v237 = vld [vmem:[%s1 + $0x4] sm:$0xf]
        %v238 = vld [vmem:[%s213] sm:$0xff]
        %v239 = vld [vmem:[%s213 + $0x8] sm:$0xff]
        %v240 = vld [vmem:[%s213 + $0x10] sm:$0xff]
        %v241 = vld [vmem:[%s213 + $0x18] sm:$0xff]
        %v242 = vld [vmem:[%s213 + $0x20] sm:$0xff]
        %v243 = vld [vmem:[%s213 + $0x28] sm:$0xff]
        %v244 = vld [vmem:[%s213 + $0x30] sm:$0xff]
        %v245 = vld [vmem:[%s213 + $0x38] sm:$0xff]
        %v246 = vld [vmem:[%s213 + $0x40] sm:$0xff]
        %v247 = vld [vmem:[%s2] sm:$0xff]
        %v248 = vld [vmem:[%s2 + $0x8] sm:$0xff]
        %250 = vset.pattern.permute.xlu0 0
        %251 = vperm.xlu0 %250, %v247
        %v252 = vpop.permute.xlu0 %251
        %255 = vset.pattern.permute.xlu0 0
        %256 = vperm.xlu0 %255, %v248
        %v257 = vpop.permute.xlu0 %256
        %v261 = vunpack.c.l.b16 %v236
        %v262 = vunpack.c.l.b16 %v237
        %v263 = vpack.c.b16 %v262, %v261
        %v273 = vunpack.c.l.b16 %v238
        %v274 = vunpack.c.h.b16 %v238
        %v275 = vunpack.c.l.b16 %v239
        %v276 = vunpack.c.h.b16 %v239
        %v277 = vunpack.c.l.b16 %v240
        %v278 = vunpack.c.h.b16 %v240
        %v279 = vunpack.c.l.b16 %v241
        %v280 = vunpack.c.h.b16 %v241
        %v281 = vunpack.c.l.b16 %v242
        %v282 = vunpack.c.h.b16 %v242
        %v283 = vunpack.c.l.b16 %v243
        %v284 = vunpack.c.h.b16 %v243
        %v285 = vunpack.c.l.b16 %v244
        %v286 = vunpack.c.h.b16 %v244
        %v287 = vunpack.c.l.b16 %v245
        %v288 = vunpack.c.h.b16 %v245
        %v289 = vunpack.c.l.b16 %v246
        %v290 = vunpack.c.h.b16 %v246
        %v291 = vpack.c.b16 %v275, %v273
        %v292 = vpack.c.b16 %v276, %v274
        %v293 = vpack.c.b16 %v279, %v277
        %v294 = vpack.c.b16 %v280, %v278
        %v295 = vpack.c.b16 %v283, %v281
        %v296 = vpack.c.b16 %v284, %v282
        %v297 = vpack.c.b16 %v287, %v285
        %v298 = vpack.c.b16 %v288, %v286
        %v299 = vpack.c.b16 %v289, %v289
        %v300 = vpack.c.b16 %v290, %v290
        %vm309 = vcmask 588800
        %v311 = vsel %vm309, %v263, 0
        %vm313 = vcmask 1043456
        %v315 = vsel %vm313, %v299, 0
        %v318 = vsel %vm313, %v300, 0
        %320 = vmatpush.bf16.msra.mxu0 0
        %321 = vmatpush.bf16.msra.mxu0 0
        %322 = vmatpush.bf16.msra.mxu0 0
        %323 = vmatpush.bf16.msra.mxu0 %v315
        %324 = vmatpush.bf16.msra.mxu0 %v297
        %325 = vmatpush.bf16.msra.mxu0 %v295
        %326 = vmatpush.bf16.msra.mxu0 %v293
        %327 = vmatpush.bf16.msra.mxu0 %v291
        %328 = vmatmul.bf16.gmra.mxu0 %v311
        %v329 = vpop.f32.mrf.mxu0
        %v330 = vadd.f32 %v252, %v329
        %v331 = vpop.f32.mrf.mxu0
        %v332 = vadd.f32 %v257, %v331
        %333 = vdwg.mxu0
        %334 = vmatpush.bf16.msra.mxu0 0
        %335 = vmatpush.bf16.msra.mxu0 0
        %336 = vmatpush.bf16.msra.mxu0 0
        %337 = vmatpush.bf16.msra.mxu0 %v318
        %338 = vmatpush.bf16.msra.mxu0 %v298
        %339 = vmatpush.bf16.msra.mxu0 %v296
        %340 = vmatpush.bf16.msra.mxu0 %v294
        %341 = vmatpush.bf16.msra.mxu0 %v292
        %342 = vmatmul.bf16.gmra.mxu0 %v311
        %v343 = vpop.f32.mrf.mxu0
        %v344 = vadd.f32 %v252, %v343
        %v345 = vpop.f32.mrf.mxu0
        %v346 = vadd.f32 %v257, %v345
        %347 = vdwg.mxu0
        %v348 = vand.u32 2147483647, %v330
        %v349 = vand.u32 2147483647, %v344
        %v350 = vand.u32 2147483647, %v332
        %v351 = vand.u32 2147483647, %v346
        %v352 = vsub.f32 0.0, %v348
        %v353 = vsub.f32 0.0, %v349
        %v354 = vsub.f32 0.0, %v350
        %v355 = vsub.f32 0.0, %v351
        %v356 = vmul.f32 %v352, 1.442695
        %v357 = vpow.pop %v356
        %v358 = vmul.f32 %v353, 1.442695
        %v359 = vpow.pop %v358
        %v360 = vmul.f32 %v354, 1.442695
        %v361 = vpow.pop %v360
        %v362 = vmul.f32 %v355, 1.442695
        %v363 = vpow.pop %v362
        %vm364 = vcmp.ge.f32.partialorder %v330, 0.0
        %vm365 = vcmp.ge.f32.partialorder %v344, 0.0
        %vm366 = vcmp.ge.f32.partialorder %v332, 0.0
        %vm367 = vcmp.ge.f32.partialorder %v346, 0.0
        %v368 = vsel %vm364, 1.0, %v357
        %v369 = vsel %vm365, 1.0, %v359
        %v370 = vsel %vm366, 1.0, %v361
        %v371 = vsel %vm367, 1.0, %v363
        %v372 = vadd.f32 %v357, 1.0
        %v373 = vadd.f32 %v359, 1.0
        %v374 = vadd.f32 %v361, 1.0
        %v375 = vadd.f32 %v363, 1.0
        %v376 = vrcp.pop %v372
        %v377 = vrcp.pop %v373
        %v378 = vrcp.pop %v374
        %v379 = vrcp.pop %v375
        %v380 = vmul.f32 %v368, %v376
        %v381 = vmul.f32 %v369, %v377
        %v382 = vmul.f32 %v370, %v378
        %v383 = vmul.f32 %v371, %v379
        %v384 = vmul.f32 %v330, %v380
        %v385 = vmul.f32 %v344, %v381
        %v386 = vmul.f32 %v332, %v382
        %v387 = vmul.f32 %v346, %v383
        %v388 = vpack.c.bf16 %v385, %v384
        %v389 = vpack.c.bf16 %v387, %v386
        %390 = vst [vmem:[%s232] sm:$0xff] %v388
        %391 = vst [vmem:[%s232 + $0x8] sm:$0xff] %v389
        %s392 = sand.u32 %s90, 1
        %s393 = sand.u32 %s90, 1
        %s394 = smul.addr %s393, 16
        %s395 = scalar_lea.vmem [#allocation3], %s394
        // Predicated region
        $region71: #{_lambda_.29} parent=65 // pred_check
          %p396 = pneg %p100
        $region72: #{_lambda_.29} parent=65 // pred_check_branch
          %398 = sbr.rel (%p396) target = $region74
        $region73: #{_lambda_.29} parent=65 // pred_region
          %s399 = smul.u32 2, %s14
          %s400 = smul.addr %s399, 4
          %s401 = scalar_lea.vmem %s3, %s400
          // Predicated region
          $region75: #{_lambda_.29} parent=73 // pred_check
            _
          $region76: #{_lambda_.29} parent=73 // pred_check_branch
            %403 = sbr.rel (0) target = $region78
          $region77: #{_lambda_.29} parent=73 // pred_region
            // Predicated region
            $region79: #{_lambda_.29} parent=77 // pred_check
              _
            $region80: #{_lambda_.29} parent=77 // pred_check_branch
              %405 = sbr.rel (0) target = $region82
            $region81: #{_lambda_.29} parent=77 // pred_region
              // Predicated region
              $region94: #{_lambda_.29} parent=81 // pred_check
                _
              $region95: #{_lambda_.29} parent=81 // pred_check_branch
                %423 = sbr.rel (0) target = $region97
              $region96: #{_lambda_.29} parent=81 // pred_region
                loop: start=0, step=1, limit=1
                $region98: #{_lambda_.29} parent=96 // loop_pre_header
                  _
                $region99: #{_lambda_.29} parent=96 // loop_header
                  %s425 = sphi 0, %s429
                  %p426 = scmp.ge.s32.totalorder %s425, 1
                  %s430 = sphi %s395, %s395
                  %s431 = sphi %s401, %s401
                $region100: #{_lambda_.29} parent=96 // loop_header_branch
                  %428 = sbr.rel (%p426) target = $region104
                $region101: #{_lambda_.29} parent=96 // loop_body
                  %v432 = vld [vmem:[%s430] sm:$0xff]
                  %433 = vst [vmem:[%s431] sm:$0xff] %v432
                  %v434 = vld [vmem:[%s430 + $0x8] sm:$0xff]
                  %435 = vst [vmem:[%s431 + $0x10] sm:$0xff] %v434
                $region102: #{_lambda_.29} parent=96 // loop_footer
                  %s429 = sadd.s32 1, %s425
                $region103: #{_lambda_.29} parent=96 // loop_footer_branch
                  %424 = sbr.rel target = $region99
                $region104: #{_lambda_.29} parent=96 // loop_exit
                  _
              $region97: #{_lambda_.29} parent=81 // pred_fallthru
                _
              // Predicated region
              $region105: #{_lambda_.29} parent=81 // pred_check
                _
              $region106: #{_lambda_.29} parent=81 // pred_check_branch
                %437 = sbr.rel target = $region108
              $region107: #{_lambda_.29} parent=81 // pred_region
                _
              $region108: #{_lambda_.29} parent=81 // pred_fallthru
                _
            $region82: #{_lambda_.29} parent=77 // pred_fallthru
              _
            // Predicated region
            $region83: #{_lambda_.29} parent=77 // pred_check
              _
            $region84: #{_lambda_.29} parent=77 // pred_check_branch
              %407 = sbr.rel target = $region86
            $region85: #{_lambda_.29} parent=77 // pred_region
              %s409 = ssub.s32 256, 1
              loop: start=0, step=1, limit=1
              $region87: #{_lambda_.29} parent=85 // loop_pre_header
                _
              $region88: #{_lambda_.29} parent=85 // loop_header
                %s411 = sphi 0, %s415
                %p412 = scmp.ge.s32.totalorder %s411, 1
                %s416 = sphi %s395, %s395
                %s417 = sphi %s401, %s401
              $region89: #{_lambda_.29} parent=85 // loop_header_branch
                %414 = sbr.rel (%p412) target = $region93
              $region90: #{_lambda_.29} parent=85 // loop_body
                %v418 = vld [vmem:[%s416] sm:%s409]
                %419 = vst [vmem:[%s417] sm:%s409] %v418
                %v420 = vld [vmem:[%s416 + $0x8] sm:%s409]
                %421 = vst [vmem:[%s417 + $0x10] sm:%s409] %v420
              $region91: #{_lambda_.29} parent=85 // loop_footer
                %s415 = sadd.s32 1, %s411
              $region92: #{_lambda_.29} parent=85 // loop_footer_branch
                %410 = sbr.rel target = $region88
              $region93: #{_lambda_.29} parent=85 // loop_exit
                _
            $region86: #{_lambda_.29} parent=77 // pred_fallthru
              _
          $region78: #{_lambda_.29} parent=73 // pred_fallthru
            _
          %438 = vnop
        $region74: #{_lambda_.29} parent=65 // pred_fallthru
          _
      $region66: #{_lambda_.29} parent=5 // pred_fallthru
        _
      %p439 = scmp.le.s32.totalorder 2, %s9
      // Predicated region
      $region109: #{_lambda_.29} parent=5 // pred_check
        %p440 = pneg %p439
      $region110: #{_lambda_.29} parent=5 // pred_check_branch
        %442 = sbr.rel (%p440) target = $region112
      $region111: #{_lambda_.29} parent=5 // pred_region
        %s443 = ssub.s32 %s9, 2
        // Predicated region
        $region113: #{_lambda_.29} parent=111 // pred_check
          %p444 = pneg %p106
        $region114: #{_lambda_.29} parent=111 // pred_check_branch
          %446 = sbr.rel (%p444) target = $region116
        $region115: #{_lambda_.29} parent=111 // pred_region
          %s447 = sand.u32 %s91, 1
          %s448 = sand.u32 %s91, 1
          %s449 = smul.addr %s448, 16
          %s450 = scalar_lea.vmem [#allocation3], %s449
        $region116: #{_lambda_.29} parent=111 // pred_fallthru
          _
      $region112: #{_lambda_.29} parent=5 // pred_fallthru
        _
    $region6: #{_lambda_.29} parent=1 // loop_footer
      %s13 = sadd.s32 1, %s9
    $region7: #{_lambda_.29} parent=1 // loop_footer_branch
      %8 = sbr.rel target = $region3
    $region8: #{_lambda_.29} parent=1 // loop_exit
      _

// kernel: _lambda_.30
$region0: #{_lambda_.30}
  #allocation0 [shape = 'u32[]', space=smem, size = 0x4, offset = 0x4, fixed_abs, tag = 'smem constant byte address 0x4 - core index']
  #allocation1 [shape = 'u32[72,128]{1,0:T(1,128)}', space=vmem, size = 0x9000, scoped, tag = 'internal scratch']
  %s0 = inlined_call_operand.vmem [shape: bf16[16,512], index: 0, kind: input, shape index: {}]
  %s1 = inlined_call_operand.vmem [shape: bf16[16,16], index: 1, kind: input, shape index: {}]
  %s2 = inlined_call_operand.vmem [shape: f32[16,1], index: 2, kind: input, shape index: {}]
  %s3 = inlined_call_operand.vmem [shape: bf16[16,512], index: 3, kind: output, shape index: {}]
  %s4 = sld [smem:[#allocation0]]
  $region117: #{_lambda_.30} parent=0
    _
  %s6 = ssub.s32 1, %s4
  %s7 = scalar_select 0, %s6, %s4
  $region1: #{_lambda_.30} parent=0
    #allocation2 [shape = 'u8[16384]{0}', space=vmem, size = 0x4000, scoped, tag = 'input window, operand 0']
    #allocation3 [shape = 'u8[16384]{0}', space=vmem, size = 0x4000, scoped, tag = 'output window, operand 0']
    loop: start=0, step=1, limit=4
    $region2: #{_lambda_.30} parent=1 // loop_pre_header
      _
    $region3: #{_lambda_.30} parent=1 // loop_header
      %s9 = sphi 0, %s13
      %p10 = scmp.ge.s32.totalorder %s9, 4
      %s19 = sphi 0, %s21
      %s22 = sphi 0, %s19
      %s23 = sphi 0, %s22
      %s39 = sphi 0, %s23
      %s43 = sphi 0, %s43
      %s45 = sphi 0, %s43
      %s46 = sphi 0, %s45
      %s60 = sphi 0, %s46
      %s64 = sphi 0, %s64
      %s66 = sphi 0, %s64
      %s67 = sphi 0, %s66
      %s81 = sphi 0, %s67
      %s87 = sphi 0, %s89
      %s90 = sphi 0, %s87
      %s91 = sphi 0, %s90
      %s107 = sphi 0, %s91
    $region4: #{_lambda_.30} parent=1 // loop_header_branch
      %12 = sbr.rel (%p10) target = $region8
    $region5: #{_lambda_.30} parent=1 // loop_body
      %s14 = ssub.s32 %s9, 1
      %s15 = ssub.s32 %s9, 2
      %s16 = sadd.s32 %s9, 1
      %s17 = ssub.s32 %s9, %s16
      %p18 = scmp.eq.s32.totalorder %s17, 0
      %s20 = sadd.s32 %s19, 1
      %s21 = scalar_select %p18, %s19, %s20
      %p24 = pneg %p18
      %p25 = scmp.eq.s32.totalorder %s9, 1
      %p26 = por %p24, %p25
      %p27 = scmp.ne.s32.totalorder %s19, %s22
      %p28 = scmp.eq.s32.totalorder %s9, 0
      %p29 = por %p27, %p28
      %p30 = scmp.ne.s32.totalorder %s19, %s22
      %p31 = scmp.eq.s32.totalorder %s14, 1
      %p32 = por %p30, %p31
      %p33 = scmp.ne.s32.totalorder %s22, %s23
      %p34 = scmp.eq.s32.totalorder %s14, 0
      %p35 = por %p33, %p34
      %p36 = scmp.ne.s32.totalorder %s22, %s23
      %p37 = scmp.eq.s32.totalorder %s15, 1
      %p38 = por %p36, %p37
      %p40 = scmp.ne.s32.totalorder %s23, %s39
      %p41 = scmp.eq.s32.totalorder %s15, 0
      %p42 = por %p40, %p41
      %s44 = sadd.s32 %s43, 1
      %p47 = scmp.eq.s32.totalorder %s9, 1
      %p48 = scmp.ne.s32.totalorder %s43, %s45
      %p49 = scmp.eq.s32.totalorder %s9, 0
      %p50 = por %p48, %p49
      %p51 = scmp.ne.s32.totalorder %s43, %s45
      %p52 = scmp.eq.s32.totalorder %s14, 1
      %p53 = por %p51, %p52
      %p54 = scmp.ne.s32.totalorder %s45, %s46
      %p55 = scmp.eq.s32.totalorder %s14, 0
      %p56 = por %p54, %p55
      %p57 = scmp.ne.s32.totalorder %s45, %s46
      %p58 = scmp.eq.s32.totalorder %s15, 1
      %p59 = por %p57, %p58
      %p61 = scmp.ne.s32.totalorder %s46, %s60
      %p62 = scmp.eq.s32.totalorder %s15, 0
      %p63 = por %p61, %p62
      %s65 = sadd.s32 %s64, 1
      %p68 = scmp.eq.s32.totalorder %s9, 1
      %p69 = scmp.ne.s32.totalorder %s64, %s66
      %p70 = scmp.eq.s32.totalorder %s9, 0
      %p71 = por %p69, %p70
      %p72 = scmp.ne.s32.totalorder %s64, %s66
      %p73 = scmp.eq.s32.totalorder %s14, 1
      %p74 = por %p72, %p73
      %p75 = scmp.ne.s32.totalorder %s66, %s67
      %p76 = scmp.eq.s32.totalorder %s14, 0
      %p77 = por %p75, %p76
      %p78 = scmp.ne.s32.totalorder %s66, %s67
      %p79 = scmp.eq.s32.totalorder %s15, 1
      %p80 = por %p78, %p79
      %p82 = scmp.ne.s32.totalorder %s67, %s81
      %p83 = scmp.eq.s32.totalorder %s15, 0
      %p84 = por %p82, %p83
      %s85 = ssub.s32 %s9, %s16
      %p86 = scmp.eq.s32.totalorder %s85, 0
      %s88 = sadd.s32 %s87, 1
      %s89 = scalar_select %p86, %s87, %s88
      %p92 = pneg %p86
      %p93 = scmp.eq.s32.totalorder %s9, 1
      %p94 = por %p92, %p93
      %p95 = scmp.ne.s32.totalorder %s87, %s90
      %p96 = scmp.eq.s32.totalorder %s9, 0
      %p97 = por %p95, %p96
      %p98 = scmp.ne.s32.totalorder %s87, %s90
      %p99 = scmp.eq.s32.totalorder %s14, 1
      %p100 = por %p98, %p99
      %p101 = scmp.ne.s32.totalorder %s90, %s91
      %p102 = scmp.eq.s32.totalorder %s14, 0
      %p103 = por %p101, %p102
      %p104 = scmp.ne.s32.totalorder %s90, %s91
      %p105 = scmp.eq.s32.totalorder %s15, 1
      %p106 = por %p104, %p105
      %p108 = scmp.ne.s32.totalorder %s91, %s107
      %p109 = scmp.eq.s32.totalorder %s15, 0
      %p110 = por %p108, %p109
      %p111 = scmp.le.s32.totalorder 1, %s9
      %p112 = scmp.lt.s32.totalorder %s9, 3
      %p113 = pnand %p111, %p112
      %p114 = pneg %p113
      // Predicated region
      $region9: #{_lambda_.30} parent=5 // pred_check
        _
      $region10: #{_lambda_.30} parent=5 // pred_check_branch
        %116 = sbr.rel (%p113) target = $region12
      $region11: #{_lambda_.30} parent=5 // pred_region
        %s117 = ssub.s32 %s9, 1
        // Predicated region
        $region13: #{_lambda_.30} parent=11 // pred_check
          %p118 = pneg %p56
        $region14: #{_lambda_.30} parent=11 // pred_check_branch
          %120 = sbr.rel (%p118) target = $region16
        $region15: #{_lambda_.30} parent=11 // pred_region
          _
        $region16: #{_lambda_.30} parent=11 // pred_fallthru
          _
        // Predicated region
        $region17: #{_lambda_.30} parent=11 // pred_check
          %p121 = pneg %p77
        $region18: #{_lambda_.30} parent=11 // pred_check_branch
          %123 = sbr.rel (%p121) target = $region20
        $region19: #{_lambda_.30} parent=11 // pred_region
          _
        $region20: #{_lambda_.30} parent=11 // pred_fallthru
          _
      $region12: #{_lambda_.30} parent=5 // pred_fallthru
        _
      %p124 = scmp.lt.s32.totalorder %s9, 2
      // Predicated region
      $region21: #{_lambda_.30} parent=5 // pred_check
        %p125 = pneg %p124
      $region22: #{_lambda_.30} parent=5 // pred_check_branch
        %127 = sbr.rel (%p125) target = $region24
      $region23: #{_lambda_.30} parent=5 // pred_region
        // Predicated region
        $region25: #{_lambda_.30} parent=23 // pred_check
          %p128 = pneg %p29
        $region26: #{_lambda_.30} parent=23 // pred_check_branch
          %130 = sbr.rel (%p128) target = $region28
        $region27: #{_lambda_.30} parent=23 // pred_region
          %s131 = sand.u32 %s19, 1
          %s132 = sand.u32 %s19, 1
          %s133 = smul.addr %s132, 16
          %s134 = scalar_lea.vmem [#allocation2], %s133
          %s135 = smul.u32 2, %s9
          %s136 = smul.addr %s135, 4
          %s137 = scalar_lea.vmem %s0, %s136
          // Predicated region
          $region29: #{_lambda_.30} parent=27 // pred_check
            _
          $region30: #{_lambda_.30} parent=27 // pred_check_branch
            %139 = sbr.rel (0) target = $region32
          $region31: #{_lambda_.30} parent=27 // pred_region
            // Predicated region
            $region33: #{_lambda_.30} parent=31 // pred_check
              _
            $region34: #{_lambda_.30} parent=31 // pred_check_branch
              %141 = sbr.rel (0) target = $region36
            $region35: #{_lambda_.30} parent=31 // pred_region
              // Predicated region
              $region48: #{_lambda_.30} parent=35 // pred_check
                _
              $region49: #{_lambda_.30} parent=35 // pred_check_branch
                %159 = sbr.rel (0) target = $region51
              $region50: #{_lambda_.30} parent=35 // pred_region
                loop: start=0, step=1, limit=1
                $region52: #{_lambda_.30} parent=50 // loop_pre_header
                  _
                $region53: #{_lambda_.30} parent=50 // loop_header
                  %s161 = sphi 0, %s165
                  %p162 = scmp.ge.s32.totalorder %s161, 1
                  %s166 = sphi %s137, %s137
                  %s167 = sphi %s134, %s134
                $region54: #{_lambda_.30} parent=50 // loop_header_branch
                  %164 = sbr.rel (%p162) target = $region58
                $region55: #{_lambda_.30} parent=50 // loop_body
                  %v168 = vld [vmem:[%s166] sm:$0xff]
                  %169 = vst [vmem:[%s167] sm:$0xff] %v168
                  %v170 = vld [vmem:[%s166 + $0x10] sm:$0xff]
                  %171 = vst [vmem:[%s167 + $0x8] sm:$0xff] %v170
                $region56: #{_lambda_.30} parent=50 // loop_footer
                  %s165 = sadd.s32 1, %s161
                $region57: #{_lambda_.30} parent=50 // loop_footer_branch
                  %160 = sbr.rel target = $region53
                $region58: #{_lambda_.30} parent=50 // loop_exit
                  _
              $region51: #{_lambda_.30} parent=35 // pred_fallthru
                _
              // Predicated region
              $region59: #{_lambda_.30} parent=35 // pred_check
                _
              $region60: #{_lambda_.30} parent=35 // pred_check_branch
                %173 = sbr.rel target = $region62
              $region61: #{_lambda_.30} parent=35 // pred_region
                _
              $region62: #{_lambda_.30} parent=35 // pred_fallthru
                _
            $region36: #{_lambda_.30} parent=31 // pred_fallthru
              _
            // Predicated region
            $region37: #{_lambda_.30} parent=31 // pred_check
              _
            $region38: #{_lambda_.30} parent=31 // pred_check_branch
              %143 = sbr.rel target = $region40
            $region39: #{_lambda_.30} parent=31 // pred_region
              %s145 = ssub.s32 256, 1
              loop: start=0, step=1, limit=1
              $region41: #{_lambda_.30} parent=39 // loop_pre_header
                _
              $region42: #{_lambda_.30} parent=39 // loop_header
                %s147 = sphi 0, %s151
                %p148 = scmp.ge.s32.totalorder %s147, 1
                %s152 = sphi %s137, %s137
                %s153 = sphi %s134, %s134
              $region43: #{_lambda_.30} parent=39 // loop_header_branch
                %150 = sbr.rel (%p148) target = $region47
              $region44: #{_lambda_.30} parent=39 // loop_body
                %v154 = vld [vmem:[%s152] sm:%s145]
                %155 = vst [vmem:[%s153] sm:%s145] %v154
                %v156 = vld [vmem:[%s152 + $0x10] sm:%s145]
                %157 = vst [vmem:[%s153 + $0x8] sm:%s145] %v156
              $region45: #{_lambda_.30} parent=39 // loop_footer
                %s151 = sadd.s32 1, %s147
              $region46: #{_lambda_.30} parent=39 // loop_footer_branch
                %146 = sbr.rel target = $region42
              $region47: #{_lambda_.30} parent=39 // loop_exit
                _
            $region40: #{_lambda_.30} parent=31 // pred_fallthru
              _
          $region32: #{_lambda_.30} parent=27 // pred_fallthru
            _
          %174 = vnop
        $region28: #{_lambda_.30} parent=23 // pred_fallthru
          _
      $region24: #{_lambda_.30} parent=5 // pred_fallthru
        _
      %p175 = scmp.le.s32.totalorder 1, %s9
      %p176 = scmp.lt.s32.totalorder %s9, 3
      %p177 = pnand %p175, %p176
      %p178 = pneg %p177
      // Predicated region
      $region63: #{_lambda_.30} parent=5 // pred_check
        _
      $region64: #{_lambda_.30} parent=5 // pred_check_branch
        %180 = sbr.rel (%p177) target = $region66
      $region65: #{_lambda_.30} parent=5 // pred_region
        %s181 = ssub.s32 %s9, 1
        %s182 = sand.u32 %s22, 1
        %s183 = sand.u32 %s22, 1
        %s184 = smul.addr %s183, 16
        %s185 = scalar_lea.vmem [#allocation2], %s184
        // Predicated region
        $region67: #{_lambda_.30} parent=65 // pred_check
          %p186 = pneg %p35
        $region68: #{_lambda_.30} parent=65 // pred_check_branch
          %188 = sbr.rel (%p186) target = $region70
        $region69: #{_lambda_.30} parent=65 // pred_region
          _
        $region70: #{_lambda_.30} parent=65 // pred_fallthru
          _
        %s189 = sand.u32 %s22, 1
        %s190 = sand.u32 %s22, 1
        %s191 = smul.addr %s190, 16
        %s192 = scalar_lea.vmem [#allocation2], %s191
        %p193 = pneg %p35
        %p194 = pneg %p32
        %p195 = pneg %p56
        %p196 = pneg %p53
        %p197 = pneg %p77
        %p198 = pneg %p74
        %p199 = pneg %p103
        %p200 = pneg %p100
        %s201 = sand.u32 %s90, 1
        %s202 = sand.u32 %s90, 1
        %s203 = smul.addr %s202, 16
        %s204 = scalar_lea.vmem [#allocation3], %s203
        %s205 = smul.u32 2, %s14
        %s206 = smul.u32 2, %s14
        %v208 = vld [vmem:[%s1] sm:$0xf]
        %v209 = vld [vmem:[%s1 + $0x4] sm:$0xf]
        %v210 = vld [vmem:[%s185] sm:$0xff]
        %v211 = vld [vmem:[%s185 + $0x8] sm:$0xff]
        %v212 = vld [vmem:[%s2] sm:$0xff]
        %v213 = vld [vmem:[%s2 + $0x8] sm:$0xff]
        %215 = vset.pattern.permute.xlu0 0
        %216 = vperm.xlu0 %215, %v212
        %v217 = vpop.permute.xlu0 %216
        %220 = vset.pattern.permute.xlu0 0
        %221 = vperm.xlu0 %220, %v213
        %v222 = vpop.permute.xlu0 %221
        %v226 = vunpack.c.l.b16 %v208
        %v227 = vunpack.c.l.b16 %v209
        %v228 = vpack.c.b16 %v227, %v226
        %v231 = vunpack.c.l.b16 %v210
        %v232 = vunpack.c.h.b16 %v210
        %v233 = vunpack.c.l.b16 %v211
        %v234 = vunpack.c.h.b16 %v211
        %v235 = vpack.c.b16 %v233, %v231
        %v236 = vpack.c.b16 %v234, %v232
        %vm239 = vcmask 130048
        %v241 = vsel %vm239, %v228, 0
        %243 = vmatpush.bf16.msra.mxu0 0
        %244 = vmatpush.bf16.msra.mxu0 0
        %245 = vmatpush.bf16.msra.mxu0 0
        %246 = vmatpush.bf16.msra.mxu0 0
        %247 = vmatpush.bf16.msra.mxu0 0
        %248 = vmatpush.bf16.msra.mxu0 0
        %249 = vmatpush.bf16.msra.mxu0 0
        %250 = vmatpush.bf16.msra.mxu0 %v235
        %251 = vmatmul.bf16.gmra.mxu0 %v241
        %v252 = vpop.f32.mrf.mxu0
        %v253 = vadd.f32 %v217, %v252
        %v254 = vpop.f32.mrf.mxu0
        %v255 = vadd.f32 %v222, %v254
        %256 = vdwg.mxu0
        %257 = vmatpush.bf16.msra.mxu0 0
        %258 = vmatpush.bf16.msra.mxu0 0
        %259 = vmatpush.bf16.msra.mxu0 0
        %260 = vmatpush.bf16.msra.mxu0 0
        %261 = vmatpush.bf16.msra.mxu0 0
        %262 = vmatpush.bf16.msra.mxu0 0
        %263 = vmatpush.bf16.msra.mxu0 0
        %264 = vmatpush.bf16.msra.mxu0 %v236
        %265 = vmatmul.bf16.gmra.mxu0 %v241
        %v266 = vpop.f32.mrf.mxu0
        %v267 = vadd.f32 %v217, %v266
        %v268 = vpop.f32.mrf.mxu0
        %v269 = vadd.f32 %v222, %v268
        %270 = vdwg.mxu0
        %v271 = vand.u32 2147483647, %v253
        %v272 = vand.u32 2147483647, %v267
        %v273 = vand.u32 2147483647, %v255
        %v274 = vand.u32 2147483647, %v269
        %v275 = vsub.f32 0.0, %v271
        %v276 = vsub.f32 0.0, %v272
        %v277 = vsub.f32 0.0, %v273
        %v278 = vsub.f32 0.0, %v274
        %v279 = vmul.f32 %v275, 1.442695
        %v280 = vpow.pop %v279
        %v281 = vmul.f32 %v276, 1.442695
        %v282 = vpow.pop %v281
        %v283 = vmul.f32 %v277, 1.442695
        %v284 = vpow.pop %v283
        %v285 = vmul.f32 %v278, 1.442695
        %v286 = vpow.pop %v285
        %vm287 = vcmp.ge.f32.partialorder %v253, 0.0
        %vm288 = vcmp.ge.f32.partialorder %v267, 0.0
        %vm289 = vcmp.ge.f32.partialorder %v255, 0.0
        %vm290 = vcmp.ge.f32.partialorder %v269, 0.0
        %v291 = vsel %vm287, 1.0, %v280
        %v292 = vsel %vm288, 1.0, %v282
        %v293 = vsel %vm289, 1.0, %v284
        %v294 = vsel %vm290, 1.0, %v286
        %v295 = vadd.f32 %v280, 1.0
        %v296 = vadd.f32 %v282, 1.0
        %v297 = vadd.f32 %v284, 1.0
        %v298 = vadd.f32 %v286, 1.0
        %v299 = vrcp.pop %v295
        %v300 = vrcp.pop %v296
        %v301 = vrcp.pop %v297
        %v302 = vrcp.pop %v298
        %v303 = vmul.f32 %v291, %v299
        %v304 = vmul.f32 %v292, %v300
        %v305 = vmul.f32 %v293, %v301
        %v306 = vmul.f32 %v294, %v302
        %v307 = vmul.f32 %v253, %v303
        %v308 = vmul.f32 %v267, %v304
        %v309 = vmul.f32 %v255, %v305
        %v310 = vmul.f32 %v269, %v306
        %v311 = vpack.c.bf16 %v308, %v307
        %v312 = vpack.c.bf16 %v310, %v309
        %313 = vst [vmem:[%s204] sm:$0xff] %v311
        %314 = vst [vmem:[%s204 + $0x8] sm:$0xff] %v312
        %s315 = sand.u32 %s90, 1
        %s316 = sand.u32 %s90, 1
        %s317 = smul.addr %s316, 16
        %s318 = scalar_lea.vmem [#allocation3], %s317
        // Predicated region
        $region71: #{_lambda_.30} parent=65 // pred_check
          %p319 = pneg %p100
        $region72: #{_lambda_.30} parent=65 // pred_check_branch
          %321 = sbr.rel (%p319) target = $region74
        $region73: #{_lambda_.30} parent=65 // pred_region
          %s322 = smul.u32 2, %s14
          %s323 = smul.addr %s322, 4
          %s324 = scalar_lea.vmem %s3, %s323
          // Predicated region
          $region75: #{_lambda_.30} parent=73 // pred_check
            _
          $region76: #{_lambda_.30} parent=73 // pred_check_branch
            %326 = sbr.rel (0) target = $region78
          $region77: #{_lambda_.30} parent=73 // pred_region
            // Predicated region
            $region79: #{_lambda_.30} parent=77 // pred_check
              _
            $region80: #{_lambda_.30} parent=77 // pred_check_branch
              %328 = sbr.rel (0) target = $region82
            $region81: #{_lambda_.30} parent=77 // pred_region
              // Predicated region
              $region94: #{_lambda_.30} parent=81 // pred_check
                _
              $region95: #{_lambda_.30} parent=81 // pred_check_branch
                %346 = sbr.rel (0) target = $region97
              $region96: #{_lambda_.30} parent=81 // pred_region
                loop: start=0, step=1, limit=1
                $region98: #{_lambda_.30} parent=96 // loop_pre_header
                  _
                $region99: #{_lambda_.30} parent=96 // loop_header
                  %s348 = sphi 0, %s352
                  %p349 = scmp.ge.s32.totalorder %s348, 1
                  %s353 = sphi %s318, %s318
                  %s354 = sphi %s324, %s324
                $region100: #{_lambda_.30} parent=96 // loop_header_branch
                  %351 = sbr.rel (%p349) target = $region104
                $region101: #{_lambda_.30} parent=96 // loop_body
                  %v355 = vld [vmem:[%s353] sm:$0xff]
                  %356 = vst [vmem:[%s354] sm:$0xff] %v355
                  %v357 = vld [vmem:[%s353 + $0x8] sm:$0xff]
                  %358 = vst [vmem:[%s354 + $0x10] sm:$0xff] %v357
                $region102: #{_lambda_.30} parent=96 // loop_footer
                  %s352 = sadd.s32 1, %s348
                $region103: #{_lambda_.30} parent=96 // loop_footer_branch
                  %347 = sbr.rel target = $region99
                $region104: #{_lambda_.30} parent=96 // loop_exit
                  _
              $region97: #{_lambda_.30} parent=81 // pred_fallthru
                _
              // Predicated region
              $region105: #{_lambda_.30} parent=81 // pred_check
                _
              $region106: #{_lambda_.30} parent=81 // pred_check_branch
                %360 = sbr.rel target = $region108
              $region107: #{_lambda_.30} parent=81 // pred_region
                _
              $region108: #{_lambda_.30} parent=81 // pred_fallthru
                _
            $region82: #{_lambda_.30} parent=77 // pred_fallthru
              _
            // Predicated region
            $region83: #{_lambda_.30} parent=77 // pred_check
              _
            $region84: #{_lambda_.30} parent=77 // pred_check_branch
              %330 = sbr.rel target = $region86
            $region85: #{_lambda_.30} parent=77 // pred_region
              %s332 = ssub.s32 256, 1
              loop: start=0, step=1, limit=1
              $region87: #{_lambda_.30} parent=85 // loop_pre_header
                _
              $region88: #{_lambda_.30} parent=85 // loop_header
                %s334 = sphi 0, %s338
                %p335 = scmp.ge.s32.totalorder %s334, 1
                %s339 = sphi %s318, %s318
                %s340 = sphi %s324, %s324
              $region89: #{_lambda_.30} parent=85 // loop_header_branch
                %337 = sbr.rel (%p335) target = $region93
              $region90: #{_lambda_.30} parent=85 // loop_body
                %v341 = vld [vmem:[%s339] sm:%s332]
                %342 = vst [vmem:[%s340] sm:%s332] %v341
                %v343 = vld [vmem:[%s339 + $0x8] sm:%s332]
                %344 = vst [vmem:[%s340 + $0x10] sm:%s332] %v343
              $region91: #{_lambda_.30} parent=85 // loop_footer
                %s338 = sadd.s32 1, %s334
              $region92: #{_lambda_.30} parent=85 // loop_footer_branch
                %333 = sbr.rel target = $region88
              $region93: #{_lambda_.30} parent=85 // loop_exit
                _
            $region86: #{_lambda_.30} parent=77 // pred_fallthru
              _
          $region78: #{_lambda_.30} parent=73 // pred_fallthru
            _
          %361 = vnop
        $region74: #{_lambda_.30} parent=65 // pred_fallthru
          _
      $region66: #{_lambda_.30} parent=5 // pred_fallthru
        _
      %p362 = scmp.le.s32.totalorder 2, %s9
      // Predicated region
      $region109: #{_lambda_.30} parent=5 // pred_check
        %p363 = pneg %p362
      $region110: #{_lambda_.30} parent=5 // pred_check_branch
        %365 = sbr.rel (%p363) target = $region112
      $region111: #{_lambda_.30} parent=5 // pred_region
        %s366 = ssub.s32 %s9, 2
        // Predicated region
        $region113: #{_lambda_.30} parent=111 // pred_check
          %p367 = pneg %p106
        $region114: #{_lambda_.30} parent=111 // pred_check_branch
          %369 = sbr.rel (%p367) target = $region116
        $region115: #{_lambda_.30} parent=111 // pred_region
          %s370 = sand.u32 %s91, 1
          %s371 = sand.u32 %s91, 1
          %s372 = smul.addr %s371, 16
          %s373 = scalar_lea.vmem [#allocation3], %s372
        $region116: #{_lambda_.30} parent=111 // pred_fallthru
          _
      $region112: #{_lambda_.30} parent=5 // pred_fallthru
        _
    $region6: #{_lambda_.30} parent=1 // loop_footer
      %s13 = sadd.s32 1, %s9
    $region7: #{_lambda_.30} parent=1 // loop_footer_branch
      %8 = sbr.rel target = $region3
    $region8: #{_lambda_.30} parent=1 // loop_exit
      _

// kernel: _lambda_.31
$region0: #{_lambda_.31}
  #allocation0 [shape = 'u32[]', space=smem, size = 0x4, offset = 0x4, fixed_abs, tag = 'smem constant byte address 0x4 - core index']
  #allocation1 [shape = 'u32[72,128]{1,0:T(1,128)}', space=vmem, size = 0x9000, scoped, tag = 'internal scratch']
  %s0 = inlined_call_operand.vmem [shape: bf16[144,512], index: 0, kind: input, shape index: {}]
  %s1 = inlined_call_operand.vmem [shape: bf16[16,144], index: 1, kind: input, shape index: {}]
  %s2 = inlined_call_operand.vmem [shape: f32[16,1], index: 2, kind: input, shape index: {}]
  %s3 = inlined_call_operand.vmem [shape: bf16[16,512], index: 3, kind: input, shape index: {}]
  %s4 = inlined_call_operand.vmem [shape: bf16[16,512], index: 4, kind: output, shape index: {}]
  %s5 = sld [smem:[#allocation0]]
  $region159: #{_lambda_.31} parent=0
    _
  %s7 = ssub.s32 1, %s5
  %s8 = scalar_select 0, %s7, %s5
  $region1: #{_lambda_.31} parent=0
    #allocation2 [shape = 'u8[147456]{0}', space=vmem, size = 0x24000, scoped, tag = 'input window, operand 0']
    #allocation3 [shape = 'u8[16384]{0}', space=vmem, size = 0x4000, scoped, tag = 'input window, operand 3']
    #allocation4 [shape = 'u8[16384]{0}', space=vmem, size = 0x4000, scoped, tag = 'output window, operand 0']
    loop: start=0, step=1, limit=4
    $region2: #{_lambda_.31} parent=1 // loop_pre_header
      _
    $region3: #{_lambda_.31} parent=1 // loop_header
      %s10 = sphi 0, %s14
      %p11 = scmp.ge.s32.totalorder %s10, 4
      %s20 = sphi 0, %s22
      %s23 = sphi 0, %s20
      %s24 = sphi 0, %s23
      %s40 = sphi 0, %s24
      %s44 = sphi 0, %s44
      %s46 = sphi 0, %s44
      %s47 = sphi 0, %s46
      %s61 = sphi 0, %s47
      %s65 = sphi 0, %s65
      %s67 = sphi 0, %s65
      %s68 = sphi 0, %s67
      %s82 = sphi 0, %s68
      %s88 = sphi 0, %s90
      %s91 = sphi 0, %s88
      %s92 = sphi 0, %s91
      %s108 = sphi 0, %s92
      %s114 = sphi 0, %s116
      %s117 = sphi 0, %s114
      %s118 = sphi 0, %s117
      %s134 = sphi 0, %s118
    $region4: #{_lambda_.31} parent=1 // loop_header_branch
      %13 = sbr.rel (%p11) target = $region8
    $region5: #{_lambda_.31} parent=1 // loop_body
      %s15 = ssub.s32 %s10, 1
      %s16 = ssub.s32 %s10, 2
      %s17 = sadd.s32 %s10, 1
      %s18 = ssub.s32 %s10, %s17
      %p19 = scmp.eq.s32.totalorder %s18, 0
      %s21 = sadd.s32 %s20, 1
      %s22 = scalar_select %p19, %s20, %s21
      %p25 = pneg %p19
      %p26 = scmp.eq.s32.totalorder %s10, 1
      %p27 = por %p25, %p26
      %p28 = scmp.ne.s32.totalorder %s20, %s23
      %p29 = scmp.eq.s32.totalorder %s10, 0
      %p30 = por %p28, %p29
      %p31 = scmp.ne.s32.totalorder %s20, %s23
      %p32 = scmp.eq.s32.totalorder %s15, 1
      %p33 = por %p31, %p32
      %p34 = scmp.ne.s32.totalorder %s23, %s24
      %p35 = scmp.eq.s32.totalorder %s15, 0
      %p36 = por %p34, %p35
      %p37 = scmp.ne.s32.totalorder %s23, %s24
      %p38 = scmp.eq.s32.totalorder %s16, 1
      %p39 = por %p37, %p38
      %p41 = scmp.ne.s32.totalorder %s24, %s40
      %p42 = scmp.eq.s32.totalorder %s16, 0
      %p43 = por %p41, %p42
      %s45 = sadd.s32 %s44, 1
      %p48 = scmp.eq.s32.totalorder %s10, 1
      %p49 = scmp.ne.s32.totalorder %s44, %s46
      %p50 = scmp.eq.s32.totalorder %s10, 0
      %p51 = por %p49, %p50
      %p52 = scmp.ne.s32.totalorder %s44, %s46
      %p53 = scmp.eq.s32.totalorder %s15, 1
      %p54 = por %p52, %p53
      %p55 = scmp.ne.s32.totalorder %s46, %s47
      %p56 = scmp.eq.s32.totalorder %s15, 0
      %p57 = por %p55, %p56
      %p58 = scmp.ne.s32.totalorder %s46, %s47
      %p59 = scmp.eq.s32.totalorder %s16, 1
      %p60 = por %p58, %p59
      %p62 = scmp.ne.s32.totalorder %s47, %s61
      %p63 = scmp.eq.s32.totalorder %s16, 0
      %p64 = por %p62, %p63
      %s66 = sadd.s32 %s65, 1
      %p69 = scmp.eq.s32.totalorder %s10, 1
      %p70 = scmp.ne.s32.totalorder %s65, %s67
      %p71 = scmp.eq.s32.totalorder %s10, 0
      %p72 = por %p70, %p71
      %p73 = scmp.ne.s32.totalorder %s65, %s67
      %p74 = scmp.eq.s32.totalorder %s15, 1
      %p75 = por %p73, %p74
      %p76 = scmp.ne.s32.totalorder %s67, %s68
      %p77 = scmp.eq.s32.totalorder %s15, 0
      %p78 = por %p76, %p77
      %p79 = scmp.ne.s32.totalorder %s67, %s68
      %p80 = scmp.eq.s32.totalorder %s16, 1
      %p81 = por %p79, %p80
      %p83 = scmp.ne.s32.totalorder %s68, %s82
      %p84 = scmp.eq.s32.totalorder %s16, 0
      %p85 = por %p83, %p84
      %s86 = ssub.s32 %s10, %s17
      %p87 = scmp.eq.s32.totalorder %s86, 0
      %s89 = sadd.s32 %s88, 1
      %s90 = scalar_select %p87, %s88, %s89
      %p93 = pneg %p87
      %p94 = scmp.eq.s32.totalorder %s10, 1
      %p95 = por %p93, %p94
      %p96 = scmp.ne.s32.totalorder %s88, %s91
      %p97 = scmp.eq.s32.totalorder %s10, 0
      %p98 = por %p96, %p97
      %p99 = scmp.ne.s32.totalorder %s88, %s91
      %p100 = scmp.eq.s32.totalorder %s15, 1
      %p101 = por %p99, %p100
      %p102 = scmp.ne.s32.totalorder %s91, %s92
      %p103 = scmp.eq.s32.totalorder %s15, 0
      %p104 = por %p102, %p103
      %p105 = scmp.ne.s32.totalorder %s91, %s92
      %p106 = scmp.eq.s32.totalorder %s16, 1
      %p107 = por %p105, %p106
      %p109 = scmp.ne.s32.totalorder %s92, %s108
      %p110 = scmp.eq.s32.totalorder %s16, 0
      %p111 = por %p109, %p110
      %s112 = ssub.s32 %s10, %s17
      %p113 = scmp.eq.s32.totalorder %s112, 0
      %s115 = sadd.s32 %s114, 1
      %s116 = scalar_select %p113, %s114, %s115
      %p119 = pneg %p113
      %p120 = scmp.eq.s32.totalorder %s10, 1
      %p121 = por %p119, %p120
      %p122 = scmp.ne.s32.totalorder %s114, %s117
      %p123 = scmp.eq.s32.totalorder %s10, 0
      %p124 = por %p122, %p123
      %p125 = scmp.ne.s32.totalorder %s114, %s117
      %p126 = scmp.eq.s32.totalorder %s15, 1
      %p127 = por %p125, %p126
      %p128 = scmp.ne.s32.totalorder %s117, %s118
      %p129 = scmp.eq.s32.totalorder %s15, 0
      %p130 = por %p128, %p129
      %p131 = scmp.ne.s32.totalorder %s117, %s118
      %p132 = scmp.eq.s32.totalorder %s16, 1
      %p133 = por %p131, %p132
      %p135 = scmp.ne.s32.totalorder %s118, %s134
      %p136 = scmp.eq.s32.totalorder %s16, 0
      %p137 = por %p135, %p136
      %p138 = scmp.le.s32.totalorder 1, %s10
      %p139 = scmp.lt.s32.totalorder %s10, 3
      %p140 = pnand %p138, %p139
      %p141 = pneg %p140
      // Predicated region
      $region9: #{_lambda_.31} parent=5 // pred_check
        _
      $region10: #{_lambda_.31} parent=5 // pred_check_branch
        %143 = sbr.rel (%p140) target = $region12
      $region11: #{_lambda_.31} parent=5 // pred_region
        %s144 = ssub.s32 %s10, 1
        // Predicated region
        $region13: #{_lambda_.31} parent=11 // pred_check
          %p145 = pneg %p57
        $region14: #{_lambda_.31} parent=11 // pred_check_branch
          %147 = sbr.rel (%p145) target = $region16
        $region15: #{_lambda_.31} parent=11 // pred_region
          _
        $region16: #{_lambda_.31} parent=11 // pred_fallthru
          _
        // Predicated region
        $region17: #{_lambda_.31} parent=11 // pred_check
          %p148 = pneg %p78
        $region18: #{_lambda_.31} parent=11 // pred_check_branch
          %150 = sbr.rel (%p148) target = $region20
        $region19: #{_lambda_.31} parent=11 // pred_region
          _
        $region20: #{_lambda_.31} parent=11 // pred_fallthru
          _
      $region12: #{_lambda_.31} parent=5 // pred_fallthru
        _
      %p151 = scmp.lt.s32.totalorder %s10, 2
      // Predicated region
      $region21: #{_lambda_.31} parent=5 // pred_check
        %p152 = pneg %p151
      $region22: #{_lambda_.31} parent=5 // pred_check_branch
        %154 = sbr.rel (%p152) target = $region24
      $region23: #{_lambda_.31} parent=5 // pred_region
        // Predicated region
        $region25: #{_lambda_.31} parent=23 // pred_check
          %p155 = pneg %p30
        $region26: #{_lambda_.31} parent=23 // pred_check_branch
          %157 = sbr.rel (%p155) target = $region28
        $region27: #{_lambda_.31} parent=23 // pred_region
          %s158 = sand.u32 %s20, 1
          %s159 = sand.u32 %s20, 1
          %s160 = smul.addr %s159, 144
          %s161 = scalar_lea.vmem [#allocation2], %s160
          %s162 = smul.u32 2, %s10
          %s163 = smul.addr %s162, 4
          %s164 = scalar_lea.vmem %s0, %s163
          // Predicated region
          $region29: #{_lambda_.31} parent=27 // pred_check
            _
          $region30: #{_lambda_.31} parent=27 // pred_check_branch
            %166 = sbr.rel (0) target = $region32
          $region31: #{_lambda_.31} parent=27 // pred_region
            // Predicated region
            $region33: #{_lambda_.31} parent=31 // pred_check
              _
            $region34: #{_lambda_.31} parent=31 // pred_check_branch
              %168 = sbr.rel (0) target = $region36
            $region35: #{_lambda_.31} parent=31 // pred_region
              // Predicated region
              $region48: #{_lambda_.31} parent=35 // pred_check
                _
              $region49: #{_lambda_.31} parent=35 // pred_check_branch
                %218 = sbr.rel (0) target = $region51
              $region50: #{_lambda_.31} parent=35 // pred_region
                loop: start=0, step=1, limit=1
                $region52: #{_lambda_.31} parent=50 // loop_pre_header
                  _
                $region53: #{_lambda_.31} parent=50 // loop_header
                  %s220 = sphi 0, %s224
                  %p221 = scmp.ge.s32.totalorder %s220, 1
                  %s225 = sphi %s164, %s164
                  %s226 = sphi %s161, %s161
                $region54: #{_lambda_.31} parent=50 // loop_header_branch
                  %223 = sbr.rel (%p221) target = $region58
                $region55: #{_lambda_.31} parent=50 // loop_body
                  %v227 = vld [vmem:[%s225] sm:$0xff]
                  %228 = vst [vmem:[%s226] sm:$0xff] %v227
                  %v229 = vld [vmem:[%s225 + $0x10] sm:$0xff]
                  %230 = vst [vmem:[%s226 + $0x8] sm:$0xff] %v229
                  %v231 = vld [vmem:[%s225 + $0x20] sm:$0xff]
                  %232 = vst [vmem:[%s226 + $0x10] sm:$0xff] %v231
                  %v233 = vld [vmem:[%s225 + $0x30] sm:$0xff]
                  %234 = vst [vmem:[%s226 + $0x18] sm:$0xff] %v233
                  %v235 = vld [vmem:[%s225 + $0x40] sm:$0xff]
                  %236 = vst [vmem:[%s226 + $0x20] sm:$0xff] %v235
                  %v237 = vld [vmem:[%s225 + $0x50] sm:$0xff]
                  %238 = vst [vmem:[%s226 + $0x28] sm:$0xff] %v237
                  %v239 = vld [vmem:[%s225 + $0x60] sm:$0xff]
                  %240 = vst [vmem:[%s226 + $0x30] sm:$0xff] %v239
                  %v241 = vld [vmem:[%s225 + $0x70] sm:$0xff]
                  %242 = vst [vmem:[%s226 + $0x38] sm:$0xff] %v241
                  %v243 = vld [vmem:[%s225 + $0x80] sm:$0xff]
                  %244 = vst [vmem:[%s226 + $0x40] sm:$0xff] %v243
                  %v245 = vld [vmem:[%s225 + $0x90] sm:$0xff]
                  %246 = vst [vmem:[%s226 + $0x48] sm:$0xff] %v245
                  %v247 = vld [vmem:[%s225 + $0xa0] sm:$0xff]
                  %248 = vst [vmem:[%s226 + $0x50] sm:$0xff] %v247
                  %v249 = vld [vmem:[%s225 + $0xb0] sm:$0xff]
                  %250 = vst [vmem:[%s226 + $0x58] sm:$0xff] %v249
                  %v251 = vld [vmem:[%s225 + $0xc0] sm:$0xff]
                  %252 = vst [vmem:[%s226 + $0x60] sm:$0xff] %v251
                  %v253 = vld [vmem:[%s225 + $0xd0] sm:$0xff]
                  %254 = vst [vmem:[%s226 + $0x68] sm:$0xff] %v253
                  %v255 = vld [vmem:[%s225 + $0xe0] sm:$0xff]
                  %256 = vst [vmem:[%s226 + $0x70] sm:$0xff] %v255
                  %v257 = vld [vmem:[%s225 + $0xf0] sm:$0xff]
                  %258 = vst [vmem:[%s226 + $0x78] sm:$0xff] %v257
                  %v259 = vld [vmem:[%s225 + $0x100] sm:$0xff]
                  %260 = vst [vmem:[%s226 + $0x80] sm:$0xff] %v259
                  %v261 = vld [vmem:[%s225 + $0x110] sm:$0xff]
                  %262 = vst [vmem:[%s226 + $0x88] sm:$0xff] %v261
                $region56: #{_lambda_.31} parent=50 // loop_footer
                  %s224 = sadd.s32 1, %s220
                $region57: #{_lambda_.31} parent=50 // loop_footer_branch
                  %219 = sbr.rel target = $region53
                $region58: #{_lambda_.31} parent=50 // loop_exit
                  _
              $region51: #{_lambda_.31} parent=35 // pred_fallthru
                _
              // Predicated region
              $region59: #{_lambda_.31} parent=35 // pred_check
                _
              $region60: #{_lambda_.31} parent=35 // pred_check_branch
                %264 = sbr.rel target = $region62
              $region61: #{_lambda_.31} parent=35 // pred_region
                _
              $region62: #{_lambda_.31} parent=35 // pred_fallthru
                _
            $region36: #{_lambda_.31} parent=31 // pred_fallthru
              _
            // Predicated region
            $region37: #{_lambda_.31} parent=31 // pred_check
              _
            $region38: #{_lambda_.31} parent=31 // pred_check_branch
              %170 = sbr.rel target = $region40
            $region39: #{_lambda_.31} parent=31 // pred_region
              %s172 = ssub.s32 256, 1
              loop: start=0, step=1, limit=1
              $region41: #{_lambda_.31} parent=39 // loop_pre_header
                _
              $region42: #{_lambda_.31} parent=39 // loop_header
                %s174 = sphi 0, %s178
                %p175 = scmp.ge.s32.totalorder %s174, 1
                %s179 = sphi %s164, %s164
                %s180 = sphi %s161, %s161
              $region43: #{_lambda_.31} parent=39 // loop_header_branch
                %177 = sbr.rel (%p175) target = $region47
              $region44: #{_lambda_.31} parent=39 // loop_body
                %v181 = vld [vmem:[%s179] sm:%s172]
                %182 = vst [vmem:[%s180] sm:%s172] %v181
                %v183 = vld [vmem:[%s179 + $0x10] sm:%s172]
                %184 = vst [vmem:[%s180 + $0x8] sm:%s172] %v183
                %v185 = vld [vmem:[%s179 + $0x20] sm:%s172]
                %186 = vst [vmem:[%s180 + $0x10] sm:%s172] %v185
                %v187 = vld [vmem:[%s179 + $0x30] sm:%s172]
                %188 = vst [vmem:[%s180 + $0x18] sm:%s172] %v187
                %v189 = vld [vmem:[%s179 + $0x40] sm:%s172]
                %190 = vst [vmem:[%s180 + $0x20] sm:%s172] %v189
                %v191 = vld [vmem:[%s179 + $0x50] sm:%s172]
                %192 = vst [vmem:[%s180 + $0x28] sm:%s172] %v191
                %v193 = vld [vmem:[%s179 + $0x60] sm:%s172]
                %194 = vst [vmem:[%s180 + $0x30] sm:%s172] %v193
                %v195 = vld [vmem:[%s179 + $0x70] sm:%s172]
                %196 = vst [vmem:[%s180 + $0x38] sm:%s172] %v195
                %v197 = vld [vmem:[%s179 + $0x80] sm:%s172]
                %198 = vst [vmem:[%s180 + $0x40] sm:%s172] %v197
                %v199 = vld [vmem:[%s179 + $0x90] sm:%s172]
                %200 = vst [vmem:[%s180 + $0x48] sm:%s172] %v199
                %v201 = vld [vmem:[%s179 + $0xa0] sm:%s172]
                %202 = vst [vmem:[%s180 + $0x50] sm:%s172] %v201
                %v203 = vld [vmem:[%s179 + $0xb0] sm:%s172]
                %204 = vst [vmem:[%s180 + $0x58] sm:%s172] %v203
                %v205 = vld [vmem:[%s179 + $0xc0] sm:%s172]
                %206 = vst [vmem:[%s180 + $0x60] sm:%s172] %v205
                %v207 = vld [vmem:[%s179 + $0xd0] sm:%s172]
                %208 = vst [vmem:[%s180 + $0x68] sm:%s172] %v207
                %v209 = vld [vmem:[%s179 + $0xe0] sm:%s172]
                %210 = vst [vmem:[%s180 + $0x70] sm:%s172] %v209
                %v211 = vld [vmem:[%s179 + $0xf0] sm:%s172]
                %212 = vst [vmem:[%s180 + $0x78] sm:%s172] %v211
                %v213 = vld [vmem:[%s179 + $0x100] sm:%s172]
                %214 = vst [vmem:[%s180 + $0x80] sm:%s172] %v213
                %v215 = vld [vmem:[%s179 + $0x110] sm:%s172]
                %216 = vst [vmem:[%s180 + $0x88] sm:%s172] %v215
              $region45: #{_lambda_.31} parent=39 // loop_footer
                %s178 = sadd.s32 1, %s174
              $region46: #{_lambda_.31} parent=39 // loop_footer_branch
                %173 = sbr.rel target = $region42
              $region47: #{_lambda_.31} parent=39 // loop_exit
                _
            $region40: #{_lambda_.31} parent=31 // pred_fallthru
              _
          $region32: #{_lambda_.31} parent=27 // pred_fallthru
            _
          %265 = vnop
        $region28: #{_lambda_.31} parent=23 // pred_fallthru
          _
        // Predicated region
        $region63: #{_lambda_.31} parent=23 // pred_check
          %p266 = pneg %p98
        $region64: #{_lambda_.31} parent=23 // pred_check_branch
          %268 = sbr.rel (%p266) target = $region66
        $region65: #{_lambda_.31} parent=23 // pred_region
          %s269 = sand.u32 %s88, 1
          %s270 = sand.u32 %s88, 1
          %s271 = smul.addr %s270, 16
          %s272 = scalar_lea.vmem [#allocation3], %s271
          %s273 = smul.u32 2, %s10
          %s274 = smul.addr %s273, 4
          %s275 = scalar_lea.vmem %s3, %s274
          // Predicated region
          $region67: #{_lambda_.31} parent=65 // pred_check
            _
          $region68: #{_lambda_.31} parent=65 // pred_check_branch
            %277 = sbr.rel (0) target = $region70
          $region69: #{_lambda_.31} parent=65 // pred_region
            // Predicated region
            $region71: #{_lambda_.31} parent=69 // pred_check
              _
            $region72: #{_lambda_.31} parent=69 // pred_check_branch
              %279 = sbr.rel (0) target = $region74
            $region73: #{_lambda_.31} parent=69 // pred_region
              // Predicated region
              $region86: #{_lambda_.31} parent=73 // pred_check
                _
              $region87: #{_lambda_.31} parent=73 // pred_check_branch
                %297 = sbr.rel (0) target = $region89
              $region88: #{_lambda_.31} parent=73 // pred_region
                loop: start=0, step=1, limit=1
                $region90: #{_lambda_.31} parent=88 // loop_pre_header
                  _
                $region91: #{_lambda_.31} parent=88 // loop_header
                  %s299 = sphi 0, %s303
                  %p300 = scmp.ge.s32.totalorder %s299, 1
                  %s304 = sphi %s275, %s275
                  %s305 = sphi %s272, %s272
                $region92: #{_lambda_.31} parent=88 // loop_header_branch
                  %302 = sbr.rel (%p300) target = $region96
                $region93: #{_lambda_.31} parent=88 // loop_body
                  %v306 = vld [vmem:[%s304] sm:$0xff]
                  %307 = vst [vmem:[%s305] sm:$0xff] %v306
                  %v308 = vld [vmem:[%s304 + $0x10] sm:$0xff]
                  %309 = vst [vmem:[%s305 + $0x8] sm:$0xff] %v308
                $region94: #{_lambda_.31} parent=88 // loop_footer
                  %s303 = sadd.s32 1, %s299
                $region95: #{_lambda_.31} parent=88 // loop_footer_branch
                  %298 = sbr.rel target = $region91
                $region96: #{_lambda_.31} parent=88 // loop_exit
                  _
              $region89: #{_lambda_.31} parent=73 // pred_fallthru
                _
              // Predicated region
              $region97: #{_lambda_.31} parent=73 // pred_check
                _
              $region98: #{_lambda_.31} parent=73 // pred_check_branch
                %311 = sbr.rel target = $region100
              $region99: #{_lambda_.31} parent=73 // pred_region
                _
              $region100: #{_lambda_.31} parent=73 // pred_fallthru
                _
            $region74: #{_lambda_.31} parent=69 // pred_fallthru
              _
            // Predicated region
            $region75: #{_lambda_.31} parent=69 // pred_check
              _
            $region76: #{_lambda_.31} parent=69 // pred_check_branch
              %281 = sbr.rel target = $region78
            $region77: #{_lambda_.31} parent=69 // pred_region
              %s283 = ssub.s32 256, 1
              loop: start=0, step=1, limit=1
              $region79: #{_lambda_.31} parent=77 // loop_pre_header
                _
              $region80: #{_lambda_.31} parent=77 // loop_header
                %s285 = sphi 0, %s289
                %p286 = scmp.ge.s32.totalorder %s285, 1
                %s290 = sphi %s275, %s275
                %s291 = sphi %s272, %s272
              $region81: #{_lambda_.31} parent=77 // loop_header_branch
                %288 = sbr.rel (%p286) target = $region85
              $region82: #{_lambda_.31} parent=77 // loop_body
                %v292 = vld [vmem:[%s290] sm:%s283]
                %293 = vst [vmem:[%s291] sm:%s283] %v292
                %v294 = vld [vmem:[%s290 + $0x10] sm:%s283]
                %295 = vst [vmem:[%s291 + $0x8] sm:%s283] %v294
              $region83: #{_lambda_.31} parent=77 // loop_footer
                %s289 = sadd.s32 1, %s285
              $region84: #{_lambda_.31} parent=77 // loop_footer_branch
                %284 = sbr.rel target = $region80
              $region85: #{_lambda_.31} parent=77 // loop_exit
                _
            $region78: #{_lambda_.31} parent=69 // pred_fallthru
              _
          $region70: #{_lambda_.31} parent=65 // pred_fallthru
            _
          %312 = vnop
        $region66: #{_lambda_.31} parent=23 // pred_fallthru
          _
      $region24: #{_lambda_.31} parent=5 // pred_fallthru
        _
      %p313 = scmp.le.s32.totalorder 1, %s10
      %p314 = scmp.lt.s32.totalorder %s10, 3
      %p315 = pnand %p313, %p314
      %p316 = pneg %p315
      // Predicated region
      $region101: #{_lambda_.31} parent=5 // pred_check
        _
      $region102: #{_lambda_.31} parent=5 // pred_check_branch
        %318 = sbr.rel (%p315) target = $region104
      $region103: #{_lambda_.31} parent=5 // pred_region
        %s319 = ssub.s32 %s10, 1
        %s320 = sand.u32 %s23, 1
        %s321 = sand.u32 %s23, 1
        %s322 = smul.addr %s321, 144
        %s323 = scalar_lea.vmem [#allocation2], %s322
        // Predicated region
        $region105: #{_lambda_.31} parent=103 // pred_check
          %p324 = pneg %p36
        $region106: #{_lambda_.31} parent=103 // pred_check_branch
          %326 = sbr.rel (%p324) target = $region108
        $region107: #{_lambda_.31} parent=103 // pred_region
          _
        $region108: #{_lambda_.31} parent=103 // pred_fallthru
          _
        %s327 = sand.u32 %s91, 1
        %s328 = sand.u32 %s91, 1
        %s329 = smul.addr %s328, 16
        %s330 = scalar_lea.vmem [#allocation3], %s329
        // Predicated region
        $region109: #{_lambda_.31} parent=103 // pred_check
          %p331 = pneg %p104
        $region110: #{_lambda_.31} parent=103 // pred_check_branch
          %333 = sbr.rel (%p331) target = $region112
        $region111: #{_lambda_.31} parent=103 // pred_region
          _
        $region112: #{_lambda_.31} parent=103 // pred_fallthru
          _
        %s334 = sand.u32 %s23, 1
        %s335 = sand.u32 %s23, 1
        %s336 = smul.addr %s335, 144
        %s337 = scalar_lea.vmem [#allocation2], %s336
        %p338 = pneg %p36
        %p339 = pneg %p33
        %p340 = pneg %p57
        %p341 = pneg %p54
        %p342 = pneg %p78
        %p343 = pneg %p75
        %s344 = sand.u32 %s91, 1
        %s345 = sand.u32 %s91, 1
        %s346 = smul.addr %s345, 16
        %s347 = scalar_lea.vmem [#allocation3], %s346
        %p348 = pneg %p104
        %p349 = pneg %p101
        %p350 = pneg %p130
        %p351 = pneg %p127
        %s352 = sand.u32 %s117, 1
        %s353 = sand.u32 %s117, 1
        %s354 = smul.addr %s353, 16
        %s355 = scalar_lea.vmem [#allocation4], %s354
        %s356 = smul.u32 2, %s15
        %s357 = smul.u32 2, %s15
        %s358 = smul.u32 2, %s15
        %v360 = vld [vmem:[%s1] sm:$0xff]
        %v361 = vld [vmem:[%s1 + $0x8] sm:$0xff]
        %v362 = vld [vmem:[%s323] sm:$0xff]
        %v363 = vld [vmem:[%s323 + $0x8] sm:$0xff]
        %v364 = vld [vmem:[%s323 + $0x10] sm:$0xff]
        %v365 = vld [vmem:[%s323 + $0x18] sm:$0xff]
        %v366 = vld [vmem:[%s323 + $0x20] sm:$0xff]
        %v367 = vld [vmem:[%s323 + $0x28] sm:$0xff]
        %v368 = vld [vmem:[%s323 + $0x30] sm:$0xff]
        %v369 = vld [vmem:[%s323 + $0x38] sm:$0xff]
        %v370 = vld [vmem:[%s323 + $0x40] sm:$0xff]
        %v371 = vld [vmem:[%s323 + $0x48] sm:$0xff]
        %v372 = vld [vmem:[%s323 + $0x50] sm:$0xff]
        %v373 = vld [vmem:[%s323 + $0x58] sm:$0xff]
        %v374 = vld [vmem:[%s323 + $0x60] sm:$0xff]
        %v375 = vld [vmem:[%s323 + $0x68] sm:$0xff]
        %v376 = vld [vmem:[%s323 + $0x70] sm:$0xff]
        %v377 = vld [vmem:[%s323 + $0x78] sm:$0xff]
        %v378 = vld [vmem:[%s323 + $0x80] sm:$0xff]
        %v379 = vld [vmem:[%s323 + $0x88] sm:$0xff]
        %v380 = vld [vmem:[%s2] sm:$0xff]
        %v381 = vld [vmem:[%s2 + $0x8] sm:$0xff]
        %383 = vset.pattern.permute.xlu0 0
        %384 = vperm.xlu0 %383, %v380
        %v385 = vpop.permute.xlu0 %384
        %388 = vset.pattern.permute.xlu0 0
        %389 = vperm.xlu0 %388, %v381
        %v390 = vpop.permute.xlu0 %389
        %v394 = vunpack.c.l.b16 %v360
        %v395 = vunpack.c.h.b16 %v360
        %v396 = vunpack.c.l.b16 %v361
        %v397 = vunpack.c.h.b16 %v361
        %v398 = vpack.c.b16 %v396, %v394
        %v399 = vpack.c.b16 %v397, %v395
        %v419 = vunpack.c.l.b16 %v362
        %v420 = vunpack.c.h.b16 %v362
        %v421 = vunpack.c.l.b16 %v363
        %v422 = vunpack.c.h.b16 %v363
        %v423 = vunpack.c.l.b16 %v364
        %v424 = vunpack.c.h.b16 %v364
        %v425 = vunpack.c.l.b16 %v365
        %v426 = vunpack.c.h.b16 %v365
        %v427 = vunpack.c.l.b16 %v366
        %v428 = vunpack.c.h.b16 %v366
        %v429 = vunpack.c.l.b16 %v367
        %v430 = vunpack.c.h.b16 %v367
        %v431 = vunpack.c.l.b16 %v368
        %v432 = vunpack.c.h.b16 %v368
        %v433 = vunpack.c.l.b16 %v369
        %v434 = vunpack.c.h.b16 %v369
        %v435 = vunpack.c.l.b16 %v370
        %v436 = vunpack.c.h.b16 %v370
        %v437 = vunpack.c.l.b16 %v371
        %v438 = vunpack.c.h.b16 %v371
        %v439 = vunpack.c.l.b16 %v372
        %v440 = vunpack.c.h.b16 %v372
        %v441 = vunpack.c.l.b16 %v373
        %v442 = vunpack.c.h.b16 %v373
        %v443 = vunpack.c.l.b16 %v374
        %v444 = vunpack.c.h.b16 %v374
        %v445 = vunpack.c.l.b16 %v375
        %v446 = vunpack.c.h.b16 %v375
        %v447 = vunpack.c.l.b16 %v376
        %v448 = vunpack.c.h.b16 %v376
        %v449 = vunpack.c.l.b16 %v377
        %v450 = vunpack.c.h.b16 %v377
        %v451 = vunpack.c.l.b16 %v378
        %v452 = vunpack.c.h.b16 %v378
        %v453 = vunpack.c.l.b16 %v379
        %v454 = vunpack.c.h.b16 %v379
        %v455 = vpack.c.b16 %v421, %v419
        %v456 = vpack.c.b16 %v422, %v420
        %v457 = vpack.c.b16 %v425, %v423
        %v458 = vpack.c.b16 %v426, %v424
        %v459 = vpack.c.b16 %v429, %v427
        %v460 = vpack.c.b16 %v430, %v428
        %v461 = vpack.c.b16 %v433, %v431
        %v462 = vpack.c.b16 %v434, %v432
        %v463 = vpack.c.b16 %v437, %v435
        %v464 = vpack.c.b16 %v438, %v436
        %v465 = vpack.c.b16 %v441, %v439
        %v466 = vpack.c.b16 %v442, %v440
        %v467 = vpack.c.b16 %v445, %v443
        %v468 = vpack.c.b16 %v446, %v444
        %v469 = vpack.c.b16 %v449, %v447
        %v470 = vpack.c.b16 %v450, %v448
        %v471 = vpack.c.b16 %v453, %v451
        %v472 = vpack.c.b16 %v454, %v452
        %vm491 = vcmask 130048
        %v493 = vsel %vm491, %v399, 0
        %495 = vmatpush.bf16.msra.mxu0 %v469
        %496 = vmatpush.bf16.msra.mxu0 %v467
        %497 = vmatpush.bf16.msra.mxu0 %v465
        %498 = vmatpush.bf16.msra.mxu0 %v463
        %499 = vmatpush.bf16.msra.mxu0 %v461
        %500 = vmatpush.bf16.msra.mxu0 %v459
        %501 = vmatpush.bf16.msra.mxu0 %v457
        %502 = vmatpush.bf16.msra.mxu0 %v455
        %503 = vmatmul.bf16.gmra.mxu0 %v398
        %v504 = vpop.f32.mrf.mxu0
        %v505 = vadd.f32 %v385, %v504
        %v506 = vpop.f32.mrf.mxu0
        %v507 = vadd.f32 %v390, %v506
        %508 = vdwg.mxu0
        %509 = vmatpush.bf16.msra.mxu0 0
        %510 = vmatpush.bf16.msra.mxu0 0
        %511 = vmatpush.bf16.msra.mxu0 0
        %512 = vmatpush.bf16.msra.mxu0 0
        %513 = vmatpush.bf16.msra.mxu0 0
        %514 = vmatpush.bf16.msra.mxu0 0
        %515 = vmatpush.bf16.msra.mxu0 0
        %516 = vmatpush.bf16.msra.mxu0 %v471
        %517 = vmatmul.bf16.gmra.mxu0 %v493
        %v518 = vpop.f32.mrf.mxu0
        %v519 = vadd.f32 %v505, %v518
        %v520 = vpop.f32.mrf.mxu0
        %v521 = vadd.f32 %v507, %v520
        %522 = vdwg.mxu0
        %523 = vmatpush.bf16.msra.mxu0 %v470
        %524 = vmatpush.bf16.msra.mxu0 %v468
        %525 = vmatpush.bf16.msra.mxu0 %v466
        %526 = vmatpush.bf16.msra.mxu0 %v464
        %527 = vmatpush.bf16.msra.mxu0 %v462
        %528 = vmatpush.bf16.msra.mxu0 %v460
        %529 = vmatpush.bf16.msra.mxu0 %v458
        %530 = vmatpush.bf16.msra.mxu0 %v456
        %531 = vmatmul.bf16.gmra.mxu0 %v398
        %v532 = vpop.f32.mrf.mxu0
        %v533 = vadd.f32 %v385, %v532
        %v534 = vpop.f32.mrf.mxu0
        %v535 = vadd.f32 %v390, %v534
        %536 = vdwg.mxu0
        %537 = vmatpush.bf16.msra.mxu0 0
        %538 = vmatpush.bf16.msra.mxu0 0
        %539 = vmatpush.bf16.msra.mxu0 0
        %540 = vmatpush.bf16.msra.mxu0 0
        %541 = vmatpush.bf16.msra.mxu0 0
        %542 = vmatpush.bf16.msra.mxu0 0
        %543 = vmatpush.bf16.msra.mxu0 0
        %544 = vmatpush.bf16.msra.mxu0 %v472
        %545 = vmatmul.bf16.gmra.mxu0 %v493
        %v546 = vpop.f32.mrf.mxu0
        %v547 = vadd.f32 %v533, %v546
        %v548 = vpop.f32.mrf.mxu0
        %v549 = vadd.f32 %v535, %v548
        %550 = vdwg.mxu0
        %v551 = vand.u32 2147483647, %v519
        %v552 = vand.u32 2147483647, %v547
        %v553 = vand.u32 2147483647, %v521
        %v554 = vand.u32 2147483647, %v549
        %v555 = vsub.f32 0.0, %v551
        %v556 = vsub.f32 0.0, %v552
        %v557 = vsub.f32 0.0, %v553
        %v558 = vsub.f32 0.0, %v554
        %v559 = vmul.f32 %v555, 1.442695
        %v560 = vpow.pop %v559
        %v561 = vmul.f32 %v556, 1.442695
        %v562 = vpow.pop %v561
        %v563 = vmul.f32 %v557, 1.442695
        %v564 = vpow.pop %v563
        %v565 = vmul.f32 %v558, 1.442695
        %v566 = vpow.pop %v565
        %vm567 = vcmp.ge.f32.partialorder %v519, 0.0
        %vm568 = vcmp.ge.f32.partialorder %v547, 0.0
        %vm569 = vcmp.ge.f32.partialorder %v521, 0.0
        %vm570 = vcmp.ge.f32.partialorder %v549, 0.0
        %v571 = vsel %vm567, 1.0, %v560
        %v572 = vsel %vm568, 1.0, %v562
        %v573 = vsel %vm569, 1.0, %v564
        %v574 = vsel %vm570, 1.0, %v566
        %v575 = vadd.f32 %v560, 1.0
        %v576 = vadd.f32 %v562, 1.0
        %v577 = vadd.f32 %v564, 1.0
        %v578 = vadd.f32 %v566, 1.0
        %v579 = vrcp.pop %v575
        %v580 = vrcp.pop %v576
        %v581 = vrcp.pop %v577
        %v582 = vrcp.pop %v578
        %v583 = vmul.f32 %v571, %v579
        %v584 = vmul.f32 %v572, %v580
        %v585 = vmul.f32 %v573, %v581
        %v586 = vmul.f32 %v574, %v582
        %v587 = vmul.f32 %v519, %v583
        %v588 = vmul.f32 %v547, %v584
        %v589 = vmul.f32 %v521, %v585
        %v590 = vmul.f32 %v549, %v586
        %v591 = vld [vmem:[%s330] sm:$0xff]
        %v592 = vld [vmem:[%s330 + $0x8] sm:$0xff]
        %v593 = vunpack.c.l.bf16 %v591
        %v594 = vunpack.c.h.bf16 %v591
        %v595 = vunpack.c.l.bf16 %v592
        %v596 = vunpack.c.h.bf16 %v592
        %v597 = vadd.f32 %v587, %v593
        %v598 = vadd.f32 %v588, %v594
        %v599 = vadd.f32 %v589, %v595
        %v600 = vadd.f32 %v590, %v596
        %v601 = vpack.c.bf16 %v598, %v597
        %v602 = vpack.c.bf16 %v600, %v599
        %603 = vst [vmem:[%s355] sm:$0xff] %v601
        %604 = vst [vmem:[%s355 + $0x8] sm:$0xff] %v602
        %s605 = sand.u32 %s117, 1
        %s606 = sand.u32 %s117, 1
        %s607 = smul.addr %s606, 16
        %s608 = scalar_lea.vmem [#allocation4], %s607
        // Predicated region
        $region113: #{_lambda_.31} parent=103 // pred_check
          %p609 = pneg %p127
        $region114: #{_lambda_.31} parent=103 // pred_check_branch
          %611 = sbr.rel (%p609) target = $region116
        $region115: #{_lambda_.31} parent=103 // pred_region
          %s612 = smul.u32 2, %s15
          %s613 = smul.addr %s612, 4
          %s614 = scalar_lea.vmem %s4, %s613
          // Predicated region
          $region117: #{_lambda_.31} parent=115 // pred_check
            _
          $region118: #{_lambda_.31} parent=115 // pred_check_branch
            %616 = sbr.rel (0) target = $region120
          $region119: #{_lambda_.31} parent=115 // pred_region
            // Predicated region
            $region121: #{_lambda_.31} parent=119 // pred_check
              _
            $region122: #{_lambda_.31} parent=119 // pred_check_branch
              %618 = sbr.rel (0) target = $region124
            $region123: #{_lambda_.31} parent=119 // pred_region
              // Predicated region
              $region136: #{_lambda_.31} parent=123 // pred_check
                _
              $region137: #{_lambda_.31} parent=123 // pred_check_branch
                %636 = sbr.rel (0) target = $region139
              $region138: #{_lambda_.31} parent=123 // pred_region
                loop: start=0, step=1, limit=1
                $region140: #{_lambda_.31} parent=138 // loop_pre_header
                  _
                $region141: #{_lambda_.31} parent=138 // loop_header
                  %s638 = sphi 0, %s642
                  %p639 = scmp.ge.s32.totalorder %s638, 1
                  %s643 = sphi %s608, %s608
                  %s644 = sphi %s614, %s614
                $region142: #{_lambda_.31} parent=138 // loop_header_branch
                  %641 = sbr.rel (%p639) target = $region146
                $region143: #{_lambda_.31} parent=138 // loop_body
                  %v645 = vld [vmem:[%s643] sm:$0xff]
                  %646 = vst [vmem:[%s644] sm:$0xff] %v645
                  %v647 = vld [vmem:[%s643 + $0x8] sm:$0xff]
                  %648 = vst [vmem:[%s644 + $0x10] sm:$0xff] %v647
                $region144: #{_lambda_.31} parent=138 // loop_footer
                  %s642 = sadd.s32 1, %s638
                $region145: #{_lambda_.31} parent=138 // loop_footer_branch
                  %637 = sbr.rel target = $region141
                $region146: #{_lambda_.31} parent=138 // loop_exit
                  _
              $region139: #{_lambda_.31} parent=123 // pred_fallthru
                _
              // Predicated region
              $region147: #{_lambda_.31} parent=123 // pred_check
                _
              $region148: #{_lambda_.31} parent=123 // pred_check_branch
                %650 = sbr.rel target = $region150
              $region149: #{_lambda_.31} parent=123 // pred_region
                _
              $region150: #{_lambda_.31} parent=123 // pred_fallthru
                _
            $region124: #{_lambda_.31} parent=119 // pred_fallthru
              _
            // Predicated region
            $region125: #{_lambda_.31} parent=119 // pred_check
              _
            $region126: #{_lambda_.31} parent=119 // pred_check_branch
              %620 = sbr.rel target = $region128
            $region127: #{_lambda_.31} parent=119 // pred_region
              %s622 = ssub.s32 256, 1
              loop: start=0, step=1, limit=1
              $region129: #{_lambda_.31} parent=127 // loop_pre_header
                _
              $region130: #{_lambda_.31} parent=127 // loop_header
                %s624 = sphi 0, %s628
                %p625 = scmp.ge.s32.totalorder %s624, 1
                %s629 = sphi %s608, %s608
                %s630 = sphi %s614, %s614
              $region131: #{_lambda_.31} parent=127 // loop_header_branch
                %627 = sbr.rel (%p625) target = $region135
              $region132: #{_lambda_.31} parent=127 // loop_body
                %v631 = vld [vmem:[%s629] sm:%s622]
                %632 = vst [vmem:[%s630] sm:%s622] %v631
                %v633 = vld [vmem:[%s629 + $0x8] sm:%s622]
                %634 = vst [vmem:[%s630 + $0x10] sm:%s622] %v633
              $region133: #{_lambda_.31} parent=127 // loop_footer
                %s628 = sadd.s32 1, %s624
              $region134: #{_lambda_.31} parent=127 // loop_footer_branch
                %623 = sbr.rel target = $region130
              $region135: #{_lambda_.31} parent=127 // loop_exit
                _
            $region128: #{_lambda_.31} parent=119 // pred_fallthru
              _
          $region120: #{_lambda_.31} parent=115 // pred_fallthru
            _
          %651 = vnop
        $region116: #{_lambda_.31} parent=103 // pred_fallthru
          _
      $region104: #{_lambda_.31} parent=5 // pred_fallthru
        _
      %p652 = scmp.le.s32.totalorder 2, %s10
      // Predicated region
      $region151: #{_lambda_.31} parent=5 // pred_check
        %p653 = pneg %p652
      $region152: #{_lambda_.31} parent=5 // pred_check_branch
        %655 = sbr.rel (%p653) target = $region154
      $region153: #{_lambda_.31} parent=5 // pred_region
        %s656 = ssub.s32 %s10, 2
        // Predicated region
        $region155: #{_lambda_.31} parent=153 // pred_check
          %p657 = pneg %p133
        $region156: #{_lambda_.31} parent=153 // pred_check_branch
          %659 = sbr.rel (%p657) target = $region158
        $region157: #{_lambda_.31} parent=153 // pred_region
          %s660 = sand.u32 %s118, 1
          %s661 = sand.u32 %s118, 1
          %s662 = smul.addr %s661, 16
          %s663 = scalar_lea.vmem [#allocation4], %s662
        $region158: #{_lambda_.31} parent=153 // pred_fallthru
          _
      $region154: #{_lambda_.31} parent=5 // pred_fallthru
        _
    $region6: #{_lambda_.31} parent=1 // loop_footer
      %s14 = sadd.s32 1, %s10
    $region7: #{_lambda_.31} parent=1 // loop_footer_branch
      %9 = sbr.rel target = $region3
    $region8: #{_lambda_.31} parent=1 // loop_exit
      _

// kernel: _lambda_.32
$region0: #{_lambda_.32}
  #allocation0 [shape = 'u32[]', space=smem, size = 0x4, offset = 0x4, fixed_abs, tag = 'smem constant byte address 0x4 - core index']
  #allocation1 [shape = 'u32[72,128]{1,0:T(1,128)}', space=vmem, size = 0x9000, scoped, tag = 'internal scratch']
  %s0 = inlined_call_operand.vmem [shape: bf16[144,128], index: 0, kind: input, shape index: {}]
  %s1 = inlined_call_operand.vmem [shape: bf16[16,144], index: 1, kind: input, shape index: {}]
  %s2 = inlined_call_operand.vmem [shape: f32[16,1], index: 2, kind: input, shape index: {}]
  %s3 = inlined_call_operand.vmem [shape: bf16[16,128], index: 3, kind: output, shape index: {}]
  %s4 = sld [smem:[#allocation0]]
  $region22: #{_lambda_.32} parent=0
    _
  %s6 = ssub.s32 1, %s4
  %s7 = scalar_select 0, %s6, %s4
  // Predicated region
  $region2: #{_lambda_.32} parent=0 // pred_check
    _
  $region3: #{_lambda_.32} parent=0 // pred_check_branch
    %9 = sbr.rel (0) target = $region5
  $region4: #{_lambda_.32} parent=0 // pred_region
    _
  $region5: #{_lambda_.32} parent=0 // pred_fallthru
    _
  // Predicated region
  $region6: #{_lambda_.32} parent=0 // pred_check
    _
  $region7: #{_lambda_.32} parent=0 // pred_check_branch
    %11 = sbr.rel (0) target = $region9
  $region8: #{_lambda_.32} parent=0 // pred_region
    _
  $region9: #{_lambda_.32} parent=0 // pred_fallthru
    _
  // Predicated region
  $region10: #{_lambda_.32} parent=0 // pred_check
    _
  $region11: #{_lambda_.32} parent=0 // pred_check_branch
    %13 = sbr.rel (0) target = $region13
  $region12: #{_lambda_.32} parent=0 // pred_region
    _
  $region13: #{_lambda_.32} parent=0 // pred_fallthru
    _
  %v15 = vld [vmem:[%s1] sm:$0xff]
  %v16 = vld [vmem:[%s1 + $0x8] sm:$0xff]
  %v17 = vld [vmem:[%s0] sm:$0xf]
  %v18 = vld [vmem:[%s0 + $0x4] sm:$0xf]
  %v19 = vld [vmem:[%s0 + $0x8] sm:$0xf]
  %v20 = vld [vmem:[%s0 + $0xc] sm:$0xf]
  %v21 = vld [vmem:[%s0 + $0x10] sm:$0xf]
  %v22 = vld [vmem:[%s0 + $0x14] sm:$0xf]
  %v23 = vld [vmem:[%s0 + $0x18] sm:$0xf]
  %v24 = vld [vmem:[%s0 + $0x1c] sm:$0xf]
  %v25 = vld [vmem:[%s0 + $0x20] sm:$0xf]
  %v26 = vld [vmem:[%s0 + $0x24] sm:$0xf]
  %v27 = vld [vmem:[%s0 + $0x28] sm:$0xf]
  %v28 = vld [vmem:[%s0 + $0x2c] sm:$0xf]
  %v29 = vld [vmem:[%s0 + $0x30] sm:$0xf]
  %v30 = vld [vmem:[%s0 + $0x34] sm:$0xf]
  %v31 = vld [vmem:[%s0 + $0x38] sm:$0xf]
  %v32 = vld [vmem:[%s0 + $0x3c] sm:$0xf]
  %v33 = vld [vmem:[%s0 + $0x40] sm:$0xf]
  %v34 = vld [vmem:[%s0 + $0x44] sm:$0xf]
  %v35 = vld [vmem:[%s2] sm:$0xff]
  %v36 = vld [vmem:[%s2 + $0x8] sm:$0xff]
  %38 = vset.pattern.permute.xlu0 0
  %39 = vperm.xlu0 %38, %v35
  %v40 = vpop.permute.xlu0 %39
  %43 = vset.pattern.permute.xlu0 0
  %44 = vperm.xlu0 %43, %v36
  %v45 = vpop.permute.xlu0 %44
  %v49 = vunpack.c.l.b16 %v15
  %v50 = vunpack.c.h.b16 %v15
  %v51 = vunpack.c.l.b16 %v16
  %v52 = vunpack.c.h.b16 %v16
  %v53 = vpack.c.b16 %v51, %v49
  %v54 = vpack.c.b16 %v52, %v50
  %v74 = vunpack.c.l.b16 %v17
  %v75 = vunpack.c.l.b16 %v18
  %v76 = vunpack.c.l.b16 %v19
  %v77 = vunpack.c.l.b16 %v20
  %v78 = vunpack.c.l.b16 %v21
  %v79 = vunpack.c.l.b16 %v22
  %v80 = vunpack.c.l.b16 %v23
  %v81 = vunpack.c.l.b16 %v24
  %v82 = vunpack.c.l.b16 %v25
  %v83 = vunpack.c.l.b16 %v26
  %v84 = vunpack.c.l.b16 %v27
  %v85 = vunpack.c.l.b16 %v28
  %v86 = vunpack.c.l.b16 %v29
  %v87 = vunpack.c.l.b16 %v30
  %v88 = vunpack.c.l.b16 %v31
  %v89 = vunpack.c.l.b16 %v32
  %v90 = vunpack.c.l.b16 %v33
  %v91 = vunpack.c.l.b16 %v34
  %v92 = vpack.c.b16 %v75, %v74
  %v93 = vpack.c.b16 %v77, %v76
  %v94 = vpack.c.b16 %v79, %v78
  %v95 = vpack.c.b16 %v81, %v80
  %v96 = vpack.c.b16 %v83, %v82
  %v97 = vpack.c.b16 %v85, %v84
  %v98 = vpack.c.b16 %v87, %v86
  %v99 = vpack.c.b16 %v89, %v88
  %v100 = vpack.c.b16 %v91, %v90
  %vm110 = vcmask 130048
  %v112 = vsel %vm110, %v54, 0
  %114 = vmatpush.bf16.msra.mxu0 %v99
  %115 = vmatpush.bf16.msra.mxu0 %v98
  %116 = vmatpush.bf16.msra.mxu0 %v97
  %117 = vmatpush.bf16.msra.mxu0 %v96
  %118 = vmatpush.bf16.msra.mxu0 %v95
  %119 = vmatpush.bf16.msra.mxu0 %v94
  %120 = vmatpush.bf16.msra.mxu0 %v93
  %121 = vmatpush.bf16.msra.mxu0 %v92
  %122 = vmatmul.bf16.gmra.mxu0 %v53
  %v123 = vpop.f32.mrf.mxu0
  %v124 = vadd.f32 %v40, %v123
  %v125 = vpop.f32.mrf.mxu0
  %v126 = vadd.f32 %v45, %v125
  %127 = vdwg.mxu0
  %128 = vmatpush.bf16.msra.mxu0 0
  %129 = vmatpush.bf16.msra.mxu0 0
  %130 = vmatpush.bf16.msra.mxu0 0
  %131 = vmatpush.bf16.msra.mxu0 0
  %132 = vmatpush.bf16.msra.mxu0 0
  %133 = vmatpush.bf16.msra.mxu0 0
  %134 = vmatpush.bf16.msra.mxu0 0
  %135 = vmatpush.bf16.msra.mxu0 %v100
  %136 = vmatmul.bf16.gmra.mxu0 %v112
  %v137 = vpop.f32.mrf.mxu0
  %v138 = vadd.f32 %v124, %v137
  %v139 = vpop.f32.mrf.mxu0
  %v140 = vadd.f32 %v126, %v139
  %141 = vdwg.mxu0
  %v142 = vand.u32 2147483647, %v138
  %v143 = vand.u32 2147483647, %v140
  %v144 = vsub.f32 0.0, %v142
  %v145 = vsub.f32 0.0, %v143
  %v146 = vmul.f32 %v144, 1.442695
  %v147 = vpow.pop %v146
  %v148 = vmul.f32 %v145, 1.442695
  %v149 = vpow.pop %v148
  %vm150 = vcmp.ge.f32.partialorder %v138, 0.0
  %vm151 = vcmp.ge.f32.partialorder %v140, 0.0
  %v152 = vsel %vm150, 1.0, %v147
  %v153 = vsel %vm151, 1.0, %v149
  %v154 = vadd.f32 %v147, 1.0
  %v155 = vadd.f32 %v149, 1.0
  %v156 = vrcp.pop %v154
  %v157 = vrcp.pop %v155
  %v158 = vmul.f32 %v152, %v156
  %v159 = vmul.f32 %v153, %v157
  %v160 = vmul.f32 %v138, %v158
  %v161 = vmul.f32 %v140, %v159
  %v162 = vpack.c.bf16 %v160, %v160
  %v163 = vpack.c.bf16 %v161, %v161
  %164 = vst [vmem:[%s3] sm:$0xf] %v162
  %165 = vst [vmem:[%s3 + $0x4] sm:$0xf] %v163
  // Predicated region
  $region14: #{_lambda_.32} parent=0 // pred_check
    _
  $region15: #{_lambda_.32} parent=0 // pred_check_branch
    %167 = sbr.rel (0) target = $region17
  $region16: #{_lambda_.32} parent=0 // pred_region
    _
  $region17: #{_lambda_.32} parent=0 // pred_fallthru
    _
  // Predicated region
  $region18: #{_lambda_.32} parent=0 // pred_check
    _
  $region19: #{_lambda_.32} parent=0 // pred_check_branch
    %169 = sbr.rel (0) target = $region21
  $region20: #{_lambda_.32} parent=0 // pred_region
    _
  $region21: #{_lambda_.32} parent=0 // pred_fallthru
    _

// kernel: _lambda_.33
$region0: #{_lambda_.33}
  #allocation0 [shape = 'u32[]', space=smem, size = 0x4, offset = 0x4, fixed_abs, tag = 'smem constant byte address 0x4 - core index']
  #allocation1 [shape = 'u32[72,128]{1,0:T(1,128)}', space=vmem, size = 0x9000, scoped, tag = 'internal scratch']
  %s0 = inlined_call_operand.vmem [shape: bf16[16,128], index: 0, kind: input, shape index: {}]
  %s1 = inlined_call_operand.vmem [shape: bf16[16,16], index: 1, kind: input, shape index: {}]
  %s2 = inlined_call_operand.vmem [shape: f32[16,1], index: 2, kind: input, shape index: {}]
  %s3 = inlined_call_operand.vmem [shape: bf16[16,128], index: 3, kind: output, shape index: {}]
  %s4 = sld [smem:[#allocation0]]
  $region22: #{_lambda_.33} parent=0
    _
  %s6 = ssub.s32 1, %s4
  %s7 = scalar_select 0, %s6, %s4
  // Predicated region
  $region2: #{_lambda_.33} parent=0 // pred_check
    _
  $region3: #{_lambda_.33} parent=0 // pred_check_branch
    %9 = sbr.rel (0) target = $region5
  $region4: #{_lambda_.33} parent=0 // pred_region
    _
  $region5: #{_lambda_.33} parent=0 // pred_fallthru
    _
  // Predicated region
  $region6: #{_lambda_.33} parent=0 // pred_check
    _
  $region7: #{_lambda_.33} parent=0 // pred_check_branch
    %11 = sbr.rel (0) target = $region9
  $region8: #{_lambda_.33} parent=0 // pred_region
    _
  $region9: #{_lambda_.33} parent=0 // pred_fallthru
    _
  // Predicated region
  $region10: #{_lambda_.33} parent=0 // pred_check
    _
  $region11: #{_lambda_.33} parent=0 // pred_check_branch
    %13 = sbr.rel (0) target = $region13
  $region12: #{_lambda_.33} parent=0 // pred_region
    _
  $region13: #{_lambda_.33} parent=0 // pred_fallthru
    _
  %v15 = vld [vmem:[%s1] sm:$0xf]
  %v16 = vld [vmem:[%s1 + $0x4] sm:$0xf]
  %v17 = vld [vmem:[%s0] sm:$0xf]
  %v18 = vld [vmem:[%s0 + $0x4] sm:$0xf]
  %v19 = vld [vmem:[%s2] sm:$0xff]
  %v20 = vld [vmem:[%s2 + $0x8] sm:$0xff]
  %22 = vset.pattern.permute.xlu0 0
  %23 = vperm.xlu0 %22, %v19
  %v24 = vpop.permute.xlu0 %23
  %27 = vset.pattern.permute.xlu0 0
  %28 = vperm.xlu0 %27, %v20
  %v29 = vpop.permute.xlu0 %28
  %v33 = vunpack.c.l.b16 %v15
  %v34 = vunpack.c.l.b16 %v16
  %v35 = vpack.c.b16 %v34, %v33
  %v38 = vunpack.c.l.b16 %v17
  %v39 = vunpack.c.l.b16 %v18
  %v40 = vpack.c.b16 %v39, %v38
  %vm42 = vcmask 130048
  %v44 = vsel %vm42, %v35, 0
  %46 = vmatpush.bf16.msra.mxu0 0
  %47 = vmatpush.bf16.msra.mxu0 0
  %48 = vmatpush.bf16.msra.mxu0 0
  %49 = vmatpush.bf16.msra.mxu0 0
  %50 = vmatpush.bf16.msra.mxu0 0
  %51 = vmatpush.bf16.msra.mxu0 0
  %52 = vmatpush.bf16.msra.mxu0 0
  %53 = vmatpush.bf16.msra.mxu0 %v40
  %54 = vmatmul.bf16.gmra.mxu0 %v44
  %v55 = vpop.f32.mrf.mxu0
  %v56 = vadd.f32 %v24, %v55
  %v57 = vpop.f32.mrf.mxu0
  %v58 = vadd.f32 %v29, %v57
  %59 = vdwg.mxu0
  %v60 = vand.u32 2147483647, %v56
  %v61 = vand.u32 2147483647, %v58
  %v62 = vsub.f32 0.0, %v60
  %v63 = vsub.f32 0.0, %v61
  %v64 = vmul.f32 %v62, 1.442695
  %v65 = vpow.pop %v64
  %v66 = vmul.f32 %v63, 1.442695
  %v67 = vpow.pop %v66
  %vm68 = vcmp.ge.f32.partialorder %v56, 0.0
  %vm69 = vcmp.ge.f32.partialorder %v58, 0.0
  %v70 = vsel %vm68, 1.0, %v65
  %v71 = vsel %vm69, 1.0, %v67
  %v72 = vadd.f32 %v65, 1.0
  %v73 = vadd.f32 %v67, 1.0
  %v74 = vrcp.pop %v72
  %v75 = vrcp.pop %v73
  %v76 = vmul.f32 %v70, %v74
  %v77 = vmul.f32 %v71, %v75
  %v78 = vmul.f32 %v56, %v76
  %v79 = vmul.f32 %v58, %v77
  %v80 = vpack.c.bf16 %v78, %v78
  %v81 = vpack.c.bf16 %v79, %v79
  %82 = vst [vmem:[%s3] sm:$0xf] %v80
  %83 = vst [vmem:[%s3 + $0x4] sm:$0xf] %v81
  // Predicated region
  $region14: #{_lambda_.33} parent=0 // pred_check
    _
  $region15: #{_lambda_.33} parent=0 // pred_check_branch
    %85 = sbr.rel (0) target = $region17
  $region16: #{_lambda_.33} parent=0 // pred_region
    _
  $region17: #{_lambda_.33} parent=0 // pred_fallthru
    _
  // Predicated region
  $region18: #{_lambda_.33} parent=0 // pred_check
    _
  $region19: #{_lambda_.33} parent=0 // pred_check_branch
    %87 = sbr.rel (0) target = $region21
  $region20: #{_lambda_.33} parent=0 // pred_region
    _
  $region21: #{_lambda_.33} parent=0 // pred_fallthru
    _

// kernel: _lambda_.34
$region0: #{_lambda_.34}
  #allocation0 [shape = 'u32[]', space=smem, size = 0x4, offset = 0x4, fixed_abs, tag = 'smem constant byte address 0x4 - core index']
  #allocation1 [shape = 'u32[72,128]{1,0:T(1,128)}', space=vmem, size = 0x9000, scoped, tag = 'internal scratch']
  %s0 = inlined_call_operand.vmem [shape: bf16[144,128], index: 0, kind: input, shape index: {}]
  %s1 = inlined_call_operand.vmem [shape: bf16[16,144], index: 1, kind: input, shape index: {}]
  %s2 = inlined_call_operand.vmem [shape: f32[16,1], index: 2, kind: input, shape index: {}]
  %s3 = inlined_call_operand.vmem [shape: bf16[16,128], index: 3, kind: input, shape index: {}]
  %s4 = inlined_call_operand.vmem [shape: bf16[16,128], index: 4, kind: output, shape index: {}]
  %s5 = sld [smem:[#allocation0]]
  $region26: #{_lambda_.34} parent=0
    _
  %s7 = ssub.s32 1, %s5
  %s8 = scalar_select 0, %s7, %s5
  // Predicated region
  $region2: #{_lambda_.34} parent=0 // pred_check
    _
  $region3: #{_lambda_.34} parent=0 // pred_check_branch
    %10 = sbr.rel (0) target = $region5
  $region4: #{_lambda_.34} parent=0 // pred_region
    _
  $region5: #{_lambda_.34} parent=0 // pred_fallthru
    _
  // Predicated region
  $region6: #{_lambda_.34} parent=0 // pred_check
    _
  $region7: #{_lambda_.34} parent=0 // pred_check_branch
    %12 = sbr.rel (0) target = $region9
  $region8: #{_lambda_.34} parent=0 // pred_region
    _
  $region9: #{_lambda_.34} parent=0 // pred_fallthru
    _
  // Predicated region
  $region10: #{_lambda_.34} parent=0 // pred_check
    _
  $region11: #{_lambda_.34} parent=0 // pred_check_branch
    %14 = sbr.rel (0) target = $region13
  $region12: #{_lambda_.34} parent=0 // pred_region
    _
  $region13: #{_lambda_.34} parent=0 // pred_fallthru
    _
  // Predicated region
  $region14: #{_lambda_.34} parent=0 // pred_check
    _
  $region15: #{_lambda_.34} parent=0 // pred_check_branch
    %16 = sbr.rel (0) target = $region17
  $region16: #{_lambda_.34} parent=0 // pred_region
    _
  $region17: #{_lambda_.34} parent=0 // pred_fallthru
    _
  %v18 = vld [vmem:[%s1] sm:$0xff]
  %v19 = vld [vmem:[%s1 + $0x8] sm:$0xff]
  %v20 = vld [vmem:[%s0] sm:$0xf]
  %v21 = vld [vmem:[%s0 + $0x4] sm:$0xf]
  %v22 = vld [vmem:[%s0 + $0x8] sm:$0xf]
  %v23 = vld [vmem:[%s0 + $0xc] sm:$0xf]
  %v24 = vld [vmem:[%s0 + $0x10] sm:$0xf]
  %v25 = vld [vmem:[%s0 + $0x14] sm:$0xf]
  %v26 = vld [vmem:[%s0 + $0x18] sm:$0xf]
  %v27 = vld [vmem:[%s0 + $0x1c] sm:$0xf]
  %v28 = vld [vmem:[%s0 + $0x20] sm:$0xf]
  %v29 = vld [vmem:[%s0 + $0x24] sm:$0xf]
  %v30 = vld [vmem:[%s0 + $0x28] sm:$0xf]
  %v31 = vld [vmem:[%s0 + $0x2c] sm:$0xf]
  %v32 = vld [vmem:[%s0 + $0x30] sm:$0xf]
  %v33 = vld [vmem:[%s0 + $0x34] sm:$0xf]
  %v34 = vld [vmem:[%s0 + $0x38] sm:$0xf]
  %v35 = vld [vmem:[%s0 + $0x3c] sm:$0xf]
  %v36 = vld [vmem:[%s0 + $0x40] sm:$0xf]
  %v37 = vld [vmem:[%s0 + $0x44] sm:$0xf]
  %v38 = vld [vmem:[%s2] sm:$0xff]
  %v39 = vld [vmem:[%s2 + $0x8] sm:$0xff]
  %41 = vset.pattern.permute.xlu0 0
  %42 = vperm.xlu0 %41, %v38
  %v43 = vpop.permute.xlu0 %42
  %46 = vset.pattern.permute.xlu0 0
  %47 = vperm.xlu0 %46, %v39
  %v48 = vpop.permute.xlu0 %47
  %v52 = vunpack.c.l.b16 %v18
  %v53 = vunpack.c.h.b16 %v18
  %v54 = vunpack.c.l.b16 %v19
  %v55 = vunpack.c.h.b16 %v19
  %v56 = vpack.c.b16 %v54, %v52
  %v57 = vpack.c.b16 %v55, %v53
  %v77 = vunpack.c.l.b16 %v20
  %v78 = vunpack.c.l.b16 %v21
  %v79 = vunpack.c.l.b16 %v22
  %v80 = vunpack.c.l.b16 %v23
  %v81 = vunpack.c.l.b16 %v24
  %v82 = vunpack.c.l.b16 %v25
  %v83 = vunpack.c.l.b16 %v26
  %v84 = vunpack.c.l.b16 %v27
  %v85 = vunpack.c.l.b16 %v28
  %v86 = vunpack.c.l.b16 %v29
  %v87 = vunpack.c.l.b16 %v30
  %v88 = vunpack.c.l.b16 %v31
  %v89 = vunpack.c.l.b16 %v32
  %v90 = vunpack.c.l.b16 %v33
  %v91 = vunpack.c.l.b16 %v34
  %v92 = vunpack.c.l.b16 %v35
  %v93 = vunpack.c.l.b16 %v36
  %v94 = vunpack.c.l.b16 %v37
  %v95 = vpack.c.b16 %v78, %v77
  %v96 = vpack.c.b16 %v80, %v79
  %v97 = vpack.c.b16 %v82, %v81
  %v98 = vpack.c.b16 %v84, %v83
  %v99 = vpack.c.b16 %v86, %v85
  %v100 = vpack.c.b16 %v88, %v87
  %v101 = vpack.c.b16 %v90, %v89
  %v102 = vpack.c.b16 %v92, %v91
  %v103 = vpack.c.b16 %v94, %v93
  %vm113 = vcmask 130048
  %v115 = vsel %vm113, %v57, 0
  %117 = vmatpush.bf16.msra.mxu0 %v102
  %118 = vmatpush.bf16.msra.mxu0 %v101
  %119 = vmatpush.bf16.msra.mxu0 %v100
  %120 = vmatpush.bf16.msra.mxu0 %v99
  %121 = vmatpush.bf16.msra.mxu0 %v98
  %122 = vmatpush.bf16.msra.mxu0 %v97
  %123 = vmatpush.bf16.msra.mxu0 %v96
  %124 = vmatpush.bf16.msra.mxu0 %v95
  %125 = vmatmul.bf16.gmra.mxu0 %v56
  %v126 = vpop.f32.mrf.mxu0
  %v127 = vadd.f32 %v43, %v126
  %v128 = vpop.f32.mrf.mxu0
  %v129 = vadd.f32 %v48, %v128
  %130 = vdwg.mxu0
  %131 = vmatpush.bf16.msra.mxu0 0
  %132 = vmatpush.bf16.msra.mxu0 0
  %133 = vmatpush.bf16.msra.mxu0 0
  %134 = vmatpush.bf16.msra.mxu0 0
  %135 = vmatpush.bf16.msra.mxu0 0
  %136 = vmatpush.bf16.msra.mxu0 0
  %137 = vmatpush.bf16.msra.mxu0 0
  %138 = vmatpush.bf16.msra.mxu0 %v103
  %139 = vmatmul.bf16.gmra.mxu0 %v115
  %v140 = vpop.f32.mrf.mxu0
  %v141 = vadd.f32 %v127, %v140
  %v142 = vpop.f32.mrf.mxu0
  %v143 = vadd.f32 %v129, %v142
  %144 = vdwg.mxu0
  %v145 = vand.u32 2147483647, %v141
  %v146 = vand.u32 2147483647, %v143
  %v147 = vsub.f32 0.0, %v145
  %v148 = vsub.f32 0.0, %v146
  %v149 = vmul.f32 %v147, 1.442695
  %v150 = vpow.pop %v149
  %v151 = vmul.f32 %v148, 1.442695
  %v152 = vpow.pop %v151
  %vm153 = vcmp.ge.f32.partialorder %v141, 0.0
  %vm154 = vcmp.ge.f32.partialorder %v143, 0.0
  %v155 = vsel %vm153, 1.0, %v150
  %v156 = vsel %vm154, 1.0, %v152
  %v157 = vadd.f32 %v150, 1.0
  %v158 = vadd.f32 %v152, 1.0
  %v159 = vrcp.pop %v157
  %v160 = vrcp.pop %v158
  %v161 = vmul.f32 %v155, %v159
  %v162 = vmul.f32 %v156, %v160
  %v163 = vmul.f32 %v141, %v161
  %v164 = vmul.f32 %v143, %v162
  %v165 = vld [vmem:[%s3] sm:$0xf]
  %v166 = vld [vmem:[%s3 + $0x4] sm:$0xf]
  %v167 = vunpack.c.l.bf16 %v165
  %v168 = vunpack.c.l.bf16 %v166
  %v169 = vadd.f32 %v163, %v167
  %v170 = vadd.f32 %v164, %v168
  %v171 = vpack.c.bf16 %v169, %v169
  %v172 = vpack.c.bf16 %v170, %v170
  %173 = vst [vmem:[%s4] sm:$0xf] %v171
  %174 = vst [vmem:[%s4 + $0x4] sm:$0xf] %v172
  // Predicated region
  $region18: #{_lambda_.34} parent=0 // pred_check
    _
  $region19: #{_lambda_.34} parent=0 // pred_check_branch
    %176 = sbr.rel (0) target = $region21
  $region20: #{_lambda_.34} parent=0 // pred_region
    _
  $region21: #{_lambda_.34} parent=0 // pred_fallthru
    _
  // Predicated region
  $region22: #{_lambda_.34} parent=0 // pred_check
    _
  $region23: #{_lambda_.34} parent=0 // pred_check_branch
    %178 = sbr.rel (0) target = $region25
  $region24: #{_lambda_.34} parent=0 // pred_region
    _
  $region25: #{_lambda_.34} parent=0 // pred_fallthru
    _

// kernel: _lambda_.35
$region0: #{_lambda_.35}
  #allocation0 [shape = 'u32[]', space=smem, size = 0x4, offset = 0x4, fixed_abs, tag = 'smem constant byte address 0x4 - core index']
  #allocation1 [shape = 'u32[72,128]{1,0:T(1,128)}', space=vmem, size = 0x9000, scoped, tag = 'internal scratch']
  %s0 = inlined_call_operand.vmem [shape: bf16[144,128], index: 0, kind: input, shape index: {}]
  %s1 = inlined_call_operand.vmem [shape: bf16[32,144], index: 1, kind: input, shape index: {}]
  %s2 = inlined_call_operand.vmem [shape: f32[32,1], index: 2, kind: input, shape index: {}]
  %s3 = inlined_call_operand.vmem [shape: bf16[32,128], index: 3, kind: output, shape index: {}]
  %s4 = sld [smem:[#allocation0]]
  $region22: #{_lambda_.35} parent=0
    _
  %s6 = ssub.s32 1, %s4
  %s7 = scalar_select 0, %s6, %s4
  // Predicated region
  $region2: #{_lambda_.35} parent=0 // pred_check
    _
  $region3: #{_lambda_.35} parent=0 // pred_check_branch
    %9 = sbr.rel (0) target = $region5
  $region4: #{_lambda_.35} parent=0 // pred_region
    _
  $region5: #{_lambda_.35} parent=0 // pred_fallthru
    _
  // Predicated region
  $region6: #{_lambda_.35} parent=0 // pred_check
    _
  $region7: #{_lambda_.35} parent=0 // pred_check_branch
    %11 = sbr.rel (0) target = $region9
  $region8: #{_lambda_.35} parent=0 // pred_region
    _
  $region9: #{_lambda_.35} parent=0 // pred_fallthru
    _
  // Predicated region
  $region10: #{_lambda_.35} parent=0 // pred_check
    _
  $region11: #{_lambda_.35} parent=0 // pred_check_branch
    %13 = sbr.rel (0) target = $region13
  $region12: #{_lambda_.35} parent=0 // pred_region
    _
  $region13: #{_lambda_.35} parent=0 // pred_fallthru
    _
  %v15 = vld [vmem:[%s1] sm:$0xff]
  %v16 = vld [vmem:[%s1 + $0x8] sm:$0xff]
  %v17 = vld [vmem:[%s1 + $0x10] sm:$0xff]
  %v18 = vld [vmem:[%s1 + $0x18] sm:$0xff]
  %v19 = vld [vmem:[%s0] sm:$0xf]
  %v20 = vld [vmem:[%s0 + $0x4] sm:$0xf]
  %v21 = vld [vmem:[%s0 + $0x8] sm:$0xf]
  %v22 = vld [vmem:[%s0 + $0xc] sm:$0xf]
  %v23 = vld [vmem:[%s0 + $0x10] sm:$0xf]
  %v24 = vld [vmem:[%s0 + $0x14] sm:$0xf]
  %v25 = vld [vmem:[%s0 + $0x18] sm:$0xf]
  %v26 = vld [vmem:[%s0 + $0x1c] sm:$0xf]
  %v27 = vld [vmem:[%s0 + $0x20] sm:$0xf]
  %v28 = vld [vmem:[%s0 + $0x24] sm:$0xf]
  %v29 = vld [vmem:[%s0 + $0x28] sm:$0xf]
  %v30 = vld [vmem:[%s0 + $0x2c] sm:$0xf]
  %v31 = vld [vmem:[%s0 + $0x30] sm:$0xf]
  %v32 = vld [vmem:[%s0 + $0x34] sm:$0xf]
  %v33 = vld [vmem:[%s0 + $0x38] sm:$0xf]
  %v34 = vld [vmem:[%s0 + $0x3c] sm:$0xf]
  %v35 = vld [vmem:[%s0 + $0x40] sm:$0xf]
  %v36 = vld [vmem:[%s0 + $0x44] sm:$0xf]
  %v37 = vld [vmem:[%s2] sm:$0xff]
  %v38 = vld [vmem:[%s2 + $0x8] sm:$0xff]
  %v39 = vld [vmem:[%s2 + $0x10] sm:$0xff]
  %v40 = vld [vmem:[%s2 + $0x18] sm:$0xff]
  %42 = vset.pattern.permute.xlu0 0
  %43 = vperm.xlu0 %42, %v37
  %v44 = vpop.permute.xlu0 %43
  %47 = vset.pattern.permute.xlu0 0
  %48 = vperm.xlu0 %47, %v38
  %v49 = vpop.permute.xlu0 %48
  %52 = vset.pattern.permute.xlu0 0
  %53 = vperm.xlu0 %52, %v39
  %v54 = vpop.permute.xlu0 %53
  %57 = vset.pattern.permute.xlu0 0
  %58 = vperm.xlu0 %57, %v40
  %v59 = vpop.permute.xlu0 %58
  %v65 = vunpack.c.l.b16 %v15
  %v66 = vunpack.c.h.b16 %v15
  %v67 = vunpack.c.l.b16 %v16
  %v68 = vunpack.c.h.b16 %v16
  %v69 = vunpack.c.l.b16 %v17
  %v70 = vunpack.c.h.b16 %v17
  %v71 = vunpack.c.l.b16 %v18
  %v72 = vunpack.c.h.b16 %v18
  %v73 = vpack.c.b16 %v67, %v65
  %v74 = vpack.c.b16 %v68, %v66
  %v75 = vpack.c.b16 %v71, %v69
  %v76 = vpack.c.b16 %v72, %v70
  %v97 = vunpack.c.l.b16 %v19
  %v98 = vunpack.c.l.b16 %v20
  %v99 = vunpack.c.l.b16 %v21
  %v100 = vunpack.c.l.b16 %v22
  %v101 = vunpack.c.l.b16 %v23
  %v102 = vunpack.c.l.b16 %v24
  %v103 = vunpack.c.l.b16 %v25
  %v104 = vunpack.c.l.b16 %v26
  %v105 = vunpack.c.l.b16 %v27
  %v106 = vunpack.c.l.b16 %v28
  %v107 = vunpack.c.l.b16 %v29
  %v108 = vunpack.c.l.b16 %v30
  %v109 = vunpack.c.l.b16 %v31
  %v110 = vunpack.c.l.b16 %v32
  %v111 = vunpack.c.l.b16 %v33
  %v112 = vunpack.c.l.b16 %v34
  %v113 = vunpack.c.l.b16 %v35
  %v114 = vunpack.c.l.b16 %v36
  %v115 = vpack.c.b16 %v98, %v97
  %v116 = vpack.c.b16 %v100, %v99
  %v117 = vpack.c.b16 %v102, %v101
  %v118 = vpack.c.b16 %v104, %v103
  %v119 = vpack.c.b16 %v106, %v105
  %v120 = vpack.c.b16 %v108, %v107
  %v121 = vpack.c.b16 %v110, %v109
  %v122 = vpack.c.b16 %v112, %v111
  %v123 = vpack.c.b16 %v114, %v113
  %vm133 = vcmask 130048
  %v135 = vsel %vm133, %v74, 0
  %v138 = vsel %vm133, %v76, 0
  %140 = vmatpush.bf16.msra.mxu0 %v122
  %141 = vmatpush.bf16.msra.mxu0 %v121
  %142 = vmatpush.bf16.msra.mxu0 %v120
  %143 = vmatpush.bf16.msra.mxu0 %v119
  %144 = vmatpush.bf16.msra.mxu0 %v118
  %145 = vmatpush.bf16.msra.mxu0 %v117
  %146 = vmatpush.bf16.msra.mxu0 %v116
  %147 = vmatpush.bf16.msra.mxu0 %v115
  %148 = vmatmul.bf16.gmra.mxu0 %v73
  %v149 = vpop.f32.mrf.mxu0
  %v150 = vadd.f32 %v44, %v149
  %v151 = vpop.f32.mrf.mxu0
  %v152 = vadd.f32 %v49, %v151
  %153 = vmatmul.bf16.gmra.mxu0 %v75
  %v154 = vpop.f32.mrf.mxu0
  %v155 = vadd.f32 %v54, %v154
  %v156 = vpop.f32.mrf.mxu0
  %v157 = vadd.f32 %v59, %v156
  %158 = vdwg.mxu0
  %159 = vmatpush.bf16.msra.mxu0 0
  %160 = vmatpush.bf16.msra.mxu0 0
  %161 = vmatpush.bf16.msra.mxu0 0
  %162 = vmatpush.bf16.msra.mxu0 0
  %163 = vmatpush.bf16.msra.mxu0 0
  %164 = vmatpush.bf16.msra.mxu0 0
  %165 = vmatpush.bf16.msra.mxu0 0
  %166 = vmatpush.bf16.msra.mxu0 %v123
  %167 = vmatmul.bf16.gmra.mxu0 %v135
  %v168 = vpop.f32.mrf.mxu0
  %v169 = vadd.f32 %v150, %v168
  %v170 = vpop.f32.mrf.mxu0
  %v171 = vadd.f32 %v152, %v170
  %172 = vmatmul.bf16.gmra.mxu0 %v138
  %v173 = vpop.f32.mrf.mxu0
  %v174 = vadd.f32 %v155, %v173
  %v175 = vpop.f32.mrf.mxu0
  %v176 = vadd.f32 %v157, %v175
  %177 = vdwg.mxu0
  %v178 = vand.u32 2147483647, %v169
  %v179 = vand.u32 2147483647, %v171
  %v180 = vand.u32 2147483647, %v174
  %v181 = vand.u32 2147483647, %v176
  %v182 = vsub.f32 0.0, %v178
  %v183 = vsub.f32 0.0, %v179
  %v184 = vsub.f32 0.0, %v180
  %v185 = vsub.f32 0.0, %v181
  %v186 = vmul.f32 %v182, 1.442695
  %v187 = vpow.pop %v186
  %v188 = vmul.f32 %v183, 1.442695
  %v189 = vpow.pop %v188
  %v190 = vmul.f32 %v184, 1.442695
  %v191 = vpow.pop %v190
  %v192 = vmul.f32 %v185, 1.442695
  %v193 = vpow.pop %v192
  %vm194 = vcmp.ge.f32.partialorder %v169, 0.0
  %vm195 = vcmp.ge.f32.partialorder %v171, 0.0
  %vm196 = vcmp.ge.f32.partialorder %v174, 0.0
  %vm197 = vcmp.ge.f32.partialorder %v176, 0.0
  %v198 = vsel %vm194, 1.0, %v187
  %v199 = vsel %vm195, 1.0, %v189
  %v200 = vsel %vm196, 1.0, %v191
  %v201 = vsel %vm197, 1.0, %v193
  %v202 = vadd.f32 %v187, 1.0
  %v203 = vadd.f32 %v189, 1.0
  %v204 = vadd.f32 %v191, 1.0
  %v205 = vadd.f32 %v193, 1.0
  %v206 = vrcp.pop %v202
  %v207 = vrcp.pop %v203
  %v208 = vrcp.pop %v204
  %v209 = vrcp.pop %v205
  %v210 = vmul.f32 %v198, %v206
  %v211 = vmul.f32 %v199, %v207
  %v212 = vmul.f32 %v200, %v208
  %v213 = vmul.f32 %v201, %v209
  %v214 = vmul.f32 %v169, %v210
  %v215 = vmul.f32 %v171, %v211
  %v216 = vmul.f32 %v174, %v212
  %v217 = vmul.f32 %v176, %v213
  %v218 = vpack.c.bf16 %v214, %v214
  %v219 = vpack.c.bf16 %v215, %v215
  %v220 = vpack.c.bf16 %v216, %v216
  %v221 = vpack.c.bf16 %v217, %v217
  %222 = vst [vmem:[%s3] sm:$0xf] %v218
  %223 = vst [vmem:[%s3 + $0x4] sm:$0xf] %v219
  %224 = vst [vmem:[%s3 + $0x8] sm:$0xf] %v220
  %225 = vst [vmem:[%s3 + $0xc] sm:$0xf] %v221
  // Predicated region
  $region14: #{_lambda_.35} parent=0 // pred_check
    _
  $region15: #{_lambda_.35} parent=0 // pred_check_branch
    %227 = sbr.rel (0) target = $region17
  $region16: #{_lambda_.35} parent=0 // pred_region
    _
  $region17: #{_lambda_.35} parent=0 // pred_fallthru
    _
  // Predicated region
  $region18: #{_lambda_.35} parent=0 // pred_check
    _
  $region19: #{_lambda_.35} parent=0 // pred_check_branch
    %229 = sbr.rel (0) target = $region21
  $region20: #{_lambda_.35} parent=0 // pred_region
    _
  $region21: #{_lambda_.35} parent=0 // pred_fallthru
    _

// kernel: _lambda_.36
$region0: #{_lambda_.36}
  #allocation0 [shape = 'u32[]', space=smem, size = 0x4, offset = 0x4, fixed_abs, tag = 'smem constant byte address 0x4 - core index']
  #allocation1 [shape = 'u32[72,128]{1,0:T(1,128)}', space=vmem, size = 0x9000, scoped, tag = 'internal scratch']
  %s0 = inlined_call_operand.vmem [shape: bf16[32,128], index: 0, kind: input, shape index: {}]
  %s1 = inlined_call_operand.vmem [shape: bf16[32,32], index: 1, kind: input, shape index: {}]
  %s2 = inlined_call_operand.vmem [shape: f32[32,1], index: 2, kind: input, shape index: {}]
  %s3 = inlined_call_operand.vmem [shape: bf16[32,128], index: 3, kind: output, shape index: {}]
  %s4 = sld [smem:[#allocation0]]
  $region22: #{_lambda_.36} parent=0
    _
  %s6 = ssub.s32 1, %s4
  %s7 = scalar_select 0, %s6, %s4
  // Predicated region
  $region2: #{_lambda_.36} parent=0 // pred_check
    _
  $region3: #{_lambda_.36} parent=0 // pred_check_branch
    %9 = sbr.rel (0) target = $region5
  $region4: #{_lambda_.36} parent=0 // pred_region
    _
  $region5: #{_lambda_.36} parent=0 // pred_fallthru
    _
  // Predicated region
  $region6: #{_lambda_.36} parent=0 // pred_check
    _
  $region7: #{_lambda_.36} parent=0 // pred_check_branch
    %11 = sbr.rel (0) target = $region9
  $region8: #{_lambda_.36} parent=0 // pred_region
    _
  $region9: #{_lambda_.36} parent=0 // pred_fallthru
    _
  // Predicated region
  $region10: #{_lambda_.36} parent=0 // pred_check
    _
  $region11: #{_lambda_.36} parent=0 // pred_check_branch
    %13 = sbr.rel (0) target = $region13
  $region12: #{_lambda_.36} parent=0 // pred_region
    _
  $region13: #{_lambda_.36} parent=0 // pred_fallthru
    _
  %v15 = vld [vmem:[%s1] sm:$0xf]
  %v16 = vld [vmem:[%s1 + $0x4] sm:$0xf]
  %v17 = vld [vmem:[%s1 + $0x8] sm:$0xf]
  %v18 = vld [vmem:[%s1 + $0xc] sm:$0xf]
  %v19 = vld [vmem:[%s0] sm:$0xf]
  %v20 = vld [vmem:[%s0 + $0x4] sm:$0xf]
  %v21 = vld [vmem:[%s0 + $0x8] sm:$0xf]
  %v22 = vld [vmem:[%s0 + $0xc] sm:$0xf]
  %v23 = vld [vmem:[%s2] sm:$0xff]
  %v24 = vld [vmem:[%s2 + $0x8] sm:$0xff]
  %v25 = vld [vmem:[%s2 + $0x10] sm:$0xff]
  %v26 = vld [vmem:[%s2 + $0x18] sm:$0xff]
  %28 = vset.pattern.permute.xlu0 0
  %29 = vperm.xlu0 %28, %v23
  %v30 = vpop.permute.xlu0 %29
  %33 = vset.pattern.permute.xlu0 0
  %34 = vperm.xlu0 %33, %v24
  %v35 = vpop.permute.xlu0 %34
  %38 = vset.pattern.permute.xlu0 0
  %39 = vperm.xlu0 %38, %v25
  %v40 = vpop.permute.xlu0 %39
  %43 = vset.pattern.permute.xlu0 0
  %44 = vperm.xlu0 %43, %v26
  %v45 = vpop.permute.xlu0 %44
  %v51 = vunpack.c.l.b16 %v15
  %v52 = vunpack.c.l.b16 %v16
  %v53 = vunpack.c.l.b16 %v17
  %v54 = vunpack.c.l.b16 %v18
  %v55 = vpack.c.b16 %v52, %v51
  %v56 = vpack.c.b16 %v54, %v53
  %v61 = vunpack.c.l.b16 %v19
  %v62 = vunpack.c.l.b16 %v20
  %v63 = vunpack.c.l.b16 %v21
  %v64 = vunpack.c.l.b16 %v22
  %v65 = vpack.c.b16 %v62, %v61
  %v66 = vpack.c.b16 %v64, %v63
  %vm69 = vcmask 261120
  %v71 = vsel %vm69, %v55, 0
  %v74 = vsel %vm69, %v56, 0
  %76 = vmatpush.bf16.msra.mxu0 0
  %77 = vmatpush.bf16.msra.mxu0 0
  %78 = vmatpush.bf16.msra.mxu0 0
  %79 = vmatpush.bf16.msra.mxu0 0
  %80 = vmatpush.bf16.msra.mxu0 0
  %81 = vmatpush.bf16.msra.mxu0 0
  %82 = vmatpush.bf16.msra.mxu0 %v66
  %83 = vmatpush.bf16.msra.mxu0 %v65
  %84 = vmatmul.bf16.gmra.mxu0 %v71
  %v85 = vpop.f32.mrf.mxu0
  %v86 = vadd.f32 %v30, %v85
  %v87 = vpop.f32.mrf.mxu0
  %v88 = vadd.f32 %v35, %v87
  %89 = vmatmul.bf16.gmra.mxu0 %v74
  %v90 = vpop.f32.mrf.mxu0
  %v91 = vadd.f32 %v40, %v90
  %v92 = vpop.f32.mrf.mxu0
  %v93 = vadd.f32 %v45, %v92
  %94 = vdwg.mxu0
  %v95 = vand.u32 2147483647, %v86
  %v96 = vand.u32 2147483647, %v88
  %v97 = vand.u32 2147483647, %v91
  %v98 = vand.u32 2147483647, %v93
  %v99 = vsub.f32 0.0, %v95
  %v100 = vsub.f32 0.0, %v96
  %v101 = vsub.f32 0.0, %v97
  %v102 = vsub.f32 0.0, %v98
  %v103 = vmul.f32 %v99, 1.442695
  %v104 = vpow.pop %v103
  %v105 = vmul.f32 %v100, 1.442695
  %v106 = vpow.pop %v105
  %v107 = vmul.f32 %v101, 1.442695
  %v108 = vpow.pop %v107
  %v109 = vmul.f32 %v102, 1.442695
  %v110 = vpow.pop %v109
  %vm111 = vcmp.ge.f32.partialorder %v86, 0.0
  %vm112 = vcmp.ge.f32.partialorder %v88, 0.0
  %vm113 = vcmp.ge.f32.partialorder %v91, 0.0
  %vm114 = vcmp.ge.f32.partialorder %v93, 0.0
  %v115 = vsel %vm111, 1.0, %v104
  %v116 = vsel %vm112, 1.0, %v106
  %v117 = vsel %vm113, 1.0, %v108
  %v118 = vsel %vm114, 1.0, %v110
  %v119 = vadd.f32 %v104, 1.0
  %v120 = vadd.f32 %v106, 1.0
  %v121 = vadd.f32 %v108, 1.0
  %v122 = vadd.f32 %v110, 1.0
  %v123 = vrcp.pop %v119
  %v124 = vrcp.pop %v120
  %v125 = vrcp.pop %v121
  %v126 = vrcp.pop %v122
  %v127 = vmul.f32 %v115, %v123
  %v128 = vmul.f32 %v116, %v124
  %v129 = vmul.f32 %v117, %v125
  %v130 = vmul.f32 %v118, %v126
  %v131 = vmul.f32 %v86, %v127
  %v132 = vmul.f32 %v88, %v128
  %v133 = vmul.f32 %v91, %v129
  %v134 = vmul.f32 %v93, %v130
  %v135 = vpack.c.bf16 %v131, %v131
  %v136 = vpack.c.bf16 %v132, %v132
  %v137 = vpack.c.bf16 %v133, %v133
  %v138 = vpack.c.bf16 %v134, %v134
  %139 = vst [vmem:[%s3] sm:$0xf] %v135
  %140 = vst [vmem:[%s3 + $0x4] sm:$0xf] %v136
  %141 = vst [vmem:[%s3 + $0x8] sm:$0xf] %v137
  %142 = vst [vmem:[%s3 + $0xc] sm:$0xf] %v138
  // Predicated region
  $region14: #{_lambda_.36} parent=0 // pred_check
    _
  $region15: #{_lambda_.36} parent=0 // pred_check_branch
    %144 = sbr.rel (0) target = $region17
  $region16: #{_lambda_.36} parent=0 // pred_region
    _
  $region17: #{_lambda_.36} parent=0 // pred_fallthru
    _
  // Predicated region
  $region18: #{_lambda_.36} parent=0 // pred_check
    _
  $region19: #{_lambda_.36} parent=0 // pred_check_branch
    %146 = sbr.rel (0) target = $region21
  $region20: #{_lambda_.36} parent=0 // pred_region
    _
  $region21: #{_lambda_.36} parent=0 // pred_fallthru
    _

// kernel: _lambda_.37
$region0: #{_lambda_.37}
  #allocation0 [shape = 'u32[]', space=smem, size = 0x4, offset = 0x4, fixed_abs, tag = 'smem constant byte address 0x4 - core index']
  #allocation1 [shape = 'u32[72,128]{1,0:T(1,128)}', space=vmem, size = 0x9000, scoped, tag = 'internal scratch']
  %s0 = inlined_call_operand.vmem [shape: bf16[288,128], index: 0, kind: input, shape index: {}]
  %s1 = inlined_call_operand.vmem [shape: bf16[32,288], index: 1, kind: input, shape index: {}]
  %s2 = inlined_call_operand.vmem [shape: f32[32,1], index: 2, kind: input, shape index: {}]
  %s3 = inlined_call_operand.vmem [shape: bf16[32,128], index: 3, kind: input, shape index: {}]
  %s4 = inlined_call_operand.vmem [shape: bf16[32,128], index: 4, kind: output, shape index: {}]
  %s5 = sld [smem:[#allocation0]]
  $region26: #{_lambda_.37} parent=0
    _
  %s7 = ssub.s32 1, %s5
  %s8 = scalar_select 0, %s7, %s5
  // Predicated region
  $region2: #{_lambda_.37} parent=0 // pred_check
    _
  $region3: #{_lambda_.37} parent=0 // pred_check_branch
    %10 = sbr.rel (0) target = $region5
  $region4: #{_lambda_.37} parent=0 // pred_region
    _
  $region5: #{_lambda_.37} parent=0 // pred_fallthru
    _
  // Predicated region
  $region6: #{_lambda_.37} parent=0 // pred_check
    _
  $region7: #{_lambda_.37} parent=0 // pred_check_branch
    %12 = sbr.rel (0) target = $region9
  $region8: #{_lambda_.37} parent=0 // pred_region
    _
  $region9: #{_lambda_.37} parent=0 // pred_fallthru
    _
  // Predicated region
  $region10: #{_lambda_.37} parent=0 // pred_check
    _
  $region11: #{_lambda_.37} parent=0 // pred_check_branch
    %14 = sbr.rel (0) target = $region13
  $region12: #{_lambda_.37} parent=0 // pred_region
    _
  $region13: #{_lambda_.37} parent=0 // pred_fallthru
    _
  // Predicated region
  $region14: #{_lambda_.37} parent=0 // pred_check
    _
  $region15: #{_lambda_.37} parent=0 // pred_check_branch
    %16 = sbr.rel (0) target = $region17
  $region16: #{_lambda_.37} parent=0 // pred_region
    _
  $region17: #{_lambda_.37} parent=0 // pred_fallthru
    _
  %v18 = vld [vmem:[%s1] sm:$0xff]
  %v19 = vld [vmem:[%s1 + $0x8] sm:$0xf]
  %v20 = vld [vmem:[%s1 + $0xc] sm:$0xff]
  %v21 = vld [vmem:[%s1 + $0x14] sm:$0xf]
  %v22 = vld [vmem:[%s1 + $0x18] sm:$0xff]
  %v23 = vld [vmem:[%s1 + $0x20] sm:$0xf]
  %v24 = vld [vmem:[%s1 + $0x24] sm:$0xff]
  %v25 = vld [vmem:[%s1 + $0x2c] sm:$0xf]
  %v26 = vld [vmem:[%s0] sm:$0xf]
  %v27 = vld [vmem:[%s0 + $0x4] sm:$0xf]
  %v28 = vld [vmem:[%s0 + $0x8] sm:$0xf]
  %v29 = vld [vmem:[%s0 + $0xc] sm:$0xf]
  %v30 = vld [vmem:[%s0 + $0x10] sm:$0xf]
  %v31 = vld [vmem:[%s0 + $0x14] sm:$0xf]
  %v32 = vld [vmem:[%s0 + $0x18] sm:$0xf]
  %v33 = vld [vmem:[%s0 + $0x1c] sm:$0xf]
  %v34 = vld [vmem:[%s0 + $0x20] sm:$0xf]
  %v35 = vld [vmem:[%s0 + $0x24] sm:$0xf]
  %v36 = vld [vmem:[%s0 + $0x28] sm:$0xf]
  %v37 = vld [vmem:[%s0 + $0x2c] sm:$0xf]
  %v38 = vld [vmem:[%s0 + $0x30] sm:$0xf]
  %v39 = vld [vmem:[%s0 + $0x34] sm:$0xf]
  %v40 = vld [vmem:[%s0 + $0x38] sm:$0xf]
  %v41 = vld [vmem:[%s0 + $0x3c] sm:$0xf]
  %v42 = vld [vmem:[%s0 + $0x40] sm:$0xf]
  %v43 = vld [vmem:[%s0 + $0x44] sm:$0xf]
  %v44 = vld [vmem:[%s0 + $0x48] sm:$0xf]
  %v45 = vld [vmem:[%s0 + $0x4c] sm:$0xf]
  %v46 = vld [vmem:[%s0 + $0x50] sm:$0xf]
  %v47 = vld [vmem:[%s0 + $0x54] sm:$0xf]
  %v48 = vld [vmem:[%s0 + $0x58] sm:$0xf]
  %v49 = vld [vmem:[%s0 + $0x5c] sm:$0xf]
  %v50 = vld [vmem:[%s0 + $0x60] sm:$0xf]
  %v51 = vld [vmem:[%s0 + $0x64] sm:$0xf]
  %v52 = vld [vmem:[%s0 + $0x68] sm:$0xf]
  %v53 = vld [vmem:[%s0 + $0x6c] sm:$0xf]
  %v54 = vld [vmem:[%s0 + $0x70] sm:$0xf]
  %v55 = vld [vmem:[%s0 + $0x74] sm:$0xf]
  %v56 = vld [vmem:[%s0 + $0x78] sm:$0xf]
  %v57 = vld [vmem:[%s0 + $0x7c] sm:$0xf]
  %v58 = vld [vmem:[%s0 + $0x80] sm:$0xf]
  %v59 = vld [vmem:[%s0 + $0x84] sm:$0xf]
  %v60 = vld [vmem:[%s0 + $0x88] sm:$0xf]
  %v61 = vld [vmem:[%s0 + $0x8c] sm:$0xf]
  %v62 = vld [vmem:[%s2] sm:$0xff]
  %v63 = vld [vmem:[%s2 + $0x8] sm:$0xff]
  %v64 = vld [vmem:[%s2 + $0x10] sm:$0xff]
  %v65 = vld [vmem:[%s2 + $0x18] sm:$0xff]
  %67 = vset.pattern.permute.xlu0 0
  %68 = vperm.xlu0 %67, %v62
  %v69 = vpop.permute.xlu0 %68
  %72 = vset.pattern.permute.xlu0 0
  %73 = vperm.xlu0 %72, %v63
  %v74 = vpop.permute.xlu0 %73
  %77 = vset.pattern.permute.xlu0 0
  %78 = vperm.xlu0 %77, %v64
  %v79 = vpop.permute.xlu0 %78
  %82 = vset.pattern.permute.xlu0 0
  %83 = vperm.xlu0 %82, %v65
  %v84 = vpop.permute.xlu0 %83
  %v94 = vunpack.c.l.b16 %v18
  %v95 = vunpack.c.h.b16 %v18
  %v96 = vunpack.c.l.b16 %v19
  %v97 = vunpack.c.l.b16 %v20
  %v98 = vunpack.c.h.b16 %v20
  %v99 = vunpack.c.l.b16 %v21
  %v100 = vunpack.c.l.b16 %v22
  %v101 = vunpack.c.h.b16 %v22
  %v102 = vunpack.c.l.b16 %v23
  %v103 = vunpack.c.l.b16 %v24
  %v104 = vunpack.c.h.b16 %v24
  %v105 = vunpack.c.l.b16 %v25
  %v106 = vpack.c.b16 %v97, %v94
  %v107 = vpack.c.b16 %v98, %v95
  %v108 = vpack.c.b16 %v99, %v96
  %v109 = vpack.c.b16 %v103, %v100
  %v110 = vpack.c.b16 %v104, %v101
  %v111 = vpack.c.b16 %v105, %v102
  %v152 = vunpack.c.l.b16 %v26
  %v153 = vunpack.c.l.b16 %v27
  %v154 = vunpack.c.l.b16 %v28
  %v155 = vunpack.c.l.b16 %v29
  %v156 = vunpack.c.l.b16 %v30
  %v157 = vunpack.c.l.b16 %v31
  %v158 = vunpack.c.l.b16 %v32
  %v159 = vunpack.c.l.b16 %v33
  %v160 = vunpack.c.l.b16 %v34
  %v161 = vunpack.c.l.b16 %v35
  %v162 = vunpack.c.l.b16 %v36
  %v163 = vunpack.c.l.b16 %v37
  %v164 = vunpack.c.l.b16 %v38
  %v165 = vunpack.c.l.b16 %v39
  %v166 = vunpack.c.l.b16 %v40
  %v167 = vunpack.c.l.b16 %v41
  %v168 = vunpack.c.l.b16 %v42
  %v169 = vunpack.c.l.b16 %v43
  %v170 = vunpack.c.l.b16 %v44
  %v171 = vunpack.c.l.b16 %v45
  %v172 = vunpack.c.l.b16 %v46
  %v173 = vunpack.c.l.b16 %v47
  %v174 = vunpack.c.l.b16 %v48
  %v175 = vunpack.c.l.b16 %v49
  %v176 = vunpack.c.l.b16 %v50
  %v177 = vunpack.c.l.b16 %v51
  %v178 = vunpack.c.l.b16 %v52
  %v179 = vunpack.c.l.b16 %v53
  %v180 = vunpack.c.l.b16 %v54
  %v181 = vunpack.c.l.b16 %v55
  %v182 = vunpack.c.l.b16 %v56
  %v183 = vunpack.c.l.b16 %v57
  %v184 = vunpack.c.l.b16 %v58
  %v185 = vunpack.c.l.b16 %v59
  %v186 = vunpack.c.l.b16 %v60
  %v187 = vunpack.c.l.b16 %v61
  %v188 = vpack.c.b16 %v153, %v152
  %v189 = vpack.c.b16 %v155, %v154
  %v190 = vpack.c.b16 %v157, %v156
  %v191 = vpack.c.b16 %v159, %v158
  %v192 = vpack.c.b16 %v161, %v160
  %v193 = vpack.c.b16 %v163, %v162
  %v194 = vpack.c.b16 %v165, %v164
  %v195 = vpack.c.b16 %v167, %v166
  %v196 = vpack.c.b16 %v169, %v168
  %v197 = vpack.c.b16 %v171, %v170
  %v198 = vpack.c.b16 %v173, %v172
  %v199 = vpack.c.b16 %v175, %v174
  %v200 = vpack.c.b16 %v177, %v176
  %v201 = vpack.c.b16 %v179, %v178
  %v202 = vpack.c.b16 %v181, %v180
  %v203 = vpack.c.b16 %v183, %v182
  %v204 = vpack.c.b16 %v185, %v184
  %v205 = vpack.c.b16 %v187, %v186
  %vm224 = vcmask 261120
  %v226 = vsel %vm224, %v108, 0
  %v229 = vsel %vm224, %v111, 0
  %231 = vmatpush.bf16.msra.mxu0 %v195
  %232 = vmatpush.bf16.msra.mxu0 %v194
  %233 = vmatpush.bf16.msra.mxu0 %v193
  %234 = vmatpush.bf16.msra.mxu0 %v192
  %235 = vmatpush.bf16.msra.mxu0 %v191
  %236 = vmatpush.bf16.msra.mxu0 %v190
  %237 = vmatpush.bf16.msra.mxu0 %v189
  %238 = vmatpush.bf16.msra.mxu0 %v188
  %239 = vmatmul.bf16.gmra.mxu0 %v106
  %v240 = vpop.f32.mrf.mxu0
  %v241 = vadd.f32 %v69, %v240
  %v242 = vpop.f32.mrf.mxu0
  %v243 = vadd.f32 %v74, %v242
  %244 = vmatmul.bf16.gmra.mxu0 %v109
  %v245 = vpop.f32.mrf.mxu0
  %v246 = vadd.f32 %v79, %v245
  %v247 = vpop.f32.mrf.mxu0
  %v248 = vadd.f32 %v84, %v247
  %249 = vdwg.mxu0
  %250 = vmatpush.bf16.msra.mxu0 %v203
  %251 = vmatpush.bf16.msra.mxu0 %v202
  %252 = vmatpush.bf16.msra.mxu0 %v201
  %253 = vmatpush.bf16.msra.mxu0 %v200
  %254 = vmatpush.bf16.msra.mxu0 %v199
  %255 = vmatpush.bf16.msra.mxu0 %v198
  %256 = vmatpush.bf16.msra.mxu0 %v197
  %257 = vmatpush.bf16.msra.mxu0 %v196
  %258 = vmatmul.bf16.gmra.mxu0 %v107
  %v259 = vpop.f32.mrf.mxu0
  %v260 = vadd.f32 %v241, %v259
  %v261 = vpop.f32.mrf.mxu0
  %v262 = vadd.f32 %v243, %v261
  %263 = vmatmul.bf16.gmra.mxu0 %v110
  %v264 = vpop.f32.mrf.mxu0
  %v265 = vadd.f32 %v246, %v264
  %v266 = vpop.f32.mrf.mxu0
  %v267 = vadd.f32 %v248, %v266
  %268 = vdwg.mxu0
  %269 = vmatpush.bf16.msra.mxu0 0
  %270 = vmatpush.bf16.msra.mxu0 0
  %271 = vmatpush.bf16.msra.mxu0 0
  %272 = vmatpush.bf16.msra.mxu0 0
  %273 = vmatpush.bf16.msra.mxu0 0
  %274 = vmatpush.bf16.msra.mxu0 0
  %275 = vmatpush.bf16.msra.mxu0 %v205
  %276 = vmatpush.bf16.msra.mxu0 %v204
  %277 = vmatmul.bf16.gmra.mxu0 %v226
  %v278 = vpop.f32.mrf.mxu0
  %v279 = vadd.f32 %v260, %v278
  %v280 = vpop.f32.mrf.mxu0
  %v281 = vadd.f32 %v262, %v280
  %282 = vmatmul.bf16.gmra.mxu0 %v229
  %v283 = vpop.f32.mrf.mxu0
  %v284 = vadd.f32 %v265, %v283
  %v285 = vpop.f32.mrf.mxu0
  %v286 = vadd.f32 %v267, %v285
  %287 = vdwg.mxu0
  %v288 = vand.u32 2147483647, %v279
  %v289 = vand.u32 2147483647, %v281
  %v290 = vand.u32 2147483647, %v284
  %v291 = vand.u32 2147483647, %v286
  %v292 = vsub.f32 0.0, %v288
  %v293 = vsub.f32 0.0, %v289
  %v294 = vsub.f32 0.0, %v290
  %v295 = vsub.f32 0.0, %v291
  %v296 = vmul.f32 %v292, 1.442695
  %v297 = vpow.pop %v296
  %v298 = vmul.f32 %v293, 1.442695
  %v299 = vpow.pop %v298
  %v300 = vmul.f32 %v294, 1.442695
  %v301 = vpow.pop %v300
  %v302 = vmul.f32 %v295, 1.442695
  %v303 = vpow.pop %v302
  %vm304 = vcmp.ge.f32.partialorder %v279, 0.0
  %vm305 = vcmp.ge.f32.partialorder %v281, 0.0
  %vm306 = vcmp.ge.f32.partialorder %v284, 0.0
  %vm307 = vcmp.ge.f32.partialorder %v286, 0.0
  %v308 = vsel %vm304, 1.0, %v297
  %v309 = vsel %vm305, 1.0, %v299
  %v310 = vsel %vm306, 1.0, %v301
  %v311 = vsel %vm307, 1.0, %v303
  %v312 = vadd.f32 %v297, 1.0
  %v313 = vadd.f32 %v299, 1.0
  %v314 = vadd.f32 %v301, 1.0
  %v315 = vadd.f32 %v303, 1.0
  %v316 = vrcp.pop %v312
  %v317 = vrcp.pop %v313
  %v318 = vrcp.pop %v314
  %v319 = vrcp.pop %v315
  %v320 = vmul.f32 %v308, %v316
  %v321 = vmul.f32 %v309, %v317
  %v322 = vmul.f32 %v310, %v318
  %v323 = vmul.f32 %v311, %v319
  %v324 = vmul.f32 %v279, %v320
  %v325 = vmul.f32 %v281, %v321
  %v326 = vmul.f32 %v284, %v322
  %v327 = vmul.f32 %v286, %v323
  %v328 = vld [vmem:[%s3] sm:$0xf]
  %v329 = vld [vmem:[%s3 + $0x4] sm:$0xf]
  %v330 = vld [vmem:[%s3 + $0x8] sm:$0xf]
  %v331 = vld [vmem:[%s3 + $0xc] sm:$0xf]
  %v332 = vunpack.c.l.bf16 %v328
  %v333 = vunpack.c.l.bf16 %v329
  %v334 = vunpack.c.l.bf16 %v330
  %v335 = vunpack.c.l.bf16 %v331
  %v336 = vadd.f32 %v324, %v332
  %v337 = vadd.f32 %v325, %v333
  %v338 = vadd.f32 %v326, %v334
  %v339 = vadd.f32 %v327, %v335
  %v340 = vpack.c.bf16 %v336, %v336
  %v341 = vpack.c.bf16 %v337, %v337
  %v342 = vpack.c.bf16 %v338, %v338
  %v343 = vpack.c.bf16 %v339, %v339
  %344 = vst [vmem:[%s4] sm:$0xf] %v340
  %345 = vst [vmem:[%s4 + $0x4] sm:$0xf] %v341
  %346 = vst [vmem:[%s4 + $0x8] sm:$0xf] %v342
  %347 = vst [vmem:[%s4 + $0xc] sm:$0xf] %v343
  // Predicated region
  $region18: #{_lambda_.37} parent=0 // pred_check
    _
  $region19: #{_lambda_.37} parent=0 // pred_check_branch
    %349 = sbr.rel (0) target = $region21
  $region20: #{_lambda_.37} parent=0 // pred_region
    _
  $region21: #{_lambda_.37} parent=0 // pred_fallthru
    _
  // Predicated region
  $region22: #{_lambda_.37} parent=0 // pred_check
    _
  $region23: #{_lambda_.37} parent=0 // pred_check_branch
    %351 = sbr.rel (0) target = $region25
  $region24: #{_lambda_.37} parent=0 // pred_region
    _
  $region25: #{_lambda_.37} parent=0 // pred_fallthru
    _

// kernel: _lambda_.39
$region0: #{_lambda_.39}
  #allocation0 [shape = 'u32[]', space=smem, size = 0x4, offset = 0x4, fixed_abs, tag = 'smem constant byte address 0x4 - core index']
  #allocation1 [shape = 'u32[72,128]{1,0:T(1,128)}', space=vmem, size = 0x9000, scoped, tag = 'internal scratch']
  %s0 = inlined_call_operand.vmem [shape: bf16[64,128], index: 0, kind: input, shape index: {}]
  %s1 = inlined_call_operand.vmem [shape: bf16[64,64], index: 1, kind: input, shape index: {}]
  %s2 = inlined_call_operand.vmem [shape: f32[64,1], index: 2, kind: input, shape index: {}]
  %s3 = inlined_call_operand.vmem [shape: bf16[64,128], index: 3, kind: output, shape index: {}]
  %s4 = sld [smem:[#allocation0]]
  $region22: #{_lambda_.39} parent=0
    _
  %s6 = ssub.s32 1, %s4
  %s7 = scalar_select 0, %s6, %s4
  // Predicated region
  $region2: #{_lambda_.39} parent=0 // pred_check
    _
  $region3: #{_lambda_.39} parent=0 // pred_check_branch
    %9 = sbr.rel (0) target = $region5
  $region4: #{_lambda_.39} parent=0 // pred_region
    _
  $region5: #{_lambda_.39} parent=0 // pred_fallthru
    _
  // Predicated region
  $region6: #{_lambda_.39} parent=0 // pred_check
    _
  $region7: #{_lambda_.39} parent=0 // pred_check_branch
    %11 = sbr.rel (0) target = $region9
  $region8: #{_lambda_.39} parent=0 // pred_region
    _
  $region9: #{_lambda_.39} parent=0 // pred_fallthru
    _
  // Predicated region
  $region10: #{_lambda_.39} parent=0 // pred_check
    _
  $region11: #{_lambda_.39} parent=0 // pred_check_branch
    %13 = sbr.rel (0) target = $region13
  $region12: #{_lambda_.39} parent=0 // pred_region
    _
  $region13: #{_lambda_.39} parent=0 // pred_fallthru
    _
  %v15 = vld [vmem:[%s1] sm:$0xf]
  %v16 = vld [vmem:[%s1 + $0x4] sm:$0xf]
  %v17 = vld [vmem:[%s1 + $0x8] sm:$0xf]
  %v18 = vld [vmem:[%s1 + $0xc] sm:$0xf]
  %v19 = vld [vmem:[%s1 + $0x10] sm:$0xf]
  %v20 = vld [vmem:[%s1 + $0x14] sm:$0xf]
  %v21 = vld [vmem:[%s1 + $0x18] sm:$0xf]
  %v22 = vld [vmem:[%s1 + $0x1c] sm:$0xf]
  %v23 = vld [vmem:[%s0] sm:$0xf]
  %v24 = vld [vmem:[%s0 + $0x4] sm:$0xf]
  %v25 = vld [vmem:[%s0 + $0x8] sm:$0xf]
  %v26 = vld [vmem:[%s0 + $0xc] sm:$0xf]
  %v27 = vld [vmem:[%s0 + $0x10] sm:$0xf]
  %v28 = vld [vmem:[%s0 + $0x14] sm:$0xf]
  %v29 = vld [vmem:[%s0 + $0x18] sm:$0xf]
  %v30 = vld [vmem:[%s0 + $0x1c] sm:$0xf]
  %v31 = vld [vmem:[%s2] sm:$0xff]
  %v32 = vld [vmem:[%s2 + $0x8] sm:$0xff]
  %v33 = vld [vmem:[%s2 + $0x10] sm:$0xff]
  %v34 = vld [vmem:[%s2 + $0x18] sm:$0xff]
  %v35 = vld [vmem:[%s2 + $0x20] sm:$0xff]
  %v36 = vld [vmem:[%s2 + $0x28] sm:$0xff]
  %v37 = vld [vmem:[%s2 + $0x30] sm:$0xff]
  %v38 = vld [vmem:[%s2 + $0x38] sm:$0xff]
  %40 = vset.pattern.permute.xlu0 0
  %41 = vperm.xlu0 %40, %v31
  %v42 = vpop.permute.xlu0 %41
  %45 = vset.pattern.permute.xlu0 0
  %46 = vperm.xlu0 %45, %v32
  %v47 = vpop.permute.xlu0 %46
  %50 = vset.pattern.permute.xlu0 0
  %51 = vperm.xlu0 %50, %v33
  %v52 = vpop.permute.xlu0 %51
  %55 = vset.pattern.permute.xlu0 0
  %56 = vperm.xlu0 %55, %v34
  %v57 = vpop.permute.xlu0 %56
  %60 = vset.pattern.permute.xlu0 0
  %61 = vperm.xlu0 %60, %v35
  %v62 = vpop.permute.xlu0 %61
  %65 = vset.pattern.permute.xlu0 0
  %66 = vperm.xlu0 %65, %v36
  %v67 = vpop.permute.xlu0 %66
  %70 = vset.pattern.permute.xlu0 0
  %71 = vperm.xlu0 %70, %v37
  %v72 = vpop.permute.xlu0 %71
  %75 = vset.pattern.permute.xlu0 0
  %76 = vperm.xlu0 %75, %v38
  %v77 = vpop.permute.xlu0 %76
  %v87 = vunpack.c.l.b16 %v15
  %v88 = vunpack.c.l.b16 %v16
  %v89 = vunpack.c.l.b16 %v17
  %v90 = vunpack.c.l.b16 %v18
  %v91 = vunpack.c.l.b16 %v19
  %v92 = vunpack.c.l.b16 %v20
  %v93 = vunpack.c.l.b16 %v21
  %v94 = vunpack.c.l.b16 %v22
  %v95 = vpack.c.b16 %v88, %v87
  %v96 = vpack.c.b16 %v90, %v89
  %v97 = vpack.c.b16 %v92, %v91
  %v98 = vpack.c.b16 %v94, %v93
  %v107 = vunpack.c.l.b16 %v23
  %v108 = vunpack.c.l.b16 %v24
  %v109 = vunpack.c.l.b16 %v25
  %v110 = vunpack.c.l.b16 %v26
  %v111 = vunpack.c.l.b16 %v27
  %v112 = vunpack.c.l.b16 %v28
  %v113 = vunpack.c.l.b16 %v29
  %v114 = vunpack.c.l.b16 %v30
  %v115 = vpack.c.b16 %v108, %v107
  %v116 = vpack.c.b16 %v110, %v109
  %v117 = vpack.c.b16 %v112, %v111
  %v118 = vpack.c.b16 %v114, %v113
  %vm123 = vcmask 523264
  %v125 = vsel %vm123, %v95, 0
  %v128 = vsel %vm123, %v96, 0
  %v131 = vsel %vm123, %v97, 0
  %v134 = vsel %vm123, %v98, 0
  %136 = vmatpush.bf16.msra.mxu0 0
  %137 = vmatpush.bf16.msra.mxu0 0
  %138 = vmatpush.bf16.msra.mxu0 0
  %139 = vmatpush.bf16.msra.mxu0 0
  %140 = vmatpush.bf16.msra.mxu0 %v118
  %141 = vmatpush.bf16.msra.mxu0 %v117
  %142 = vmatpush.bf16.msra.mxu0 %v116
  %143 = vmatpush.bf16.msra.mxu0 %v115
  %144 = vmatmul.bf16.gmra.mxu0 %v125
  %v145 = vpop.f32.mrf.mxu0
  %v146 = vadd.f32 %v42, %v145
  %v147 = vpop.f32.mrf.mxu0
  %v148 = vadd.f32 %v47, %v147
  %149 = vmatmul.bf16.gmra.mxu0 %v128
  %v150 = vpop.f32.mrf.mxu0
  %v151 = vadd.f32 %v52, %v150
  %v152 = vpop.f32.mrf.mxu0
  %v153 = vadd.f32 %v57, %v152
  %154 = vmatmul.bf16.gmra.mxu0 %v131
  %v155 = vpop.f32.mrf.mxu0
  %v156 = vadd.f32 %v62, %v155
  %v157 = vpop.f32.mrf.mxu0
  %v158 = vadd.f32 %v67, %v157
  %159 = vmatmul.bf16.gmra.mxu0 %v134
  %v160 = vpop.f32.mrf.mxu0
  %v161 = vadd.f32 %v72, %v160
  %v162 = vpop.f32.mrf.mxu0
  %v163 = vadd.f32 %v77, %v162
  %164 = vdwg.mxu0
  %v165 = vand.u32 2147483647, %v146
  %v166 = vand.u32 2147483647, %v148
  %v167 = vand.u32 2147483647, %v151
  %v168 = vand.u32 2147483647, %v153
  %v169 = vand.u32 2147483647, %v156
  %v170 = vand.u32 2147483647, %v158
  %v171 = vand.u32 2147483647, %v161
  %v172 = vand.u32 2147483647, %v163
  %v173 = vsub.f32 0.0, %v165
  %v174 = vsub.f32 0.0, %v166
  %v175 = vsub.f32 0.0, %v167
  %v176 = vsub.f32 0.0, %v168
  %v177 = vsub.f32 0.0, %v169
  %v178 = vsub.f32 0.0, %v170
  %v179 = vsub.f32 0.0, %v171
  %v180 = vsub.f32 0.0, %v172
  %v181 = vmul.f32 %v173, 1.442695
  %v182 = vpow.pop %v181
  %v183 = vmul.f32 %v174, 1.442695
  %v184 = vpow.pop %v183
  %v185 = vmul.f32 %v175, 1.442695
  %v186 = vpow.pop %v185
  %v187 = vmul.f32 %v176, 1.442695
  %v188 = vpow.pop %v187
  %v189 = vmul.f32 %v177, 1.442695
  %v190 = vpow.pop %v189
  %v191 = vmul.f32 %v178, 1.442695
  %v192 = vpow.pop %v191
  %v193 = vmul.f32 %v179, 1.442695
  %v194 = vpow.pop %v193
  %v195 = vmul.f32 %v180, 1.442695
  %v196 = vpow.pop %v195
  %vm197 = vcmp.ge.f32.partialorder %v146, 0.0
  %vm198 = vcmp.ge.f32.partialorder %v148, 0.0
  %vm199 = vcmp.ge.f32.partialorder %v151, 0.0
  %vm200 = vcmp.ge.f32.partialorder %v153, 0.0
  %vm201 = vcmp.ge.f32.partialorder %v156, 0.0
  %vm202 = vcmp.ge.f32.partialorder %v158, 0.0
  %vm203 = vcmp.ge.f32.partialorder %v161, 0.0
  %vm204 = vcmp.ge.f32.partialorder %v163, 0.0
  %v205 = vsel %vm197, 1.0, %v182
  %v206 = vsel %vm198, 1.0, %v184
  %v207 = vsel %vm199, 1.0, %v186
  %v208 = vsel %vm200, 1.0, %v188
  %v209 = vsel %vm201, 1.0, %v190
  %v210 = vsel %vm202, 1.0, %v192
  %v211 = vsel %vm203, 1.0, %v194
  %v212 = vsel %vm204, 1.0, %v196
  %v213 = vadd.f32 %v182, 1.0
  %v214 = vadd.f32 %v184, 1.0
  %v215 = vadd.f32 %v186, 1.0
  %v216 = vadd.f32 %v188, 1.0
  %v217 = vadd.f32 %v190, 1.0
  %v218 = vadd.f32 %v192, 1.0
  %v219 = vadd.f32 %v194, 1.0
  %v220 = vadd.f32 %v196, 1.0
  %v221 = vrcp.pop %v213
  %v222 = vrcp.pop %v214
  %v223 = vrcp.pop %v215
  %v224 = vrcp.pop %v216
  %v225 = vrcp.pop %v217
  %v226 = vrcp.pop %v218
  %v227 = vrcp.pop %v219
  %v228 = vrcp.pop %v220
  %v229 = vmul.f32 %v205, %v221
  %v230 = vmul.f32 %v206, %v222
  %v231 = vmul.f32 %v207, %v223
  %v232 = vmul.f32 %v208, %v224
  %v233 = vmul.f32 %v209, %v225
  %v234 = vmul.f32 %v210, %v226
  %v235 = vmul.f32 %v211, %v227
  %v236 = vmul.f32 %v212, %v228
  %v237 = vmul.f32 %v146, %v229
  %v238 = vmul.f32 %v148, %v230
  %v239 = vmul.f32 %v151, %v231
  %v240 = vmul.f32 %v153, %v232
  %v241 = vmul.f32 %v156, %v233
  %v242 = vmul.f32 %v158, %v234
  %v243 = vmul.f32 %v161, %v235
  %v244 = vmul.f32 %v163, %v236
  %v245 = vpack.c.bf16 %v237, %v237
  %v246 = vpack.c.bf16 %v238, %v238
  %v247 = vpack.c.bf16 %v239, %v239
  %v248 = vpack.c.bf16 %v240, %v240
  %v249 = vpack.c.bf16 %v241, %v241
  %v250 = vpack.c.bf16 %v242, %v242
  %v251 = vpack.c.bf16 %v243, %v243
  %v252 = vpack.c.bf16 %v244, %v244
  %253 = vst [vmem:[%s3] sm:$0xf] %v245
  %254 = vst [vmem:[%s3 + $0x4] sm:$0xf] %v246
  %255 = vst [vmem:[%s3 + $0x8] sm:$0xf] %v247
  %256 = vst [vmem:[%s3 + $0xc] sm:$0xf] %v248
  %257 = vst [vmem:[%s3 + $0x10] sm:$0xf] %v249
  %258 = vst [vmem:[%s3 + $0x14] sm:$0xf] %v250
  %259 = vst [vmem:[%s3 + $0x18] sm:$0xf] %v251
  %260 = vst [vmem:[%s3 + $0x1c] sm:$0xf] %v252
  // Predicated region
  $region14: #{_lambda_.39} parent=0 // pred_check
    _
  $region15: #{_lambda_.39} parent=0 // pred_check_branch
    %262 = sbr.rel (0) target = $region17
  $region16: #{_lambda_.39} parent=0 // pred_region
    _
  $region17: #{_lambda_.39} parent=0 // pred_fallthru
    _
  // Predicated region
  $region18: #{_lambda_.39} parent=0 // pred_check
    _
  $region19: #{_lambda_.39} parent=0 // pred_check_branch
    %264 = sbr.rel (0) target = $region21
  $region20: #{_lambda_.39} parent=0 // pred_region
    _
  $region21: #{_lambda_.39} parent=0 // pred_fallthru
    _

// kernel: _lambda_.38
$region0: #{_lambda_.38}
  #allocation0 [shape = 'u32[]', space=smem, size = 0x4, offset = 0x4, fixed_abs, tag = 'smem constant byte address 0x4 - core index']
  #allocation1 [shape = 'u32[72,128]{1,0:T(1,128)}', space=vmem, size = 0x9000, scoped, tag = 'internal scratch']
  %s0 = inlined_call_operand.vmem [shape: bf16[288,128], index: 0, kind: input, shape index: {}]
  %s1 = inlined_call_operand.vmem [shape: bf16[64,288], index: 1, kind: input, shape index: {}]
  %s2 = inlined_call_operand.vmem [shape: f32[64,1], index: 2, kind: input, shape index: {}]
  %s3 = inlined_call_operand.vmem [shape: bf16[64,128], index: 3, kind: output, shape index: {}]
  %s4 = sld [smem:[#allocation0]]
  $region22: #{_lambda_.38} parent=0
    _
  %s6 = ssub.s32 1, %s4
  %s7 = scalar_select 0, %s6, %s4
  // Predicated region
  $region2: #{_lambda_.38} parent=0 // pred_check
    _
  $region3: #{_lambda_.38} parent=0 // pred_check_branch
    %9 = sbr.rel (0) target = $region5
  $region4: #{_lambda_.38} parent=0 // pred_region
    _
  $region5: #{_lambda_.38} parent=0 // pred_fallthru
    _
  // Predicated region
  $region6: #{_lambda_.38} parent=0 // pred_check
    _
  $region7: #{_lambda_.38} parent=0 // pred_check_branch
    %11 = sbr.rel (0) target = $region9
  $region8: #{_lambda_.38} parent=0 // pred_region
    _
  $region9: #{_lambda_.38} parent=0 // pred_fallthru
    _
  // Predicated region
  $region10: #{_lambda_.38} parent=0 // pred_check
    _
  $region11: #{_lambda_.38} parent=0 // pred_check_branch
    %13 = sbr.rel (0) target = $region13
  $region12: #{_lambda_.38} parent=0 // pred_region
    _
  $region13: #{_lambda_.38} parent=0 // pred_fallthru
    _
  %v15 = vld [vmem:[%s1] sm:$0xff]
  %v16 = vld [vmem:[%s1 + $0x8] sm:$0xf]
  %v17 = vld [vmem:[%s1 + $0xc] sm:$0xff]
  %v18 = vld [vmem:[%s1 + $0x14] sm:$0xf]
  %v19 = vld [vmem:[%s1 + $0x18] sm:$0xff]
  %v20 = vld [vmem:[%s1 + $0x20] sm:$0xf]
  %v21 = vld [vmem:[%s1 + $0x24] sm:$0xff]
  %v22 = vld [vmem:[%s1 + $0x2c] sm:$0xf]
  %v23 = vld [vmem:[%s1 + $0x30] sm:$0xff]
  %v24 = vld [vmem:[%s1 + $0x38] sm:$0xf]
  %v25 = vld [vmem:[%s1 + $0x3c] sm:$0xff]
  %v26 = vld [vmem:[%s1 + $0x44] sm:$0xf]
  %v27 = vld [vmem:[%s1 + $0x48] sm:$0xff]
  %v28 = vld [vmem:[%s1 + $0x50] sm:$0xf]
  %v29 = vld [vmem:[%s1 + $0x54] sm:$0xff]
  %v30 = vld [vmem:[%s1 + $0x5c] sm:$0xf]
  %v31 = vld [vmem:[%s0] sm:$0xf]
  %v32 = vld [vmem:[%s0 + $0x4] sm:$0xf]
  %v33 = vld [vmem:[%s0 + $0x8] sm:$0xf]
  %v34 = vld [vmem:[%s0 + $0xc] sm:$0xf]
  %v35 = vld [vmem:[%s0 + $0x10] sm:$0xf]
  %v36 = vld [vmem:[%s0 + $0x14] sm:$0xf]
  %v37 = vld [vmem:[%s0 + $0x18] sm:$0xf]
  %v38 = vld [vmem:[%s0 + $0x1c] sm:$0xf]
  %v39 = vld [vmem:[%s0 + $0x20] sm:$0xf]
  %v40 = vld [vmem:[%s0 + $0x24] sm:$0xf]
  %v41 = vld [vmem:[%s0 + $0x28] sm:$0xf]
  %v42 = vld [vmem:[%s0 + $0x2c] sm:$0xf]
  %v43 = vld [vmem:[%s0 + $0x30] sm:$0xf]
  %v44 = vld [vmem:[%s0 + $0x34] sm:$0xf]
  %v45 = vld [vmem:[%s0 + $0x38] sm:$0xf]
  %v46 = vld [vmem:[%s0 + $0x3c] sm:$0xf]
  %v47 = vld [vmem:[%s0 + $0x40] sm:$0xf]
  %v48 = vld [vmem:[%s0 + $0x44] sm:$0xf]
  %v49 = vld [vmem:[%s0 + $0x48] sm:$0xf]
  %v50 = vld [vmem:[%s0 + $0x4c] sm:$0xf]
  %v51 = vld [vmem:[%s0 + $0x50] sm:$0xf]
  %v52 = vld [vmem:[%s0 + $0x54] sm:$0xf]
  %v53 = vld [vmem:[%s0 + $0x58] sm:$0xf]
  %v54 = vld [vmem:[%s0 + $0x5c] sm:$0xf]
  %v55 = vld [vmem:[%s0 + $0x60] sm:$0xf]
  %v56 = vld [vmem:[%s0 + $0x64] sm:$0xf]
  %v57 = vld [vmem:[%s0 + $0x68] sm:$0xf]
  %v58 = vld [vmem:[%s0 + $0x6c] sm:$0xf]
  %v59 = vld [vmem:[%s0 + $0x70] sm:$0xf]
  %v60 = vld [vmem:[%s0 + $0x74] sm:$0xf]
  %v61 = vld [vmem:[%s0 + $0x78] sm:$0xf]
  %v62 = vld [vmem:[%s0 + $0x7c] sm:$0xf]
  %v63 = vld [vmem:[%s0 + $0x80] sm:$0xf]
  %v64 = vld [vmem:[%s0 + $0x84] sm:$0xf]
  %v65 = vld [vmem:[%s0 + $0x88] sm:$0xf]
  %v66 = vld [vmem:[%s0 + $0x8c] sm:$0xf]
  %v67 = vld [vmem:[%s2] sm:$0xff]
  %v68 = vld [vmem:[%s2 + $0x8] sm:$0xff]
  %v69 = vld [vmem:[%s2 + $0x10] sm:$0xff]
  %v70 = vld [vmem:[%s2 + $0x18] sm:$0xff]
  %v71 = vld [vmem:[%s2 + $0x20] sm:$0xff]
  %v72 = vld [vmem:[%s2 + $0x28] sm:$0xff]
  %v73 = vld [vmem:[%s2 + $0x30] sm:$0xff]
  %v74 = vld [vmem:[%s2 + $0x38] sm:$0xff]
  %76 = vset.pattern.permute.xlu0 0
  %77 = vperm.xlu0 %76, %v67
  %v78 = vpop.permute.xlu0 %77
  %81 = vset.pattern.permute.xlu0 0
  %82 = vperm.xlu0 %81, %v68
  %v83 = vpop.permute.xlu0 %82
  %86 = vset.pattern.permute.xlu0 0
  %87 = vperm.xlu0 %86, %v69
  %v88 = vpop.permute.xlu0 %87
  %91 = vset.pattern.permute.xlu0 0
  %92 = vperm.xlu0 %91, %v70
  %v93 = vpop.permute.xlu0 %92
  %96 = vset.pattern.permute.xlu0 0
  %97 = vperm.xlu0 %96, %v71
  %v98 = vpop.permute.xlu0 %97
  %101 = vset.pattern.permute.xlu0 0
  %102 = vperm.xlu0 %101, %v72
  %v103 = vpop.permute.xlu0 %102
  %106 = vset.pattern.permute.xlu0 0
  %107 = vperm.xlu0 %106, %v73
  %v108 = vpop.permute.xlu0 %107
  %111 = vset.pattern.permute.xlu0 0
  %112 = vperm.xlu0 %111, %v74
  %v113 = vpop.permute.xlu0 %112
  %v131 = vunpack.c.l.b16 %v15
  %v132 = vunpack.c.h.b16 %v15
  %v133 = vunpack.c.l.b16 %v16
  %v134 = vunpack.c.l.b16 %v17
  %v135 = vunpack.c.h.b16 %v17
  %v136 = vunpack.c.l.b16 %v18
  %v137 = vunpack.c.l.b16 %v19
  %v138 = vunpack.c.h.b16 %v19
  %v139 = vunpack.c.l.b16 %v20
  %v140 = vunpack.c.l.b16 %v21
  %v141 = vunpack.c.h.b16 %v21
  %v142 = vunpack.c.l.b16 %v22
  %v143 = vunpack.c.l.b16 %v23
  %v144 = vunpack.c.h.b16 %v23
  %v145 = vunpack.c.l.b16 %v24
  %v146 = vunpack.c.l.b16 %v25
  %v147 = vunpack.c.h.b16 %v25
  %v148 = vunpack.c.l.b16 %v26
  %v149 = vunpack.c.l.b16 %v27
  %v150 = vunpack.c.h.b16 %v27
  %v151 = vunpack.c.l.b16 %v28
  %v152 = vunpack.c.l.b16 %v29
  %v153 = vunpack.c.h.b16 %v29
  %v154 = vunpack.c.l.b16 %v30
  %v155 = vpack.c.b16 %v134, %v131
  %v156 = vpack.c.b16 %v135, %v132
  %v157 = vpack.c.b16 %v136, %v133
  %v158 = vpack.c.b16 %v140, %v137
  %v159 = vpack.c.b16 %v141, %v138
  %v160 = vpack.c.b16 %v142, %v139
  %v161 = vpack.c.b16 %v146, %v143
  %v162 = vpack.c.b16 %v147, %v144
  %v163 = vpack.c.b16 %v148, %v145
  %v164 = vpack.c.b16 %v152, %v149
  %v165 = vpack.c.b16 %v153, %v150
  %v166 = vpack.c.b16 %v154, %v151
  %v211 = vunpack.c.l.b16 %v31
  %v212 = vunpack.c.l.b16 %v32
  %v213 = vunpack.c.l.b16 %v33
  %v214 = vunpack.c.l.b16 %v34
  %v215 = vunpack.c.l.b16 %v35
  %v216 = vunpack.c.l.b16 %v36
  %v217 = vunpack.c.l.b16 %v37
  %v218 = vunpack.c.l.b16 %v38
  %v219 = vunpack.c.l.b16 %v39
  %v220 = vunpack.c.l.b16 %v40
  %v221 = vunpack.c.l.b16 %v41
  %v222 = vunpack.c.l.b16 %v42
  %v223 = vunpack.c.l.b16 %v43
  %v224 = vunpack.c.l.b16 %v44
  %v225 = vunpack.c.l.b16 %v45
  %v226 = vunpack.c.l.b16 %v46
  %v227 = vunpack.c.l.b16 %v47
  %v228 = vunpack.c.l.b16 %v48
  %v229 = vunpack.c.l.b16 %v49
  %v230 = vunpack.c.l.b16 %v50
  %v231 = vunpack.c.l.b16 %v51
  %v232 = vunpack.c.l.b16 %v52
  %v233 = vunpack.c.l.b16 %v53
  %v234 = vunpack.c.l.b16 %v54
  %v235 = vunpack.c.l.b16 %v55
  %v236 = vunpack.c.l.b16 %v56
  %v237 = vunpack.c.l.b16 %v57
  %v238 = vunpack.c.l.b16 %v58
  %v239 = vunpack.c.l.b16 %v59
  %v240 = vunpack.c.l.b16 %v60
  %v241 = vunpack.c.l.b16 %v61
  %v242 = vunpack.c.l.b16 %v62
  %v243 = vunpack.c.l.b16 %v63
  %v244 = vunpack.c.l.b16 %v64
  %v245 = vunpack.c.l.b16 %v65
  %v246 = vunpack.c.l.b16 %v66
  %v247 = vpack.c.b16 %v212, %v211
  %v248 = vpack.c.b16 %v214, %v213
  %v249 = vpack.c.b16 %v216, %v215
  %v250 = vpack.c.b16 %v218, %v217
  %v251 = vpack.c.b16 %v220, %v219
  %v252 = vpack.c.b16 %v222, %v221
  %v253 = vpack.c.b16 %v224, %v223
  %v254 = vpack.c.b16 %v226, %v225
  %v255 = vpack.c.b16 %v228, %v227
  %v256 = vpack.c.b16 %v230, %v229
  %v257 = vpack.c.b16 %v232, %v231
  %v258 = vpack.c.b16 %v234, %v233
  %v259 = vpack.c.b16 %v236, %v235
  %v260 = vpack.c.b16 %v238, %v237
  %v261 = vpack.c.b16 %v240, %v239
  %v262 = vpack.c.b16 %v242, %v241
  %v263 = vpack.c.b16 %v244, %v243
  %v264 = vpack.c.b16 %v246, %v245
  %vm283 = vcmask 261120
  %v285 = vsel %vm283, %v157, 0
  %v288 = vsel %vm283, %v160, 0
  %v291 = vsel %vm283, %v163, 0
  %v294 = vsel %vm283, %v166, 0
  %296 = vmatpush.bf16.msra.mxu0 %v254
  %297 = vmatpush.bf16.msra.mxu0 %v253
  %298 = vmatpush.bf16.msra.mxu0 %v252
  %299 = vmatpush.bf16.msra.mxu0 %v251
  %300 = vmatpush.bf16.msra.mxu0 %v250
  %301 = vmatpush.bf16.msra.mxu0 %v249
  %302 = vmatpush.bf16.msra.mxu0 %v248
  %303 = vmatpush.bf16.msra.mxu0 %v247
  %304 = vmatmul.bf16.gmra.mxu0 %v155
  %v305 = vpop.f32.mrf.mxu0
  %v306 = vadd.f32 %v78, %v305
  %v307 = vpop.f32.mrf.mxu0
  %v308 = vadd.f32 %v83, %v307
  %309 = vmatmul.bf16.gmra.mxu0 %v158
  %v310 = vpop.f32.mrf.mxu0
  %v311 = vadd.f32 %v88, %v310
  %v312 = vpop.f32.mrf.mxu0
  %v313 = vadd.f32 %v93, %v312
  %314 = vmatmul.bf16.gmra.mxu0 %v161
  %v315 = vpop.f32.mrf.mxu0
  %v316 = vadd.f32 %v98, %v315
  %v317 = vpop.f32.mrf.mxu0
  %v318 = vadd.f32 %v103, %v317
  %319 = vmatmul.bf16.gmra.mxu0 %v164
  %v320 = vpop.f32.mrf.mxu0
  %v321 = vadd.f32 %v108, %v320
  %v322 = vpop.f32.mrf.mxu0
  %v323 = vadd.f32 %v113, %v322
  %324 = vdwg.mxu0
  %325 = vmatpush.bf16.msra.mxu0 %v262
  %326 = vmatpush.bf16.msra.mxu0 %v261
  %327 = vmatpush.bf16.msra.mxu0 %v260
  %328 = vmatpush.bf16.msra.mxu0 %v259
  %329 = vmatpush.bf16.msra.mxu0 %v258
  %330 = vmatpush.bf16.msra.mxu0 %v257
  %331 = vmatpush.bf16.msra.mxu0 %v256
  %332 = vmatpush.bf16.msra.mxu0 %v255
  %333 = vmatmul.bf16.gmra.mxu0 %v156
  %v334 = vpop.f32.mrf.mxu0
  %v335 = vadd.f32 %v306, %v334
  %v336 = vpop.f32.mrf.mxu0
  %v337 = vadd.f32 %v308, %v336
  %338 = vmatmul.bf16.gmra.mxu0 %v159
  %v339 = vpop.f32.mrf.mxu0
  %v340 = vadd.f32 %v311, %v339
  %v341 = vpop.f32.mrf.mxu0
  %v342 = vadd.f32 %v313, %v341
  %343 = vmatmul.bf16.gmra.mxu0 %v162
  %v344 = vpop.f32.mrf.mxu0
  %v345 = vadd.f32 %v316, %v344
  %v346 = vpop.f32.mrf.mxu0
  %v347 = vadd.f32 %v318, %v346
  %348 = vmatmul.bf16.gmra.mxu0 %v165
  %v349 = vpop.f32.mrf.mxu0
  %v350 = vadd.f32 %v321, %v349
  %v351 = vpop.f32.mrf.mxu0
  %v352 = vadd.f32 %v323, %v351
  %353 = vdwg.mxu0
  %354 = vmatpush.bf16.msra.mxu0 0
  %355 = vmatpush.bf16.msra.mxu0 0
  %356 = vmatpush.bf16.msra.mxu0 0
  %357 = vmatpush.bf16.msra.mxu0 0
  %358 = vmatpush.bf16.msra.mxu0 0
  %359 = vmatpush.bf16.msra.mxu0 0
  %360 = vmatpush.bf16.msra.mxu0 %v264
  %361 = vmatpush.bf16.msra.mxu0 %v263
  %362 = vmatmul.bf16.gmra.mxu0 %v285
  %v363 = vpop.f32.mrf.mxu0
  %v364 = vadd.f32 %v335, %v363
  %v365 = vpop.f32.mrf.mxu0
  %v366 = vadd.f32 %v337, %v365
  %367 = vmatmul.bf16.gmra.mxu0 %v288
  %v368 = vpop.f32.mrf.mxu0
  %v369 = vadd.f32 %v340, %v368
  %v370 = vpop.f32.mrf.mxu0
  %v371 = vadd.f32 %v342, %v370
  %372 = vmatmul.bf16.gmra.mxu0 %v291
  %v373 = vpop.f32.mrf.mxu0
  %v374 = vadd.f32 %v345, %v373
  %v375 = vpop.f32.mrf.mxu0
  %v376 = vadd.f32 %v347, %v375
  %377 = vmatmul.bf16.gmra.mxu0 %v294
  %v378 = vpop.f32.mrf.mxu0
  %v379 = vadd.f32 %v350, %v378
  %v380 = vpop.f32.mrf.mxu0
  %v381 = vadd.f32 %v352, %v380
  %382 = vdwg.mxu0
  %v383 = vand.u32 2147483647, %v364
  %v384 = vand.u32 2147483647, %v366
  %v385 = vand.u32 2147483647, %v369
  %v386 = vand.u32 2147483647, %v371
  %v387 = vand.u32 2147483647, %v374
  %v388 = vand.u32 2147483647, %v376
  %v389 = vand.u32 2147483647, %v379
  %v390 = vand.u32 2147483647, %v381
  %v391 = vsub.f32 0.0, %v383
  %v392 = vsub.f32 0.0, %v384
  %v393 = vsub.f32 0.0, %v385
  %v394 = vsub.f32 0.0, %v386
  %v395 = vsub.f32 0.0, %v387
  %v396 = vsub.f32 0.0, %v388
  %v397 = vsub.f32 0.0, %v389
  %v398 = vsub.f32 0.0, %v390
  %v399 = vmul.f32 %v391, 1.442695
  %v400 = vpow.pop %v399
  %v401 = vmul.f32 %v392, 1.442695
  %v402 = vpow.pop %v401
  %v403 = vmul.f32 %v393, 1.442695
  %v404 = vpow.pop %v403
  %v405 = vmul.f32 %v394, 1.442695
  %v406 = vpow.pop %v405
  %v407 = vmul.f32 %v395, 1.442695
  %v408 = vpow.pop %v407
  %v409 = vmul.f32 %v396, 1.442695
  %v410 = vpow.pop %v409
  %v411 = vmul.f32 %v397, 1.442695
  %v412 = vpow.pop %v411
  %v413 = vmul.f32 %v398, 1.442695
  %v414 = vpow.pop %v413
  %vm415 = vcmp.ge.f32.partialorder %v364, 0.0
  %vm416 = vcmp.ge.f32.partialorder %v366, 0.0
  %vm417 = vcmp.ge.f32.partialorder %v369, 0.0
  %vm418 = vcmp.ge.f32.partialorder %v371, 0.0
  %vm419 = vcmp.ge.f32.partialorder %v374, 0.0
  %vm420 = vcmp.ge.f32.partialorder %v376, 0.0
  %vm421 = vcmp.ge.f32.partialorder %v379, 0.0
  %vm422 = vcmp.ge.f32.partialorder %v381, 0.0
  %v423 = vsel %vm415, 1.0, %v400
  %v424 = vsel %vm416, 1.0, %v402
  %v425 = vsel %vm417, 1.0, %v404
  %v426 = vsel %vm418, 1.0, %v406
  %v427 = vsel %vm419, 1.0, %v408
  %v428 = vsel %vm420, 1.0, %v410
  %v429 = vsel %vm421, 1.0, %v412
  %v430 = vsel %vm422, 1.0, %v414
  %v431 = vadd.f32 %v400, 1.0
  %v432 = vadd.f32 %v402, 1.0
  %v433 = vadd.f32 %v404, 1.0
  %v434 = vadd.f32 %v406, 1.0
  %v435 = vadd.f32 %v408, 1.0
  %v436 = vadd.f32 %v410, 1.0
  %v437 = vadd.f32 %v412, 1.0
  %v438 = vadd.f32 %v414, 1.0
  %v439 = vrcp.pop %v431
  %v440 = vrcp.pop %v432
  %v441 = vrcp.pop %v433
  %v442 = vrcp.pop %v434
  %v443 = vrcp.pop %v435
  %v444 = vrcp.pop %v436
  %v445 = vrcp.pop %v437
  %v446 = vrcp.pop %v438
  %v447 = vmul.f32 %v423, %v439
  %v448 = vmul.f32 %v424, %v440
  %v449 = vmul.f32 %v425, %v441
  %v450 = vmul.f32 %v426, %v442
  %v451 = vmul.f32 %v427, %v443
  %v452 = vmul.f32 %v428, %v444
  %v453 = vmul.f32 %v429, %v445
  %v454 = vmul.f32 %v430, %v446
  %v455 = vmul.f32 %v364, %v447
  %v456 = vmul.f32 %v366, %v448
  %v457 = vmul.f32 %v369, %v449
  %v458 = vmul.f32 %v371, %v450
  %v459 = vmul.f32 %v374, %v451
  %v460 = vmul.f32 %v376, %v452
  %v461 = vmul.f32 %v379, %v453
  %v462 = vmul.f32 %v381, %v454
  %v463 = vpack.c.bf16 %v455, %v455
  %v464 = vpack.c.bf16 %v456, %v456
  %v465 = vpack.c.bf16 %v457, %v457
  %v466 = vpack.c.bf16 %v458, %v458
  %v467 = vpack.c.bf16 %v459, %v459
  %v468 = vpack.c.bf16 %v460, %v460
  %v469 = vpack.c.bf16 %v461, %v461
  %v470 = vpack.c.bf16 %v462, %v462
  %471 = vst [vmem:[%s3] sm:$0xf] %v463
  %472 = vst [vmem:[%s3 + $0x4] sm:$0xf] %v464
  %473 = vst [vmem:[%s3 + $0x8] sm:$0xf] %v465
  %474 = vst [vmem:[%s3 + $0xc] sm:$0xf] %v466
  %475 = vst [vmem:[%s3 + $0x10] sm:$0xf] %v467
  %476 = vst [vmem:[%s3 + $0x14] sm:$0xf] %v468
  %477 = vst [vmem:[%s3 + $0x18] sm:$0xf] %v469
  %478 = vst [vmem:[%s3 + $0x1c] sm:$0xf] %v470
  // Predicated region
  $region14: #{_lambda_.38} parent=0 // pred_check
    _
  $region15: #{_lambda_.38} parent=0 // pred_check_branch
    %480 = sbr.rel (0) target = $region17
  $region16: #{_lambda_.38} parent=0 // pred_region
    _
  $region17: #{_lambda_.38} parent=0 // pred_fallthru
    _
  // Predicated region
  $region18: #{_lambda_.38} parent=0 // pred_check
    _
  $region19: #{_lambda_.38} parent=0 // pred_check_branch
    %482 = sbr.rel (0) target = $region21
  $region20: #{_lambda_.38} parent=0 // pred_region
    _
  $region21: #{_lambda_.38} parent=0 // pred_fallthru
    _

// kernel: _lambda_.43
$region0: #{_lambda_.43}
  #allocation0 [shape = 'u32[]', space=smem, size = 0x4, offset = 0x4, fixed_abs, tag = 'smem constant byte address 0x4 - core index']
  #allocation1 [shape = 'u32[72,128]{1,0:T(1,128)}', space=vmem, size = 0x9000, scoped, tag = 'internal scratch']
  %s0 = inlined_call_operand.vmem [shape: bf16[64,128], index: 0, kind: input, shape index: {}]
  %s1 = inlined_call_operand.vmem [shape: bf16[32,64], index: 1, kind: input, shape index: {}]
  %s2 = inlined_call_operand.vmem [shape: f32[32,1], index: 2, kind: input, shape index: {}]
  %s3 = inlined_call_operand.vmem [shape: bf16[32,128], index: 3, kind: output, shape index: {}]
  %s4 = sld [smem:[#allocation0]]
  $region22: #{_lambda_.43} parent=0
    _
  %s6 = ssub.s32 1, %s4
  %s7 = scalar_select 0, %s6, %s4
  // Predicated region
  $region2: #{_lambda_.43} parent=0 // pred_check
    _
  $region3: #{_lambda_.43} parent=0 // pred_check_branch
    %9 = sbr.rel (0) target = $region5
  $region4: #{_lambda_.43} parent=0 // pred_region
    _
  $region5: #{_lambda_.43} parent=0 // pred_fallthru
    _
  // Predicated region
  $region6: #{_lambda_.43} parent=0 // pred_check
    _
  $region7: #{_lambda_.43} parent=0 // pred_check_branch
    %11 = sbr.rel (0) target = $region9
  $region8: #{_lambda_.43} parent=0 // pred_region
    _
  $region9: #{_lambda_.43} parent=0 // pred_fallthru
    _
  // Predicated region
  $region10: #{_lambda_.43} parent=0 // pred_check
    _
  $region11: #{_lambda_.43} parent=0 // pred_check_branch
    %13 = sbr.rel (0) target = $region13
  $region12: #{_lambda_.43} parent=0 // pred_region
    _
  $region13: #{_lambda_.43} parent=0 // pred_fallthru
    _
  %v15 = vld [vmem:[%s1] sm:$0xf]
  %v16 = vld [vmem:[%s1 + $0x4] sm:$0xf]
  %v17 = vld [vmem:[%s1 + $0x8] sm:$0xf]
  %v18 = vld [vmem:[%s1 + $0xc] sm:$0xf]
  %v19 = vld [vmem:[%s0] sm:$0xf]
  %v20 = vld [vmem:[%s0 + $0x4] sm:$0xf]
  %v21 = vld [vmem:[%s0 + $0x8] sm:$0xf]
  %v22 = vld [vmem:[%s0 + $0xc] sm:$0xf]
  %v23 = vld [vmem:[%s0 + $0x10] sm:$0xf]
  %v24 = vld [vmem:[%s0 + $0x14] sm:$0xf]
  %v25 = vld [vmem:[%s0 + $0x18] sm:$0xf]
  %v26 = vld [vmem:[%s0 + $0x1c] sm:$0xf]
  %v27 = vld [vmem:[%s2] sm:$0xff]
  %v28 = vld [vmem:[%s2 + $0x8] sm:$0xff]
  %v29 = vld [vmem:[%s2 + $0x10] sm:$0xff]
  %v30 = vld [vmem:[%s2 + $0x18] sm:$0xff]
  %32 = vset.pattern.permute.xlu0 0
  %33 = vperm.xlu0 %32, %v27
  %v34 = vpop.permute.xlu0 %33
  %37 = vset.pattern.permute.xlu0 0
  %38 = vperm.xlu0 %37, %v28
  %v39 = vpop.permute.xlu0 %38
  %42 = vset.pattern.permute.xlu0 0
  %43 = vperm.xlu0 %42, %v29
  %v44 = vpop.permute.xlu0 %43
  %47 = vset.pattern.permute.xlu0 0
  %48 = vperm.xlu0 %47, %v30
  %v49 = vpop.permute.xlu0 %48
  %v55 = vunpack.c.l.b16 %v15
  %v56 = vunpack.c.l.b16 %v16
  %v57 = vunpack.c.l.b16 %v17
  %v58 = vunpack.c.l.b16 %v18
  %v59 = vpack.c.b16 %v56, %v55
  %v60 = vpack.c.b16 %v58, %v57
  %v69 = vunpack.c.l.b16 %v19
  %v70 = vunpack.c.l.b16 %v20
  %v71 = vunpack.c.l.b16 %v21
  %v72 = vunpack.c.l.b16 %v22
  %v73 = vunpack.c.l.b16 %v23
  %v74 = vunpack.c.l.b16 %v24
  %v75 = vunpack.c.l.b16 %v25
  %v76 = vunpack.c.l.b16 %v26
  %v77 = vpack.c.b16 %v70, %v69
  %v78 = vpack.c.b16 %v72, %v71
  %v79 = vpack.c.b16 %v74, %v73
  %v80 = vpack.c.b16 %v76, %v75
  %vm85 = vcmask 523264
  %v87 = vsel %vm85, %v59, 0
  %v90 = vsel %vm85, %v60, 0
  %92 = vmatpush.bf16.msra.mxu0 0
  %93 = vmatpush.bf16.msra.mxu0 0
  %94 = vmatpush.bf16.msra.mxu0 0
  %95 = vmatpush.bf16.msra.mxu0 0
  %96 = vmatpush.bf16.msra.mxu0 %v80
  %97 = vmatpush.bf16.msra.mxu0 %v79
  %98 = vmatpush.bf16.msra.mxu0 %v78
  %99 = vmatpush.bf16.msra.mxu0 %v77
  %100 = vmatmul.bf16.gmra.mxu0 %v87
  %v101 = vpop.f32.mrf.mxu0
  %v102 = vadd.f32 %v34, %v101
  %v103 = vpop.f32.mrf.mxu0
  %v104 = vadd.f32 %v39, %v103
  %105 = vmatmul.bf16.gmra.mxu0 %v90
  %v106 = vpop.f32.mrf.mxu0
  %v107 = vadd.f32 %v44, %v106
  %v108 = vpop.f32.mrf.mxu0
  %v109 = vadd.f32 %v49, %v108
  %110 = vdwg.mxu0
  %v111 = vand.u32 2147483647, %v102
  %v112 = vand.u32 2147483647, %v104
  %v113 = vand.u32 2147483647, %v107
  %v114 = vand.u32 2147483647, %v109
  %v115 = vsub.f32 0.0, %v111
  %v116 = vsub.f32 0.0, %v112
  %v117 = vsub.f32 0.0, %v113
  %v118 = vsub.f32 0.0, %v114
  %v119 = vmul.f32 %v115, 1.442695
  %v120 = vpow.pop %v119
  %v121 = vmul.f32 %v116, 1.442695
  %v122 = vpow.pop %v121
  %v123 = vmul.f32 %v117, 1.442695
  %v124 = vpow.pop %v123
  %v125 = vmul.f32 %v118, 1.442695
  %v126 = vpow.pop %v125
  %vm127 = vcmp.ge.f32.partialorder %v102, 0.0
  %vm128 = vcmp.ge.f32.partialorder %v104, 0.0
  %vm129 = vcmp.ge.f32.partialorder %v107, 0.0
  %vm130 = vcmp.ge.f32.partialorder %v109, 0.0
  %v131 = vsel %vm127, 1.0, %v120
  %v132 = vsel %vm128, 1.0, %v122
  %v133 = vsel %vm129, 1.0, %v124
  %v134 = vsel %vm130, 1.0, %v126
  %v135 = vadd.f32 %v120, 1.0
  %v136 = vadd.f32 %v122, 1.0
  %v137 = vadd.f32 %v124, 1.0
  %v138 = vadd.f32 %v126, 1.0
  %v139 = vrcp.pop %v135
  %v140 = vrcp.pop %v136
  %v141 = vrcp.pop %v137
  %v142 = vrcp.pop %v138
  %v143 = vmul.f32 %v131, %v139
  %v144 = vmul.f32 %v132, %v140
  %v145 = vmul.f32 %v133, %v141
  %v146 = vmul.f32 %v134, %v142
  %v147 = vmul.f32 %v102, %v143
  %v148 = vmul.f32 %v104, %v144
  %v149 = vmul.f32 %v107, %v145
  %v150 = vmul.f32 %v109, %v146
  %v151 = vpack.c.bf16 %v147, %v147
  %v152 = vpack.c.bf16 %v148, %v148
  %v153 = vpack.c.bf16 %v149, %v149
  %v154 = vpack.c.bf16 %v150, %v150
  %155 = vst [vmem:[%s3] sm:$0xf] %v151
  %156 = vst [vmem:[%s3 + $0x4] sm:$0xf] %v152
  %157 = vst [vmem:[%s3 + $0x8] sm:$0xf] %v153
  %158 = vst [vmem:[%s3 + $0xc] sm:$0xf] %v154
  // Predicated region
  $region14: #{_lambda_.43} parent=0 // pred_check
    _
  $region15: #{_lambda_.43} parent=0 // pred_check_branch
    %160 = sbr.rel (0) target = $region17
  $region16: #{_lambda_.43} parent=0 // pred_region
    _
  $region17: #{_lambda_.43} parent=0 // pred_fallthru
    _
  // Predicated region
  $region18: #{_lambda_.43} parent=0 // pred_check
    _
  $region19: #{_lambda_.43} parent=0 // pred_check_branch
    %162 = sbr.rel (0) target = $region21
  $region20: #{_lambda_.43} parent=0 // pred_region
    _
  $region21: #{_lambda_.43} parent=0 // pred_fallthru
    _

// kernel: _lambda_.40
$region0: #{_lambda_.40}
  #allocation0 [shape = 'u32[]', space=smem, size = 0x4, offset = 0x4, fixed_abs, tag = 'smem constant byte address 0x4 - core index']
  #allocation1 [shape = 'u32[72,128]{1,0:T(1,128)}', space=vmem, size = 0x9000, scoped, tag = 'internal scratch']
  %s0 = inlined_call_operand.vmem [shape: bf16[576,128], index: 0, kind: input, shape index: {}]
  %s1 = inlined_call_operand.vmem [shape: bf16[64,576], index: 1, kind: input, shape index: {}]
  %s2 = inlined_call_operand.vmem [shape: f32[64,1], index: 2, kind: input, shape index: {}]
  %s3 = inlined_call_operand.vmem [shape: bf16[64,128], index: 3, kind: input, shape index: {}]
  %s4 = inlined_call_operand.vmem [shape: bf16[64,128], index: 4, kind: output, shape index: {}]
  %s5 = sld [smem:[#allocation0]]
  $region26: #{_lambda_.40} parent=0
    _
  %s7 = ssub.s32 1, %s5
  %s8 = scalar_select 0, %s7, %s5
  // Predicated region
  $region2: #{_lambda_.40} parent=0 // pred_check
    _
  $region3: #{_lambda_.40} parent=0 // pred_check_branch
    %10 = sbr.rel (0) target = $region5
  $region4: #{_lambda_.40} parent=0 // pred_region
    _
  $region5: #{_lambda_.40} parent=0 // pred_fallthru
    _
  // Predicated region
  $region6: #{_lambda_.40} parent=0 // pred_check
    _
  $region7: #{_lambda_.40} parent=0 // pred_check_branch
    %12 = sbr.rel (0) target = $region9
  $region8: #{_lambda_.40} parent=0 // pred_region
    _
  $region9: #{_lambda_.40} parent=0 // pred_fallthru
    _
  // Predicated region
  $region10: #{_lambda_.40} parent=0 // pred_check
    _
  $region11: #{_lambda_.40} parent=0 // pred_check_branch
    %14 = sbr.rel (0) target = $region13
  $region12: #{_lambda_.40} parent=0 // pred_region
    _
  $region13: #{_lambda_.40} parent=0 // pred_fallthru
    _
  // Predicated region
  $region14: #{_lambda_.40} parent=0 // pred_check
    _
  $region15: #{_lambda_.40} parent=0 // pred_check_branch
    %16 = sbr.rel (0) target = $region17
  $region16: #{_lambda_.40} parent=0 // pred_region
    _
  $region17: #{_lambda_.40} parent=0 // pred_fallthru
    _
  %v18 = vld [vmem:[%s1] sm:$0xff]
  %v19 = vld [vmem:[%s1 + $0x8] sm:$0xff]
  %v20 = vld [vmem:[%s1 + $0x10] sm:$0xf]
  %v21 = vld [vmem:[%s1 + $0x14] sm:$0xff]
  %v22 = vld [vmem:[%s1 + $0x1c] sm:$0xff]
  %v23 = vld [vmem:[%s1 + $0x24] sm:$0xf]
  %v24 = vld [vmem:[%s1 + $0x28] sm:$0xff]
  %v25 = vld [vmem:[%s1 + $0x30] sm:$0xff]
  %v26 = vld [vmem:[%s1 + $0x38] sm:$0xf]
  %v27 = vld [vmem:[%s1 + $0x3c] sm:$0xff]
  %v28 = vld [vmem:[%s1 + $0x44] sm:$0xff]
  %v29 = vld [vmem:[%s1 + $0x4c] sm:$0xf]
  %v30 = vld [vmem:[%s1 + $0x50] sm:$0xff]
  %v31 = vld [vmem:[%s1 + $0x58] sm:$0xff]
  %v32 = vld [vmem:[%s1 + $0x60] sm:$0xf]
  %v33 = vld [vmem:[%s1 + $0x64] sm:$0xff]
  %v34 = vld [vmem:[%s1 + $0x6c] sm:$0xff]
  %v35 = vld [vmem:[%s1 + $0x74] sm:$0xf]
  %v36 = vld [vmem:[%s1 + $0x78] sm:$0xff]
  %v37 = vld [vmem:[%s1 + $0x80] sm:$0xff]
  %v38 = vld [vmem:[%s1 + $0x88] sm:$0xf]
  %v39 = vld [vmem:[%s1 + $0x8c] sm:$0xff]
  %v40 = vld [vmem:[%s1 + $0x94] sm:$0xff]
  %v41 = vld [vmem:[%s1 + $0x9c] sm:$0xf]
  %v42 = vld [vmem:[%s0] sm:$0xf]
  %v43 = vld [vmem:[%s0 + $0x4] sm:$0xf]
  %v44 = vld [vmem:[%s0 + $0x8] sm:$0xf]
  %v45 = vld [vmem:[%s0 + $0xc] sm:$0xf]
  %v46 = vld [vmem:[%s0 + $0x10] sm:$0xf]
  %v47 = vld [vmem:[%s0 + $0x14] sm:$0xf]
  %v48 = vld [vmem:[%s0 + $0x18] sm:$0xf]
  %v49 = vld [vmem:[%s0 + $0x1c] sm:$0xf]
  %v50 = vld [vmem:[%s0 + $0x20] sm:$0xf]
  %v51 = vld [vmem:[%s0 + $0x24] sm:$0xf]
  %v52 = vld [vmem:[%s0 + $0x28] sm:$0xf]
  %v53 = vld [vmem:[%s0 + $0x2c] sm:$0xf]
  %v54 = vld [vmem:[%s0 + $0x30] sm:$0xf]
  %v55 = vld [vmem:[%s0 + $0x34] sm:$0xf]
  %v56 = vld [vmem:[%s0 + $0x38] sm:$0xf]
  %v57 = vld [vmem:[%s0 + $0x3c] sm:$0xf]
  %v58 = vld [vmem:[%s0 + $0x40] sm:$0xf]
  %v59 = vld [vmem:[%s0 + $0x44] sm:$0xf]
  %v60 = vld [vmem:[%s0 + $0x48] sm:$0xf]
  %v61 = vld [vmem:[%s0 + $0x4c] sm:$0xf]
  %v62 = vld [vmem:[%s0 + $0x50] sm:$0xf]
  %v63 = vld [vmem:[%s0 + $0x54] sm:$0xf]
  %v64 = vld [vmem:[%s0 + $0x58] sm:$0xf]
  %v65 = vld [vmem:[%s0 + $0x5c] sm:$0xf]
  %v66 = vld [vmem:[%s0 + $0x60] sm:$0xf]
  %v67 = vld [vmem:[%s0 + $0x64] sm:$0xf]
  %v68 = vld [vmem:[%s0 + $0x68] sm:$0xf]
  %v69 = vld [vmem:[%s0 + $0x6c] sm:$0xf]
  %v70 = vld [vmem:[%s0 + $0x70] sm:$0xf]
  %v71 = vld [vmem:[%s0 + $0x74] sm:$0xf]
  %v72 = vld [vmem:[%s0 + $0x78] sm:$0xf]
  %v73 = vld [vmem:[%s0 + $0x7c] sm:$0xf]
  %v74 = vld [vmem:[%s0 + $0x80] sm:$0xf]
  %v75 = vld [vmem:[%s0 + $0x84] sm:$0xf]
  %v76 = vld [vmem:[%s0 + $0x88] sm:$0xf]
  %v77 = vld [vmem:[%s0 + $0x8c] sm:$0xf]
  %v78 = vld [vmem:[%s0 + $0x90] sm:$0xf]
  %v79 = vld [vmem:[%s0 + $0x94] sm:$0xf]
  %v80 = vld [vmem:[%s0 + $0x98] sm:$0xf]
  %v81 = vld [vmem:[%s0 + $0x9c] sm:$0xf]
  %v82 = vld [vmem:[%s0 + $0xa0] sm:$0xf]
  %v83 = vld [vmem:[%s0 + $0xa4] sm:$0xf]
  %v84 = vld [vmem:[%s0 + $0xa8] sm:$0xf]
  %v85 = vld [vmem:[%s0 + $0xac] sm:$0xf]
  %v86 = vld [vmem:[%s0 + $0xb0] sm:$0xf]
  %v87 = vld [vmem:[%s0 + $0xb4] sm:$0xf]
  %v88 = vld [vmem:[%s0 + $0xb8] sm:$0xf]
  %v89 = vld [vmem:[%s0 + $0xbc] sm:$0xf]
  %v90 = vld [vmem:[%s0 + $0xc0] sm:$0xf]
  %v91 = vld [vmem:[%s0 + $0xc4] sm:$0xf]
  %v92 = vld [vmem:[%s0 + $0xc8] sm:$0xf]
  %v93 = vld [vmem:[%s0 + $0xcc] sm:$0xf]
  %v94 = vld [vmem:[%s0 + $0xd0] sm:$0xf]
  %v95 = vld [vmem:[%s0 + $0xd4] sm:$0xf]
  %v96 = vld [vmem:[%s0 + $0xd8] sm:$0xf]
  %v97 = vld [vmem:[%s0 + $0xdc] sm:$0xf]
  %v98 = vld [vmem:[%s0 + $0xe0] sm:$0xf]
  %v99 = vld [vmem:[%s0 + $0xe4] sm:$0xf]
  %v100 = vld [vmem:[%s0 + $0xe8] sm:$0xf]
  %v101 = vld [vmem:[%s0 + $0xec] sm:$0xf]
  %v102 = vld [vmem:[%s0 + $0xf0] sm:$0xf]
  %v103 = vld [vmem:[%s0 + $0xf4] sm:$0xf]
  %v104 = vld [vmem:[%s0 + $0xf8] sm:$0xf]
  %v105 = vld [vmem:[%s0 + $0xfc] sm:$0xf]
  %v106 = vld [vmem:[%s0 + $0x100] sm:$0xf]
  %v107 = vld [vmem:[%s0 + $0x104] sm:$0xf]
  %v108 = vld [vmem:[%s0 + $0x108] sm:$0xf]
  %v109 = vld [vmem:[%s0 + $0x10c] sm:$0xf]
  %v110 = vld [vmem:[%s0 + $0x110] sm:$0xf]
  %v111 = vld [vmem:[%s0 + $0x114] sm:$0xf]
  %v112 = vld [vmem:[%s0 + $0x118] sm:$0xf]
  %v113 = vld [vmem:[%s0 + $0x11c] sm:$0xf]
  %v114 = vld [vmem:[%s2] sm:$0xff]
  %v115 = vld [vmem:[%s2 + $0x8] sm:$0xff]
  %v116 = vld [vmem:[%s2 + $0x10] sm:$0xff]
  %v117 = vld [vmem:[%s2 + $0x18] sm:$0xff]
  %v118 = vld [vmem:[%s2 + $0x20] sm:$0xff]
  %v119 = vld [vmem:[%s2 + $0x28] sm:$0xff]
  %v120 = vld [vmem:[%s2 + $0x30] sm:$0xff]
  %v121 = vld [vmem:[%s2 + $0x38] sm:$0xff]
  %123 = vset.pattern.permute.xlu0 0
  %124 = vperm.xlu0 %123, %v114
  %v125 = vpop.permute.xlu0 %124
  %128 = vset.pattern.permute.xlu0 0
  %129 = vperm.xlu0 %128, %v115
  %v130 = vpop.permute.xlu0 %129
  %133 = vset.pattern.permute.xlu0 0
  %134 = vperm.xlu0 %133, %v116
  %v135 = vpop.permute.xlu0 %134
  %138 = vset.pattern.permute.xlu0 0
  %139 = vperm.xlu0 %138, %v117
  %v140 = vpop.permute.xlu0 %139
  %143 = vset.pattern.permute.xlu0 0
  %144 = vperm.xlu0 %143, %v118
  %v145 = vpop.permute.xlu0 %144
  %148 = vset.pattern.permute.xlu0 0
  %149 = vperm.xlu0 %148, %v119
  %v150 = vpop.permute.xlu0 %149
  %153 = vset.pattern.permute.xlu0 0
  %154 = vperm.xlu0 %153, %v120
  %v155 = vpop.permute.xlu0 %154
  %158 = vset.pattern.permute.xlu0 0
  %159 = vperm.xlu0 %158, %v121
  %v160 = vpop.permute.xlu0 %159
  %v186 = vunpack.c.l.b16 %v18
  %v187 = vunpack.c.h.b16 %v18
  %v188 = vunpack.c.l.b16 %v19
  %v189 = vunpack.c.h.b16 %v19
  %v190 = vunpack.c.l.b16 %v20
  %v191 = vunpack.c.l.b16 %v21
  %v192 = vunpack.c.h.b16 %v21
  %v193 = vunpack.c.l.b16 %v22
  %v194 = vunpack.c.h.b16 %v22
  %v195 = vunpack.c.l.b16 %v23
  %v196 = vunpack.c.l.b16 %v24
  %v197 = vunpack.c.h.b16 %v24
  %v198 = vunpack.c.l.b16 %v25
  %v199 = vunpack.c.h.b16 %v25
  %v200 = vunpack.c.l.b16 %v26
  %v201 = vunpack.c.l.b16 %v27
  %v202 = vunpack.c.h.b16 %v27
  %v203 = vunpack.c.l.b16 %v28
  %v204 = vunpack.c.h.b16 %v28
  %v205 = vunpack.c.l.b16 %v29
  %v206 = vunpack.c.l.b16 %v30
  %v207 = vunpack.c.h.b16 %v30
  %v208 = vunpack.c.l.b16 %v31
  %v209 = vunpack.c.h.b16 %v31
  %v210 = vunpack.c.l.b16 %v32
  %v211 = vunpack.c.l.b16 %v33
  %v212 = vunpack.c.h.b16 %v33
  %v213 = vunpack.c.l.b16 %v34
  %v214 = vunpack.c.h.b16 %v34
  %v215 = vunpack.c.l.b16 %v35
  %v216 = vunpack.c.l.b16 %v36
  %v217 = vunpack.c.h.b16 %v36
  %v218 = vunpack.c.l.b16 %v37
  %v219 = vunpack.c.h.b16 %v37
  %v220 = vunpack.c.l.b16 %v38
  %v221 = vunpack.c.l.b16 %v39
  %v222 = vunpack.c.h.b16 %v39
  %v223 = vunpack.c.l.b16 %v40
  %v224 = vunpack.c.h.b16 %v40
  %v225 = vunpack.c.l.b16 %v41
  %v226 = vpack.c.b16 %v191, %v186
  %v227 = vpack.c.b16 %v192, %v187
  %v228 = vpack.c.b16 %v193, %v188
  %v229 = vpack.c.b16 %v194, %v189
  %v230 = vpack.c.b16 %v195, %v190
  %v231 = vpack.c.b16 %v201, %v196
  %v232 = vpack.c.b16 %v202, %v197
  %v233 = vpack.c.b16 %v203, %v198
  %v234 = vpack.c.b16 %v204, %v199
  %v235 = vpack.c.b16 %v205, %v200
  %v236 = vpack.c.b16 %v211, %v206
  %v237 = vpack.c.b16 %v212, %v207
  %v238 = vpack.c.b16 %v213, %v208
  %v239 = vpack.c.b16 %v214, %v209
  %v240 = vpack.c.b16 %v215, %v210
  %v241 = vpack.c.b16 %v221, %v216
  %v242 = vpack.c.b16 %v222, %v217
  %v243 = vpack.c.b16 %v223, %v218
  %v244 = vpack.c.b16 %v224, %v219
  %v245 = vpack.c.b16 %v225, %v220
  %v334 = vunpack.c.l.b16 %v42
  %v335 = vunpack.c.l.b16 %v43
  %v336 = vunpack.c.l.b16 %v44
  %v337 = vunpack.c.l.b16 %v45
  %v338 = vunpack.c.l.b16 %v46
  %v339 = vunpack.c.l.b16 %v47
  %v340 = vunpack.c.l.b16 %v48
  %v341 = vunpack.c.l.b16 %v49
  %v342 = vunpack.c.l.b16 %v50
  %v343 = vunpack.c.l.b16 %v51
  %v344 = vunpack.c.l.b16 %v52
  %v345 = vunpack.c.l.b16 %v53
  %v346 = vunpack.c.l.b16 %v54
  %v347 = vunpack.c.l.b16 %v55
  %v348 = vunpack.c.l.b16 %v56
  %v349 = vunpack.c.l.b16 %v57
  %v350 = vunpack.c.l.b16 %v58
  %v351 = vunpack.c.l.b16 %v59
  %v352 = vunpack.c.l.b16 %v60
  %v353 = vunpack.c.l.b16 %v61
  %v354 = vunpack.c.l.b16 %v62
  %v355 = vunpack.c.l.b16 %v63
  %v356 = vunpack.c.l.b16 %v64
  %v357 = vunpack.c.l.b16 %v65
  %v358 = vunpack.c.l.b16 %v66
  %v359 = vunpack.c.l.b16 %v67
  %v360 = vunpack.c.l.b16 %v68
  %v361 = vunpack.c.l.b16 %v69
  %v362 = vunpack.c.l.b16 %v70
  %v363 = vunpack.c.l.b16 %v71
  %v364 = vunpack.c.l.b16 %v72
  %v365 = vunpack.c.l.b16 %v73
  %v366 = vunpack.c.l.b16 %v74
  %v367 = vunpack.c.l.b16 %v75
  %v368 = vunpack.c.l.b16 %v76
  %v369 = vunpack.c.l.b16 %v77
  %v370 = vunpack.c.l.b16 %v78
  %v371 = vunpack.c.l.b16 %v79
  %v372 = vunpack.c.l.b16 %v80
  %v373 = vunpack.c.l.b16 %v81
  %v374 = vunpack.c.l.b16 %v82
  %v375 = vunpack.c.l.b16 %v83
  %v376 = vunpack.c.l.b16 %v84
  %v377 = vunpack.c.l.b16 %v85
  %v378 = vunpack.c.l.b16 %v86
  %v379 = vunpack.c.l.b16 %v87
  %v380 = vunpack.c.l.b16 %v88
  %v381 = vunpack.c.l.b16 %v89
  %v382 = vunpack.c.l.b16 %v90
  %v383 = vunpack.c.l.b16 %v91
  %v384 = vunpack.c.l.b16 %v92
  %v385 = vunpack.c.l.b16 %v93
  %v386 = vunpack.c.l.b16 %v94
  %v387 = vunpack.c.l.b16 %v95
  %v388 = vunpack.c.l.b16 %v96
  %v389 = vunpack.c.l.b16 %v97
  %v390 = vunpack.c.l.b16 %v98
  %v391 = vunpack.c.l.b16 %v99
  %v392 = vunpack.c.l.b16 %v100
  %v393 = vunpack.c.l.b16 %v101
  %v394 = vunpack.c.l.b16 %v102
  %v395 = vunpack.c.l.b16 %v103
  %v396 = vunpack.c.l.b16 %v104
  %v397 = vunpack.c.l.b16 %v105
  %v398 = vunpack.c.l.b16 %v106
  %v399 = vunpack.c.l.b16 %v107
  %v400 = vunpack.c.l.b16 %v108
  %v401 = vunpack.c.l.b16 %v109
  %v402 = vunpack.c.l.b16 %v110
  %v403 = vunpack.c.l.b16 %v111
  %v404 = vunpack.c.l.b16 %v112
  %v405 = vunpack.c.l.b16 %v113
  %v406 = vpack.c.b16 %v335, %v334
  %v407 = vpack.c.b16 %v337, %v336
  %v408 = vpack.c.b16 %v339, %v338
  %v409 = vpack.c.b16 %v341, %v340
  %v410 = vpack.c.b16 %v343, %v342
  %v411 = vpack.c.b16 %v345, %v344
  %v412 = vpack.c.b16 %v347, %v346
  %v413 = vpack.c.b16 %v349, %v348
  %v414 = vpack.c.b16 %v351, %v350
  %v415 = vpack.c.b16 %v353, %v352
  %v416 = vpack.c.b16 %v355, %v354
  %v417 = vpack.c.b16 %v357, %v356
  %v418 = vpack.c.b16 %v359, %v358
  %v419 = vpack.c.b16 %v361, %v360
  %v420 = vpack.c.b16 %v363, %v362
  %v421 = vpack.c.b16 %v365, %v364
  %v422 = vpack.c.b16 %v367, %v366
  %v423 = vpack.c.b16 %v369, %v368
  %v424 = vpack.c.b16 %v371, %v370
  %v425 = vpack.c.b16 %v373, %v372
  %v426 = vpack.c.b16 %v375, %v374
  %v427 = vpack.c.b16 %v377, %v376
  %v428 = vpack.c.b16 %v379, %v378
  %v429 = vpack.c.b16 %v381, %v380
  %v430 = vpack.c.b16 %v383, %v382
  %v431 = vpack.c.b16 %v385, %v384
  %v432 = vpack.c.b16 %v387, %v386
  %v433 = vpack.c.b16 %v389, %v388
  %v434 = vpack.c.b16 %v391, %v390
  %v435 = vpack.c.b16 %v393, %v392
  %v436 = vpack.c.b16 %v395, %v394
  %v437 = vpack.c.b16 %v397, %v396
  %v438 = vpack.c.b16 %v399, %v398
  %v439 = vpack.c.b16 %v401, %v400
  %v440 = vpack.c.b16 %v403, %v402
  %v441 = vpack.c.b16 %v405, %v404
  %vm478 = vcmask 523264
  %v480 = vsel %vm478, %v230, 0
  %v483 = vsel %vm478, %v235, 0
  %v486 = vsel %vm478, %v240, 0
  %v489 = vsel %vm478, %v245, 0
  %491 = vmatpush.bf16.msra.mxu0 %v413
  %492 = vmatpush.bf16.msra.mxu0 %v412
  %493 = vmatpush.bf16.msra.mxu0 %v411
  %494 = vmatpush.bf16.msra.mxu0 %v410
  %495 = vmatpush.bf16.msra.mxu0 %v409
  %496 = vmatpush.bf16.msra.mxu0 %v408
  %497 = vmatpush.bf16.msra.mxu0 %v407
  %498 = vmatpush.bf16.msra.mxu0 %v406
  %499 = vmatmul.bf16.gmra.mxu0 %v226
  %v500 = vpop.f32.mrf.mxu0
  %v501 = vadd.f32 %v125, %v500
  %v502 = vpop.f32.mrf.mxu0
  %v503 = vadd.f32 %v130, %v502
  %504 = vmatmul.bf16.gmra.mxu0 %v231
  %v505 = vpop.f32.mrf.mxu0
  %v506 = vadd.f32 %v135, %v505
  %v507 = vpop.f32.mrf.mxu0
  %v508 = vadd.f32 %v140, %v507
  %509 = vmatmul.bf16.gmra.mxu0 %v236
  %v510 = vpop.f32.mrf.mxu0
  %v511 = vadd.f32 %v145, %v510
  %v512 = vpop.f32.mrf.mxu0
  %v513 = vadd.f32 %v150, %v512
  %514 = vmatmul.bf16.gmra.mxu0 %v241
  %v515 = vpop.f32.mrf.mxu0
  %v516 = vadd.f32 %v155, %v515
  %v517 = vpop.f32.mrf.mxu0
  %v518 = vadd.f32 %v160, %v517
  %519 = vdwg.mxu0
  %520 = vmatpush.bf16.msra.mxu0 %v421
  %521 = vmatpush.bf16.msra.mxu0 %v420
  %522 = vmatpush.bf16.msra.mxu0 %v419
  %523 = vmatpush.bf16.msra.mxu0 %v418
  %524 = vmatpush.bf16.msra.mxu0 %v417
  %525 = vmatpush.bf16.msra.mxu0 %v416
  %526 = vmatpush.bf16.msra.mxu0 %v415
  %527 = vmatpush.bf16.msra.mxu0 %v414
  %528 = vmatmul.bf16.gmra.mxu0 %v227
  %v529 = vpop.f32.mrf.mxu0
  %v530 = vadd.f32 %v501, %v529
  %v531 = vpop.f32.mrf.mxu0
  %v532 = vadd.f32 %v503, %v531
  %533 = vmatmul.bf16.gmra.mxu0 %v232
  %v534 = vpop.f32.mrf.mxu0
  %v535 = vadd.f32 %v506, %v534
  %v536 = vpop.f32.mrf.mxu0
  %v537 = vadd.f32 %v508, %v536
  %538 = vmatmul.bf16.gmra.mxu0 %v237
  %v539 = vpop.f32.mrf.mxu0
  %v540 = vadd.f32 %v511, %v539
  %v541 = vpop.f32.mrf.mxu0
  %v542 = vadd.f32 %v513, %v541
  %543 = vmatmul.bf16.gmra.mxu0 %v242
  %v544 = vpop.f32.mrf.mxu0
  %v545 = vadd.f32 %v516, %v544
  %v546 = vpop.f32.mrf.mxu0
  %v547 = vadd.f32 %v518, %v546
  %548 = vdwg.mxu0
  %549 = vmatpush.bf16.msra.mxu0 %v429
  %550 = vmatpush.bf16.msra.mxu0 %v428
  %551 = vmatpush.bf16.msra.mxu0 %v427
  %552 = vmatpush.bf16.msra.mxu0 %v426
  %553 = vmatpush.bf16.msra.mxu0 %v425
  %554 = vmatpush.bf16.msra.mxu0 %v424
  %555 = vmatpush.bf16.msra.mxu0 %v423
  %556 = vmatpush.bf16.msra.mxu0 %v422
  %557 = vmatmul.bf16.gmra.mxu0 %v228
  %v558 = vpop.f32.mrf.mxu0
  %v559 = vadd.f32 %v530, %v558
  %v560 = vpop.f32.mrf.mxu0
  %v561 = vadd.f32 %v532, %v560
  %562 = vmatmul.bf16.gmra.mxu0 %v233
  %v563 = vpop.f32.mrf.mxu0
  %v564 = vadd.f32 %v535, %v563
  %v565 = vpop.f32.mrf.mxu0
  %v566 = vadd.f32 %v537, %v565
  %567 = vmatmul.bf16.gmra.mxu0 %v238
  %v568 = vpop.f32.mrf.mxu0
  %v569 = vadd.f32 %v540, %v568
  %v570 = vpop.f32.mrf.mxu0
  %v571 = vadd.f32 %v542, %v570
  %572 = vmatmul.bf16.gmra.mxu0 %v243
  %v573 = vpop.f32.mrf.mxu0
  %v574 = vadd.f32 %v545, %v573
  %v575 = vpop.f32.mrf.mxu0
  %v576 = vadd.f32 %v547, %v575
  %577 = vdwg.mxu0
  %578 = vmatpush.bf16.msra.mxu0 %v437
  %579 = vmatpush.bf16.msra.mxu0 %v436
  %580 = vmatpush.bf16.msra.mxu0 %v435
  %581 = vmatpush.bf16.msra.mxu0 %v434
  %582 = vmatpush.bf16.msra.mxu0 %v433
  %583 = vmatpush.bf16.msra.mxu0 %v432
  %584 = vmatpush.bf16.msra.mxu0 %v431
  %585 = vmatpush.bf16.msra.mxu0 %v430
  %586 = vmatmul.bf16.gmra.mxu0 %v229
  %v587 = vpop.f32.mrf.mxu0
  %v588 = vadd.f32 %v559, %v587
  %v589 = vpop.f32.mrf.mxu0
  %v590 = vadd.f32 %v561, %v589
  %591 = vmatmul.bf16.gmra.mxu0 %v234
  %v592 = vpop.f32.mrf.mxu0
  %v593 = vadd.f32 %v564, %v592
  %v594 = vpop.f32.mrf.mxu0
  %v595 = vadd.f32 %v566, %v594
  %596 = vmatmul.bf16.gmra.mxu0 %v239
  %v597 = vpop.f32.mrf.mxu0
  %v598 = vadd.f32 %v569, %v597
  %v599 = vpop.f32.mrf.mxu0
  %v600 = vadd.f32 %v571, %v599
  %601 = vmatmul.bf16.gmra.mxu0 %v244
  %v602 = vpop.f32.mrf.mxu0
  %v603 = vadd.f32 %v574, %v602
  %v604 = vpop.f32.mrf.mxu0
  %v605 = vadd.f32 %v576, %v604
  %606 = vdwg.mxu0
  %607 = vmatpush.bf16.msra.mxu0 0
  %608 = vmatpush.bf16.msra.mxu0 0
  %609 = vmatpush.bf16.msra.mxu0 0
  %610 = vmatpush.bf16.msra.mxu0 0
  %611 = vmatpush.bf16.msra.mxu0 %v441
  %612 = vmatpush.bf16.msra.mxu0 %v440
  %613 = vmatpush.bf16.msra.mxu0 %v439
  %614 = vmatpush.bf16.msra.mxu0 %v438
  %615 = vmatmul.bf16.gmra.mxu0 %v480
  %v616 = vpop.f32.mrf.mxu0
  %v617 = vadd.f32 %v588, %v616
  %v618 = vpop.f32.mrf.mxu0
  %v619 = vadd.f32 %v590, %v618
  %620 = vmatmul.bf16.gmra.mxu0 %v483
  %v621 = vpop.f32.mrf.mxu0
  %v622 = vadd.f32 %v593, %v621
  %v623 = vpop.f32.mrf.mxu0
  %v624 = vadd.f32 %v595, %v623
  %625 = vmatmul.bf16.gmra.mxu0 %v486
  %v626 = vpop.f32.mrf.mxu0
  %v627 = vadd.f32 %v598, %v626
  %v628 = vpop.f32.mrf.mxu0
  %v629 = vadd.f32 %v600, %v628
  %630 = vmatmul.bf16.gmra.mxu0 %v489
  %v631 = vpop.f32.mrf.mxu0
  %v632 = vadd.f32 %v603, %v631
  %v633 = vpop.f32.mrf.mxu0
  %v634 = vadd.f32 %v605, %v633
  %635 = vdwg.mxu0
  %v636 = vand.u32 2147483647, %v617
  %v637 = vand.u32 2147483647, %v619
  %v638 = vand.u32 2147483647, %v622
  %v639 = vand.u32 2147483647, %v624
  %v640 = vand.u32 2147483647, %v627
  %v641 = vand.u32 2147483647, %v629
  %v642 = vand.u32 2147483647, %v632
  %v643 = vand.u32 2147483647, %v634
  %v644 = vsub.f32 0.0, %v636
  %v645 = vsub.f32 0.0, %v637
  %v646 = vsub.f32 0.0, %v638
  %v647 = vsub.f32 0.0, %v639
  %v648 = vsub.f32 0.0, %v640
  %v649 = vsub.f32 0.0, %v641
  %v650 = vsub.f32 0.0, %v642
  %v651 = vsub.f32 0.0, %v643
  %v652 = vmul.f32 %v644, 1.442695
  %v653 = vpow.pop %v652
  %v654 = vmul.f32 %v645, 1.442695
  %v655 = vpow.pop %v654
  %v656 = vmul.f32 %v646, 1.442695
  %v657 = vpow.pop %v656
  %v658 = vmul.f32 %v647, 1.442695
  %v659 = vpow.pop %v658
  %v660 = vmul.f32 %v648, 1.442695
  %v661 = vpow.pop %v660
  %v662 = vmul.f32 %v649, 1.442695
  %v663 = vpow.pop %v662
  %v664 = vmul.f32 %v650, 1.442695
  %v665 = vpow.pop %v664
  %v666 = vmul.f32 %v651, 1.442695
  %v667 = vpow.pop %v666
  %vm668 = vcmp.ge.f32.partialorder %v617, 0.0
  %vm669 = vcmp.ge.f32.partialorder %v619, 0.0
  %vm670 = vcmp.ge.f32.partialorder %v622, 0.0
  %vm671 = vcmp.ge.f32.partialorder %v624, 0.0
  %vm672 = vcmp.ge.f32.partialorder %v627, 0.0
  %vm673 = vcmp.ge.f32.partialorder %v629, 0.0
  %vm674 = vcmp.ge.f32.partialorder %v632, 0.0
  %vm675 = vcmp.ge.f32.partialorder %v634, 0.0
  %v676 = vsel %vm668, 1.0, %v653
  %v677 = vsel %vm669, 1.0, %v655
  %v678 = vsel %vm670, 1.0, %v657
  %v679 = vsel %vm671, 1.0, %v659
  %v680 = vsel %vm672, 1.0, %v661
  %v681 = vsel %vm673, 1.0, %v663
  %v682 = vsel %vm674, 1.0, %v665
  %v683 = vsel %vm675, 1.0, %v667
  %v684 = vadd.f32 %v653, 1.0
  %v685 = vadd.f32 %v655, 1.0
  %v686 = vadd.f32 %v657, 1.0
  %v687 = vadd.f32 %v659, 1.0
  %v688 = vadd.f32 %v661, 1.0
  %v689 = vadd.f32 %v663, 1.0
  %v690 = vadd.f32 %v665, 1.0
  %v691 = vadd.f32 %v667, 1.0
  %v692 = vrcp.pop %v684
  %v693 = vrcp.pop %v685
  %v694 = vrcp.pop %v686
  %v695 = vrcp.pop %v687
  %v696 = vrcp.pop %v688
  %v697 = vrcp.pop %v689
  %v698 = vrcp.pop %v690
  %v699 = vrcp.pop %v691
  %v700 = vmul.f32 %v676, %v692
  %v701 = vmul.f32 %v677, %v693
  %v702 = vmul.f32 %v678, %v694
  %v703 = vmul.f32 %v679, %v695
  %v704 = vmul.f32 %v680, %v696
  %v705 = vmul.f32 %v681, %v697
  %v706 = vmul.f32 %v682, %v698
  %v707 = vmul.f32 %v683, %v699
  %v708 = vmul.f32 %v617, %v700
  %v709 = vmul.f32 %v619, %v701
  %v710 = vmul.f32 %v622, %v702
  %v711 = vmul.f32 %v624, %v703
  %v712 = vmul.f32 %v627, %v704
  %v713 = vmul.f32 %v629, %v705
  %v714 = vmul.f32 %v632, %v706
  %v715 = vmul.f32 %v634, %v707
  %v716 = vld [vmem:[%s3] sm:$0xf]
  %v717 = vld [vmem:[%s3 + $0x4] sm:$0xf]
  %v718 = vld [vmem:[%s3 + $0x8] sm:$0xf]
  %v719 = vld [vmem:[%s3 + $0xc] sm:$0xf]
  %v720 = vld [vmem:[%s3 + $0x10] sm:$0xf]
  %v721 = vld [vmem:[%s3 + $0x14] sm:$0xf]
  %v722 = vld [vmem:[%s3 + $0x18] sm:$0xf]
  %v723 = vld [vmem:[%s3 + $0x1c] sm:$0xf]
  %v724 = vunpack.c.l.bf16 %v716
  %v725 = vunpack.c.l.bf16 %v717
  %v726 = vunpack.c.l.bf16 %v718
  %v727 = vunpack.c.l.bf16 %v719
  %v728 = vunpack.c.l.bf16 %v720
  %v729 = vunpack.c.l.bf16 %v721
  %v730 = vunpack.c.l.bf16 %v722
  %v731 = vunpack.c.l.bf16 %v723
  %v732 = vadd.f32 %v708, %v724
  %v733 = vadd.f32 %v709, %v725
  %v734 = vadd.f32 %v710, %v726
  %v735 = vadd.f32 %v711, %v727
  %v736 = vadd.f32 %v712, %v728
  %v737 = vadd.f32 %v713, %v729
  %v738 = vadd.f32 %v714, %v730
  %v739 = vadd.f32 %v715, %v731
  %v740 = vpack.c.bf16 %v732, %v732
  %v741 = vpack.c.bf16 %v733, %v733
  %v742 = vpack.c.bf16 %v734, %v734
  %v743 = vpack.c.bf16 %v735, %v735
  %v744 = vpack.c.bf16 %v736, %v736
  %v745 = vpack.c.bf16 %v737, %v737
  %v746 = vpack.c.bf16 %v738, %v738
  %v747 = vpack.c.bf16 %v739, %v739
  %748 = vst [vmem:[%s4] sm:$0xf] %v740
  %749 = vst [vmem:[%s4 + $0x4] sm:$0xf] %v741
  %750 = vst [vmem:[%s4 + $0x8] sm:$0xf] %v742
  %751 = vst [vmem:[%s4 + $0xc] sm:$0xf] %v743
  %752 = vst [vmem:[%s4 + $0x10] sm:$0xf] %v744
  %753 = vst [vmem:[%s4 + $0x14] sm:$0xf] %v745
  %754 = vst [vmem:[%s4 + $0x18] sm:$0xf] %v746
  %755 = vst [vmem:[%s4 + $0x1c] sm:$0xf] %v747
  // Predicated region
  $region18: #{_lambda_.40} parent=0 // pred_check
    _
  $region19: #{_lambda_.40} parent=0 // pred_check_branch
    %757 = sbr.rel (0) target = $region21
  $region20: #{_lambda_.40} parent=0 // pred_region
    _
  $region21: #{_lambda_.40} parent=0 // pred_fallthru
    _
  // Predicated region
  $region22: #{_lambda_.40} parent=0 // pred_check
    _
  $region23: #{_lambda_.40} parent=0 // pred_check_branch
    %759 = sbr.rel (0) target = $region25
  $region24: #{_lambda_.40} parent=0 // pred_region
    _
  $region25: #{_lambda_.40} parent=0 // pred_fallthru
    _

// kernel: _lambda_.44
$region0: #{_lambda_.44}
  #allocation0 [shape = 'u32[]', space=smem, size = 0x4, offset = 0x4, fixed_abs, tag = 'smem constant byte address 0x4 - core index']
  #allocation1 [shape = 'u32[72,128]{1,0:T(1,128)}', space=vmem, size = 0x9000, scoped, tag = 'internal scratch']
  %s0 = inlined_call_operand.vmem [shape: bf16[576,128], index: 0, kind: input, shape index: {}]
  %s1 = inlined_call_operand.vmem [shape: bf16[32,576], index: 1, kind: input, shape index: {}]
  %s2 = inlined_call_operand.vmem [shape: f32[32,1], index: 2, kind: input, shape index: {}]
  %s3 = inlined_call_operand.vmem [shape: bf16[32,128], index: 3, kind: output, shape index: {}]
  %s4 = sld [smem:[#allocation0]]
  $region22: #{_lambda_.44} parent=0
    _
  %s6 = ssub.s32 1, %s4
  %s7 = scalar_select 0, %s6, %s4
  // Predicated region
  $region2: #{_lambda_.44} parent=0 // pred_check
    _
  $region3: #{_lambda_.44} parent=0 // pred_check_branch
    %9 = sbr.rel (0) target = $region5
  $region4: #{_lambda_.44} parent=0 // pred_region
    _
  $region5: #{_lambda_.44} parent=0 // pred_fallthru
    _
  // Predicated region
  $region6: #{_lambda_.44} parent=0 // pred_check
    _
  $region7: #{_lambda_.44} parent=0 // pred_check_branch
    %11 = sbr.rel (0) target = $region9
  $region8: #{_lambda_.44} parent=0 // pred_region
    _
  $region9: #{_lambda_.44} parent=0 // pred_fallthru
    _
  // Predicated region
  $region10: #{_lambda_.44} parent=0 // pred_check
    _
  $region11: #{_lambda_.44} parent=0 // pred_check_branch
    %13 = sbr.rel (0) target = $region13
  $region12: #{_lambda_.44} parent=0 // pred_region
    _
  $region13: #{_lambda_.44} parent=0 // pred_fallthru
    _
  %v15 = vld [vmem:[%s1] sm:$0xff]
  %v16 = vld [vmem:[%s1 + $0x8] sm:$0xff]
  %v17 = vld [vmem:[%s1 + $0x10] sm:$0xf]
  %v18 = vld [vmem:[%s1 + $0x14] sm:$0xff]
  %v19 = vld [vmem:[%s1 + $0x1c] sm:$0xff]
  %v20 = vld [vmem:[%s1 + $0x24] sm:$0xf]
  %v21 = vld [vmem:[%s1 + $0x28] sm:$0xff]
  %v22 = vld [vmem:[%s1 + $0x30] sm:$0xff]
  %v23 = vld [vmem:[%s1 + $0x38] sm:$0xf]
  %v24 = vld [vmem:[%s1 + $0x3c] sm:$0xff]
  %v25 = vld [vmem:[%s1 + $0x44] sm:$0xff]
  %v26 = vld [vmem:[%s1 + $0x4c] sm:$0xf]
  %v27 = vld [vmem:[%s0] sm:$0xf]
  %v28 = vld [vmem:[%s0 + $0x4] sm:$0xf]
  %v29 = vld [vmem:[%s0 + $0x8] sm:$0xf]
  %v30 = vld [vmem:[%s0 + $0xc] sm:$0xf]
  %v31 = vld [vmem:[%s0 + $0x10] sm:$0xf]
  %v32 = vld [vmem:[%s0 + $0x14] sm:$0xf]
  %v33 = vld [vmem:[%s0 + $0x18] sm:$0xf]
  %v34 = vld [vmem:[%s0 + $0x1c] sm:$0xf]
  %v35 = vld [vmem:[%s0 + $0x20] sm:$0xf]
  %v36 = vld [vmem:[%s0 + $0x24] sm:$0xf]
  %v37 = vld [vmem:[%s0 + $0x28] sm:$0xf]
  %v38 = vld [vmem:[%s0 + $0x2c] sm:$0xf]
  %v39 = vld [vmem:[%s0 + $0x30] sm:$0xf]
  %v40 = vld [vmem:[%s0 + $0x34] sm:$0xf]
  %v41 = vld [vmem:[%s0 + $0x38] sm:$0xf]
  %v42 = vld [vmem:[%s0 + $0x3c] sm:$0xf]
  %v43 = vld [vmem:[%s0 + $0x40] sm:$0xf]
  %v44 = vld [vmem:[%s0 + $0x44] sm:$0xf]
  %v45 = vld [vmem:[%s0 + $0x48] sm:$0xf]
  %v46 = vld [vmem:[%s0 + $0x4c] sm:$0xf]
  %v47 = vld [vmem:[%s0 + $0x50] sm:$0xf]
  %v48 = vld [vmem:[%s0 + $0x54] sm:$0xf]
  %v49 = vld [vmem:[%s0 + $0x58] sm:$0xf]
  %v50 = vld [vmem:[%s0 + $0x5c] sm:$0xf]
  %v51 = vld [vmem:[%s0 + $0x60] sm:$0xf]
  %v52 = vld [vmem:[%s0 + $0x64] sm:$0xf]
  %v53 = vld [vmem:[%s0 + $0x68] sm:$0xf]
  %v54 = vld [vmem:[%s0 + $0x6c] sm:$0xf]
  %v55 = vld [vmem:[%s0 + $0x70] sm:$0xf]
  %v56 = vld [vmem:[%s0 + $0x74] sm:$0xf]
  %v57 = vld [vmem:[%s0 + $0x78] sm:$0xf]
  %v58 = vld [vmem:[%s0 + $0x7c] sm:$0xf]
  %v59 = vld [vmem:[%s0 + $0x80] sm:$0xf]
  %v60 = vld [vmem:[%s0 + $0x84] sm:$0xf]
  %v61 = vld [vmem:[%s0 + $0x88] sm:$0xf]
  %v62 = vld [vmem:[%s0 + $0x8c] sm:$0xf]
  %v63 = vld [vmem:[%s0 + $0x90] sm:$0xf]
  %v64 = vld [vmem:[%s0 + $0x94] sm:$0xf]
  %v65 = vld [vmem:[%s0 + $0x98] sm:$0xf]
  %v66 = vld [vmem:[%s0 + $0x9c] sm:$0xf]
  %v67 = vld [vmem:[%s0 + $0xa0] sm:$0xf]
  %v68 = vld [vmem:[%s0 + $0xa4] sm:$0xf]
  %v69 = vld [vmem:[%s0 + $0xa8] sm:$0xf]
  %v70 = vld [vmem:[%s0 + $0xac] sm:$0xf]
  %v71 = vld [vmem:[%s0 + $0xb0] sm:$0xf]
  %v72 = vld [vmem:[%s0 + $0xb4] sm:$0xf]
  %v73 = vld [vmem:[%s0 + $0xb8] sm:$0xf]
  %v74 = vld [vmem:[%s0 + $0xbc] sm:$0xf]
  %v75 = vld [vmem:[%s0 + $0xc0] sm:$0xf]
  %v76 = vld [vmem:[%s0 + $0xc4] sm:$0xf]
  %v77 = vld [vmem:[%s0 + $0xc8] sm:$0xf]
  %v78 = vld [vmem:[%s0 + $0xcc] sm:$0xf]
  %v79 = vld [vmem:[%s0 + $0xd0] sm:$0xf]
  %v80 = vld [vmem:[%s0 + $0xd4] sm:$0xf]
  %v81 = vld [vmem:[%s0 + $0xd8] sm:$0xf]
  %v82 = vld [vmem:[%s0 + $0xdc] sm:$0xf]
  %v83 = vld [vmem:[%s0 + $0xe0] sm:$0xf]
  %v84 = vld [vmem:[%s0 + $0xe4] sm:$0xf]
  %v85 = vld [vmem:[%s0 + $0xe8] sm:$0xf]
  %v86 = vld [vmem:[%s0 + $0xec] sm:$0xf]
  %v87 = vld [vmem:[%s0 + $0xf0] sm:$0xf]
  %v88 = vld [vmem:[%s0 + $0xf4] sm:$0xf]
  %v89 = vld [vmem:[%s0 + $0xf8] sm:$0xf]
  %v90 = vld [vmem:[%s0 + $0xfc] sm:$0xf]
  %v91 = vld [vmem:[%s0 + $0x100] sm:$0xf]
  %v92 = vld [vmem:[%s0 + $0x104] sm:$0xf]
  %v93 = vld [vmem:[%s0 + $0x108] sm:$0xf]
  %v94 = vld [vmem:[%s0 + $0x10c] sm:$0xf]
  %v95 = vld [vmem:[%s0 + $0x110] sm:$0xf]
  %v96 = vld [vmem:[%s0 + $0x114] sm:$0xf]
  %v97 = vld [vmem:[%s0 + $0x118] sm:$0xf]
  %v98 = vld [vmem:[%s0 + $0x11c] sm:$0xf]
  %v99 = vld [vmem:[%s2] sm:$0xff]
  %v100 = vld [vmem:[%s2 + $0x8] sm:$0xff]
  %v101 = vld [vmem:[%s2 + $0x10] sm:$0xff]
  %v102 = vld [vmem:[%s2 + $0x18] sm:$0xff]
  %104 = vset.pattern.permute.xlu0 0
  %105 = vperm.xlu0 %104, %v99
  %v106 = vpop.permute.xlu0 %105
  %109 = vset.pattern.permute.xlu0 0
  %110 = vperm.xlu0 %109, %v100
  %v111 = vpop.permute.xlu0 %110
  %114 = vset.pattern.permute.xlu0 0
  %115 = vperm.xlu0 %114, %v101
  %v116 = vpop.permute.xlu0 %115
  %119 = vset.pattern.permute.xlu0 0
  %120 = vperm.xlu0 %119, %v102
  %v121 = vpop.permute.xlu0 %120
  %v135 = vunpack.c.l.b16 %v15
  %v136 = vunpack.c.h.b16 %v15
  %v137 = vunpack.c.l.b16 %v16
  %v138 = vunpack.c.h.b16 %v16
  %v139 = vunpack.c.l.b16 %v17
  %v140 = vunpack.c.l.b16 %v18
  %v141 = vunpack.c.h.b16 %v18
  %v142 = vunpack.c.l.b16 %v19
  %v143 = vunpack.c.h.b16 %v19
  %v144 = vunpack.c.l.b16 %v20
  %v145 = vunpack.c.l.b16 %v21
  %v146 = vunpack.c.h.b16 %v21
  %v147 = vunpack.c.l.b16 %v22
  %v148 = vunpack.c.h.b16 %v22
  %v149 = vunpack.c.l.b16 %v23
  %v150 = vunpack.c.l.b16 %v24
  %v151 = vunpack.c.h.b16 %v24
  %v152 = vunpack.c.l.b16 %v25
  %v153 = vunpack.c.h.b16 %v25
  %v154 = vunpack.c.l.b16 %v26
  %v155 = vpack.c.b16 %v140, %v135
  %v156 = vpack.c.b16 %v141, %v136
  %v157 = vpack.c.b16 %v142, %v137
  %v158 = vpack.c.b16 %v143, %v138
  %v159 = vpack.c.b16 %v144, %v139
  %v160 = vpack.c.b16 %v150, %v145
  %v161 = vpack.c.b16 %v151, %v146
  %v162 = vpack.c.b16 %v152, %v147
  %v163 = vpack.c.b16 %v153, %v148
  %v164 = vpack.c.b16 %v154, %v149
  %v245 = vunpack.c.l.b16 %v27
  %v246 = vunpack.c.l.b16 %v28
  %v247 = vunpack.c.l.b16 %v29
  %v248 = vunpack.c.l.b16 %v30
  %v249 = vunpack.c.l.b16 %v31
  %v250 = vunpack.c.l.b16 %v32
  %v251 = vunpack.c.l.b16 %v33
  %v252 = vunpack.c.l.b16 %v34
  %v253 = vunpack.c.l.b16 %v35
  %v254 = vunpack.c.l.b16 %v36
  %v255 = vunpack.c.l.b16 %v37
  %v256 = vunpack.c.l.b16 %v38
  %v257 = vunpack.c.l.b16 %v39
  %v258 = vunpack.c.l.b16 %v40
  %v259 = vunpack.c.l.b16 %v41
  %v260 = vunpack.c.l.b16 %v42
  %v261 = vunpack.c.l.b16 %v43
  %v262 = vunpack.c.l.b16 %v44
  %v263 = vunpack.c.l.b16 %v45
  %v264 = vunpack.c.l.b16 %v46
  %v265 = vunpack.c.l.b16 %v47
  %v266 = vunpack.c.l.b16 %v48
  %v267 = vunpack.c.l.b16 %v49
  %v268 = vunpack.c.l.b16 %v50
  %v269 = vunpack.c.l.b16 %v51
  %v270 = vunpack.c.l.b16 %v52
  %v271 = vunpack.c.l.b16 %v53
  %v272 = vunpack.c.l.b16 %v54
  %v273 = vunpack.c.l.b16 %v55
  %v274 = vunpack.c.l.b16 %v56
  %v275 = vunpack.c.l.b16 %v57
  %v276 = vunpack.c.l.b16 %v58
  %v277 = vunpack.c.l.b16 %v59
  %v278 = vunpack.c.l.b16 %v60
  %v279 = vunpack.c.l.b16 %v61
  %v280 = vunpack.c.l.b16 %v62
  %v281 = vunpack.c.l.b16 %v63
  %v282 = vunpack.c.l.b16 %v64
  %v283 = vunpack.c.l.b16 %v65
  %v284 = vunpack.c.l.b16 %v66
  %v285 = vunpack.c.l.b16 %v67
  %v286 = vunpack.c.l.b16 %v68
  %v287 = vunpack.c.l.b16 %v69
  %v288 = vunpack.c.l.b16 %v70
  %v289 = vunpack.c.l.b16 %v71
  %v290 = vunpack.c.l.b16 %v72
  %v291 = vunpack.c.l.b16 %v73
  %v292 = vunpack.c.l.b16 %v74
  %v293 = vunpack.c.l.b16 %v75
  %v294 = vunpack.c.l.b16 %v76
  %v295 = vunpack.c.l.b16 %v77
  %v296 = vunpack.c.l.b16 %v78
  %v297 = vunpack.c.l.b16 %v79
  %v298 = vunpack.c.l.b16 %v80
  %v299 = vunpack.c.l.b16 %v81
  %v300 = vunpack.c.l.b16 %v82
  %v301 = vunpack.c.l.b16 %v83
  %v302 = vunpack.c.l.b16 %v84
  %v303 = vunpack.c.l.b16 %v85
  %v304 = vunpack.c.l.b16 %v86
  %v305 = vunpack.c.l.b16 %v87
  %v306 = vunpack.c.l.b16 %v88
  %v307 = vunpack.c.l.b16 %v89
  %v308 = vunpack.c.l.b16 %v90
  %v309 = vunpack.c.l.b16 %v91
  %v310 = vunpack.c.l.b16 %v92
  %v311 = vunpack.c.l.b16 %v93
  %v312 = vunpack.c.l.b16 %v94
  %v313 = vunpack.c.l.b16 %v95
  %v314 = vunpack.c.l.b16 %v96
  %v315 = vunpack.c.l.b16 %v97
  %v316 = vunpack.c.l.b16 %v98
  %v317 = vpack.c.b16 %v246, %v245
  %v318 = vpack.c.b16 %v248, %v247
  %v319 = vpack.c.b16 %v250, %v249
  %v320 = vpack.c.b16 %v252, %v251
  %v321 = vpack.c.b16 %v254, %v253
  %v322 = vpack.c.b16 %v256, %v255
  %v323 = vpack.c.b16 %v258, %v257
  %v324 = vpack.c.b16 %v260, %v259
  %v325 = vpack.c.b16 %v262, %v261
  %v326 = vpack.c.b16 %v264, %v263
  %v327 = vpack.c.b16 %v266, %v265
  %v328 = vpack.c.b16 %v268, %v267
  %v329 = vpack.c.b16 %v270, %v269
  %v330 = vpack.c.b16 %v272, %v271
  %v331 = vpack.c.b16 %v274, %v273
  %v332 = vpack.c.b16 %v276, %v275
  %v333 = vpack.c.b16 %v278, %v277
  %v334 = vpack.c.b16 %v280, %v279
  %v335 = vpack.c.b16 %v282, %v281
  %v336 = vpack.c.b16 %v284, %v283
  %v337 = vpack.c.b16 %v286, %v285
  %v338 = vpack.c.b16 %v288, %v287
  %v339 = vpack.c.b16 %v290, %v289
  %v340 = vpack.c.b16 %v292, %v291
  %v341 = vpack.c.b16 %v294, %v293
  %v342 = vpack.c.b16 %v296, %v295
  %v343 = vpack.c.b16 %v298, %v297
  %v344 = vpack.c.b16 %v300, %v299
  %v345 = vpack.c.b16 %v302, %v301
  %v346 = vpack.c.b16 %v304, %v303
  %v347 = vpack.c.b16 %v306, %v305
  %v348 = vpack.c.b16 %v308, %v307
  %v349 = vpack.c.b16 %v310, %v309
  %v350 = vpack.c.b16 %v312, %v311
  %v351 = vpack.c.b16 %v314, %v313
  %v352 = vpack.c.b16 %v316, %v315
  %vm389 = vcmask 523264
  %v391 = vsel %vm389, %v159, 0
  %v394 = vsel %vm389, %v164, 0
  %396 = vmatpush.bf16.msra.mxu0 %v324
  %397 = vmatpush.bf16.msra.mxu0 %v323
  %398 = vmatpush.bf16.msra.mxu0 %v322
  %399 = vmatpush.bf16.msra.mxu0 %v321
  %400 = vmatpush.bf16.msra.mxu0 %v320
  %401 = vmatpush.bf16.msra.mxu0 %v319
  %402 = vmatpush.bf16.msra.mxu0 %v318
  %403 = vmatpush.bf16.msra.mxu0 %v317
  %404 = vmatmul.bf16.gmra.mxu0 %v155
  %v405 = vpop.f32.mrf.mxu0
  %v406 = vadd.f32 %v106, %v405
  %v407 = vpop.f32.mrf.mxu0
  %v408 = vadd.f32 %v111, %v407
  %409 = vmatmul.bf16.gmra.mxu0 %v160
  %v410 = vpop.f32.mrf.mxu0
  %v411 = vadd.f32 %v116, %v410
  %v412 = vpop.f32.mrf.mxu0
  %v413 = vadd.f32 %v121, %v412
  %414 = vdwg.mxu0
  %415 = vmatpush.bf16.msra.mxu0 %v332
  %416 = vmatpush.bf16.msra.mxu0 %v331
  %417 = vmatpush.bf16.msra.mxu0 %v330
  %418 = vmatpush.bf16.msra.mxu0 %v329
  %419 = vmatpush.bf16.msra.mxu0 %v328
  %420 = vmatpush.bf16.msra.mxu0 %v327
  %421 = vmatpush.bf16.msra.mxu0 %v326
  %422 = vmatpush.bf16.msra.mxu0 %v325
  %423 = vmatmul.bf16.gmra.mxu0 %v156
  %v424 = vpop.f32.mrf.mxu0
  %v425 = vadd.f32 %v406, %v424
  %v426 = vpop.f32.mrf.mxu0
  %v427 = vadd.f32 %v408, %v426
  %428 = vmatmul.bf16.gmra.mxu0 %v161
  %v429 = vpop.f32.mrf.mxu0
  %v430 = vadd.f32 %v411, %v429
  %v431 = vpop.f32.mrf.mxu0
  %v432 = vadd.f32 %v413, %v431
  %433 = vdwg.mxu0
  %434 = vmatpush.bf16.msra.mxu0 %v340
  %435 = vmatpush.bf16.msra.mxu0 %v339
  %436 = vmatpush.bf16.msra.mxu0 %v338
  %437 = vmatpush.bf16.msra.mxu0 %v337
  %438 = vmatpush.bf16.msra.mxu0 %v336
  %439 = vmatpush.bf16.msra.mxu0 %v335
  %440 = vmatpush.bf16.msra.mxu0 %v334
  %441 = vmatpush.bf16.msra.mxu0 %v333
  %442 = vmatmul.bf16.gmra.mxu0 %v157
  %v443 = vpop.f32.mrf.mxu0
  %v444 = vadd.f32 %v425, %v443
  %v445 = vpop.f32.mrf.mxu0
  %v446 = vadd.f32 %v427, %v445
  %447 = vmatmul.bf16.gmra.mxu0 %v162
  %v448 = vpop.f32.mrf.mxu0
  %v449 = vadd.f32 %v430, %v448
  %v450 = vpop.f32.mrf.mxu0
  %v451 = vadd.f32 %v432, %v450
  %452 = vdwg.mxu0
  %453 = vmatpush.bf16.msra.mxu0 %v348
  %454 = vmatpush.bf16.msra.mxu0 %v347
  %455 = vmatpush.bf16.msra.mxu0 %v346
  %456 = vmatpush.bf16.msra.mxu0 %v345
  %457 = vmatpush.bf16.msra.mxu0 %v344
  %458 = vmatpush.bf16.msra.mxu0 %v343
  %459 = vmatpush.bf16.msra.mxu0 %v342
  %460 = vmatpush.bf16.msra.mxu0 %v341
  %461 = vmatmul.bf16.gmra.mxu0 %v158
  %v462 = vpop.f32.mrf.mxu0
  %v463 = vadd.f32 %v444, %v462
  %v464 = vpop.f32.mrf.mxu0
  %v465 = vadd.f32 %v446, %v464
  %466 = vmatmul.bf16.gmra.mxu0 %v163
  %v467 = vpop.f32.mrf.mxu0
  %v468 = vadd.f32 %v449, %v467
  %v469 = vpop.f32.mrf.mxu0
  %v470 = vadd.f32 %v451, %v469
  %471 = vdwg.mxu0
  %472 = vmatpush.bf16.msra.mxu0 0
  %473 = vmatpush.bf16.msra.mxu0 0
  %474 = vmatpush.bf16.msra.mxu0 0
  %475 = vmatpush.bf16.msra.mxu0 0
  %476 = vmatpush.bf16.msra.mxu0 %v352
  %477 = vmatpush.bf16.msra.mxu0 %v351
  %478 = vmatpush.bf16.msra.mxu0 %v350
  %479 = vmatpush.bf16.msra.mxu0 %v349
  %480 = vmatmul.bf16.gmra.mxu0 %v391
  %v481 = vpop.f32.mrf.mxu0
  %v482 = vadd.f32 %v463, %v481
  %v483 = vpop.f32.mrf.mxu0
  %v484 = vadd.f32 %v465, %v483
  %485 = vmatmul.bf16.gmra.mxu0 %v394
  %v486 = vpop.f32.mrf.mxu0
  %v487 = vadd.f32 %v468, %v486
  %v488 = vpop.f32.mrf.mxu0
  %v489 = vadd.f32 %v470, %v488
  %490 = vdwg.mxu0
  %v491 = vand.u32 2147483647, %v482
  %v492 = vand.u32 2147483647, %v484
  %v493 = vand.u32 2147483647, %v487
  %v494 = vand.u32 2147483647, %v489
  %v495 = vsub.f32 0.0, %v491
  %v496 = vsub.f32 0.0, %v492
  %v497 = vsub.f32 0.0, %v493
  %v498 = vsub.f32 0.0, %v494
  %v499 = vmul.f32 %v495, 1.442695
  %v500 = vpow.pop %v499
  %v501 = vmul.f32 %v496, 1.442695
  %v502 = vpow.pop %v501
  %v503 = vmul.f32 %v497, 1.442695
  %v504 = vpow.pop %v503
  %v505 = vmul.f32 %v498, 1.442695
  %v506 = vpow.pop %v505
  %vm507 = vcmp.ge.f32.partialorder %v482, 0.0
  %vm508 = vcmp.ge.f32.partialorder %v484, 0.0
  %vm509 = vcmp.ge.f32.partialorder %v487, 0.0
  %vm510 = vcmp.ge.f32.partialorder %v489, 0.0
  %v511 = vsel %vm507, 1.0, %v500
  %v512 = vsel %vm508, 1.0, %v502
  %v513 = vsel %vm509, 1.0, %v504
  %v514 = vsel %vm510, 1.0, %v506
  %v515 = vadd.f32 %v500, 1.0
  %v516 = vadd.f32 %v502, 1.0
  %v517 = vadd.f32 %v504, 1.0
  %v518 = vadd.f32 %v506, 1.0
  %v519 = vrcp.pop %v515
  %v520 = vrcp.pop %v516
  %v521 = vrcp.pop %v517
  %v522 = vrcp.pop %v518
  %v523 = vmul.f32 %v511, %v519
  %v524 = vmul.f32 %v512, %v520
  %v525 = vmul.f32 %v513, %v521
  %v526 = vmul.f32 %v514, %v522
  %v527 = vmul.f32 %v482, %v523
  %v528 = vmul.f32 %v484, %v524
  %v529 = vmul.f32 %v487, %v525
  %v530 = vmul.f32 %v489, %v526
  %v531 = vpack.c.bf16 %v527, %v527
  %v532 = vpack.c.bf16 %v528, %v528
  %v533 = vpack.c.bf16 %v529, %v529
  %v534 = vpack.c.bf16 %v530, %v530
  %535 = vst [vmem:[%s3] sm:$0xf] %v531
  %536 = vst [vmem:[%s3 + $0x4] sm:$0xf] %v532
  %537 = vst [vmem:[%s3 + $0x8] sm:$0xf] %v533
  %538 = vst [vmem:[%s3 + $0xc] sm:$0xf] %v534
  // Predicated region
  $region14: #{_lambda_.44} parent=0 // pred_check
    _
  $region15: #{_lambda_.44} parent=0 // pred_check_branch
    %540 = sbr.rel (0) target = $region17
  $region16: #{_lambda_.44} parent=0 // pred_region
    _
  $region17: #{_lambda_.44} parent=0 // pred_fallthru
    _
  // Predicated region
  $region18: #{_lambda_.44} parent=0 // pred_check
    _
  $region19: #{_lambda_.44} parent=0 // pred_check_branch
    %542 = sbr.rel (0) target = $region21
  $region20: #{_lambda_.44} parent=0 // pred_region
    _
  $region21: #{_lambda_.44} parent=0 // pred_fallthru
    _

// kernel: _lambda_.41
$region0: #{_lambda_.41}
  #allocation0 [shape = 'u32[]', space=smem, size = 0x4, offset = 0x4, fixed_abs, tag = 'smem constant byte address 0x4 - core index']
  #allocation1 [shape = 'u32[72,128]{1,0:T(1,128)}', space=vmem, size = 0x9000, scoped, tag = 'internal scratch']
  %s0 = inlined_call_operand.vmem [shape: bf16[16,128], index: 0, kind: input, shape index: {}]
  %s1 = inlined_call_operand.vmem [shape: bf16[32,16], index: 1, kind: input, shape index: {}]
  %s2 = inlined_call_operand.vmem [shape: f32[32,1], index: 2, kind: input, shape index: {}]
  %s3 = inlined_call_operand.vmem [shape: bf16[32,128], index: 3, kind: output, shape index: {}]
  %s4 = sld [smem:[#allocation0]]
  $region22: #{_lambda_.41} parent=0
    _
  %s6 = ssub.s32 1, %s4
  %s7 = scalar_select 0, %s6, %s4
  // Predicated region
  $region2: #{_lambda_.41} parent=0 // pred_check
    _
  $region3: #{_lambda_.41} parent=0 // pred_check_branch
    %9 = sbr.rel (0) target = $region5
  $region4: #{_lambda_.41} parent=0 // pred_region
    _
  $region5: #{_lambda_.41} parent=0 // pred_fallthru
    _
  // Predicated region
  $region6: #{_lambda_.41} parent=0 // pred_check
    _
  $region7: #{_lambda_.41} parent=0 // pred_check_branch
    %11 = sbr.rel (0) target = $region9
  $region8: #{_lambda_.41} parent=0 // pred_region
    _
  $region9: #{_lambda_.41} parent=0 // pred_fallthru
    _
  // Predicated region
  $region10: #{_lambda_.41} parent=0 // pred_check
    _
  $region11: #{_lambda_.41} parent=0 // pred_check_branch
    %13 = sbr.rel (0) target = $region13
  $region12: #{_lambda_.41} parent=0 // pred_region
    _
  $region13: #{_lambda_.41} parent=0 // pred_fallthru
    _
  %v15 = vld [vmem:[%s1] sm:$0xf]
  %v16 = vld [vmem:[%s1 + $0x4] sm:$0xf]
  %v17 = vld [vmem:[%s1 + $0x8] sm:$0xf]
  %v18 = vld [vmem:[%s1 + $0xc] sm:$0xf]
  %v19 = vld [vmem:[%s0] sm:$0xf]
  %v20 = vld [vmem:[%s0 + $0x4] sm:$0xf]
  %v21 = vld [vmem:[%s2] sm:$0xff]
  %v22 = vld [vmem:[%s2 + $0x8] sm:$0xff]
  %v23 = vld [vmem:[%s2 + $0x10] sm:$0xff]
  %v24 = vld [vmem:[%s2 + $0x18] sm:$0xff]
  %26 = vset.pattern.permute.xlu0 0
  %27 = vperm.xlu0 %26, %v21
  %v28 = vpop.permute.xlu0 %27
  %31 = vset.pattern.permute.xlu0 0
  %32 = vperm.xlu0 %31, %v22
  %v33 = vpop.permute.xlu0 %32
  %36 = vset.pattern.permute.xlu0 0
  %37 = vperm.xlu0 %36, %v23
  %v38 = vpop.permute.xlu0 %37
  %41 = vset.pattern.permute.xlu0 0
  %42 = vperm.xlu0 %41, %v24
  %v43 = vpop.permute.xlu0 %42
  %v49 = vunpack.c.l.b16 %v15
  %v50 = vunpack.c.l.b16 %v16
  %v51 = vunpack.c.l.b16 %v17
  %v52 = vunpack.c.l.b16 %v18
  %v53 = vpack.c.b16 %v50, %v49
  %v54 = vpack.c.b16 %v52, %v51
  %v57 = vunpack.c.l.b16 %v19
  %v58 = vunpack.c.l.b16 %v20
  %v59 = vpack.c.b16 %v58, %v57
  %vm61 = vcmask 130048
  %v63 = vsel %vm61, %v53, 0
  %v66 = vsel %vm61, %v54, 0
  %68 = vmatpush.bf16.msra.mxu0 0
  %69 = vmatpush.bf16.msra.mxu0 0
  %70 = vmatpush.bf16.msra.mxu0 0
  %71 = vmatpush.bf16.msra.mxu0 0
  %72 = vmatpush.bf16.msra.mxu0 0
  %73 = vmatpush.bf16.msra.mxu0 0
  %74 = vmatpush.bf16.msra.mxu0 0
  %75 = vmatpush.bf16.msra.mxu0 %v59
  %76 = vmatmul.bf16.gmra.mxu0 %v63
  %v77 = vpop.f32.mrf.mxu0
  %v78 = vadd.f32 %v28, %v77
  %v79 = vpop.f32.mrf.mxu0
  %v80 = vadd.f32 %v33, %v79
  %81 = vmatmul.bf16.gmra.mxu0 %v66
  %v82 = vpop.f32.mrf.mxu0
  %v83 = vadd.f32 %v38, %v82
  %v84 = vpop.f32.mrf.mxu0
  %v85 = vadd.f32 %v43, %v84
  %86 = vdwg.mxu0
  %v87 = vand.u32 2147483647, %v78
  %v88 = vand.u32 2147483647, %v80
  %v89 = vand.u32 2147483647, %v83
  %v90 = vand.u32 2147483647, %v85
  %v91 = vsub.f32 0.0, %v87
  %v92 = vsub.f32 0.0, %v88
  %v93 = vsub.f32 0.0, %v89
  %v94 = vsub.f32 0.0, %v90
  %v95 = vmul.f32 %v91, 1.442695
  %v96 = vpow.pop %v95
  %v97 = vmul.f32 %v92, 1.442695
  %v98 = vpow.pop %v97
  %v99 = vmul.f32 %v93, 1.442695
  %v100 = vpow.pop %v99
  %v101 = vmul.f32 %v94, 1.442695
  %v102 = vpow.pop %v101
  %vm103 = vcmp.ge.f32.partialorder %v78, 0.0
  %vm104 = vcmp.ge.f32.partialorder %v80, 0.0
  %vm105 = vcmp.ge.f32.partialorder %v83, 0.0
  %vm106 = vcmp.ge.f32.partialorder %v85, 0.0
  %v107 = vsel %vm103, 1.0, %v96
  %v108 = vsel %vm104, 1.0, %v98
  %v109 = vsel %vm105, 1.0, %v100
  %v110 = vsel %vm106, 1.0, %v102
  %v111 = vadd.f32 %v96, 1.0
  %v112 = vadd.f32 %v98, 1.0
  %v113 = vadd.f32 %v100, 1.0
  %v114 = vadd.f32 %v102, 1.0
  %v115 = vrcp.pop %v111
  %v116 = vrcp.pop %v112
  %v117 = vrcp.pop %v113
  %v118 = vrcp.pop %v114
  %v119 = vmul.f32 %v107, %v115
  %v120 = vmul.f32 %v108, %v116
  %v121 = vmul.f32 %v109, %v117
  %v122 = vmul.f32 %v110, %v118
  %v123 = vmul.f32 %v78, %v119
  %v124 = vmul.f32 %v80, %v120
  %v125 = vmul.f32 %v83, %v121
  %v126 = vmul.f32 %v85, %v122
  %v127 = vpack.c.bf16 %v123, %v123
  %v128 = vpack.c.bf16 %v124, %v124
  %v129 = vpack.c.bf16 %v125, %v125
  %v130 = vpack.c.bf16 %v126, %v126
  %131 = vst [vmem:[%s3] sm:$0xf] %v127
  %132 = vst [vmem:[%s3 + $0x4] sm:$0xf] %v128
  %133 = vst [vmem:[%s3 + $0x8] sm:$0xf] %v129
  %134 = vst [vmem:[%s3 + $0xc] sm:$0xf] %v130
  // Predicated region
  $region14: #{_lambda_.41} parent=0 // pred_check
    _
  $region15: #{_lambda_.41} parent=0 // pred_check_branch
    %136 = sbr.rel (0) target = $region17
  $region16: #{_lambda_.41} parent=0 // pred_region
    _
  $region17: #{_lambda_.41} parent=0 // pred_fallthru
    _
  // Predicated region
  $region18: #{_lambda_.41} parent=0 // pred_check
    _
  $region19: #{_lambda_.41} parent=0 // pred_check_branch
    %138 = sbr.rel (0) target = $region21
  $region20: #{_lambda_.41} parent=0 // pred_region
    _
  $region21: #{_lambda_.41} parent=0 // pred_fallthru
    _

// kernel: _lambda_.46
$region0: #{_lambda_.46}
  #allocation0 [shape = 'u32[]', space=smem, size = 0x4, offset = 0x4, fixed_abs, tag = 'smem constant byte address 0x4 - core index']
  #allocation1 [shape = 'u32[72,128]{1,0:T(1,128)}', space=vmem, size = 0x9000, scoped, tag = 'internal scratch']
  %s0 = inlined_call_operand.vmem [shape: bf16[288,128], index: 0, kind: input, shape index: {}]
  %s1 = inlined_call_operand.vmem [shape: bf16[32,288], index: 1, kind: input, shape index: {}]
  %s2 = inlined_call_operand.vmem [shape: f32[32,1], index: 2, kind: input, shape index: {}]
  %s3 = inlined_call_operand.vmem [shape: bf16[32,128], index: 3, kind: output, shape index: {}]
  %s4 = sld [smem:[#allocation0]]
  $region22: #{_lambda_.46} parent=0
    _
  %s6 = ssub.s32 1, %s4
  %s7 = scalar_select 0, %s6, %s4
  // Predicated region
  $region2: #{_lambda_.46} parent=0 // pred_check
    _
  $region3: #{_lambda_.46} parent=0 // pred_check_branch
    %9 = sbr.rel (0) target = $region5
  $region4: #{_lambda_.46} parent=0 // pred_region
    _
  $region5: #{_lambda_.46} parent=0 // pred_fallthru
    _
  // Predicated region
  $region6: #{_lambda_.46} parent=0 // pred_check
    _
  $region7: #{_lambda_.46} parent=0 // pred_check_branch
    %11 = sbr.rel (0) target = $region9
  $region8: #{_lambda_.46} parent=0 // pred_region
    _
  $region9: #{_lambda_.46} parent=0 // pred_fallthru
    _
  // Predicated region
  $region10: #{_lambda_.46} parent=0 // pred_check
    _
  $region11: #{_lambda_.46} parent=0 // pred_check_branch
    %13 = sbr.rel (0) target = $region13
  $region12: #{_lambda_.46} parent=0 // pred_region
    _
  $region13: #{_lambda_.46} parent=0 // pred_fallthru
    _
  %v15 = vld [vmem:[%s1] sm:$0xff]
  %v16 = vld [vmem:[%s1 + $0x8] sm:$0xf]
  %v17 = vld [vmem:[%s1 + $0xc] sm:$0xff]
  %v18 = vld [vmem:[%s1 + $0x14] sm:$0xf]
  %v19 = vld [vmem:[%s1 + $0x18] sm:$0xff]
  %v20 = vld [vmem:[%s1 + $0x20] sm:$0xf]
  %v21 = vld [vmem:[%s1 + $0x24] sm:$0xff]
  %v22 = vld [vmem:[%s1 + $0x2c] sm:$0xf]
  %v23 = vld [vmem:[%s0] sm:$0xf]
  %v24 = vld [vmem:[%s0 + $0x4] sm:$0xf]
  %v25 = vld [vmem:[%s0 + $0x8] sm:$0xf]
  %v26 = vld [vmem:[%s0 + $0xc] sm:$0xf]
  %v27 = vld [vmem:[%s0 + $0x10] sm:$0xf]
  %v28 = vld [vmem:[%s0 + $0x14] sm:$0xf]
  %v29 = vld [vmem:[%s0 + $0x18] sm:$0xf]
  %v30 = vld [vmem:[%s0 + $0x1c] sm:$0xf]
  %v31 = vld [vmem:[%s0 + $0x20] sm:$0xf]
  %v32 = vld [vmem:[%s0 + $0x24] sm:$0xf]
  %v33 = vld [vmem:[%s0 + $0x28] sm:$0xf]
  %v34 = vld [vmem:[%s0 + $0x2c] sm:$0xf]
  %v35 = vld [vmem:[%s0 + $0x30] sm:$0xf]
  %v36 = vld [vmem:[%s0 + $0x34] sm:$0xf]
  %v37 = vld [vmem:[%s0 + $0x38] sm:$0xf]
  %v38 = vld [vmem:[%s0 + $0x3c] sm:$0xf]
  %v39 = vld [vmem:[%s0 + $0x40] sm:$0xf]
  %v40 = vld [vmem:[%s0 + $0x44] sm:$0xf]
  %v41 = vld [vmem:[%s0 + $0x48] sm:$0xf]
  %v42 = vld [vmem:[%s0 + $0x4c] sm:$0xf]
  %v43 = vld [vmem:[%s0 + $0x50] sm:$0xf]
  %v44 = vld [vmem:[%s0 + $0x54] sm:$0xf]
  %v45 = vld [vmem:[%s0 + $0x58] sm:$0xf]
  %v46 = vld [vmem:[%s0 + $0x5c] sm:$0xf]
  %v47 = vld [vmem:[%s0 + $0x60] sm:$0xf]
  %v48 = vld [vmem:[%s0 + $0x64] sm:$0xf]
  %v49 = vld [vmem:[%s0 + $0x68] sm:$0xf]
  %v50 = vld [vmem:[%s0 + $0x6c] sm:$0xf]
  %v51 = vld [vmem:[%s0 + $0x70] sm:$0xf]
  %v52 = vld [vmem:[%s0 + $0x74] sm:$0xf]
  %v53 = vld [vmem:[%s0 + $0x78] sm:$0xf]
  %v54 = vld [vmem:[%s0 + $0x7c] sm:$0xf]
  %v55 = vld [vmem:[%s0 + $0x80] sm:$0xf]
  %v56 = vld [vmem:[%s0 + $0x84] sm:$0xf]
  %v57 = vld [vmem:[%s0 + $0x88] sm:$0xf]
  %v58 = vld [vmem:[%s0 + $0x8c] sm:$0xf]
  %v59 = vld [vmem:[%s2] sm:$0xff]
  %v60 = vld [vmem:[%s2 + $0x8] sm:$0xff]
  %v61 = vld [vmem:[%s2 + $0x10] sm:$0xff]
  %v62 = vld [vmem:[%s2 + $0x18] sm:$0xff]
  %64 = vset.pattern.permute.xlu0 0
  %65 = vperm.xlu0 %64, %v59
  %v66 = vpop.permute.xlu0 %65
  %69 = vset.pattern.permute.xlu0 0
  %70 = vperm.xlu0 %69, %v60
  %v71 = vpop.permute.xlu0 %70
  %74 = vset.pattern.permute.xlu0 0
  %75 = vperm.xlu0 %74, %v61
  %v76 = vpop.permute.xlu0 %75
  %79 = vset.pattern.permute.xlu0 0
  %80 = vperm.xlu0 %79, %v62
  %v81 = vpop.permute.xlu0 %80
  %v91 = vunpack.c.l.b16 %v15
  %v92 = vunpack.c.h.b16 %v15
  %v93 = vunpack.c.l.b16 %v16
  %v94 = vunpack.c.l.b16 %v17
  %v95 = vunpack.c.h.b16 %v17
  %v96 = vunpack.c.l.b16 %v18
  %v97 = vunpack.c.l.b16 %v19
  %v98 = vunpack.c.h.b16 %v19
  %v99 = vunpack.c.l.b16 %v20
  %v100 = vunpack.c.l.b16 %v21
  %v101 = vunpack.c.h.b16 %v21
  %v102 = vunpack.c.l.b16 %v22
  %v103 = vpack.c.b16 %v94, %v91
  %v104 = vpack.c.b16 %v95, %v92
  %v105 = vpack.c.b16 %v96, %v93
  %v106 = vpack.c.b16 %v100, %v97
  %v107 = vpack.c.b16 %v101, %v98
  %v108 = vpack.c.b16 %v102, %v99
  %v149 = vunpack.c.l.b16 %v23
  %v150 = vunpack.c.l.b16 %v24
  %v151 = vunpack.c.l.b16 %v25
  %v152 = vunpack.c.l.b16 %v26
  %v153 = vunpack.c.l.b16 %v27
  %v154 = vunpack.c.l.b16 %v28
  %v155 = vunpack.c.l.b16 %v29
  %v156 = vunpack.c.l.b16 %v30
  %v157 = vunpack.c.l.b16 %v31
  %v158 = vunpack.c.l.b16 %v32
  %v159 = vunpack.c.l.b16 %v33
  %v160 = vunpack.c.l.b16 %v34
  %v161 = vunpack.c.l.b16 %v35
  %v162 = vunpack.c.l.b16 %v36
  %v163 = vunpack.c.l.b16 %v37
  %v164 = vunpack.c.l.b16 %v38
  %v165 = vunpack.c.l.b16 %v39
  %v166 = vunpack.c.l.b16 %v40
  %v167 = vunpack.c.l.b16 %v41
  %v168 = vunpack.c.l.b16 %v42
  %v169 = vunpack.c.l.b16 %v43
  %v170 = vunpack.c.l.b16 %v44
  %v171 = vunpack.c.l.b16 %v45
  %v172 = vunpack.c.l.b16 %v46
  %v173 = vunpack.c.l.b16 %v47
  %v174 = vunpack.c.l.b16 %v48
  %v175 = vunpack.c.l.b16 %v49
  %v176 = vunpack.c.l.b16 %v50
  %v177 = vunpack.c.l.b16 %v51
  %v178 = vunpack.c.l.b16 %v52
  %v179 = vunpack.c.l.b16 %v53
  %v180 = vunpack.c.l.b16 %v54
  %v181 = vunpack.c.l.b16 %v55
  %v182 = vunpack.c.l.b16 %v56
  %v183 = vunpack.c.l.b16 %v57
  %v184 = vunpack.c.l.b16 %v58
  %v185 = vpack.c.b16 %v150, %v149
  %v186 = vpack.c.b16 %v152, %v151
  %v187 = vpack.c.b16 %v154, %v153
  %v188 = vpack.c.b16 %v156, %v155
  %v189 = vpack.c.b16 %v158, %v157
  %v190 = vpack.c.b16 %v160, %v159
  %v191 = vpack.c.b16 %v162, %v161
  %v192 = vpack.c.b16 %v164, %v163
  %v193 = vpack.c.b16 %v166, %v165
  %v194 = vpack.c.b16 %v168, %v167
  %v195 = vpack.c.b16 %v170, %v169
  %v196 = vpack.c.b16 %v172, %v171
  %v197 = vpack.c.b16 %v174, %v173
  %v198 = vpack.c.b16 %v176, %v175
  %v199 = vpack.c.b16 %v178, %v177
  %v200 = vpack.c.b16 %v180, %v179
  %v201 = vpack.c.b16 %v182, %v181
  %v202 = vpack.c.b16 %v184, %v183
  %vm221 = vcmask 261120
  %v223 = vsel %vm221, %v105, 0
  %v226 = vsel %vm221, %v108, 0
  %228 = vmatpush.bf16.msra.mxu0 %v192
  %229 = vmatpush.bf16.msra.mxu0 %v191
  %230 = vmatpush.bf16.msra.mxu0 %v190
  %231 = vmatpush.bf16.msra.mxu0 %v189
  %232 = vmatpush.bf16.msra.mxu0 %v188
  %233 = vmatpush.bf16.msra.mxu0 %v187
  %234 = vmatpush.bf16.msra.mxu0 %v186
  %235 = vmatpush.bf16.msra.mxu0 %v185
  %236 = vmatmul.bf16.gmra.mxu0 %v103
  %v237 = vpop.f32.mrf.mxu0
  %v238 = vadd.f32 %v66, %v237
  %v239 = vpop.f32.mrf.mxu0
  %v240 = vadd.f32 %v71, %v239
  %241 = vmatmul.bf16.gmra.mxu0 %v106
  %v242 = vpop.f32.mrf.mxu0
  %v243 = vadd.f32 %v76, %v242
  %v244 = vpop.f32.mrf.mxu0
  %v245 = vadd.f32 %v81, %v244
  %246 = vdwg.mxu0
  %247 = vmatpush.bf16.msra.mxu0 %v200
  %248 = vmatpush.bf16.msra.mxu0 %v199
  %249 = vmatpush.bf16.msra.mxu0 %v198
  %250 = vmatpush.bf16.msra.mxu0 %v197
  %251 = vmatpush.bf16.msra.mxu0 %v196
  %252 = vmatpush.bf16.msra.mxu0 %v195
  %253 = vmatpush.bf16.msra.mxu0 %v194
  %254 = vmatpush.bf16.msra.mxu0 %v193
  %255 = vmatmul.bf16.gmra.mxu0 %v104
  %v256 = vpop.f32.mrf.mxu0
  %v257 = vadd.f32 %v238, %v256
  %v258 = vpop.f32.mrf.mxu0
  %v259 = vadd.f32 %v240, %v258
  %260 = vmatmul.bf16.gmra.mxu0 %v107
  %v261 = vpop.f32.mrf.mxu0
  %v262 = vadd.f32 %v243, %v261
  %v263 = vpop.f32.mrf.mxu0
  %v264 = vadd.f32 %v245, %v263
  %265 = vdwg.mxu0
  %266 = vmatpush.bf16.msra.mxu0 0
  %267 = vmatpush.bf16.msra.mxu0 0
  %268 = vmatpush.bf16.msra.mxu0 0
  %269 = vmatpush.bf16.msra.mxu0 0
  %270 = vmatpush.bf16.msra.mxu0 0
  %271 = vmatpush.bf16.msra.mxu0 0
  %272 = vmatpush.bf16.msra.mxu0 %v202
  %273 = vmatpush.bf16.msra.mxu0 %v201
  %274 = vmatmul.bf16.gmra.mxu0 %v223
  %v275 = vpop.f32.mrf.mxu0
  %v276 = vadd.f32 %v257, %v275
  %v277 = vpop.f32.mrf.mxu0
  %v278 = vadd.f32 %v259, %v277
  %279 = vmatmul.bf16.gmra.mxu0 %v226
  %v280 = vpop.f32.mrf.mxu0
  %v281 = vadd.f32 %v262, %v280
  %v282 = vpop.f32.mrf.mxu0
  %v283 = vadd.f32 %v264, %v282
  %284 = vdwg.mxu0
  %v285 = vand.u32 2147483647, %v276
  %v286 = vand.u32 2147483647, %v278
  %v287 = vand.u32 2147483647, %v281
  %v288 = vand.u32 2147483647, %v283
  %v289 = vsub.f32 0.0, %v285
  %v290 = vsub.f32 0.0, %v286
  %v291 = vsub.f32 0.0, %v287
  %v292 = vsub.f32 0.0, %v288
  %v293 = vmul.f32 %v289, 1.442695
  %v294 = vpow.pop %v293
  %v295 = vmul.f32 %v290, 1.442695
  %v296 = vpow.pop %v295
  %v297 = vmul.f32 %v291, 1.442695
  %v298 = vpow.pop %v297
  %v299 = vmul.f32 %v292, 1.442695
  %v300 = vpow.pop %v299
  %vm301 = vcmp.ge.f32.partialorder %v276, 0.0
  %vm302 = vcmp.ge.f32.partialorder %v278, 0.0
  %vm303 = vcmp.ge.f32.partialorder %v281, 0.0
  %vm304 = vcmp.ge.f32.partialorder %v283, 0.0
  %v305 = vsel %vm301, 1.0, %v294
  %v306 = vsel %vm302, 1.0, %v296
  %v307 = vsel %vm303, 1.0, %v298
  %v308 = vsel %vm304, 1.0, %v300
  %v309 = vadd.f32 %v294, 1.0
  %v310 = vadd.f32 %v296, 1.0
  %v311 = vadd.f32 %v298, 1.0
  %v312 = vadd.f32 %v300, 1.0
  %v313 = vrcp.pop %v309
  %v314 = vrcp.pop %v310
  %v315 = vrcp.pop %v311
  %v316 = vrcp.pop %v312
  %v317 = vmul.f32 %v305, %v313
  %v318 = vmul.f32 %v306, %v314
  %v319 = vmul.f32 %v307, %v315
  %v320 = vmul.f32 %v308, %v316
  %v321 = vmul.f32 %v276, %v317
  %v322 = vmul.f32 %v278, %v318
  %v323 = vmul.f32 %v281, %v319
  %v324 = vmul.f32 %v283, %v320
  %v325 = vpack.c.bf16 %v321, %v321
  %v326 = vpack.c.bf16 %v322, %v322
  %v327 = vpack.c.bf16 %v323, %v323
  %v328 = vpack.c.bf16 %v324, %v324
  %329 = vst [vmem:[%s3] sm:$0xf] %v325
  %330 = vst [vmem:[%s3 + $0x4] sm:$0xf] %v326
  %331 = vst [vmem:[%s3 + $0x8] sm:$0xf] %v327
  %332 = vst [vmem:[%s3 + $0xc] sm:$0xf] %v328
  // Predicated region
  $region14: #{_lambda_.46} parent=0 // pred_check
    _
  $region15: #{_lambda_.46} parent=0 // pred_check_branch
    %334 = sbr.rel (0) target = $region17
  $region16: #{_lambda_.46} parent=0 // pred_region
    _
  $region17: #{_lambda_.46} parent=0 // pred_fallthru
    _
  // Predicated region
  $region18: #{_lambda_.46} parent=0 // pred_check
    _
  $region19: #{_lambda_.46} parent=0 // pred_check_branch
    %336 = sbr.rel (0) target = $region21
  $region20: #{_lambda_.46} parent=0 // pred_region
    _
  $region21: #{_lambda_.46} parent=0 // pred_fallthru
    _

// kernel: _lambda_.55
$region0: #{_lambda_.55}
  #allocation0 [shape = 'u32[]', space=smem, size = 0x4, offset = 0x4, fixed_abs, tag = 'smem constant byte address 0x4 - core index']
  #allocation1 [shape = 'u32[72,128]{1,0:T(1,128)}', space=vmem, size = 0x9000, scoped, tag = 'internal scratch']
  %s0 = inlined_call_operand.vmem [shape: bf16[288,128], index: 0, kind: input, shape index: {}]
  %s1 = inlined_call_operand.vmem [shape: bf16[64,288], index: 1, kind: input, shape index: {}]
  %s2 = inlined_call_operand.vmem [shape: f32[64,1], index: 2, kind: input, shape index: {}]
  %s3 = inlined_call_operand.vmem [shape: bf16[5,64], index: 3, kind: input, shape index: {}]
  %s4 = inlined_call_operand.vmem [shape: f32[5,1], index: 4, kind: input, shape index: {}]
  %s5 = inlined_call_operand.vmem [shape: f32[5,128], index: 5, kind: output, shape index: {}]
  %s6 = sld [smem:[#allocation0]]
  $region30: #{_lambda_.55} parent=0
    _
  %s8 = ssub.s32 1, %s6
  %s9 = scalar_select 0, %s8, %s6
  // Predicated region
  $region2: #{_lambda_.55} parent=0 // pred_check
    _
  $region3: #{_lambda_.55} parent=0 // pred_check_branch
    %11 = sbr.rel (0) target = $region5
  $region4: #{_lambda_.55} parent=0 // pred_region
    _
  $region5: #{_lambda_.55} parent=0 // pred_fallthru
    _
  // Predicated region
  $region6: #{_lambda_.55} parent=0 // pred_check
    _
  $region7: #{_lambda_.55} parent=0 // pred_check_branch
    %13 = sbr.rel (0) target = $region9
  $region8: #{_lambda_.55} parent=0 // pred_region
    _
  $region9: #{_lambda_.55} parent=0 // pred_fallthru
    _
  // Predicated region
  $region10: #{_lambda_.55} parent=0 // pred_check
    _
  $region11: #{_lambda_.55} parent=0 // pred_check_branch
    %15 = sbr.rel (0) target = $region13
  $region12: #{_lambda_.55} parent=0 // pred_region
    _
  $region13: #{_lambda_.55} parent=0 // pred_fallthru
    _
  // Predicated region
  $region14: #{_lambda_.55} parent=0 // pred_check
    _
  $region15: #{_lambda_.55} parent=0 // pred_check_branch
    %17 = sbr.rel (0) target = $region17
  $region16: #{_lambda_.55} parent=0 // pred_region
    _
  $region17: #{_lambda_.55} parent=0 // pred_fallthru
    _
  // Predicated region
  $region18: #{_lambda_.55} parent=0 // pred_check
    _
  $region19: #{_lambda_.55} parent=0 // pred_check_branch
    %19 = sbr.rel (0) target = $region21
  $region20: #{_lambda_.55} parent=0 // pred_region
    _
  $region21: #{_lambda_.55} parent=0 // pred_fallthru
    _
  %v21 = vld [vmem:[%s1] sm:$0xff]
  %v22 = vld [vmem:[%s1 + $0x8] sm:$0xf]
  %v23 = vld [vmem:[%s1 + $0xc] sm:$0xff]
  %v24 = vld [vmem:[%s1 + $0x14] sm:$0xf]
  %v25 = vld [vmem:[%s1 + $0x18] sm:$0xff]
  %v26 = vld [vmem:[%s1 + $0x20] sm:$0xf]
  %v27 = vld [vmem:[%s1 + $0x24] sm:$0xff]
  %v28 = vld [vmem:[%s1 + $0x2c] sm:$0xf]
  %v29 = vld [vmem:[%s1 + $0x30] sm:$0xff]
  %v30 = vld [vmem:[%s1 + $0x38] sm:$0xf]
  %v31 = vld [vmem:[%s1 + $0x3c] sm:$0xff]
  %v32 = vld [vmem:[%s1 + $0x44] sm:$0xf]
  %v33 = vld [vmem:[%s1 + $0x48] sm:$0xff]
  %v34 = vld [vmem:[%s1 + $0x50] sm:$0xf]
  %v35 = vld [vmem:[%s1 + $0x54] sm:$0xff]
  %v36 = vld [vmem:[%s1 + $0x5c] sm:$0xf]
  %v37 = vld [vmem:[%s0] sm:$0xf]
  %v38 = vld [vmem:[%s0 + $0x4] sm:$0xf]
  %v39 = vld [vmem:[%s0 + $0x8] sm:$0xf]
  %v40 = vld [vmem:[%s0 + $0xc] sm:$0xf]
  %v41 = vld [vmem:[%s0 + $0x10] sm:$0xf]
  %v42 = vld [vmem:[%s0 + $0x14] sm:$0xf]
  %v43 = vld [vmem:[%s0 + $0x18] sm:$0xf]
  %v44 = vld [vmem:[%s0 + $0x1c] sm:$0xf]
  %v45 = vld [vmem:[%s0 + $0x20] sm:$0xf]
  %v46 = vld [vmem:[%s0 + $0x24] sm:$0xf]
  %v47 = vld [vmem:[%s0 + $0x28] sm:$0xf]
  %v48 = vld [vmem:[%s0 + $0x2c] sm:$0xf]
  %v49 = vld [vmem:[%s0 + $0x30] sm:$0xf]
  %v50 = vld [vmem:[%s0 + $0x34] sm:$0xf]
  %v51 = vld [vmem:[%s0 + $0x38] sm:$0xf]
  %v52 = vld [vmem:[%s0 + $0x3c] sm:$0xf]
  %v53 = vld [vmem:[%s0 + $0x40] sm:$0xf]
  %v54 = vld [vmem:[%s0 + $0x44] sm:$0xf]
  %v55 = vld [vmem:[%s0 + $0x48] sm:$0xf]
  %v56 = vld [vmem:[%s0 + $0x4c] sm:$0xf]
  %v57 = vld [vmem:[%s0 + $0x50] sm:$0xf]
  %v58 = vld [vmem:[%s0 + $0x54] sm:$0xf]
  %v59 = vld [vmem:[%s0 + $0x58] sm:$0xf]
  %v60 = vld [vmem:[%s0 + $0x5c] sm:$0xf]
  %v61 = vld [vmem:[%s0 + $0x60] sm:$0xf]
  %v62 = vld [vmem:[%s0 + $0x64] sm:$0xf]
  %v63 = vld [vmem:[%s0 + $0x68] sm:$0xf]
  %v64 = vld [vmem:[%s0 + $0x6c] sm:$0xf]
  %v65 = vld [vmem:[%s0 + $0x70] sm:$0xf]
  %v66 = vld [vmem:[%s0 + $0x74] sm:$0xf]
  %v67 = vld [vmem:[%s0 + $0x78] sm:$0xf]
  %v68 = vld [vmem:[%s0 + $0x7c] sm:$0xf]
  %v69 = vld [vmem:[%s0 + $0x80] sm:$0xf]
  %v70 = vld [vmem:[%s0 + $0x84] sm:$0xf]
  %v71 = vld [vmem:[%s0 + $0x88] sm:$0xf]
  %v72 = vld [vmem:[%s0 + $0x8c] sm:$0xf]
  %v73 = vld [vmem:[%s2] sm:$0xff]
  %v74 = vld [vmem:[%s2 + $0x8] sm:$0xff]
  %v75 = vld [vmem:[%s2 + $0x10] sm:$0xff]
  %v76 = vld [vmem:[%s2 + $0x18] sm:$0xff]
  %v77 = vld [vmem:[%s2 + $0x20] sm:$0xff]
  %v78 = vld [vmem:[%s2 + $0x28] sm:$0xff]
  %v79 = vld [vmem:[%s2 + $0x30] sm:$0xff]
  %v80 = vld [vmem:[%s2 + $0x38] sm:$0xff]
  %82 = vset.pattern.permute.xlu0 0
  %83 = vperm.xlu0 %82, %v73
  %v84 = vpop.permute.xlu0 %83
  %87 = vset.pattern.permute.xlu0 0
  %88 = vperm.xlu0 %87, %v74
  %v89 = vpop.permute.xlu0 %88
  %92 = vset.pattern.permute.xlu0 0
  %93 = vperm.xlu0 %92, %v75
  %v94 = vpop.permute.xlu0 %93
  %97 = vset.pattern.permute.xlu0 0
  %98 = vperm.xlu0 %97, %v76
  %v99 = vpop.permute.xlu0 %98
  %102 = vset.pattern.permute.xlu0 0
  %103 = vperm.xlu0 %102, %v77
  %v104 = vpop.permute.xlu0 %103
  %107 = vset.pattern.permute.xlu0 0
  %108 = vperm.xlu0 %107, %v78
  %v109 = vpop.permute.xlu0 %108
  %112 = vset.pattern.permute.xlu0 0
  %113 = vperm.xlu0 %112, %v79
  %v114 = vpop.permute.xlu0 %113
  %117 = vset.pattern.permute.xlu0 0
  %118 = vperm.xlu0 %117, %v80
  %v119 = vpop.permute.xlu0 %118
  %v137 = vunpack.c.l.b16 %v21
  %v138 = vunpack.c.h.b16 %v21
  %v139 = vunpack.c.l.b16 %v22
  %v140 = vunpack.c.l.b16 %v23
  %v141 = vunpack.c.h.b16 %v23
  %v142 = vunpack.c.l.b16 %v24
  %v143 = vunpack.c.l.b16 %v25
  %v144 = vunpack.c.h.b16 %v25
  %v145 = vunpack.c.l.b16 %v26
  %v146 = vunpack.c.l.b16 %v27
  %v147 = vunpack.c.h.b16 %v27
  %v148 = vunpack.c.l.b16 %v28
  %v149 = vunpack.c.l.b16 %v29
  %v150 = vunpack.c.h.b16 %v29
  %v151 = vunpack.c.l.b16 %v30
  %v152 = vunpack.c.l.b16 %v31
  %v153 = vunpack.c.h.b16 %v31
  %v154 = vunpack.c.l.b16 %v32
  %v155 = vunpack.c.l.b16 %v33
  %v156 = vunpack.c.h.b16 %v33
  %v157 = vunpack.c.l.b16 %v34
  %v158 = vunpack.c.l.b16 %v35
  %v159 = vunpack.c.h.b16 %v35
  %v160 = vunpack.c.l.b16 %v36
  %v161 = vpack.c.b16 %v140, %v137
  %v162 = vpack.c.b16 %v141, %v138
  %v163 = vpack.c.b16 %v142, %v139
  %v164 = vpack.c.b16 %v146, %v143
  %v165 = vpack.c.b16 %v147, %v144
  %v166 = vpack.c.b16 %v148, %v145
  %v167 = vpack.c.b16 %v152, %v149
  %v168 = vpack.c.b16 %v153, %v150
  %v169 = vpack.c.b16 %v154, %v151
  %v170 = vpack.c.b16 %v158, %v155
  %v171 = vpack.c.b16 %v159, %v156
  %v172 = vpack.c.b16 %v160, %v157
  %v217 = vunpack.c.l.b16 %v37
  %v218 = vunpack.c.l.b16 %v38
  %v219 = vunpack.c.l.b16 %v39
  %v220 = vunpack.c.l.b16 %v40
  %v221 = vunpack.c.l.b16 %v41
  %v222 = vunpack.c.l.b16 %v42
  %v223 = vunpack.c.l.b16 %v43
  %v224 = vunpack.c.l.b16 %v44
  %v225 = vunpack.c.l.b16 %v45
  %v226 = vunpack.c.l.b16 %v46
  %v227 = vunpack.c.l.b16 %v47
  %v228 = vunpack.c.l.b16 %v48
  %v229 = vunpack.c.l.b16 %v49
  %v230 = vunpack.c.l.b16 %v50
  %v231 = vunpack.c.l.b16 %v51
  %v232 = vunpack.c.l.b16 %v52
  %v233 = vunpack.c.l.b16 %v53
  %v234 = vunpack.c.l.b16 %v54
  %v235 = vunpack.c.l.b16 %v55
  %v236 = vunpack.c.l.b16 %v56
  %v237 = vunpack.c.l.b16 %v57
  %v238 = vunpack.c.l.b16 %v58
  %v239 = vunpack.c.l.b16 %v59
  %v240 = vunpack.c.l.b16 %v60
  %v241 = vunpack.c.l.b16 %v61
  %v242 = vunpack.c.l.b16 %v62
  %v243 = vunpack.c.l.b16 %v63
  %v244 = vunpack.c.l.b16 %v64
  %v245 = vunpack.c.l.b16 %v65
  %v246 = vunpack.c.l.b16 %v66
  %v247 = vunpack.c.l.b16 %v67
  %v248 = vunpack.c.l.b16 %v68
  %v249 = vunpack.c.l.b16 %v69
  %v250 = vunpack.c.l.b16 %v70
  %v251 = vunpack.c.l.b16 %v71
  %v252 = vunpack.c.l.b16 %v72
  %v253 = vpack.c.b16 %v218, %v217
  %v254 = vpack.c.b16 %v220, %v219
  %v255 = vpack.c.b16 %v222, %v221
  %v256 = vpack.c.b16 %v224, %v223
  %v257 = vpack.c.b16 %v226, %v225
  %v258 = vpack.c.b16 %v228, %v227
  %v259 = vpack.c.b16 %v230, %v229
  %v260 = vpack.c.b16 %v232, %v231
  %v261 = vpack.c.b16 %v234, %v233
  %v262 = vpack.c.b16 %v236, %v235
  %v263 = vpack.c.b16 %v238, %v237
  %v264 = vpack.c.b16 %v240, %v239
  %v265 = vpack.c.b16 %v242, %v241
  %v266 = vpack.c.b16 %v244, %v243
  %v267 = vpack.c.b16 %v246, %v245
  %v268 = vpack.c.b16 %v248, %v247
  %v269 = vpack.c.b16 %v250, %v249
  %v270 = vpack.c.b16 %v252, %v251
  %vm289 = vcmask 261120
  %v291 = vsel %vm289, %v163, 0
  %v294 = vsel %vm289, %v166, 0
  %v297 = vsel %vm289, %v169, 0
  %v300 = vsel %vm289, %v172, 0
  %302 = vmatpush.bf16.msra.mxu0 %v260
  %303 = vmatpush.bf16.msra.mxu0 %v259
  %304 = vmatpush.bf16.msra.mxu0 %v258
  %305 = vmatpush.bf16.msra.mxu0 %v257
  %306 = vmatpush.bf16.msra.mxu0 %v256
  %307 = vmatpush.bf16.msra.mxu0 %v255
  %308 = vmatpush.bf16.msra.mxu0 %v254
  %309 = vmatpush.bf16.msra.mxu0 %v253
  %310 = vmatmul.bf16.gmra.mxu0 %v161
  %v311 = vpop.f32.mrf.mxu0
  %v312 = vadd.f32 %v84, %v311
  %v313 = vpop.f32.mrf.mxu0
  %v314 = vadd.f32 %v89, %v313
  %315 = vmatmul.bf16.gmra.mxu0 %v164
  %v316 = vpop.f32.mrf.mxu0
  %v317 = vadd.f32 %v94, %v316
  %v318 = vpop.f32.mrf.mxu0
  %v319 = vadd.f32 %v99, %v318
  %320 = vmatmul.bf16.gmra.mxu0 %v167
  %v321 = vpop.f32.mrf.mxu0
  %v322 = vadd.f32 %v104, %v321
  %v323 = vpop.f32.mrf.mxu0
  %v324 = vadd.f32 %v109, %v323
  %325 = vmatmul.bf16.gmra.mxu0 %v170
  %v326 = vpop.f32.mrf.mxu0
  %v327 = vadd.f32 %v114, %v326
  %v328 = vpop.f32.mrf.mxu0
  %v329 = vadd.f32 %v119, %v328
  %330 = vdwg.mxu0
  %331 = vmatpush.bf16.msra.mxu0 %v268
  %332 = vmatpush.bf16.msra.mxu0 %v267
  %333 = vmatpush.bf16.msra.mxu0 %v266
  %334 = vmatpush.bf16.msra.mxu0 %v265
  %335 = vmatpush.bf16.msra.mxu0 %v264
  %336 = vmatpush.bf16.msra.mxu0 %v263
  %337 = vmatpush.bf16.msra.mxu0 %v262
  %338 = vmatpush.bf16.msra.mxu0 %v261
  %339 = vmatmul.bf16.gmra.mxu0 %v162
  %v340 = vpop.f32.mrf.mxu0
  %v341 = vadd.f32 %v312, %v340
  %v342 = vpop.f32.mrf.mxu0
  %v343 = vadd.f32 %v314, %v342
  %344 = vmatmul.bf16.gmra.mxu0 %v165
  %v345 = vpop.f32.mrf.mxu0
  %v346 = vadd.f32 %v317, %v345
  %v347 = vpop.f32.mrf.mxu0
  %v348 = vadd.f32 %v319, %v347
  %349 = vmatmul.bf16.gmra.mxu0 %v168
  %v350 = vpop.f32.mrf.mxu0
  %v351 = vadd.f32 %v322, %v350
  %v352 = vpop.f32.mrf.mxu0
  %v353 = vadd.f32 %v324, %v352
  %354 = vmatmul.bf16.gmra.mxu0 %v171
  %v355 = vpop.f32.mrf.mxu0
  %v356 = vadd.f32 %v327, %v355
  %v357 = vpop.f32.mrf.mxu0
  %v358 = vadd.f32 %v329, %v357
  %359 = vdwg.mxu0
  %360 = vmatpush.bf16.msra.mxu0 0
  %361 = vmatpush.bf16.msra.mxu0 0
  %362 = vmatpush.bf16.msra.mxu0 0
  %363 = vmatpush.bf16.msra.mxu0 0
  %364 = vmatpush.bf16.msra.mxu0 0
  %365 = vmatpush.bf16.msra.mxu0 0
  %366 = vmatpush.bf16.msra.mxu0 %v270
  %367 = vmatpush.bf16.msra.mxu0 %v269
  %368 = vmatmul.bf16.gmra.mxu0 %v291
  %v369 = vpop.f32.mrf.mxu0
  %v370 = vadd.f32 %v341, %v369
  %v371 = vpop.f32.mrf.mxu0
  %v372 = vadd.f32 %v343, %v371
  %373 = vmatmul.bf16.gmra.mxu0 %v294
  %v374 = vpop.f32.mrf.mxu0
  %v375 = vadd.f32 %v346, %v374
  %v376 = vpop.f32.mrf.mxu0
  %v377 = vadd.f32 %v348, %v376
  %378 = vmatmul.bf16.gmra.mxu0 %v297
  %v379 = vpop.f32.mrf.mxu0
  %v380 = vadd.f32 %v351, %v379
  %v381 = vpop.f32.mrf.mxu0
  %v382 = vadd.f32 %v353, %v381
  %383 = vmatmul.bf16.gmra.mxu0 %v300
  %v384 = vpop.f32.mrf.mxu0
  %v385 = vadd.f32 %v356, %v384
  %v386 = vpop.f32.mrf.mxu0
  %v387 = vadd.f32 %v358, %v386
  %388 = vdwg.mxu0
  %v389 = vand.u32 2147483647, %v370
  %v390 = vand.u32 2147483647, %v372
  %v391 = vand.u32 2147483647, %v375
  %v392 = vand.u32 2147483647, %v377
  %v393 = vand.u32 2147483647, %v380
  %v394 = vand.u32 2147483647, %v382
  %v395 = vand.u32 2147483647, %v385
  %v396 = vand.u32 2147483647, %v387
  %v397 = vsub.f32 0.0, %v389
  %v398 = vsub.f32 0.0, %v390
  %v399 = vsub.f32 0.0, %v391
  %v400 = vsub.f32 0.0, %v392
  %v401 = vsub.f32 0.0, %v393
  %v402 = vsub.f32 0.0, %v394
  %v403 = vsub.f32 0.0, %v395
  %v404 = vsub.f32 0.0, %v396
  %v405 = vmul.f32 %v397, 1.442695
  %v406 = vpow.pop %v405
  %v407 = vmul.f32 %v398, 1.442695
  %v408 = vpow.pop %v407
  %v409 = vmul.f32 %v399, 1.442695
  %v410 = vpow.pop %v409
  %v411 = vmul.f32 %v400, 1.442695
  %v412 = vpow.pop %v411
  %v413 = vmul.f32 %v401, 1.442695
  %v414 = vpow.pop %v413
  %v415 = vmul.f32 %v402, 1.442695
  %v416 = vpow.pop %v415
  %v417 = vmul.f32 %v403, 1.442695
  %v418 = vpow.pop %v417
  %v419 = vmul.f32 %v404, 1.442695
  %v420 = vpow.pop %v419
  %vm421 = vcmp.ge.f32.partialorder %v370, 0.0
  %vm422 = vcmp.ge.f32.partialorder %v372, 0.0
  %vm423 = vcmp.ge.f32.partialorder %v375, 0.0
  %vm424 = vcmp.ge.f32.partialorder %v377, 0.0
  %vm425 = vcmp.ge.f32.partialorder %v380, 0.0
  %vm426 = vcmp.ge.f32.partialorder %v382, 0.0
  %vm427 = vcmp.ge.f32.partialorder %v385, 0.0
  %vm428 = vcmp.ge.f32.partialorder %v387, 0.0
  %v429 = vsel %vm421, 1.0, %v406
  %v430 = vsel %vm422, 1.0, %v408
  %v431 = vsel %vm423, 1.0, %v410
  %v432 = vsel %vm424, 1.0, %v412
  %v433 = vsel %vm425, 1.0, %v414
  %v434 = vsel %vm426, 1.0, %v416
  %v435 = vsel %vm427, 1.0, %v418
  %v436 = vsel %vm428, 1.0, %v420
  %v437 = vadd.f32 %v406, 1.0
  %v438 = vadd.f32 %v408, 1.0
  %v439 = vadd.f32 %v410, 1.0
  %v440 = vadd.f32 %v412, 1.0
  %v441 = vadd.f32 %v414, 1.0
  %v442 = vadd.f32 %v416, 1.0
  %v443 = vadd.f32 %v418, 1.0
  %v444 = vadd.f32 %v420, 1.0
  %v445 = vrcp.pop %v437
  %v446 = vrcp.pop %v438
  %v447 = vrcp.pop %v439
  %v448 = vrcp.pop %v440
  %v449 = vrcp.pop %v441
  %v450 = vrcp.pop %v442
  %v451 = vrcp.pop %v443
  %v452 = vrcp.pop %v444
  %v453 = vmul.f32 %v429, %v445
  %v454 = vmul.f32 %v430, %v446
  %v455 = vmul.f32 %v431, %v447
  %v456 = vmul.f32 %v432, %v448
  %v457 = vmul.f32 %v433, %v449
  %v458 = vmul.f32 %v434, %v450
  %v459 = vmul.f32 %v435, %v451
  %v460 = vmul.f32 %v436, %v452
  %v461 = vmul.f32 %v370, %v453
  %v462 = vmul.f32 %v372, %v454
  %v463 = vmul.f32 %v375, %v455
  %v464 = vmul.f32 %v377, %v456
  %v465 = vmul.f32 %v380, %v457
  %v466 = vmul.f32 %v382, %v458
  %v467 = vmul.f32 %v385, %v459
  %v468 = vmul.f32 %v387, %v460
  %v469 = vld [vmem:[%s3] sm:$0x7]
  %v470 = vpack.c.bf16 %v462, %v461
  %v471 = vpack.c.bf16 %v464, %v463
  %v472 = vpack.c.bf16 %v466, %v465
  %v473 = vpack.c.bf16 %v468, %v467
  %v474 = vld [vmem:[%s4] sm:$0x1f]
  %476 = vset.pattern.permute.xlu0 0
  %477 = vperm.xlu0 %476, %v474
  %v478 = vpop.permute.xlu0 %477
  %vm480 = vcmask 523264
  %v482 = vsel %vm480, %v469, 0
  %484 = vmatpush.bf16.msra.mxu0 0
  %485 = vmatpush.bf16.msra.mxu0 0
  %486 = vmatpush.bf16.msra.mxu0 0
  %487 = vmatpush.bf16.msra.mxu0 0
  %488 = vmatpush.bf16.msra.mxu0 %v473
  %489 = vmatpush.bf16.msra.mxu0 %v472
  %490 = vmatpush.bf16.msra.mxu0 %v471
  %491 = vmatpush.bf16.msra.mxu0 %v470
  %492 = vmatmul.bf16.gmra.mxu0 %v482
  %v493 = vpop.f32.mrf.mxu0
  %v494 = vadd.f32 %v478, %v493
  %v495 = vpop.f32.mrf.mxu0
  %496 = vdwg.mxu0
  %497 = vst [vmem:[%s5] sm:$0x1f] %v494
  // Predicated region
  $region22: #{_lambda_.55} parent=0 // pred_check
    _
  $region23: #{_lambda_.55} parent=0 // pred_check_branch
    %499 = sbr.rel (0) target = $region25
  $region24: #{_lambda_.55} parent=0 // pred_region
    _
  $region25: #{_lambda_.55} parent=0 // pred_fallthru
    _
  // Predicated region
  $region26: #{_lambda_.55} parent=0 // pred_check
    _
  $region27: #{_lambda_.55} parent=0 // pred_check_branch
    %501 = sbr.rel (0) target = $region29
  $region28: #{_lambda_.55} parent=0 // pred_region
    _
  $region29: #{_lambda_.55} parent=0 // pred_fallthru
    _

</llo_original>
